<compile_context>
chip_gen: v5e
topology: v5e:2x2
jax: 0.10.0
libtpu: 0.0.40
codegen_flags: <defaults>
</compile_context>

<pallas_src>
import functools

import jax
import jax.numpy as jnp
from jax import lax
from jax.experimental import pallas as pl
from jax.experimental.pallas import tpu as pltpu


LANE = 128  # TPU vreg lane width; channels are padded to a multiple of this.


def _rup(n, m=LANE):
    return ((n + m - 1) // m) * m


def _nbytes(*arrays):
    return sum(a.size * a.dtype.itemsize for a in arrays)


# ----------------------------------------------------------------------------
# Fused per-scale kernel: all bottleneck blocks of one resolution in ONE
# pallas_call.  Per block: relu(1x1) -> relu(3x3, pad=1) -> 1x1 -> +res -> relu.
# The bottleneck activation lives in an f32 VMEM scratch with an 8-aligned
# flat halo; the 3x3 conv is 3 lane-concatenated (K=3*Cbp) tap matmuls with an
# f32 accumulator.  The running block activation is carried across the layer
# grid axis in a bf16 VMEM scratch.
# ----------------------------------------------------------------------------
def _stack_kernel(x_ref, w1_ref, b1_ref, w2_ref, b2_ref, w3_ref, b3_ref,
                  o_ref, act_ref, yp_ref, *, H, W, pad):
    M = H * W
    Cbp = w1_ref.shape[1]
    l = pl.program_id(1)

    @pl.when(l == 0)
    def _init():
        # Running activation <- this image's input; zero ONLY the two halo
        # regions (the body rows [pad, pad+M) are fully overwritten each step,
        # so the halos stay zero for the whole grid).
        act_ref[...] = x_ref[0]
        zh = jnp.zeros((pad, Cbp), yp_ref.dtype)
        yp_ref[pl.ds(0, pad), :] = zh
        yp_ref[pl.ds(pad + M, pad), :] = zh

    x = act_ref[...]                                        # (M, Cp) bf16

    # ---- 1x1 reduce + bias + relu (MXU, f32 accumulate) ----
    y1 = jnp.dot(x, w1_ref[...], preferred_element_type=jnp.float32)
    y1 = jnp.maximum(y1 + b1_ref[0], 0.0)                   # (M, Cbp) f32

    # Stage in the haloed scratch; offset `pad` is 8-sublane aligned.
    yp_ref[pl.ds(pad, M), :] = y1

    # Column masks (rows are handled by the zero halo), precomputed once and
    # reused 3x each.
    col = lax.broadcasted_iota(jnp.int32, (M, Cbp), 0) % W
    lmask = col > 0            # dx = -1 valid
    rmask = col < (W - 1)      # dx = +1 valid

    def row_lhs(dy):
        # Lane-concat the three dx taps of kernel row dy -> (M, 3*Cbp) bf16.
        base = pad + dy * W
        center = y1 if dy == 0 else yp_ref[pl.ds(base, M), :]
        left = jnp.where(lmask, yp_ref[pl.ds(base - 1, M), :], 0.0)
        right = jnp.where(rmask, yp_ref[pl.ds(base + 1, M), :], 0.0)
        return jnp.concatenate([left, center, right], axis=1).astype(jnp.bfloat16)

    # ---- 3x3 same conv: 3 deep (K=3*Cbp) matmuls, f32 accumulator ----
    acc = jnp.dot(row_lhs(0), w2_ref[pl.ds(3 * Cbp, 3 * Cbp), :],
                  preferred_element_type=jnp.float32)       # center row seeds acc
    acc = acc + jnp.dot(row_lhs(-1), w2_ref[pl.ds(0, 3 * Cbp), :],
                        preferred_element_type=jnp.float32)
    acc = acc + jnp.dot(row_lhs(1), w2_ref[pl.ds(6 * Cbp, 3 * Cbp), :],
                        preferred_element_type=jnp.float32)
    y2 = jnp.maximum(acc + b2_ref[0], 0.0).astype(jnp.bfloat16)

    # ---- 1x1 expand + bias + residual + relu ----
    y3 = jnp.dot(y2, w3_ref[...], preferred_element_type=jnp.float32)
    out = jnp.maximum(y3 + b3_ref[0] + x.astype(jnp.float32), 0.0)
    out_bf = out.astype(jnp.bfloat16)

    act_ref[...] = out_bf                                   # carried to layer l+1

    @pl.when(l == pl.num_programs(1) - 1)
    def _finalize():
        o_ref[...] = out_bf.reshape(o_ref.shape)


def bottleneck_stack(x, hw, sp):
    """Run all bottleneck blocks of one scale. x: (N, H*W, Cp) bf16."""
    N, M, Cp = x.shape
    H, W = hw
    L = sp["b1"].shape[0]
    Cbp = sp["w1"].shape[1]
    pad = _rup(W + 1, 8)
    kernel = functools.partial(_stack_kernel, H=H, W=W, pad=pad)

    flops = 2 * N * L * M * (Cp * Cbp + 9 * Cbp * Cbp + Cbp * Cp)
    cost = pl.CostEstimate(
        flops=flops, transcendentals=0,
        bytes_accessed=_nbytes(x, sp["w1"], sp["b1"], sp["w2"], sp["b2"],
                               sp["w3"], sp["b3"]) + x.size * x.dtype.itemsize)

    return pl.pallas_call(
        kernel,
        out_shape=jax.ShapeDtypeStruct((N, M, Cp), x.dtype),
        grid=(N, L),
        in_specs=[
            pl.BlockSpec((1, M, Cp), lambda n, l: (n, 0, 0)),       # x (per image)
            pl.BlockSpec((Cp, Cbp), lambda n, l: (l, 0)),           # w1 (per layer)
            pl.BlockSpec((1, 1, Cbp), lambda n, l: (l, 0, 0)),      # b1
            pl.BlockSpec((9 * Cbp, Cbp), lambda n, l: (l, 0)),      # w2 (tap-major)
            pl.BlockSpec((1, 1, Cbp), lambda n, l: (l, 0, 0)),      # b2
            pl.BlockSpec((Cbp, Cp), lambda n, l: (l, 0)),           # w3
            pl.BlockSpec((1, 1, Cp), lambda n, l: (l, 0, 0)),       # b3
        ],
        out_specs=pl.BlockSpec((1, M, Cp), lambda n, l: (n, 0, 0)),
        scratch_shapes=[pltpu.VMEM((M, Cp), jnp.bfloat16),              # running act
                        pltpu.VMEM((M + 2 * pad, Cbp), jnp.float32)],   # haloed y1
        compiler_params=pltpu.CompilerParams(
            dimension_semantics=("parallel", "arbitrary"),
            vmem_limit_bytes=32 * 1024 * 1024),
        cost_estimate=cost,
    )(x, sp["w1"], sp["b1"], sp["w2"], sp["b2"], sp["w3"], sp["b3"])


# ----------------------------------------------------------------------------
# Stride-2 3x3 "scale" conv (raw nn.Conv2d: bias, no activation).
# The wrapper lane-concatenates the 9 stride-2 taps into ONE operand, so the
# kernel is a single (Mo, 9*Cinp) x (9*Cinp, Coutp) MXU matmul per image.
# ----------------------------------------------------------------------------
def _scale_conv_kernel(x_ref, w_ref, b_ref, o_ref):
    acc = jnp.dot(x_ref[0], w_ref[...], preferred_element_type=jnp.float32)
    out = acc + b_ref[...]
    o_ref[...] = out.astype(o_ref.dtype).reshape(o_ref.shape)


def scale_conv(x, hw, w, b):
    """x: (N, H*W, Cinp) bf16 -> (N, (H//2)*(W//2), Coutp) bf16."""
    H, W = hw
    N, _, Cinp = x.shape
    Ho, Wo = H // 2, W // 2
    Mo = Ho * Wo
    K, Coutp = w.shape                                      # K = 9 * Cinp

    # XLA glue (layout plumbing only): spatial pad + 9 stride-2 taps,
    # lane-concatenated into one (N, Mo, 9*Cinp) slab (same bytes as before,
    # one DMA stream, one deep matmul).
    xs = x.reshape(N, H, W, Cinp)
    xp = jnp.pad(xs, ((0, 0), (1, 1), (1, 1), (0, 0)))
    taps = [xp[:, dy:dy + 2 * Ho:2, dx:dx + 2 * Wo:2, :].reshape(N, Mo, Cinp)
            for dy in range(3) for dx in range(3)]
    xcat = jnp.concatenate(taps, axis=-1)                   # (N, Mo, 9*Cinp)

    cost = pl.CostEstimate(
        flops=2 * N * Mo * K * Coutp, transcendentals=0,
        bytes_accessed=_nbytes(xcat, w, b) + N * Mo * Coutp * 2)

    return pl.pallas_call(
        _scale_conv_kernel,
        out_shape=jax.ShapeDtypeStruct((N, Mo, Coutp), x.dtype),
        grid=(N,),
        in_specs=[pl.BlockSpec((1, Mo, K), lambda n: (n, 0, 0)),
                  pl.BlockSpec(w.shape, lambda n: (0, 0)),
                  pl.BlockSpec(b.shape, lambda n: (0, 0))],
        out_specs=pl.BlockSpec((1, Mo, Coutp), lambda n: (n, 0, 0)),
        compiler_params=pltpu.CompilerParams(
            dimension_semantics=("parallel",),
            vmem_limit_bytes=32 * 1024 * 1024),
        cost_estimate=cost,
    )(xcat, w, b)


# ----------------------------------------------------------------------------
# Network wrapper (NCHW in / NCHW out, like the PyTorch module).
# ----------------------------------------------------------------------------
def bottleneck_resnet(x_nchw, params, *, scales, out_channels):
    N, C, H, W = x_nchw.shape
    Cp = _rup(C)
    x = jnp.transpose(x_nchw, (0, 2, 3, 1))                  # NCHW -> NHWC
    x = jnp.pad(x, ((0, 0), (0, 0), (0, 0), (0, Cp - C)))    # lane-dense channels
    x = x.reshape(N, H * W, Cp).astype(jnp.bfloat16)         # flat spatial rows
    h, w = H, W
    for i in range(scales):
        x = bottleneck_stack(x, (h, w), params["res"][i])    # fused L blocks
        if i < scales - 1:
            sp = params["scale"][i]
            x = scale_conv(x, (h, w), sp["w"], sp["b"])
            h, w = h // 2, w // 2
    x = x.reshape(N, h, w, x.shape[-1])[..., :out_channels].astype(jnp.float32)
    return jnp.transpose(x, (0, 3, 1, 2))                    # NHWC -> NCHW


# ----------------------------------------------------------------------------
# Parameters: raw f32 (for the pure-JAX reference) and packed/padded bf16
# matmul-form weights, stacked per scale along a leading layer axis.
# 3x3 weights are tap-major (dy, dx).
# ----------------------------------------------------------------------------
def init_raw_params(key, initial_depth, layers_per_scale, bottleneck_ratio, scales):
    def normal(k, shape):
        return 0.1 * jax.random.normal(k, shape, jnp.float32)

    raw = {"res": [], "scale": []}
    for i in range(scales):
        depth = initial_depth * 2 ** i
        cb = max(depth // bottleneck_ratio, 1)
        blocks = []
        for _ in range(layers_per_scale):
            key, k1, k2, k3, k4, k5, k6 = jax.random.split(key, 7)
            blocks.append({"w1": normal(k1, (depth, cb)), "b1": normal(k2, (cb,)),
                           "w2": normal(k3, (9, cb, cb)), "b2": normal(k4, (cb,)),
                           "w3": normal(k5, (cb, depth)), "b3": normal(k6, (depth,))})
        raw["res"].append(blocks)
    for i in range(1, scales):
        cin, cout = initial_depth * 2 ** (i - 1), initial_depth * 2 ** i
        key, k1, k2 = jax.random.split(key, 3)
        raw["scale"].append({"w": normal(k1, (9, cin, cout)),
                             "b": normal(k2, (cout,))})
    return raw


def pack_params(raw):
    def pad2(a, r, c):
        return jnp.zeros((r, c), jnp.float32).at[:a.shape[0], :a.shape[1]].set(a)

    packed = {"res": [], "scale": []}
    for blocks in raw["res"]:
        depth, cb = blocks[0]["w1"].shape
        dp, cbp = _rup(depth), _rup(cb)
        w1s, b1s, w2s, b2s, w3s, b3s = [], [], [], [], [], []
        for rp in blocks:
            w1s.append(pad2(rp["w1"], dp, cbp))
            b1s.append(pad2(rp["b1"].reshape(1, -1), 1, cbp))
            w2 = jnp.zeros((9, cbp, cbp), jnp.float32).at[:, :cb, :cb].set(rp["w2"])
            w2s.append(w2.reshape(9 * cbp, cbp))
            b2s.append(pad2(rp["b2"].reshape(1, -1), 1, cbp))
            w3s.append(pad2(rp["w3"], cbp, dp))
            b3s.append(pad2(rp["b3"].reshape(1, -1), 1, dp))
        packed["res"].append({
            "w1": jnp.concatenate(w1s, axis=0).astype(jnp.bfloat16),   # (L*Cp, Cbp)
            "b1": jnp.stack(b1s, axis=0),                              # (L, 1, Cbp)
            "w2": jnp.concatenate(w2s, axis=0).astype(jnp.bfloat16),   # (L*9*Cbp, Cbp)
            "b2": jnp.stack(b2s, axis=0),                              # (L, 1, Cbp)
            "w3": jnp.concatenate(w3s, axis=0).astype(jnp.bfloat16),   # (L*Cbp, Cp)
            "b3": jnp.stack(b3s, axis=0),                              # (L, 1, Cp)
        })
    for sp in raw["scale"]:
        _, cin, cout = sp["w"].shape
        cinp, coutp = _rup(cin), _rup(cout)
        w = jnp.zeros((9, cinp, coutp), jnp.float32).at[:, :cin, :cout].set(sp["w"])
        packed["scale"].append({
            "w": w.reshape(9 * cinp, coutp).astype(jnp.bfloat16),
            "b": pad2(sp["b"].reshape(1, -1), 1, coutp),
        })
    return packed


# ----------------------------------------------------------------------------
# Pure-JAX f32 reference (same math, unpadded) for a bf16-tolerance check.
# ----------------------------------------------------------------------------
def _conv3x3_ref(x, w, b, stride):
    N, H, W, _ = x.shape
    Ho = (H + 2 - 3) // stride + 1
    Wo = (W + 2 - 3) // stride + 1
    xp = jnp.pad(x, ((0, 0), (1, 1), (1, 1), (0, 0)))
    out = jnp.zeros((N, Ho, Wo, w.shape[2]), jnp.float32)
    for t in range(9):
        dy, dx = divmod(t, 3)
        tap = xp[:, dy:dy + stride * (Ho - 1) + 1:stride,
                 dx:dx + stride * (Wo - 1) + 1:stride, :]
        out = out + jnp.einsum("nhwc,cd->nhwd", tap, w[t])
    return out + b


def _block_ref(x, rp):
    y = jax.nn.relu(jnp.einsum("nhwc,cd->nhwd", x, rp["w1"]) + rp["b1"])
    y = jax.nn.relu(_conv3x3_ref(y, rp["w2"], rp["b2"], 1))
    y = jnp.einsum("nhwc,cd->nhwd", y, rp["w3"]) + rp["b3"]
    return jax.nn.relu(x + y)


def reference_forward(x_nchw, raw, layers_per_scale, scales):
    x = jnp.transpose(x_nchw, (0, 2, 3, 1))
    for i in range(scales):
        for j in range(layers_per_scale):
            x = _block_ref(x, raw["res"][i][j])
        if i < scales - 1:
            x = _conv3x3_ref(x, raw["scale"][i]["w"], raw["scale"][i]["b"], 2)
    return jnp.transpose(x, (0, 3, 1, 2))


# ----------------------------------------------------------------------------
if __name__ == "__main__":
    INITIAL_DEPTH = 4
    LAYERS_PER_SCALE = 2
    BOTTLENECK_RATIO = 2
    SCALES = 3

    key = jax.random.PRNGKey(0)
    pkey, xkey = jax.random.split(key)
    raw = init_raw_params(pkey, INITIAL_DEPTH, LAYERS_PER_SCALE,
                          BOTTLENECK_RATIO, SCALES)
    params = pack_params(raw)

    # NCHW input, matching the PyTorch module's convention.
    x = jax.random.normal(xkey, (2, INITIAL_DEPTH, 16, 16), jnp.float32)

    out_channels = INITIAL_DEPTH * 2 ** (SCALES - 1)
    fwd = jax.jit(functools.partial(
        bottleneck_resnet, scales=SCALES, out_channels=out_channels))
    out = jax.block_until_ready(fwd(x, params))

    expected_shape = (2, out_channels, 16 // 2 ** (SCALES - 1),
                      16 // 2 ** (SCALES - 1))
    assert out.shape == expected_shape, (out.shape, expected_shape)
    assert bool(jnp.all(jnp.isfinite(out)))

    # bf16-tolerance check against a pure-JAX f32 reference of the same net.
    ref = reference_forward(x, raw, LAYERS_PER_SCALE, SCALES)
    rel = float(jnp.linalg.norm(out - ref) / (jnp.linalg.norm(ref) + 1e-6))
    assert rel < 5e-2, rel

    print("KERNEL_OK")
</pallas_src>

<mosaic_0001>
module attributes {stable_mosaic.version = 11 : i64} {
  func.func @_stack_kernel(%arg0: i32, %arg1: i32, %arg2: memref<1x256x128xbf16, #tpu.memory_space<vmem>>, %arg3: memref<128x128xbf16, #tpu.memory_space<vmem>>, %arg4: memref<1x1x128xf32, #tpu.memory_space<vmem>>, %arg5: memref<1152x128xbf16, #tpu.memory_space<vmem>>, %arg6: memref<1x1x128xf32, #tpu.memory_space<vmem>>, %arg7: memref<128x128xbf16, #tpu.memory_space<vmem>>, %arg8: memref<1x1x128xf32, #tpu.memory_space<vmem>>, %arg9: memref<1x256x128xbf16, #tpu.memory_space<vmem>>, %arg10: memref<256x128xbf16, #tpu.memory_space<vmem>>, %arg11: memref<304x128xf32, #tpu.memory_space<vmem>>) attributes {dimension_semantics = [#tpu.dimension_semantics<parallel>, #tpu.dimension_semantics<arbitrary>], iteration_bounds = array<i64: 2, 2>, scalar_prefetch = 0 : i64, scratch_operands = 2 : i64, tpu.core_type = #tpu.core_type<tc>, window_params = [{transform_indices = @transform_0, window_bounds = array<i64: 1, 256, 128>}, {transform_indices = @transform_1, window_bounds = array<i64: 128, 128>}, {transform_indices = @transform_2, window_bounds = array<i64: 1, 1, 128>}, {transform_indices = @transform_3, window_bounds = array<i64: 1152, 128>}, {transform_indices = @transform_4, window_bounds = array<i64: 1, 1, 128>}, {transform_indices = @transform_5, window_bounds = array<i64: 128, 128>}, {transform_indices = @transform_6, window_bounds = array<i64: 1, 1, 128>}, {transform_indices = @transform_7, window_bounds = array<i64: 1, 256, 128>}]} {
    %c0_i32 = arith.constant 0 : i32
    %0 = arith.cmpi eq, %arg1, %c0_i32 : i32
    %1 = arith.extui %0 : i1 to i32
    %c0_i32_0 = arith.constant 0 : i32
    %2 = arith.cmpi ne, %1, %c0_i32_0 : i32
    scf.if %2 {
      %c0_50 = arith.constant 0 : index
      %c0_51 = arith.constant 0 : index
      %c0_52 = arith.constant 0 : index
      %90 = vector.load %arg2[%c0_50, %c0_51, %c0_52] : memref<1x256x128xbf16, #tpu.memory_space<vmem>>, vector<1x256x128xbf16>
      %91 = vector.shape_cast %90 : vector<1x256x128xbf16> to vector<256x128xbf16>
      %c0_53 = arith.constant 0 : index
      %c0_54 = arith.constant 0 : index
      %92 = vector.load %arg10[%c0_53, %c0_54] : memref<256x128xbf16, #tpu.memory_space<vmem>>, vector<256x128xbf16>
      tpu.vector_store %arg10[%c0_53, %c0_54], %91 {strides = array<i32>} : memref<256x128xbf16, #tpu.memory_space<vmem>>, vector<256x128xbf16>,
      %cst_55 = arith.constant 0.000000e+00 : f32
      %93 = vector.broadcast %cst_55 : f32 to vector<24x128xf32>
      %c0_56 = arith.constant 0 : index
      %c0_57 = arith.constant 0 : index
      %94 = vector.load %arg11[%c0_56, %c0_57] : memref<304x128xf32, #tpu.memory_space<vmem>>, vector<24x128xf32>
      tpu.vector_store %arg11[%c0_56, %c0_57], %93 {strides = array<i32>} : memref<304x128xf32, #tpu.memory_space<vmem>>, vector<24x128xf32>,
      %c280 = arith.constant 280 : index
      %c0_58 = arith.constant 0 : index
      %95 = vector.load %arg11[%c280, %c0_58] : memref<304x128xf32, #tpu.memory_space<vmem>>, vector<24x128xf32>
      tpu.vector_store %arg11[%c280, %c0_58], %93 {strides = array<i32>} : memref<304x128xf32, #tpu.memory_space<vmem>>, vector<24x128xf32>,
    } else {
    }
    %c0 = arith.constant 0 : index
    %c0_1 = arith.constant 0 : index
    %3 = vector.load %arg10[%c0, %c0_1] : memref<256x128xbf16, #tpu.memory_space<vmem>>, vector<256x128xbf16>
    %c0_2 = arith.constant 0 : index
    %c0_3 = arith.constant 0 : index
    %4 = vector.load %arg3[%c0_2, %c0_3] : memref<128x128xbf16, #tpu.memory_space<vmem>>, vector<128x128xbf16>
    %cst = arith.constant dense<0.000000e+00> : vector<256x128xf32>
    %5 = tpu.matmul %3, %4, %cst {dimension_numbers = #tpu.dot_dimension_numbers<[1], [0], [0], [1], [0, 0, 1, 1], [], []>} : vector<256x128xbf16>, vector<128x128xbf16>, vector<256x128xf32> -> vector<256x128xf32>
    %c0_4 = arith.constant 0 : index
    %c0_5 = arith.constant 0 : index
    %c0_6 = arith.constant 0 : index
    %6 = vector.load %arg4[%c0_4, %c0_5, %c0_6] : memref<1x1x128xf32, #tpu.memory_space<vmem>>, vector<1x1x128xf32>
    %7 = vector.shape_cast %6 : vector<1x1x128xf32> to vector<1x128xf32>
    %8 = vector.broadcast %7 : vector<1x128xf32> to vector<256x128xf32>
    %9 = arith.addf %5, %8 : vector<256x128xf32>
    %cst_7 = arith.constant 0.000000e+00 : f32
    %10 = vector.broadcast %cst_7 : f32 to vector<256x128xf32>
    %11 = arith.maximumf %9, %10 : vector<256x128xf32>
    %c24 = arith.constant 24 : index
    %c0_8 = arith.constant 0 : index
    %12 = vector.load %arg11[%c24, %c0_8] : memref<304x128xf32, #tpu.memory_space<vmem>>, vector<256x128xf32>
    tpu.vector_store %arg11[%c24, %c0_8], %11 {strides = array<i32>} : memref<304x128xf32, #tpu.memory_space<vmem>>, vector<256x128xf32>,
    %13 = tpu.iota {dimensions = array<i32: 0>} : vector<256x128xi32>
    %c16_i32 = arith.constant 16 : i32
    %c0_i32_9 = arith.constant 0 : i32
    %14 = arith.cmpi eq, %c16_i32, %c0_i32_9 : i32
    %c1_i32 = arith.constant 1 : i32
    %15 = arith.select %14, %c1_i32, %c16_i32 : i32
    %16 = vector.broadcast %15 : i32 to vector<256x128xi32>
    %17 = arith.remsi %13, %16 : vector<256x128xi32>
    %c0_i32_10 = arith.constant 0 : i32
    %18 = vector.broadcast %c0_i32_10 : i32 to vector<256x128xi32>
    %19 = arith.cmpi ne, %17, %18 : vector<256x128xi32>
    %c0_i32_11 = arith.constant 0 : i32
    %20 = vector.broadcast %c0_i32_11 : i32 to vector<256x128xi32>
    %21 = arith.cmpi slt, %17, %20 : vector<256x128xi32>
    %c0_i32_12 = arith.constant 0 : i32
    %22 = arith.cmpi slt, %15, %c0_i32_12 : i32
    %23 = vector.broadcast %22 : i1 to vector<256x128xi1>
    %24 = vector.broadcast %23 : vector<256x128xi1> to vector<256x128xi1>
    %25 = arith.xori %21, %24 : vector<256x128xi1>
    %26 = arith.andi %25, %19 : vector<256x128xi1>
    %27 = vector.broadcast %15 : i32 to vector<256x128xi32>
    %28 = arith.addi %17, %27 : vector<256x128xi32>
    %29 = arith.select %26, %28, %17 : vector<256x128xi1>, vector<256x128xi32>
    %c0_i32_13 = arith.constant 0 : i32
    %30 = vector.broadcast %c0_i32_13 : i32 to vector<256x128xi32>
    %31 = arith.cmpi sgt, %29, %30 : vector<256x128xi32>
    %c15_i32 = arith.constant 15 : i32
    %32 = vector.broadcast %c15_i32 : i32 to vector<256x128xi32>
    %33 = arith.cmpi slt, %29, %32 : vector<256x128xi32>
    %c23 = arith.constant 23 : index
    %c0_14 = arith.constant 0 : index
    %34 = vector.load %arg11[%c23, %c0_14] : memref<304x128xf32, #tpu.memory_space<vmem>>, vector<256x128xf32>
    %cst_15 = arith.constant 0.000000e+00 : f32
    %35 = vector.broadcast %cst_15 : f32 to vector<256x128xf32>
    %36 = arith.select %31, %34, %35 : vector<256x128xi1>, vector<256x128xf32>
    %c25 = arith.constant 25 : index
    %c0_16 = arith.constant 0 : index
    %37 = vector.load %arg11[%c25, %c0_16] : memref<304x128xf32, #tpu.memory_space<vmem>>, vector<256x128xf32>
    %cst_17 = arith.constant 0.000000e+00 : f32
    %38 = vector.broadcast %cst_17 : f32 to vector<256x128xf32>
    %39 = arith.select %33, %37, %38 : vector<256x128xi1>, vector<256x128xf32>
    %40 = tpu.concatenate %36, %11, %39 in 1 : vector<256x128xf32>, vector<256x128xf32>, vector<256x128xf32> -> vector<256x384xf32>
    %41 = arith.truncf %40 : vector<256x384xf32> to vector<256x384xbf16>
    %c384 = arith.constant 384 : index
    %c0_18 = arith.constant 0 : index
    %42 = vector.load %arg5[%c384, %c0_18] : memref<1152x128xbf16, #tpu.memory_space<vmem>>, vector<384x128xbf16>
    %cst_19 = arith.constant dense<0.000000e+00> : vector<256x128xf32>
    %43 = tpu.matmul %41, %42, %cst_19 {dimension_numbers = #tpu.dot_dimension_numbers<[1], [0], [0], [1], [0, 0, 1, 1], [], []>} : vector<256x384xbf16>, vector<384x128xbf16>, vector<256x128xf32> -> vector<256x128xf32>
    %c8 = arith.constant 8 : index
    %c0_20 = arith.constant 0 : index
    %44 = vector.load %arg11[%c8, %c0_20] : memref<304x128xf32, #tpu.memory_space<vmem>>, vector<256x128xf32>
    %c7 = arith.constant 7 : index
    %c0_21 = arith.constant 0 : index
    %45 = vector.load %arg11[%c7, %c0_21] : memref<304x128xf32, #tpu.memory_space<vmem>>, vector<256x128xf32>
    %cst_22 = arith.constant 0.000000e+00 : f32
    %46 = vector.broadcast %cst_22 : f32 to vector<256x128xf32>
    %47 = arith.select %31, %45, %46 : vector<256x128xi1>, vector<256x128xf32>
    %c9 = arith.constant 9 : index
    %c0_23 = arith.constant 0 : index
    %48 = vector.load %arg11[%c9, %c0_23] : memref<304x128xf32, #tpu.memory_space<vmem>>, vector<256x128xf32>
    %cst_24 = arith.constant 0.000000e+00 : f32
    %49 = vector.broadcast %cst_24 : f32 to vector<256x128xf32>
    %50 = arith.select %33, %48, %49 : vector<256x128xi1>, vector<256x128xf32>
    %51 = tpu.concatenate %47, %44, %50 in 1 : vector<256x128xf32>, vector<256x128xf32>, vector<256x128xf32> -> vector<256x384xf32>
    %52 = arith.truncf %51 : vector<256x384xf32> to vector<256x384xbf16>
    %c0_25 = arith.constant 0 : index
    %c0_26 = arith.constant 0 : index
    %53 = vector.load %arg5[%c0_25, %c0_26] : memref<1152x128xbf16, #tpu.memory_space<vmem>>, vector<384x128xbf16>
    %cst_27 = arith.constant dense<0.000000e+00> : vector<256x128xf32>
    %54 = tpu.matmul %52, %53, %cst_27 {dimension_numbers = #tpu.dot_dimension_numbers<[1], [0], [0], [1], [0, 0, 1, 1], [], []>} : vector<256x384xbf16>, vector<384x128xbf16>, vector<256x128xf32> -> vector<256x128xf32>
    %55 = arith.addf %43, %54 : vector<256x128xf32>
    %c40 = arith.constant 40 : index
    %c0_28 = arith.constant 0 : index
    %56 = vector.load %arg11[%c40, %c0_28] : memref<304x128xf32, #tpu.memory_space<vmem>>, vector<256x128xf32>
    %c39 = arith.constant 39 : index
    %c0_29 = arith.constant 0 : index
    %57 = vector.load %arg11[%c39, %c0_29] : memref<304x128xf32, #tpu.memory_space<vmem>>, vector<256x128xf32>
    %cst_30 = arith.constant 0.000000e+00 : f32
    %58 = vector.broadcast %cst_30 : f32 to vector<256x128xf32>
    %59 = arith.select %31, %57, %58 : vector<256x128xi1>, vector<256x128xf32>
    %c41 = arith.constant 41 : index
    %c0_31 = arith.constant 0 : index
    %60 = vector.load %arg11[%c41, %c0_31] : memref<304x128xf32, #tpu.memory_space<vmem>>, vector<256x128xf32>
    %cst_32 = arith.constant 0.000000e+00 : f32
    %61 = vector.broadcast %cst_32 : f32 to vector<256x128xf32>
    %62 = arith.select %33, %60, %61 : vector<256x128xi1>, vector<256x128xf32>
    %63 = tpu.concatenate %59, %56, %62 in 1 : vector<256x128xf32>, vector<256x128xf32>, vector<256x128xf32> -> vector<256x384xf32>
    %64 = arith.truncf %63 : vector<256x384xf32> to vector<256x384xbf16>
    %c768 = arith.constant 768 : index
    %c0_33 = arith.constant 0 : index
    %65 = vector.load %arg5[%c768, %c0_33] : memref<1152x128xbf16, #tpu.memory_space<vmem>>, vector<384x128xbf16>
    %cst_34 = arith.constant dense<0.000000e+00> : vector<256x128xf32>
    %66 = tpu.matmul %64, %65, %cst_34 {dimension_numbers = #tpu.dot_dimension_numbers<[1], [0], [0], [1], [0, 0, 1, 1], [], []>} : vector<256x384xbf16>, vector<384x128xbf16>, vector<256x128xf32> -> vector<256x128xf32>
    %67 = arith.addf %55, %66 : vector<256x128xf32>
    %c0_35 = arith.constant 0 : index
    %c0_36 = arith.constant 0 : index
    %c0_37 = arith.constant 0 : index
    %68 = vector.load %arg6[%c0_35, %c0_36, %c0_37] : memref<1x1x128xf32, #tpu.memory_space<vmem>>, vector<1x1x128xf32>
    %69 = vector.shape_cast %68 : vector<1x1x128xf32> to vector<1x128xf32>
    %70 = vector.broadcast %69 : vector<1x128xf32> to vector<256x128xf32>
    %71 = arith.addf %67, %70 : vector<256x128xf32>
    %cst_38 = arith.constant 0.000000e+00 : f32
    %72 = vector.broadcast %cst_38 : f32 to vector<256x128xf32>
    %73 = arith.maximumf %71, %72 : vector<256x128xf32>
    %74 = arith.truncf %73 : vector<256x128xf32> to vector<256x128xbf16>
    %c0_39 = arith.constant 0 : index
    %c0_40 = arith.constant 0 : index
    %75 = vector.load %arg7[%c0_39, %c0_40] : memref<128x128xbf16, #tpu.memory_space<vmem>>, vector<128x128xbf16>
    %cst_41 = arith.constant dense<0.000000e+00> : vector<256x128xf32>
    %76 = tpu.matmul %74, %75, %cst_41 {dimension_numbers = #tpu.dot_dimension_numbers<[1], [0], [0], [1], [0, 0, 1, 1], [], []>} : vector<256x128xbf16>, vector<128x128xbf16>, vector<256x128xf32> -> vector<256x128xf32>
    %c0_42 = arith.constant 0 : index
    %c0_43 = arith.constant 0 : index
    %c0_44 = arith.constant 0 : index
    %77 = vector.load %arg8[%c0_42, %c0_43, %c0_44] : memref<1x1x128xf32, #tpu.memory_space<vmem>>, vector<1x1x128xf32>
    %78 = vector.shape_cast %77 : vector<1x1x128xf32> to vector<1x128xf32>
    %79 = vector.broadcast %78 : vector<1x128xf32> to vector<256x128xf32>
    %80 = arith.addf %76, %79 : vector<256x128xf32>
    %81 = arith.extf %3 : vector<256x128xbf16> to vector<256x128xf32>
    %82 = arith.addf %80, %81 : vector<256x128xf32>
    %cst_45 = arith.constant 0.000000e+00 : f32
    %83 = vector.broadcast %cst_45 : f32 to vector<256x128xf32>
    %84 = arith.maximumf %82, %83 : vector<256x128xf32>
    %85 = arith.truncf %84 : vector<256x128xf32> to vector<256x128xbf16>
    %c0_46 = arith.constant 0 : index
    %c0_47 = arith.constant 0 : index
    %86 = vector.load %arg10[%c0_46, %c0_47] : memref<256x128xbf16, #tpu.memory_space<vmem>>, vector<256x128xbf16>
    tpu.vector_store %arg10[%c0_46, %c0_47], %85 {strides = array<i32>} : memref<256x128xbf16, #tpu.memory_space<vmem>>, vector<256x128xbf16>,
    %c1_i32_48 = arith.constant 1 : i32
    %87 = arith.cmpi eq, %arg1, %c1_i32_48 : i32
    %88 = arith.extui %87 : i1 to i32
    %c0_i32_49 = arith.constant 0 : i32
    %89 = arith.cmpi ne, %88, %c0_i32_49 : i32
    scf.if %89 {
      %90 = vector.shape_cast %85 : vector<256x128xbf16> to vector<1x256x128xbf16>
      %c0_50 = arith.constant 0 : index
      %c0_51 = arith.constant 0 : index
      %c0_52 = arith.constant 0 : index
      %91 = vector.load %arg9[%c0_50, %c0_51, %c0_52] : memref<1x256x128xbf16, #tpu.memory_space<vmem>>, vector<1x256x128xbf16>
      tpu.vector_store %arg9[%c0_50, %c0_51, %c0_52], %90 {strides = array<i32>} : memref<1x256x128xbf16, #tpu.memory_space<vmem>>, vector<1x256x128xbf16>,
    } else {
    }
    return
  }
  func.func @transform_0(%arg0: i32, %arg1: i32) -> (i32, i32, i32) {
    %c0_i32 = arith.constant 0 : i32
    %c0_i32_0 = arith.constant 0 : i32
    %c0_i32_1 = arith.constant 0 : i32
    return %arg0, %c0_i32, %c0_i32_0 : i32, i32, i32
  }
  func.func @transform_1(%arg0: i32, %arg1: i32) -> (i32, i32) {
    %c0_i32 = arith.constant 0 : i32
    %c0_i32_0 = arith.constant 0 : i32
    return %arg1, %c0_i32 : i32, i32
  }
  func.func @transform_2(%arg0: i32, %arg1: i32) -> (i32, i32, i32) {
    %c0_i32 = arith.constant 0 : i32
    %c0_i32_0 = arith.constant 0 : i32
    %c0_i32_1 = arith.constant 0 : i32
    return %arg1, %c0_i32, %c0_i32_0 : i32, i32, i32
  }
  func.func @transform_3(%arg0: i32, %arg1: i32) -> (i32, i32) {
    %c0_i32 = arith.constant 0 : i32
    %c0_i32_0 = arith.constant 0 : i32
    return %arg1, %c0_i32 : i32, i32
  }
  func.func @transform_4(%arg0: i32, %arg1: i32) -> (i32, i32, i32) {
    %c0_i32 = arith.constant 0 : i32
    %c0_i32_0 = arith.constant 0 : i32
    %c0_i32_1 = arith.constant 0 : i32
    return %arg1, %c0_i32, %c0_i32_0 : i32, i32, i32
  }
  func.func @transform_5(%arg0: i32, %arg1: i32) -> (i32, i32) {
    %c0_i32 = arith.constant 0 : i32
    %c0_i32_0 = arith.constant 0 : i32
    return %arg1, %c0_i32 : i32, i32
  }
  func.func @transform_6(%arg0: i32, %arg1: i32) -> (i32, i32, i32) {
    %c0_i32 = arith.constant 0 : i32
    %c0_i32_0 = arith.constant 0 : i32
    %c0_i32_1 = arith.constant 0 : i32
    return %arg1, %c0_i32, %c0_i32_0 : i32, i32, i32
  }
  func.func @transform_7(%arg0: i32, %arg1: i32) -> (i32, i32, i32) {
    %c0_i32 = arith.constant 0 : i32
    %c0_i32_0 = arith.constant 0 : i32
    %c0_i32_1 = arith.constant 0 : i32
    return %arg0, %c0_i32, %c0_i32_0 : i32, i32, i32
  }
}

module attributes {stable_mosaic.version = 11 : i64} {
  func.func @_scale_conv_kernel(%arg0: i32, %arg1: memref<1x64x1152xbf16, #tpu.memory_space<vmem>>, %arg2: memref<1152x128xbf16, #tpu.memory_space<vmem>>, %arg3: memref<1x128xf32, #tpu.memory_space<vmem>>, %arg4: memref<1x64x128xbf16, #tpu.memory_space<vmem>>) attributes {dimension_semantics = [#tpu.dimension_semantics<parallel>], iteration_bounds = array<i64: 2>, scalar_prefetch = 0 : i64, scratch_operands = 0 : i64, tpu.core_type = #tpu.core_type<tc>, window_params = [{transform_indices = @transform_0, window_bounds = array<i64: 1, 64, 1152>}, {pipeline_mode = #tpu.pipeline_mode<synchronous>, transform_indices = @transform_1, window_bounds = array<i64: 1152, 128>}, {pipeline_mode = #tpu.pipeline_mode<synchronous>, transform_indices = @transform_2, window_bounds = array<i64: 1, 128>}, {transform_indices = @transform_3, window_bounds = array<i64: 1, 64, 128>}]} {
    %c0 = arith.constant 0 : index
    %c0_0 = arith.constant 0 : index
    %c0_1 = arith.constant 0 : index
    %0 = vector.load %arg1[%c0, %c0_0, %c0_1] : memref<1x64x1152xbf16, #tpu.memory_space<vmem>>, vector<1x64x1152xbf16>
    %1 = vector.shape_cast %0 : vector<1x64x1152xbf16> to vector<64x1152xbf16>
    %c0_2 = arith.constant 0 : index
    %c0_3 = arith.constant 0 : index
    %2 = vector.load %arg2[%c0_2, %c0_3] : memref<1152x128xbf16, #tpu.memory_space<vmem>>, vector<1152x128xbf16>
    %cst = arith.constant dense<0.000000e+00> : vector<64x128xf32>
    %3 = tpu.matmul %1, %2, %cst {dimension_numbers = #tpu.dot_dimension_numbers<[1], [0], [0], [1], [0, 0, 1, 1], [], []>} : vector<64x1152xbf16>, vector<1152x128xbf16>, vector<64x128xf32> -> vector<64x128xf32>
    %c0_4 = arith.constant 0 : index
    %c0_5 = arith.constant 0 : index
    %4 = vector.load %arg3[%c0_4, %c0_5] : memref<1x128xf32, #tpu.memory_space<vmem>>, vector<1x128xf32>
    %5 = vector.broadcast %4 : vector<1x128xf32> to vector<64x128xf32>
    %6 = arith.addf %3, %5 : vector<64x128xf32>
    %7 = arith.truncf %6 : vector<64x128xf32> to vector<64x128xbf16>
    %8 = vector.shape_cast %7 : vector<64x128xbf16> to vector<1x64x128xbf16>
    %c0_6 = arith.constant 0 : index
    %c0_7 = arith.constant 0 : index
    %c0_8 = arith.constant 0 : index
    %9 = vector.load %arg4[%c0_6, %c0_7, %c0_8] : memref<1x64x128xbf16, #tpu.memory_space<vmem>>, vector<1x64x128xbf16>
    tpu.vector_store %arg4[%c0_6, %c0_7, %c0_8], %8 {strides = array<i32>} : memref<1x64x128xbf16, #tpu.memory_space<vmem>>, vector<1x64x128xbf16>,
    return
  }
  func.func @transform_0(%arg0: i32) -> (i32, i32, i32) {
    %c0_i32 = arith.constant 0 : i32
    %c0_i32_0 = arith.constant 0 : i32
    %c0_i32_1 = arith.constant 0 : i32
    return %arg0, %c0_i32, %c0_i32_0 : i32, i32, i32
  }
  func.func @transform_1(%arg0: i32) -> (i32, i32) {
    %c0_i32 = arith.constant 0 : i32
    %c0_i32_0 = arith.constant 0 : i32
    %c0_i32_1 = arith.constant 0 : i32
    return %c0_i32, %c0_i32_0 : i32, i32
  }
  func.func @transform_2(%arg0: i32) -> (i32, i32) {
    %c0_i32 = arith.constant 0 : i32
    %c0_i32_0 = arith.constant 0 : i32
    %c0_i32_1 = arith.constant 0 : i32
    return %c0_i32, %c0_i32_0 : i32, i32
  }
  func.func @transform_3(%arg0: i32) -> (i32, i32, i32) {
    %c0_i32 = arith.constant 0 : i32
    %c0_i32_0 = arith.constant 0 : i32
    %c0_i32_1 = arith.constant 0 : i32
    return %arg0, %c0_i32, %c0_i32_0 : i32, i32, i32
  }
}

module attributes {stable_mosaic.version = 11 : i64} {
  func.func @_stack_kernel(%arg0: i32, %arg1: i32, %arg2: memref<1x64x128xbf16, #tpu.memory_space<vmem>>, %arg3: memref<128x128xbf16, #tpu.memory_space<vmem>>, %arg4: memref<1x1x128xf32, #tpu.memory_space<vmem>>, %arg5: memref<1152x128xbf16, #tpu.memory_space<vmem>>, %arg6: memref<1x1x128xf32, #tpu.memory_space<vmem>>, %arg7: memref<128x128xbf16, #tpu.memory_space<vmem>>, %arg8: memref<1x1x128xf32, #tpu.memory_space<vmem>>, %arg9: memref<1x64x128xbf16, #tpu.memory_space<vmem>>, %arg10: memref<64x128xbf16, #tpu.memory_space<vmem>>, %arg11: memref<96x128xf32, #tpu.memory_space<vmem>>) attributes {dimension_semantics = [#tpu.dimension_semantics<parallel>, #tpu.dimension_semantics<arbitrary>], iteration_bounds = array<i64: 2, 2>, scalar_prefetch = 0 : i64, scratch_operands = 2 : i64, tpu.core_type = #tpu.core_type<tc>, window_params = [{transform_indices = @transform_0, window_bounds = array<i64: 1, 64, 128>}, {transform_indices = @transform_1, window_bounds = array<i64: 128, 128>}, {transform_indices = @transform_2, window_bounds = array<i64: 1, 1, 128>}, {transform_indices = @transform_3, window_bounds = array<i64: 1152, 128>}, {transform_indices = @transform_4, window_bounds = array<i64: 1, 1, 128>}, {transform_indices = @transform_5, window_bounds = array<i64: 128, 128>}, {transform_indices = @transform_6, window_bounds = array<i64: 1, 1, 128>}, {transform_indices = @transform_7, window_bounds = array<i64: 1, 64, 128>}]} {
    %c0_i32 = arith.constant 0 : i32
    %0 = arith.cmpi eq, %arg1, %c0_i32 : i32
    %1 = arith.extui %0 : i1 to i32
    %c0_i32_0 = arith.constant 0 : i32
    %2 = arith.cmpi ne, %1, %c0_i32_0 : i32
    scf.if %2 {
      %c0_50 = arith.constant 0 : index
      %c0_51 = arith.constant 0 : index
      %c0_52 = arith.constant 0 : index
      %90 = vector.load %arg2[%c0_50, %c0_51, %c0_52] : memref<1x64x128xbf16, #tpu.memory_space<vmem>>, vector<1x64x128xbf16>
      %91 = vector.shape_cast %90 : vector<1x64x128xbf16> to vector<64x128xbf16>
      %c0_53 = arith.constant 0 : index
      %c0_54 = arith.constant 0 : index
      %92 = vector.load %arg10[%c0_53, %c0_54] : memref<64x128xbf16, #tpu.memory_space<vmem>>, vector<64x128xbf16>
      tpu.vector_store %arg10[%c0_53, %c0_54], %91 {strides = array<i32>} : memref<64x128xbf16, #tpu.memory_space<vmem>>, vector<64x128xbf16>,
      %cst_55 = arith.constant 0.000000e+00 : f32
      %93 = vector.broadcast %cst_55 : f32 to vector<16x128xf32>
      %c0_56 = arith.constant 0 : index
      %c0_57 = arith.constant 0 : index
      %94 = vector.load %arg11[%c0_56, %c0_57] : memref<96x128xf32, #tpu.memory_space<vmem>>, vector<16x128xf32>
      tpu.vector_store %arg11[%c0_56, %c0_57], %93 {strides = array<i32>} : memref<96x128xf32, #tpu.memory_space<vmem>>, vector<16x128xf32>,
      %c80 = arith.constant 80 : index
      %c0_58 = arith.constant 0 : index
      %95 = vector.load %arg11[%c80, %c0_58] : memref<96x128xf32, #tpu.memory_space<vmem>>, vector<16x128xf32>
      tpu.vector_store %arg11[%c80, %c0_58], %93 {strides = array<i32>} : memref<96x128xf32, #tpu.memory_space<vmem>>, vector<16x128xf32>,
    } else {
    }
    %c0 = arith.constant 0 : index
    %c0_1 = arith.constant 0 : index
    %3 = vector.load %arg10[%c0, %c0_1] : memref<64x128xbf16, #tpu.memory_space<vmem>>, vector<64x128xbf16>
    %c0_2 = arith.constant 0 : index
    %c0_3 = arith.constant 0 : index
    %4 = vector.load %arg3[%c0_2, %c0_3] : memref<128x128xbf16, #tpu.memory_space<vmem>>, vector<128x128xbf16>
    %cst = arith.constant dense<0.000000e+00> : vector<64x128xf32>
    %5 = tpu.matmul %3, %4, %cst {dimension_numbers = #tpu.dot_dimension_numbers<[1], [0], [0], [1], [0, 0, 1, 1], [], []>} : vector<64x128xbf16>, vector<128x128xbf16>, vector<64x128xf32> -> vector<64x128xf32>
    %c0_4 = arith.constant 0 : index
    %c0_5 = arith.constant 0 : index
    %c0_6 = arith.constant 0 : index
    %6 = vector.load %arg4[%c0_4, %c0_5, %c0_6] : memref<1x1x128xf32, #tpu.memory_space<vmem>>, vector<1x1x128xf32>
    %7 = vector.shape_cast %6 : vector<1x1x128xf32> to vector<1x128xf32>
    %8 = vector.broadcast %7 : vector<1x128xf32> to vector<64x128xf32>
    %9 = arith.addf %5, %8 : vector<64x128xf32>
    %cst_7 = arith.constant 0.000000e+00 : f32
    %10 = vector.broadcast %cst_7 : f32 to vector<64x128xf32>
    %11 = arith.maximumf %9, %10 : vector<64x128xf32>
    %c16 = arith.constant 16 : index
    %c0_8 = arith.constant 0 : index
    %12 = vector.load %arg11[%c16, %c0_8] : memref<96x128xf32, #tpu.memory_space<vmem>>, vector<64x128xf32>
    tpu.vector_store %arg11[%c16, %c0_8], %11 {strides = array<i32>} : memref<96x128xf32, #tpu.memory_space<vmem>>, vector<64x128xf32>,
    %13 = tpu.iota {dimensions = array<i32: 0>} : vector<64x128xi32>
    %c8_i32 = arith.constant 8 : i32
    %c0_i32_9 = arith.constant 0 : i32
    %14 = arith.cmpi eq, %c8_i32, %c0_i32_9 : i32
    %c1_i32 = arith.constant 1 : i32
    %15 = arith.select %14, %c1_i32, %c8_i32 : i32
    %16 = vector.broadcast %15 : i32 to vector<64x128xi32>
    %17 = arith.remsi %13, %16 : vector<64x128xi32>
    %c0_i32_10 = arith.constant 0 : i32
    %18 = vector.broadcast %c0_i32_10 : i32 to vector<64x128xi32>
    %19 = arith.cmpi ne, %17, %18 : vector<64x128xi32>
    %c0_i32_11 = arith.constant 0 : i32
    %20 = vector.broadcast %c0_i32_11 : i32 to vector<64x128xi32>
    %21 = arith.cmpi slt, %17, %20 : vector<64x128xi32>
    %c0_i32_12 = arith.constant 0 : i32
    %22 = arith.cmpi slt, %15, %c0_i32_12 : i32
    %23 = vector.broadcast %22 : i1 to vector<64x128xi1>
    %24 = vector.broadcast %23 : vector<64x128xi1> to vector<64x128xi1>
    %25 = arith.xori %21, %24 : vector<64x128xi1>
    %26 = arith.andi %25, %19 : vector<64x128xi1>
    %27 = vector.broadcast %15 : i32 to vector<64x128xi32>
    %28 = arith.addi %17, %27 : vector<64x128xi32>
    %29 = arith.select %26, %28, %17 : vector<64x128xi1>, vector<64x128xi32>
    %c0_i32_13 = arith.constant 0 : i32
    %30 = vector.broadcast %c0_i32_13 : i32 to vector<64x128xi32>
    %31 = arith.cmpi sgt, %29, %30 : vector<64x128xi32>
    %c7_i32 = arith.constant 7 : i32
    %32 = vector.broadcast %c7_i32 : i32 to vector<64x128xi32>
    %33 = arith.cmpi slt, %29, %32 : vector<64x128xi32>
    %c15 = arith.constant 15 : index
    %c0_14 = arith.constant 0 : index
    %34 = vector.load %arg11[%c15, %c0_14] : memref<96x128xf32, #tpu.memory_space<vmem>>, vector<64x128xf32>
    %cst_15 = arith.constant 0.000000e+00 : f32
    %35 = vector.broadcast %cst_15 : f32 to vector<64x128xf32>
    %36 = arith.select %31, %34, %35 : vector<64x128xi1>, vector<64x128xf32>
    %c17 = arith.constant 17 : index
    %c0_16 = arith.constant 0 : index
    %37 = vector.load %arg11[%c17, %c0_16] : memref<96x128xf32, #tpu.memory_space<vmem>>, vector<64x128xf32>
    %cst_17 = arith.constant 0.000000e+00 : f32
    %38 = vector.broadcast %cst_17 : f32 to vector<64x128xf32>
    %39 = arith.select %33, %37, %38 : vector<64x128xi1>, vector<64x128xf32>
    %40 = tpu.concatenate %36, %11, %39 in 1 : vector<64x128xf32>, vector<64x128xf32>, vector<64x128xf32> -> vector<64x384xf32>
    %41 = arith.truncf %40 : vector<64x384xf32> to vector<64x384xbf16>
    %c384 = arith.constant 384 : index
    %c0_18 = arith.constant 0 : index
    %42 = vector.load %arg5[%c384, %c0_18] : memref<1152x128xbf16, #tpu.memory_space<vmem>>, vector<384x128xbf16>
    %cst_19 = arith.constant dense<0.000000e+00> : vector<64x128xf32>
    %43 = tpu.matmul %41, %42, %cst_19 {dimension_numbers = #tpu.dot_dimension_numbers<[1], [0], [0], [1], [0, 0, 1, 1], [], []>} : vector<64x384xbf16>, vector<384x128xbf16>, vector<64x128xf32> -> vector<64x128xf32>
    %c8 = arith.constant 8 : index
    %c0_20 = arith.constant 0 : index
    %44 = vector.load %arg11[%c8, %c0_20] : memref<96x128xf32, #tpu.memory_space<vmem>>, vector<64x128xf32>
    %c7 = arith.constant 7 : index
    %c0_21 = arith.constant 0 : index
    %45 = vector.load %arg11[%c7, %c0_21] : memref<96x128xf32, #tpu.memory_space<vmem>>, vector<64x128xf32>
    %cst_22 = arith.constant 0.000000e+00 : f32
    %46 = vector.broadcast %cst_22 : f32 to vector<64x128xf32>
    %47 = arith.select %31, %45, %46 : vector<64x128xi1>, vector<64x128xf32>
    %c9 = arith.constant 9 : index
    %c0_23 = arith.constant 0 : index
    %48 = vector.load %arg11[%c9, %c0_23] : memref<96x128xf32, #tpu.memory_space<vmem>>, vector<64x128xf32>
    %cst_24 = arith.constant 0.000000e+00 : f32
    %49 = vector.broadcast %cst_24 : f32 to vector<64x128xf32>
    %50 = arith.select %33, %48, %49 : vector<64x128xi1>, vector<64x128xf32>
    %51 = tpu.concatenate %47, %44, %50 in 1 : vector<64x128xf32>, vector<64x128xf32>, vector<64x128xf32> -> vector<64x384xf32>
    %52 = arith.truncf %51 : vector<64x384xf32> to vector<64x384xbf16>
    %c0_25 = arith.constant 0 : index
    %c0_26 = arith.constant 0 : index
    %53 = vector.load %arg5[%c0_25, %c0_26] : memref<1152x128xbf16, #tpu.memory_space<vmem>>, vector<384x128xbf16>
    %cst_27 = arith.constant dense<0.000000e+00> : vector<64x128xf32>
    %54 = tpu.matmul %52, %53, %cst_27 {dimension_numbers = #tpu.dot_dimension_numbers<[1], [0], [0], [1], [0, 0, 1, 1], [], []>} : vector<64x384xbf16>, vector<384x128xbf16>, vector<64x128xf32> -> vector<64x128xf32>
    %55 = arith.addf %43, %54 : vector<64x128xf32>
    %c24 = arith.constant 24 : index
    %c0_28 = arith.constant 0 : index
    %56 = vector.load %arg11[%c24, %c0_28] : memref<96x128xf32, #tpu.memory_space<vmem>>, vector<64x128xf32>
    %c23 = arith.constant 23 : index
    %c0_29 = arith.constant 0 : index
    %57 = vector.load %arg11[%c23, %c0_29] : memref<96x128xf32, #tpu.memory_space<vmem>>, vector<64x128xf32>
    %cst_30 = arith.constant 0.000000e+00 : f32
    %58 = vector.broadcast %cst_30 : f32 to vector<64x128xf32>
    %59 = arith.select %31, %57, %58 : vector<64x128xi1>, vector<64x128xf32>
    %c25 = arith.constant 25 : index
    %c0_31 = arith.constant 0 : index
    %60 = vector.load %arg11[%c25, %c0_31] : memref<96x128xf32, #tpu.memory_space<vmem>>, vector<64x128xf32>
    %cst_32 = arith.constant 0.000000e+00 : f32
    %61 = vector.broadcast %cst_32 : f32 to vector<64x128xf32>
    %62 = arith.select %33, %60, %61 : vector<64x128xi1>, vector<64x128xf32>
    %63 = tpu.concatenate %59, %56, %62 in 1 : vector<64x128xf32>, vector<64x128xf32>, vector<64x128xf32> -> vector<64x384xf32>
    %64 = arith.truncf %63 : vector<64x384xf32> to vector<64x384xbf16>
    %c768 = arith.constant 768 : index
    %c0_33 = arith.constant 0 : index
    %65 = vector.load %arg5[%c768, %c0_33] : memref<1152x128xbf16, #tpu.memory_space<vmem>>, vector<384x128xbf16>
    %cst_34 = arith.constant dense<0.000000e+00> : vector<64x128xf32>
    %66 = tpu.matmul %64, %65, %cst_34 {dimension_numbers = #tpu.dot_dimension_numbers<[1], [0], [0], [1], [0, 0, 1, 1], [], []>} : vector<64x384xbf16>, vector<384x128xbf16>, vector<64x128xf32> -> vector<64x128xf32>
    %67 = arith.addf %55, %66 : vector<64x128xf32>
    %c0_35 = arith.constant 0 : index
    %c0_36 = arith.constant 0 : index
    %c0_37 = arith.constant 0 : index
    %68 = vector.load %arg6[%c0_35, %c0_36, %c0_37] : memref<1x1x128xf32, #tpu.memory_space<vmem>>, vector<1x1x128xf32>
    %69 = vector.shape_cast %68 : vector<1x1x128xf32> to vector<1x128xf32>
    %70 = vector.broadcast %69 : vector<1x128xf32> to vector<64x128xf32>
    %71 = arith.addf %67, %70 : vector<64x128xf32>
    %cst_38 = arith.constant 0.000000e+00 : f32
    %72 = vector.broadcast %cst_38 : f32 to vector<64x128xf32>
    %73 = arith.maximumf %71, %72 : vector<64x128xf32>
    %74 = arith.truncf %73 : vector<64x128xf32> to vector<64x128xbf16>
    %c0_39 = arith.constant 0 : index
    %c0_40 = arith.constant 0 : index
    %75 = vector.load %arg7[%c0_39, %c0_40] : memref<128x128xbf16, #tpu.memory_space<vmem>>, vector<128x128xbf16>
    %cst_41 = arith.constant dense<0.000000e+00> : vector<64x128xf32>
    %76 = tpu.matmul %74, %75, %cst_41 {dimension_numbers = #tpu.dot_dimension_numbers<[1], [0], [0], [1], [0, 0, 1, 1], [], []>} : vector<64x128xbf16>, vector<128x128xbf16>, vector<64x128xf32> -> vector<64x128xf32>
    %c0_42 = arith.constant 0 : index
    %c0_43 = arith.constant 0 : index
    %c0_44 = arith.constant 0 : index
    %77 = vector.load %arg8[%c0_42, %c0_43, %c0_44] : memref<1x1x128xf32, #tpu.memory_space<vmem>>, vector<1x1x128xf32>
    %78 = vector.shape_cast %77 : vector<1x1x128xf32> to vector<1x128xf32>
    %79 = vector.broadcast %78 : vector<1x128xf32> to vector<64x128xf32>
    %80 = arith.addf %76, %79 : vector<64x128xf32>
    %81 = arith.extf %3 : vector<64x128xbf16> to vector<64x128xf32>
    %82 = arith.addf %80, %81 : vector<64x128xf32>
    %cst_45 = arith.constant 0.000000e+00 : f32
    %83 = vector.broadcast %cst_45 : f32 to vector<64x128xf32>
    %84 = arith.maximumf %82, %83 : vector<64x128xf32>
    %85 = arith.truncf %84 : vector<64x128xf32> to vector<64x128xbf16>
    %c0_46 = arith.constant 0 : index
    %c0_47 = arith.constant 0 : index
    %86 = vector.load %arg10[%c0_46, %c0_47] : memref<64x128xbf16, #tpu.memory_space<vmem>>, vector<64x128xbf16>
    tpu.vector_store %arg10[%c0_46, %c0_47], %85 {strides = array<i32>} : memref<64x128xbf16, #tpu.memory_space<vmem>>, vector<64x128xbf16>,
    %c1_i32_48 = arith.constant 1 : i32
    %87 = arith.cmpi eq, %arg1, %c1_i32_48 : i32
    %88 = arith.extui %87 : i1 to i32
    %c0_i32_49 = arith.constant 0 : i32
    %89 = arith.cmpi ne, %88, %c0_i32_49 : i32
    scf.if %89 {
      %90 = vector.shape_cast %85 : vector<64x128xbf16> to vector<1x64x128xbf16>
      %c0_50 = arith.constant 0 : index
      %c0_51 = arith.constant 0 : index
      %c0_52 = arith.constant 0 : index
      %91 = vector.load %arg9[%c0_50, %c0_51, %c0_52] : memref<1x64x128xbf16, #tpu.memory_space<vmem>>, vector<1x64x128xbf16>
      tpu.vector_store %arg9[%c0_50, %c0_51, %c0_52], %90 {strides = array<i32>} : memref<1x64x128xbf16, #tpu.memory_space<vmem>>, vector<1x64x128xbf16>,
    } else {
    }
    return
  }
  func.func @transform_0(%arg0: i32, %arg1: i32) -> (i32, i32, i32) {
    %c0_i32 = arith.constant 0 : i32
    %c0_i32_0 = arith.constant 0 : i32
    %c0_i32_1 = arith.constant 0 : i32
    return %arg0, %c0_i32, %c0_i32_0 : i32, i32, i32
  }
  func.func @transform_1(%arg0: i32, %arg1: i32) -> (i32, i32) {
    %c0_i32 = arith.constant 0 : i32
    %c0_i32_0 = arith.constant 0 : i32
    return %arg1, %c0_i32 : i32, i32
  }
  func.func @transform_2(%arg0: i32, %arg1: i32) -> (i32, i32, i32) {
    %c0_i32 = arith.constant 0 : i32
    %c0_i32_0 = arith.constant 0 : i32
    %c0_i32_1 = arith.constant 0 : i32
    return %arg1, %c0_i32, %c0_i32_0 : i32, i32, i32
  }
  func.func @transform_3(%arg0: i32, %arg1: i32) -> (i32, i32) {
    %c0_i32 = arith.constant 0 : i32
    %c0_i32_0 = arith.constant 0 : i32
    return %arg1, %c0_i32 : i32, i32
  }
  func.func @transform_4(%arg0: i32, %arg1: i32) -> (i32, i32, i32) {
    %c0_i32 = arith.constant 0 : i32
    %c0_i32_0 = arith.constant 0 : i32
    %c0_i32_1 = arith.constant 0 : i32
    return %arg1, %c0_i32, %c0_i32_0 : i32, i32, i32
  }
  func.func @transform_5(%arg0: i32, %arg1: i32) -> (i32, i32) {
    %c0_i32 = arith.constant 0 : i32
    %c0_i32_0 = arith.constant 0 : i32
    return %arg1, %c0_i32 : i32, i32
  }
  func.func @transform_6(%arg0: i32, %arg1: i32) -> (i32, i32, i32) {
    %c0_i32 = arith.constant 0 : i32
    %c0_i32_0 = arith.constant 0 : i32
    %c0_i32_1 = arith.constant 0 : i32
    return %arg1, %c0_i32, %c0_i32_0 : i32, i32, i32
  }
  func.func @transform_7(%arg0: i32, %arg1: i32) -> (i32, i32, i32) {
    %c0_i32 = arith.constant 0 : i32
    %c0_i32_0 = arith.constant 0 : i32
    %c0_i32_1 = arith.constant 0 : i32
    return %arg0, %c0_i32, %c0_i32_0 : i32, i32, i32
  }
}

module attributes {stable_mosaic.version = 11 : i64} {
  func.func @_scale_conv_kernel(%arg0: i32, %arg1: memref<1x16x1152xbf16, #tpu.memory_space<vmem>>, %arg2: memref<1152x128xbf16, #tpu.memory_space<vmem>>, %arg3: memref<1x128xf32, #tpu.memory_space<vmem>>, %arg4: memref<1x16x128xbf16, #tpu.memory_space<vmem>>) attributes {dimension_semantics = [#tpu.dimension_semantics<parallel>], iteration_bounds = array<i64: 2>, scalar_prefetch = 0 : i64, scratch_operands = 0 : i64, tpu.core_type = #tpu.core_type<tc>, window_params = [{transform_indices = @transform_0, window_bounds = array<i64: 1, 16, 1152>}, {pipeline_mode = #tpu.pipeline_mode<synchronous>, transform_indices = @transform_1, window_bounds = array<i64: 1152, 128>}, {pipeline_mode = #tpu.pipeline_mode<synchronous>, transform_indices = @transform_2, window_bounds = array<i64: 1, 128>}, {transform_indices = @transform_3, window_bounds = array<i64: 1, 16, 128>}]} {
    %c0 = arith.constant 0 : index
    %c0_0 = arith.constant 0 : index
    %c0_1 = arith.constant 0 : index
    %0 = vector.load %arg1[%c0, %c0_0, %c0_1] : memref<1x16x1152xbf16, #tpu.memory_space<vmem>>, vector<1x16x1152xbf16>
    %1 = vector.shape_cast %0 : vector<1x16x1152xbf16> to vector<16x1152xbf16>
    %c0_2 = arith.constant 0 : index
    %c0_3 = arith.constant 0 : index
    %2 = vector.load %arg2[%c0_2, %c0_3] : memref<1152x128xbf16, #tpu.memory_space<vmem>>, vector<1152x128xbf16>
    %cst = arith.constant dense<0.000000e+00> : vector<16x128xf32>
    %3 = tpu.matmul %1, %2, %cst {dimension_numbers = #tpu.dot_dimension_numbers<[1], [0], [0], [1], [0, 0, 1, 1], [], []>} : vector<16x1152xbf16>, vector<1152x128xbf16>, vector<16x128xf32> -> vector<16x128xf32>
    %c0_4 = arith.constant 0 : index
    %c0_5 = arith.constant 0 : index
    %4 = vector.load %arg3[%c0_4, %c0_5] : memref<1x128xf32, #tpu.memory_space<vmem>>, vector<1x128xf32>
    %5 = vector.broadcast %4 : vector<1x128xf32> to vector<16x128xf32>
    %6 = arith.addf %3, %5 : vector<16x128xf32>
    %7 = arith.truncf %6 : vector<16x128xf32> to vector<16x128xbf16>
    %8 = vector.shape_cast %7 : vector<16x128xbf16> to vector<1x16x128xbf16>
    %c0_6 = arith.constant 0 : index
    %c0_7 = arith.constant 0 : index
    %c0_8 = arith.constant 0 : index
    %9 = vector.load %arg4[%c0_6, %c0_7, %c0_8] : memref<1x16x128xbf16, #tpu.memory_space<vmem>>, vector<1x16x128xbf16>
    tpu.vector_store %arg4[%c0_6, %c0_7, %c0_8], %8 {strides = array<i32>} : memref<1x16x128xbf16, #tpu.memory_space<vmem>>, vector<1x16x128xbf16>,
    return
  }
  func.func @transform_0(%arg0: i32) -> (i32, i32, i32) {
    %c0_i32 = arith.constant 0 : i32
    %c0_i32_0 = arith.constant 0 : i32
    %c0_i32_1 = arith.constant 0 : i32
    return %arg0, %c0_i32, %c0_i32_0 : i32, i32, i32
  }
  func.func @transform_1(%arg0: i32) -> (i32, i32) {
    %c0_i32 = arith.constant 0 : i32
    %c0_i32_0 = arith.constant 0 : i32
    %c0_i32_1 = arith.constant 0 : i32
    return %c0_i32, %c0_i32_0 : i32, i32
  }
  func.func @transform_2(%arg0: i32) -> (i32, i32) {
    %c0_i32 = arith.constant 0 : i32
    %c0_i32_0 = arith.constant 0 : i32
    %c0_i32_1 = arith.constant 0 : i32
    return %c0_i32, %c0_i32_0 : i32, i32
  }
  func.func @transform_3(%arg0: i32) -> (i32, i32, i32) {
    %c0_i32 = arith.constant 0 : i32
    %c0_i32_0 = arith.constant 0 : i32
    %c0_i32_1 = arith.constant 0 : i32
    return %arg0, %c0_i32, %c0_i32_0 : i32, i32, i32
  }
}

module attributes {stable_mosaic.version = 11 : i64} {
  func.func @_stack_kernel(%arg0: i32, %arg1: i32, %arg2: memref<1x16x128xbf16, #tpu.memory_space<vmem>>, %arg3: memref<128x128xbf16, #tpu.memory_space<vmem>>, %arg4: memref<1x1x128xf32, #tpu.memory_space<vmem>>, %arg5: memref<1152x128xbf16, #tpu.memory_space<vmem>>, %arg6: memref<1x1x128xf32, #tpu.memory_space<vmem>>, %arg7: memref<128x128xbf16, #tpu.memory_space<vmem>>, %arg8: memref<1x1x128xf32, #tpu.memory_space<vmem>>, %arg9: memref<1x16x128xbf16, #tpu.memory_space<vmem>>, %arg10: memref<16x128xbf16, #tpu.memory_space<vmem>>, %arg11: memref<32x128xf32, #tpu.memory_space<vmem>>) attributes {dimension_semantics = [#tpu.dimension_semantics<parallel>, #tpu.dimension_semantics<arbitrary>], iteration_bounds = array<i64: 2, 2>, scalar_prefetch = 0 : i64, scratch_operands = 2 : i64, tpu.core_type = #tpu.core_type<tc>, window_params = [{transform_indices = @transform_0, window_bounds = array<i64: 1, 16, 128>}, {transform_indices = @transform_1, window_bounds = array<i64: 128, 128>}, {transform_indices = @transform_2, window_bounds = array<i64: 1, 1, 128>}, {transform_indices = @transform_3, window_bounds = array<i64: 1152, 128>}, {transform_indices = @transform_4, window_bounds = array<i64: 1, 1, 128>}, {transform_indices = @transform_5, window_bounds = array<i64: 128, 128>}, {transform_indices = @transform_6, window_bounds = array<i64: 1, 1, 128>}, {transform_indices = @transform_7, window_bounds = array<i64: 1, 16, 128>}]} {
    %c0_i32 = arith.constant 0 : i32
    %0 = arith.cmpi eq, %arg1, %c0_i32 : i32
    %1 = arith.extui %0 : i1 to i32
    %c0_i32_0 = arith.constant 0 : i32
    %2 = arith.cmpi ne, %1, %c0_i32_0 : i32
    scf.if %2 {
      %c0_50 = arith.constant 0 : index
      %c0_51 = arith.constant 0 : index
      %c0_52 = arith.constant 0 : index
      %90 = vector.load %arg2[%c0_50, %c0_51, %c0_52] : memref<1x16x128xbf16, #tpu.memory_space<vmem>>, vector<1x16x128xbf16>
      %91 = vector.shape_cast %90 : vector<1x16x128xbf16> to vector<16x128xbf16>
      %c0_53 = arith.constant 0 : index
      %c0_54 = arith.constant 0 : index
      %92 = vector.load %arg10[%c0_53, %c0_54] : memref<16x128xbf16, #tpu.memory_space<vmem>>, vector<16x128xbf16>
      tpu.vector_store %arg10[%c0_53, %c0_54], %91 {strides = array<i32>} : memref<16x128xbf16, #tpu.memory_space<vmem>>, vector<16x128xbf16>,
      %cst_55 = arith.constant 0.000000e+00 : f32
      %93 = vector.broadcast %cst_55 : f32 to vector<8x128xf32>
      %c0_56 = arith.constant 0 : index
      %c0_57 = arith.constant 0 : index
      %94 = vector.load %arg11[%c0_56, %c0_57] : memref<32x128xf32, #tpu.memory_space<vmem>>, vector<8x128xf32>
      tpu.vector_store %arg11[%c0_56, %c0_57], %93 {strides = array<i32>} : memref<32x128xf32, #tpu.memory_space<vmem>>, vector<8x128xf32>,
      %c24 = arith.constant 24 : index
      %c0_58 = arith.constant 0 : index
      %95 = vector.load %arg11[%c24, %c0_58] : memref<32x128xf32, #tpu.memory_space<vmem>>, vector<8x128xf32>
      tpu.vector_store %arg11[%c24, %c0_58], %93 {strides = array<i32>} : memref<32x128xf32, #tpu.memory_space<vmem>>, vector<8x128xf32>,
    } else {
    }
    %c0 = arith.constant 0 : index
    %c0_1 = arith.constant 0 : index
    %3 = vector.load %arg10[%c0, %c0_1] : memref<16x128xbf16, #tpu.memory_space<vmem>>, vector<16x128xbf16>
    %c0_2 = arith.constant 0 : index
    %c0_3 = arith.constant 0 : index
    %4 = vector.load %arg3[%c0_2, %c0_3] : memref<128x128xbf16, #tpu.memory_space<vmem>>, vector<128x128xbf16>
    %cst = arith.constant dense<0.000000e+00> : vector<16x128xf32>
    %5 = tpu.matmul %3, %4, %cst {dimension_numbers = #tpu.dot_dimension_numbers<[1], [0], [0], [1], [0, 0, 1, 1], [], []>} : vector<16x128xbf16>, vector<128x128xbf16>, vector<16x128xf32> -> vector<16x128xf32>
    %c0_4 = arith.constant 0 : index
    %c0_5 = arith.constant 0 : index
    %c0_6 = arith.constant 0 : index
    %6 = vector.load %arg4[%c0_4, %c0_5, %c0_6] : memref<1x1x128xf32, #tpu.memory_space<vmem>>, vector<1x1x128xf32>
    %7 = vector.shape_cast %6 : vector<1x1x128xf32> to vector<1x128xf32>
    %8 = vector.broadcast %7 : vector<1x128xf32> to vector<16x128xf32>
    %9 = arith.addf %5, %8 : vector<16x128xf32>
    %cst_7 = arith.constant 0.000000e+00 : f32
    %10 = vector.broadcast %cst_7 : f32 to vector<16x128xf32>
    %11 = arith.maximumf %9, %10 : vector<16x128xf32>
    %c8 = arith.constant 8 : index
    %c0_8 = arith.constant 0 : index
    %12 = vector.load %arg11[%c8, %c0_8] : memref<32x128xf32, #tpu.memory_space<vmem>>, vector<16x128xf32>
    tpu.vector_store %arg11[%c8, %c0_8], %11 {strides = array<i32>} : memref<32x128xf32, #tpu.memory_space<vmem>>, vector<16x128xf32>,
    %13 = tpu.iota {dimensions = array<i32: 0>} : vector<16x128xi32>
    %c4_i32 = arith.constant 4 : i32
    %c0_i32_9 = arith.constant 0 : i32
    %14 = arith.cmpi eq, %c4_i32, %c0_i32_9 : i32
    %c1_i32 = arith.constant 1 : i32
    %15 = arith.select %14, %c1_i32, %c4_i32 : i32
    %16 = vector.broadcast %15 : i32 to vector<16x128xi32>
    %17 = arith.remsi %13, %16 : vector<16x128xi32>
    %c0_i32_10 = arith.constant 0 : i32
    %18 = vector.broadcast %c0_i32_10 : i32 to vector<16x128xi32>
    %19 = arith.cmpi ne, %17, %18 : vector<16x128xi32>
    %c0_i32_11 = arith.constant 0 : i32
    %20 = vector.broadcast %c0_i32_11 : i32 to vector<16x128xi32>
    %21 = arith.cmpi slt, %17, %20 : vector<16x128xi32>
    %c0_i32_12 = arith.constant 0 : i32
    %22 = arith.cmpi slt, %15, %c0_i32_12 : i32
    %23 = vector.broadcast %22 : i1 to vector<16x128xi1>
    %24 = vector.broadcast %23 : vector<16x128xi1> to vector<16x128xi1>
    %25 = arith.xori %21, %24 : vector<16x128xi1>
    %26 = arith.andi %25, %19 : vector<16x128xi1>
    %27 = vector.broadcast %15 : i32 to vector<16x128xi32>
    %28 = arith.addi %17, %27 : vector<16x128xi32>
    %29 = arith.select %26, %28, %17 : vector<16x128xi1>, vector<16x128xi32>
    %c0_i32_13 = arith.constant 0 : i32
    %30 = vector.broadcast %c0_i32_13 : i32 to vector<16x128xi32>
    %31 = arith.cmpi sgt, %29, %30 : vector<16x128xi32>
    %c3_i32 = arith.constant 3 : i32
    %32 = vector.broadcast %c3_i32 : i32 to vector<16x128xi32>
    %33 = arith.cmpi slt, %29, %32 : vector<16x128xi32>
    %c7 = arith.constant 7 : index
    %c0_14 = arith.constant 0 : index
    %34 = vector.load %arg11[%c7, %c0_14] : memref<32x128xf32, #tpu.memory_space<vmem>>, vector<16x128xf32>
    %cst_15 = arith.constant 0.000000e+00 : f32
    %35 = vector.broadcast %cst_15 : f32 to vector<16x128xf32>
    %36 = arith.select %31, %34, %35 : vector<16x128xi1>, vector<16x128xf32>
    %c9 = arith.constant 9 : index
    %c0_16 = arith.constant 0 : index
    %37 = vector.load %arg11[%c9, %c0_16] : memref<32x128xf32, #tpu.memory_space<vmem>>, vector<16x128xf32>
    %cst_17 = arith.constant 0.000000e+00 : f32
    %38 = vector.broadcast %cst_17 : f32 to vector<16x128xf32>
    %39 = arith.select %33, %37, %38 : vector<16x128xi1>, vector<16x128xf32>
    %40 = tpu.concatenate %36, %11, %39 in 1 : vector<16x128xf32>, vector<16x128xf32>, vector<16x128xf32> -> vector<16x384xf32>
    %41 = arith.truncf %40 : vector<16x384xf32> to vector<16x384xbf16>
    %c384 = arith.constant 384 : index
    %c0_18 = arith.constant 0 : index
    %42 = vector.load %arg5[%c384, %c0_18] : memref<1152x128xbf16, #tpu.memory_space<vmem>>, vector<384x128xbf16>
    %cst_19 = arith.constant dense<0.000000e+00> : vector<16x128xf32>
    %43 = tpu.matmul %41, %42, %cst_19 {dimension_numbers = #tpu.dot_dimension_numbers<[1], [0], [0], [1], [0, 0, 1, 1], [], []>} : vector<16x384xbf16>, vector<384x128xbf16>, vector<16x128xf32> -> vector<16x128xf32>
    %c4 = arith.constant 4 : index
    %c0_20 = arith.constant 0 : index
    %44 = vector.load %arg11[%c4, %c0_20] : memref<32x128xf32, #tpu.memory_space<vmem>>, vector<16x128xf32>
    %c3 = arith.constant 3 : index
    %c0_21 = arith.constant 0 : index
    %45 = vector.load %arg11[%c3, %c0_21] : memref<32x128xf32, #tpu.memory_space<vmem>>, vector<16x128xf32>
    %cst_22 = arith.constant 0.000000e+00 : f32
    %46 = vector.broadcast %cst_22 : f32 to vector<16x128xf32>
    %47 = arith.select %31, %45, %46 : vector<16x128xi1>, vector<16x128xf32>
    %c5 = arith.constant 5 : index
    %c0_23 = arith.constant 0 : index
    %48 = vector.load %arg11[%c5, %c0_23] : memref<32x128xf32, #tpu.memory_space<vmem>>, vector<16x128xf32>
    %cst_24 = arith.constant 0.000000e+00 : f32
    %49 = vector.broadcast %cst_24 : f32 to vector<16x128xf32>
    %50 = arith.select %33, %48, %49 : vector<16x128xi1>, vector<16x128xf32>
    %51 = tpu.concatenate %47, %44, %50 in 1 : vector<16x128xf32>, vector<16x128xf32>, vector<16x128xf32> -> vector<16x384xf32>
    %52 = arith.truncf %51 : vector<16x384xf32> to vector<16x384xbf16>
    %c0_25 = arith.constant 0 : index
    %c0_26 = arith.constant 0 : index
    %53 = vector.load %arg5[%c0_25, %c0_26] : memref<1152x128xbf16, #tpu.memory_space<vmem>>, vector<384x128xbf16>
    %cst_27 = arith.constant dense<0.000000e+00> : vector<16x128xf32>
    %54 = tpu.matmul %52, %53, %cst_27 {dimension_numbers = #tpu.dot_dimension_numbers<[1], [0], [0], [1], [0, 0, 1, 1], [], []>} : vector<16x384xbf16>, vector<384x128xbf16>, vector<16x128xf32> -> vector<16x128xf32>
    %55 = arith.addf %43, %54 : vector<16x128xf32>
    %c12 = arith.constant 12 : index
    %c0_28 = arith.constant 0 : index
    %56 = vector.load %arg11[%c12, %c0_28] : memref<32x128xf32, #tpu.memory_space<vmem>>, vector<16x128xf32>
    %c11 = arith.constant 11 : index
    %c0_29 = arith.constant 0 : index
    %57 = vector.load %arg11[%c11, %c0_29] : memref<32x128xf32, #tpu.memory_space<vmem>>, vector<16x128xf32>
    %cst_30 = arith.constant 0.000000e+00 : f32
    %58 = vector.broadcast %cst_30 : f32 to vector<16x128xf32>
    %59 = arith.select %31, %57, %58 : vector<16x128xi1>, vector<16x128xf32>
    %c13 = arith.constant 13 : index
    %c0_31 = arith.constant 0 : index
    %60 = vector.load %arg11[%c13, %c0_31] : memref<32x128xf32, #tpu.memory_space<vmem>>, vector<16x128xf32>
    %cst_32 = arith.constant 0.000000e+00 : f32
    %61 = vector.broadcast %cst_32 : f32 to vector<16x128xf32>
    %62 = arith.select %33, %60, %61 : vector<16x128xi1>, vector<16x128xf32>
    %63 = tpu.concatenate %59, %56, %62 in 1 : vector<16x128xf32>, vector<16x128xf32>, vector<16x128xf32> -> vector<16x384xf32>
    %64 = arith.truncf %63 : vector<16x384xf32> to vector<16x384xbf16>
    %c768 = arith.constant 768 : index
    %c0_33 = arith.constant 0 : index
    %65 = vector.load %arg5[%c768, %c0_33] : memref<1152x128xbf16, #tpu.memory_space<vmem>>, vector<384x128xbf16>
    %cst_34 = arith.constant dense<0.000000e+00> : vector<16x128xf32>
    %66 = tpu.matmul %64, %65, %cst_34 {dimension_numbers = #tpu.dot_dimension_numbers<[1], [0], [0], [1], [0, 0, 1, 1], [], []>} : vector<16x384xbf16>, vector<384x128xbf16>, vector<16x128xf32> -> vector<16x128xf32>
    %67 = arith.addf %55, %66 : vector<16x128xf32>
    %c0_35 = arith.constant 0 : index
    %c0_36 = arith.constant 0 : index
    %c0_37 = arith.constant 0 : index
    %68 = vector.load %arg6[%c0_35, %c0_36, %c0_37] : memref<1x1x128xf32, #tpu.memory_space<vmem>>, vector<1x1x128xf32>
    %69 = vector.shape_cast %68 : vector<1x1x128xf32> to vector<1x128xf32>
    %70 = vector.broadcast %69 : vector<1x128xf32> to vector<16x128xf32>
    %71 = arith.addf %67, %70 : vector<16x128xf32>
    %cst_38 = arith.constant 0.000000e+00 : f32
    %72 = vector.broadcast %cst_38 : f32 to vector<16x128xf32>
    %73 = arith.maximumf %71, %72 : vector<16x128xf32>
    %74 = arith.truncf %73 : vector<16x128xf32> to vector<16x128xbf16>
    %c0_39 = arith.constant 0 : index
    %c0_40 = arith.constant 0 : index
    %75 = vector.load %arg7[%c0_39, %c0_40] : memref<128x128xbf16, #tpu.memory_space<vmem>>, vector<128x128xbf16>
    %cst_41 = arith.constant dense<0.000000e+00> : vector<16x128xf32>
    %76 = tpu.matmul %74, %75, %cst_41 {dimension_numbers = #tpu.dot_dimension_numbers<[1], [0], [0], [1], [0, 0, 1, 1], [], []>} : vector<16x128xbf16>, vector<128x128xbf16>, vector<16x128xf32> -> vector<16x128xf32>
    %c0_42 = arith.constant 0 : index
    %c0_43 = arith.constant 0 : index
    %c0_44 = arith.constant 0 : index
    %77 = vector.load %arg8[%c0_42, %c0_43, %c0_44] : memref<1x1x128xf32, #tpu.memory_space<vmem>>, vector<1x1x128xf32>
    %78 = vector.shape_cast %77 : vector<1x1x128xf32> to vector<1x128xf32>
    %79 = vector.broadcast %78 : vector<1x128xf32> to vector<16x128xf32>
    %80 = arith.addf %76, %79 : vector<16x128xf32>
    %81 = arith.extf %3 : vector<16x128xbf16> to vector<16x128xf32>
    %82 = arith.addf %80, %81 : vector<16x128xf32>
    %cst_45 = arith.constant 0.000000e+00 : f32
    %83 = vector.broadcast %cst_45 : f32 to vector<16x128xf32>
    %84 = arith.maximumf %82, %83 : vector<16x128xf32>
    %85 = arith.truncf %84 : vector<16x128xf32> to vector<16x128xbf16>
    %c0_46 = arith.constant 0 : index
    %c0_47 = arith.constant 0 : index
    %86 = vector.load %arg10[%c0_46, %c0_47] : memref<16x128xbf16, #tpu.memory_space<vmem>>, vector<16x128xbf16>
    tpu.vector_store %arg10[%c0_46, %c0_47], %85 {strides = array<i32>} : memref<16x128xbf16, #tpu.memory_space<vmem>>, vector<16x128xbf16>,
    %c1_i32_48 = arith.constant 1 : i32
    %87 = arith.cmpi eq, %arg1, %c1_i32_48 : i32
    %88 = arith.extui %87 : i1 to i32
    %c0_i32_49 = arith.constant 0 : i32
    %89 = arith.cmpi ne, %88, %c0_i32_49 : i32
    scf.if %89 {
      %90 = vector.shape_cast %85 : vector<16x128xbf16> to vector<1x16x128xbf16>
      %c0_50 = arith.constant 0 : index
      %c0_51 = arith.constant 0 : index
      %c0_52 = arith.constant 0 : index
      %91 = vector.load %arg9[%c0_50, %c0_51, %c0_52] : memref<1x16x128xbf16, #tpu.memory_space<vmem>>, vector<1x16x128xbf16>
      tpu.vector_store %arg9[%c0_50, %c0_51, %c0_52], %90 {strides = array<i32>} : memref<1x16x128xbf16, #tpu.memory_space<vmem>>, vector<1x16x128xbf16>,
    } else {
    }
    return
  }
  func.func @transform_0(%arg0: i32, %arg1: i32) -> (i32, i32, i32) {
    %c0_i32 = arith.constant 0 : i32
    %c0_i32_0 = arith.constant 0 : i32
    %c0_i32_1 = arith.constant 0 : i32
    return %arg0, %c0_i32, %c0_i32_0 : i32, i32, i32
  }
  func.func @transform_1(%arg0: i32, %arg1: i32) -> (i32, i32) {
    %c0_i32 = arith.constant 0 : i32
    %c0_i32_0 = arith.constant 0 : i32
    return %arg1, %c0_i32 : i32, i32
  }
  func.func @transform_2(%arg0: i32, %arg1: i32) -> (i32, i32, i32) {
    %c0_i32 = arith.constant 0 : i32
    %c0_i32_0 = arith.constant 0 : i32
    %c0_i32_1 = arith.constant 0 : i32
    return %arg1, %c0_i32, %c0_i32_0 : i32, i32, i32
  }
  func.func @transform_3(%arg0: i32, %arg1: i32) -> (i32, i32) {
    %c0_i32 = arith.constant 0 : i32
    %c0_i32_0 = arith.constant 0 : i32
    return %arg1, %c0_i32 : i32, i32
  }
  func.func @transform_4(%arg0: i32, %arg1: i32) -> (i32, i32, i32) {
    %c0_i32 = arith.constant 0 : i32
    %c0_i32_0 = arith.constant 0 : i32
    %c0_i32_1 = arith.constant 0 : i32
    return %arg1, %c0_i32, %c0_i32_0 : i32, i32, i32
  }
  func.func @transform_5(%arg0: i32, %arg1: i32) -> (i32, i32) {
    %c0_i32 = arith.constant 0 : i32
    %c0_i32_0 = arith.constant 0 : i32
    return %arg1, %c0_i32 : i32, i32
  }
  func.func @transform_6(%arg0: i32, %arg1: i32) -> (i32, i32, i32) {
    %c0_i32 = arith.constant 0 : i32
    %c0_i32_0 = arith.constant 0 : i32
    %c0_i32_1 = arith.constant 0 : i32
    return %arg1, %c0_i32, %c0_i32_0 : i32, i32, i32
  }
  func.func @transform_7(%arg0: i32, %arg1: i32) -> (i32, i32, i32) {
    %c0_i32 = arith.constant 0 : i32
    %c0_i32_0 = arith.constant 0 : i32
    %c0_i32_1 = arith.constant 0 : i32
    return %arg0, %c0_i32, %c0_i32_0 : i32, i32, i32
  }
}

</mosaic_0001>

<llo_original>
// kernel: bottleneck_resnet.5
$region0: #{bottleneck_resnet.5}
  #allocation0 [shape = 'u32[]', space=smem, size = 0x4, offset = 0x4, fixed_abs, tag = 'smem constant byte address 0x4 - core index']
  #allocation1 [shape = 'u32[72,128]{1,0:T(1,128)}', space=vmem, size = 0x9000, scoped, tag = 'internal scratch']
  #allocation2 [shape = 'bf16[256,128]{1,0:T(8,128)(2,1)}', space=vmem, size = 0x10000, scoped, tag = 'scratch operand']
  #allocation3 [shape = 'f32[304,128]{1,0:T(8,128)}', space=vmem, size = 0x26000, scoped, tag = 'scratch operand']
  %s0 = inlined_call_operand.vmem [shape: bf16[2,256,128], index: 0, kind: input, shape index: {}]
  %s1 = inlined_call_operand.vmem [shape: bf16[256,128], index: 1, kind: input, shape index: {}]
  %s2 = inlined_call_operand.vmem [shape: f32[2,1,128], index: 2, kind: input, shape index: {}]
  %s3 = inlined_call_operand.hbm [shape: bf16[2304,128], index: 3, kind: input, shape index: {}]
  %s4 = inlined_call_operand.vmem [shape: f32[2,1,128], index: 4, kind: input, shape index: {}]
  %s5 = inlined_call_operand.vmem [shape: bf16[256,128], index: 5, kind: input, shape index: {}]
  %s6 = inlined_call_operand.vmem [shape: f32[2,1,128], index: 6, kind: input, shape index: {}]
  %s7 = inlined_call_operand.vmem [shape: bf16[2,256,128], index: 7, kind: output, shape index: {}]
  %s8 = sld [smem:[#allocation0]]
  $region73: #{bottleneck_resnet.5} parent=0
    _
  %s10 = ssub.s32 1, %s8
  %s11 = scalar_select 0, %s10, %s8
  $region1: #{bottleneck_resnet.5} parent=0
    #allocation4 [shape = 'u8[589824]{0}', space=vmem, size = 0x90000, scoped, tag = 'input window, operand 3']
    #allocation5 [shape = 's32[2]{0}', space=sflag, size = 0x8, scoped, tag = 'scoped memory for bottleneck_resnet.5']
    %12 = vsyncpa [#allocation5], 0
    %s13 = scalar_lea.sflag [#allocation5], 1
    %14 = vsyncpa %s13, 0
    loop: start=0, step=1, limit=6
    $region2: #{bottleneck_resnet.5} parent=1 // loop_pre_header
      _
    $region3: #{bottleneck_resnet.5} parent=1 // loop_header
      %s16 = sphi 0, %s20
      %p17 = scmp.ge.s32.totalorder %s16, 6
      %s23 = sphi 0, %s35
      %s24 = sphi 0, %s31
      %s25 = sphi 0, %s23
      %s26 = sphi 0, %s24
      %s27 = sphi 0, %s25
      %s28 = sphi 0, %s26
      %s38 = sphi 0, %s40
      %s41 = sphi 0, %s38
      %s42 = sphi 0, %s41
      %s58 = sphi 0, %s42
      %s64 = sphi 0, %s66
      %s67 = sphi 0, %s64
      %s68 = sphi 0, %s67
      %s84 = sphi 0, %s68
      %s90 = sphi 0, %s92
      %s93 = sphi 0, %s90
      %s94 = sphi 0, %s93
      %s110 = sphi 0, %s94
      %s116 = sphi 0, %s118
      %s119 = sphi 0, %s116
      %s120 = sphi 0, %s119
      %s136 = sphi 0, %s120
      %s142 = sphi 0, %s144
      %s145 = sphi 0, %s142
      %s146 = sphi 0, %s145
      %s162 = sphi 0, %s146
      %s168 = sphi 0, %s170
      %s171 = sphi 0, %s168
      %s172 = sphi 0, %s171
      %s188 = sphi 0, %s172
      %s194 = sphi 0, %s196
      %s197 = sphi 0, %s194
      %s198 = sphi 0, %s197
      %s214 = sphi 0, %s198
      %s220 = sphi 0, %s222
      %s223 = sphi 0, %s220
      %s224 = sphi 0, %s223
      %s240 = sphi 0, %s224
    $region4: #{bottleneck_resnet.5} parent=1 // loop_header_branch
      %19 = sbr.rel (%p17) target = $region8
    $region5: #{bottleneck_resnet.5} parent=1 // loop_body
      %s21 = ssub.s32 %s16, 1
      %s22 = ssub.s32 %s16, 2
      %s29 = sadd.s32 1, %s24
      %p30 = scmp.ge.s32.totalorder %s29, 2
      %s31 = scalar_select %p30, 0, %s29
      %s32 = sadd.s32 1, %s23
      %s33 = scalar_select %p30, %s32, %s23
      %p34 = scmp.ge.s32.totalorder %s33, 2
      %s35 = scalar_select %p34, 0, %s33
      %s36 = ssub.s32 %s23, %s35
      %p37 = scmp.eq.s32.totalorder %s36, 0
      %s39 = sadd.s32 %s38, 1
      %s40 = scalar_select %p37, %s38, %s39
      %p43 = pneg %p37
      %p44 = scmp.eq.s32.totalorder %s16, 3
      %p45 = por %p43, %p44
      %p46 = scmp.ne.s32.totalorder %s38, %s41
      %p47 = scmp.eq.s32.totalorder %s16, 0
      %p48 = por %p46, %p47
      %p49 = scmp.ne.s32.totalorder %s38, %s41
      %p50 = scmp.eq.s32.totalorder %s21, 3
      %p51 = por %p49, %p50
      %p52 = scmp.ne.s32.totalorder %s41, %s42
      %p53 = scmp.eq.s32.totalorder %s21, 0
      %p54 = por %p52, %p53
      %p55 = scmp.ne.s32.totalorder %s41, %s42
      %p56 = scmp.eq.s32.totalorder %s22, 3
      %p57 = por %p55, %p56
      %p59 = scmp.ne.s32.totalorder %s42, %s58
      %p60 = scmp.eq.s32.totalorder %s22, 0
      %p61 = por %p59, %p60
      %s62 = ssub.s32 %s24, %s31
      %p63 = scmp.eq.s32.totalorder %s62, 0
      %s65 = sadd.s32 %s64, 1
      %s66 = scalar_select %p63, %s64, %s65
      %p69 = pneg %p63
      %p70 = scmp.eq.s32.totalorder %s16, 3
      %p71 = por %p69, %p70
      %p72 = scmp.ne.s32.totalorder %s64, %s67
      %p73 = scmp.eq.s32.totalorder %s16, 0
      %p74 = por %p72, %p73
      %p75 = scmp.ne.s32.totalorder %s64, %s67
      %p76 = scmp.eq.s32.totalorder %s21, 3
      %p77 = por %p75, %p76
      %p78 = scmp.ne.s32.totalorder %s67, %s68
      %p79 = scmp.eq.s32.totalorder %s21, 0
      %p80 = por %p78, %p79
      %p81 = scmp.ne.s32.totalorder %s67, %s68
      %p82 = scmp.eq.s32.totalorder %s22, 3
      %p83 = por %p81, %p82
      %p85 = scmp.ne.s32.totalorder %s68, %s84
      %p86 = scmp.eq.s32.totalorder %s22, 0
      %p87 = por %p85, %p86
      %s88 = ssub.s32 %s24, %s31
      %p89 = scmp.eq.s32.totalorder %s88, 0
      %s91 = sadd.s32 %s90, 1
      %s92 = scalar_select %p89, %s90, %s91
      %p95 = pneg %p89
      %p96 = scmp.eq.s32.totalorder %s16, 3
      %p97 = por %p95, %p96
      %p98 = scmp.ne.s32.totalorder %s90, %s93
      %p99 = scmp.eq.s32.totalorder %s16, 0
      %p100 = por %p98, %p99
      %p101 = scmp.ne.s32.totalorder %s90, %s93
      %p102 = scmp.eq.s32.totalorder %s21, 3
      %p103 = por %p101, %p102
      %p104 = scmp.ne.s32.totalorder %s93, %s94
      %p105 = scmp.eq.s32.totalorder %s21, 0
      %p106 = por %p104, %p105
      %p107 = scmp.ne.s32.totalorder %s93, %s94
      %p108 = scmp.eq.s32.totalorder %s22, 3
      %p109 = por %p107, %p108
      %p111 = scmp.ne.s32.totalorder %s94, %s110
      %p112 = scmp.eq.s32.totalorder %s22, 0
      %p113 = por %p111, %p112
      %s114 = ssub.s32 %s24, %s31
      %p115 = scmp.eq.s32.totalorder %s114, 0
      %s117 = sadd.s32 %s116, 1
      %s118 = scalar_select %p115, %s116, %s117
      %p121 = pneg %p115
      %p122 = scmp.eq.s32.totalorder %s16, 3
      %p123 = por %p121, %p122
      %p124 = scmp.ne.s32.totalorder %s116, %s119
      %p125 = scmp.eq.s32.totalorder %s16, 0
      %p126 = por %p124, %p125
      %p127 = scmp.ne.s32.totalorder %s116, %s119
      %p128 = scmp.eq.s32.totalorder %s21, 3
      %p129 = por %p127, %p128
      %p130 = scmp.ne.s32.totalorder %s119, %s120
      %p131 = scmp.eq.s32.totalorder %s21, 0
      %p132 = por %p130, %p131
      %p133 = scmp.ne.s32.totalorder %s119, %s120
      %p134 = scmp.eq.s32.totalorder %s22, 3
      %p135 = por %p133, %p134
      %p137 = scmp.ne.s32.totalorder %s120, %s136
      %p138 = scmp.eq.s32.totalorder %s22, 0
      %p139 = por %p137, %p138
      %s140 = ssub.s32 %s24, %s31
      %p141 = scmp.eq.s32.totalorder %s140, 0
      %s143 = sadd.s32 %s142, 1
      %s144 = scalar_select %p141, %s142, %s143
      %p147 = pneg %p141
      %p148 = scmp.eq.s32.totalorder %s16, 3
      %p149 = por %p147, %p148
      %p150 = scmp.ne.s32.totalorder %s142, %s145
      %p151 = scmp.eq.s32.totalorder %s16, 0
      %p152 = por %p150, %p151
      %p153 = scmp.ne.s32.totalorder %s142, %s145
      %p154 = scmp.eq.s32.totalorder %s21, 3
      %p155 = por %p153, %p154
      %p156 = scmp.ne.s32.totalorder %s145, %s146
      %p157 = scmp.eq.s32.totalorder %s21, 0
      %p158 = por %p156, %p157
      %p159 = scmp.ne.s32.totalorder %s145, %s146
      %p160 = scmp.eq.s32.totalorder %s22, 3
      %p161 = por %p159, %p160
      %p163 = scmp.ne.s32.totalorder %s146, %s162
      %p164 = scmp.eq.s32.totalorder %s22, 0
      %p165 = por %p163, %p164
      %s166 = ssub.s32 %s24, %s31
      %p167 = scmp.eq.s32.totalorder %s166, 0
      %s169 = sadd.s32 %s168, 1
      %s170 = scalar_select %p167, %s168, %s169
      %p173 = pneg %p167
      %p174 = scmp.eq.s32.totalorder %s16, 3
      %p175 = por %p173, %p174
      %p176 = scmp.ne.s32.totalorder %s168, %s171
      %p177 = scmp.eq.s32.totalorder %s16, 0
      %p178 = por %p176, %p177
      %p179 = scmp.ne.s32.totalorder %s168, %s171
      %p180 = scmp.eq.s32.totalorder %s21, 3
      %p181 = por %p179, %p180
      %p182 = scmp.ne.s32.totalorder %s171, %s172
      %p183 = scmp.eq.s32.totalorder %s21, 0
      %p184 = por %p182, %p183
      %p185 = scmp.ne.s32.totalorder %s171, %s172
      %p186 = scmp.eq.s32.totalorder %s22, 3
      %p187 = por %p185, %p186
      %p189 = scmp.ne.s32.totalorder %s172, %s188
      %p190 = scmp.eq.s32.totalorder %s22, 0
      %p191 = por %p189, %p190
      %s192 = ssub.s32 %s24, %s31
      %p193 = scmp.eq.s32.totalorder %s192, 0
      %s195 = sadd.s32 %s194, 1
      %s196 = scalar_select %p193, %s194, %s195
      %p199 = pneg %p193
      %p200 = scmp.eq.s32.totalorder %s16, 3
      %p201 = por %p199, %p200
      %p202 = scmp.ne.s32.totalorder %s194, %s197
      %p203 = scmp.eq.s32.totalorder %s16, 0
      %p204 = por %p202, %p203
      %p205 = scmp.ne.s32.totalorder %s194, %s197
      %p206 = scmp.eq.s32.totalorder %s21, 3
      %p207 = por %p205, %p206
      %p208 = scmp.ne.s32.totalorder %s197, %s198
      %p209 = scmp.eq.s32.totalorder %s21, 0
      %p210 = por %p208, %p209
      %p211 = scmp.ne.s32.totalorder %s197, %s198
      %p212 = scmp.eq.s32.totalorder %s22, 3
      %p213 = por %p211, %p212
      %p215 = scmp.ne.s32.totalorder %s198, %s214
      %p216 = scmp.eq.s32.totalorder %s22, 0
      %p217 = por %p215, %p216
      %s218 = ssub.s32 %s23, %s35
      %p219 = scmp.eq.s32.totalorder %s218, 0
      %s221 = sadd.s32 %s220, 1
      %s222 = scalar_select %p219, %s220, %s221
      %p225 = pneg %p219
      %p226 = scmp.eq.s32.totalorder %s16, 3
      %p227 = por %p225, %p226
      %p228 = scmp.ne.s32.totalorder %s220, %s223
      %p229 = scmp.eq.s32.totalorder %s16, 0
      %p230 = por %p228, %p229
      %p231 = scmp.ne.s32.totalorder %s220, %s223
      %p232 = scmp.eq.s32.totalorder %s21, 3
      %p233 = por %p231, %p232
      %p234 = scmp.ne.s32.totalorder %s223, %s224
      %p235 = scmp.eq.s32.totalorder %s21, 0
      %p236 = por %p234, %p235
      %p237 = scmp.ne.s32.totalorder %s223, %s224
      %p238 = scmp.eq.s32.totalorder %s22, 3
      %p239 = por %p237, %p238
      %p241 = scmp.ne.s32.totalorder %s224, %s240
      %p242 = scmp.eq.s32.totalorder %s22, 0
      %p243 = por %p241, %p242
      %p244 = scmp.le.s32.totalorder 1, %s16
      %p245 = scmp.lt.s32.totalorder %s16, 5
      %p246 = pnand %p244, %p245
      %p247 = pneg %p246
      // Predicated region
      $region9: #{bottleneck_resnet.5} parent=5 // pred_check
        _
      $region10: #{bottleneck_resnet.5} parent=5 // pred_check_branch
        %249 = sbr.rel (%p246) target = $region12
      $region11: #{bottleneck_resnet.5} parent=5 // pred_region
        %s250 = ssub.s32 %s16, 1
      $region12: #{bottleneck_resnet.5} parent=5 // pred_fallthru
        _
      %p251 = scmp.lt.s32.totalorder %s16, 4
      // Predicated region
      $region13: #{bottleneck_resnet.5} parent=5 // pred_check
        %p252 = pneg %p251
      $region14: #{bottleneck_resnet.5} parent=5 // pred_check_branch
        %254 = sbr.rel (%p252) target = $region16
      $region15: #{bottleneck_resnet.5} parent=5 // pred_region
        // Predicated region
        $region17: #{bottleneck_resnet.5} parent=15 // pred_check
          %p255 = pneg %p48
        $region18: #{bottleneck_resnet.5} parent=15 // pred_check_branch
          %257 = sbr.rel (%p255) target = $region20
        $region19: #{bottleneck_resnet.5} parent=15 // pred_region
          %p258 = scmp.lt.s32.totalorder %s23, 1
          %s259 = scalar_select %p258, %s23, 1
          %s260 = smul.addr %s259, 32
          %s261 = smul.addr %s260, 4
          %s262 = scalar_lea.vmem %s0, %s261
        $region20: #{bottleneck_resnet.5} parent=15 // pred_fallthru
          _
        // Predicated region
        $region21: #{bottleneck_resnet.5} parent=15 // pred_check
          %p263 = pneg %p74
        $region22: #{bottleneck_resnet.5} parent=15 // pred_check_branch
          %265 = sbr.rel (%p263) target = $region24
        $region23: #{bottleneck_resnet.5} parent=15 // pred_region
          %s266 = smul.u32 16, %s24
          %p267 = scmp.lt.s32.totalorder %s266, 31
          %s268 = scalar_select %p267, %s266, 31
          %s269 = smul.addr %s268, 4
          %s270 = scalar_lea.vmem %s1, %s269
          %s271 = smul.u32 16, %s24
        $region24: #{bottleneck_resnet.5} parent=15 // pred_fallthru
          _
        // Predicated region
        $region25: #{bottleneck_resnet.5} parent=15 // pred_check
          %p272 = pneg %p100
        $region26: #{bottleneck_resnet.5} parent=15 // pred_check_branch
          %274 = sbr.rel (%p272) target = $region28
        $region27: #{bottleneck_resnet.5} parent=15 // pred_region
          %p275 = scmp.lt.s32.totalorder %s24, 1
          %s276 = scalar_select %p275, %s24, 1
          %s277 = scalar_lea.vmem %s2, %s276
        $region28: #{bottleneck_resnet.5} parent=15 // pred_fallthru
          _
        // Predicated region
        $region29: #{bottleneck_resnet.5} parent=15 // pred_check
          %p278 = pneg %p126
        $region30: #{bottleneck_resnet.5} parent=15 // pred_check_branch
          %280 = sbr.rel (%p278) target = $region32
        $region31: #{bottleneck_resnet.5} parent=15 // pred_region
          %s281 = sand.u32 %s116, 1
          %s282 = scalar_lea.sflag [#allocation5], %s281
          %s283 = sand.u32 %s116, 1
          %s284 = smul.addr %s283, 576
          %s285 = scalar_lea.vmem [#allocation4], %s284
          %s286 = smul.u32 144, %s24
          %288 = vsyncadd %s282, 0
          %s289 = smul.addr %s286, 4
          %s290 = scalar_lea.hbm %s3, %s289
          %s291 = sshll.u32 %s290, 4
          %s292 = int_to_ptr.hbm [resolvable:$true] %s291
          %s293 = sshll.u32 %s285, 4
          %s294 = int_to_ptr.vmem [resolvable:$true] %s293
          %299 = dma.hbm_to_vmem [thread:$0]  %s292, 9216, %s294, %s282, 64, 64, 4
        $region32: #{bottleneck_resnet.5} parent=15 // pred_fallthru
          _
        // Predicated region
        $region33: #{bottleneck_resnet.5} parent=15 // pred_check
          %p300 = pneg %p152
        $region34: #{bottleneck_resnet.5} parent=15 // pred_check_branch
          %302 = sbr.rel (%p300) target = $region36
        $region35: #{bottleneck_resnet.5} parent=15 // pred_region
          %p303 = scmp.lt.s32.totalorder %s24, 1
          %s304 = scalar_select %p303, %s24, 1
          %s305 = scalar_lea.vmem %s4, %s304
        $region36: #{bottleneck_resnet.5} parent=15 // pred_fallthru
          _
        // Predicated region
        $region37: #{bottleneck_resnet.5} parent=15 // pred_check
          %p306 = pneg %p178
        $region38: #{bottleneck_resnet.5} parent=15 // pred_check_branch
          %308 = sbr.rel (%p306) target = $region40
        $region39: #{bottleneck_resnet.5} parent=15 // pred_region
          %s309 = smul.u32 16, %s24
          %p310 = scmp.lt.s32.totalorder %s309, 31
          %s311 = scalar_select %p310, %s309, 31
          %s312 = smul.addr %s311, 4
          %s313 = scalar_lea.vmem %s5, %s312
          %s314 = smul.u32 16, %s24
        $region40: #{bottleneck_resnet.5} parent=15 // pred_fallthru
          _
        // Predicated region
        $region41: #{bottleneck_resnet.5} parent=15 // pred_check
          %p315 = pneg %p204
        $region42: #{bottleneck_resnet.5} parent=15 // pred_check_branch
          %317 = sbr.rel (%p315) target = $region44
        $region43: #{bottleneck_resnet.5} parent=15 // pred_region
          %p318 = scmp.lt.s32.totalorder %s24, 1
          %s319 = scalar_select %p318, %s24, 1
          %s320 = scalar_lea.vmem %s6, %s319
        $region44: #{bottleneck_resnet.5} parent=15 // pred_fallthru
          _
      $region16: #{bottleneck_resnet.5} parent=5 // pred_fallthru
        _
      %p321 = scmp.le.s32.totalorder 1, %s16
      %p322 = scmp.lt.s32.totalorder %s16, 5
      %p323 = pnand %p321, %p322
      %p324 = pneg %p323
      // Predicated region
      $region45: #{bottleneck_resnet.5} parent=5 // pred_check
        _
      $region46: #{bottleneck_resnet.5} parent=5 // pred_check_branch
        %326 = sbr.rel (%p323) target = $region48
      $region47: #{bottleneck_resnet.5} parent=5 // pred_region
        %s327 = ssub.s32 %s16, 1
        %s328 = sand.u32 %s119, 1
        %s329 = scalar_lea.sflag [#allocation5], %s328
        %s330 = sand.u32 %s119, 1
        %s331 = smul.addr %s330, 576
        %s332 = scalar_lea.vmem [#allocation4], %s331
        // Predicated region
        $region49: #{bottleneck_resnet.5} parent=47 // pred_check
          %p333 = pneg %p132
        $region50: #{bottleneck_resnet.5} parent=47 // pred_check_branch
          %335 = sbr.rel (%p333) target = $region52
        $region51: #{bottleneck_resnet.5} parent=47 // pred_region
          %337 = dma.done %s329, 9216
        $region52: #{bottleneck_resnet.5} parent=47 // pred_fallthru
          _
        %p338 = scmp.lt.s32.totalorder %s25, 1
        %s339 = scalar_select %p338, %s25, 1
        %s340 = smul.addr %s339, 32
        %s341 = smul.addr %s340, 4
        %s342 = scalar_lea.vmem %s0, %s341
        %p343 = pneg %p54
        %p344 = pneg %p51
        %s345 = smul.u32 16, %s26
        %p346 = scmp.lt.s32.totalorder %s345, 31
        %s347 = scalar_select %p346, %s345, 31
        %s348 = smul.addr %s347, 4
        %s349 = scalar_lea.vmem %s1, %s348
        %p350 = pneg %p80
        %p351 = pneg %p77
        %p352 = scmp.lt.s32.totalorder %s26, 1
        %s353 = scalar_select %p352, %s26, 1
        %s354 = scalar_lea.vmem %s2, %s353
        %p355 = pneg %p106
        %p356 = pneg %p103
        %s357 = sand.u32 %s119, 1
        %s358 = scalar_lea.sflag [#allocation5], %s357
        %s359 = sand.u32 %s119, 1
        %s360 = smul.addr %s359, 576
        %s361 = scalar_lea.vmem [#allocation4], %s360
        %p362 = pneg %p132
        %p363 = pneg %p129
        %p364 = scmp.lt.s32.totalorder %s26, 1
        %s365 = scalar_select %p364, %s26, 1
        %s366 = scalar_lea.vmem %s4, %s365
        %p367 = pneg %p158
        %p368 = pneg %p155
        %s369 = smul.u32 16, %s26
        %p370 = scmp.lt.s32.totalorder %s369, 31
        %s371 = scalar_select %p370, %s369, 31
        %s372 = smul.addr %s371, 4
        %s373 = scalar_lea.vmem %s5, %s372
        %p374 = pneg %p184
        %p375 = pneg %p181
        %p376 = scmp.lt.s32.totalorder %s26, 1
        %s377 = scalar_select %p376, %s26, 1
        %s378 = scalar_lea.vmem %s6, %s377
        %p379 = pneg %p210
        %p380 = pneg %p207
        %p381 = pneg %p236
        %p382 = pneg %p233
        %p383 = scmp.lt.s32.totalorder %s25, 1
        %s384 = scalar_select %p383, %s25, 1
        %s385 = smul.addr %s384, 32
        %s386 = smul.addr %s385, 4
        %s387 = scalar_lea.vmem %s7, %s386
        %p388 = scmp.lt.s32.totalorder %s25, 1
        %s389 = scalar_select %p388, %s25, 1
        %s390 = smul.addr %s389, 32
        %s391 = smul.addr %s390, 4
        %s392 = scalar_lea.vmem %s0, %s391
        %s393 = smul.u32 16, %s26
        %p394 = scmp.lt.s32.totalorder %s393, 31
        %s395 = scalar_select %p394, %s393, 31
        %s396 = smul.addr %s395, 4
        %s397 = scalar_lea.vmem %s1, %s396
        %s398 = smul.u32 16, %s26
        %p399 = scmp.lt.s32.totalorder %s26, 1
        %s400 = scalar_select %p399, %s26, 1
        %s401 = scalar_lea.vmem %s2, %s400
        %s402 = smul.u32 144, %s26
        %p403 = scmp.lt.s32.totalorder %s26, 1
        %s404 = scalar_select %p403, %s26, 1
        %s405 = scalar_lea.vmem %s4, %s404
        %s406 = smul.u32 16, %s26
        %p407 = scmp.lt.s32.totalorder %s406, 31
        %s408 = scalar_select %p407, %s406, 31
        %s409 = smul.addr %s408, 4
        %s410 = scalar_lea.vmem %s5, %s409
        %s411 = smul.u32 16, %s26
        %p412 = scmp.lt.s32.totalorder %s26, 1
        %s413 = scalar_select %p412, %s26, 1
        %s414 = scalar_lea.vmem %s6, %s413
        %p415 = scmp.lt.s32.totalorder %s25, 1
        %s416 = scalar_select %p415, %s25, 1
        %s417 = smul.addr %s416, 32
        %s418 = smul.addr %s417, 4
        %s419 = scalar_lea.vmem %s7, %s418
        %p420 = scmp.eq.s32.totalorder %s26, 0
        // Predicated region
        $region53: #{bottleneck_resnet.5} parent=47 // pred_check
          %p421 = pneg %p420
        $region54: #{bottleneck_resnet.5} parent=47 // pred_check_branch
          %423 = sbr.rel (%p421) target = $region56
        $region55: #{bottleneck_resnet.5} parent=47 // pred_region
          %v424 = vld [vmem:[%s392] sm:$0xf]
          %v425 = vld [vmem:[%s392 + $0x4] sm:$0xf]
          %v426 = vld [vmem:[%s392 + $0x8] sm:$0xf]
          %v427 = vld [vmem:[%s392 + $0xc] sm:$0xf]
          %v428 = vld [vmem:[%s392 + $0x10] sm:$0xf]
          %v429 = vld [vmem:[%s392 + $0x14] sm:$0xf]
          %v430 = vld [vmem:[%s392 + $0x18] sm:$0xf]
          %v431 = vld [vmem:[%s392 + $0x1c] sm:$0xf]
          %v432 = vld [vmem:[%s392 + $0x20] sm:$0xf]
          %v433 = vld [vmem:[%s392 + $0x24] sm:$0xf]
          %v434 = vld [vmem:[%s392 + $0x28] sm:$0xf]
          %v435 = vld [vmem:[%s392 + $0x2c] sm:$0xf]
          %v436 = vld [vmem:[%s392 + $0x30] sm:$0xf]
          %v437 = vld [vmem:[%s392 + $0x34] sm:$0xf]
          %v438 = vld [vmem:[%s392 + $0x38] sm:$0xf]
          %v439 = vld [vmem:[%s392 + $0x3c] sm:$0xf]
          %v440 = vld [vmem:[%s392 + $0x40] sm:$0xf]
          %v441 = vld [vmem:[%s392 + $0x44] sm:$0xf]
          %v442 = vld [vmem:[%s392 + $0x48] sm:$0xf]
          %v443 = vld [vmem:[%s392 + $0x4c] sm:$0xf]
          %v444 = vld [vmem:[%s392 + $0x50] sm:$0xf]
          %v445 = vld [vmem:[%s392 + $0x54] sm:$0xf]
          %v446 = vld [vmem:[%s392 + $0x58] sm:$0xf]
          %v447 = vld [vmem:[%s392 + $0x5c] sm:$0xf]
          %v448 = vld [vmem:[%s392 + $0x60] sm:$0xf]
          %v449 = vld [vmem:[%s392 + $0x64] sm:$0xf]
          %v450 = vld [vmem:[%s392 + $0x68] sm:$0xf]
          %v451 = vld [vmem:[%s392 + $0x6c] sm:$0xf]
          %v452 = vld [vmem:[%s392 + $0x70] sm:$0xf]
          %v453 = vld [vmem:[%s392 + $0x74] sm:$0xf]
          %v454 = vld [vmem:[%s392 + $0x78] sm:$0xf]
          %v455 = vld [vmem:[%s392 + $0x7c] sm:$0xf]
          %456 = vst [vmem:[#allocation2] sm:$0xf] %v424
          %457 = vst [vmem:[#allocation2 + $0x4] sm:$0xf] %v425
          %458 = vst [vmem:[#allocation2 + $0x8] sm:$0xf] %v426
          %459 = vst [vmem:[#allocation2 + $0xc] sm:$0xf] %v427
          %460 = vst [vmem:[#allocation2 + $0x10] sm:$0xf] %v428
          %461 = vst [vmem:[#allocation2 + $0x14] sm:$0xf] %v429
          %462 = vst [vmem:[#allocation2 + $0x18] sm:$0xf] %v430
          %463 = vst [vmem:[#allocation2 + $0x1c] sm:$0xf] %v431
          %464 = vst [vmem:[#allocation2 + $0x20] sm:$0xf] %v432
          %465 = vst [vmem:[#allocation2 + $0x24] sm:$0xf] %v433
          %466 = vst [vmem:[#allocation2 + $0x28] sm:$0xf] %v434
          %467 = vst [vmem:[#allocation2 + $0x2c] sm:$0xf] %v435
          %468 = vst [vmem:[#allocation2 + $0x30] sm:$0xf] %v436
          %469 = vst [vmem:[#allocation2 + $0x34] sm:$0xf] %v437
          %470 = vst [vmem:[#allocation2 + $0x38] sm:$0xf] %v438
          %471 = vst [vmem:[#allocation2 + $0x3c] sm:$0xf] %v439
          %472 = vst [vmem:[#allocation2 + $0x40] sm:$0xf] %v440
          %473 = vst [vmem:[#allocation2 + $0x44] sm:$0xf] %v441
          %474 = vst [vmem:[#allocation2 + $0x48] sm:$0xf] %v442
          %475 = vst [vmem:[#allocation2 + $0x4c] sm:$0xf] %v443
          %476 = vst [vmem:[#allocation2 + $0x50] sm:$0xf] %v444
          %477 = vst [vmem:[#allocation2 + $0x54] sm:$0xf] %v445
          %478 = vst [vmem:[#allocation2 + $0x58] sm:$0xf] %v446
          %479 = vst [vmem:[#allocation2 + $0x5c] sm:$0xf] %v447
          %480 = vst [vmem:[#allocation2 + $0x60] sm:$0xf] %v448
          %481 = vst [vmem:[#allocation2 + $0x64] sm:$0xf] %v449
          %482 = vst [vmem:[#allocation2 + $0x68] sm:$0xf] %v450
          %483 = vst [vmem:[#allocation2 + $0x6c] sm:$0xf] %v451
          %484 = vst [vmem:[#allocation2 + $0x70] sm:$0xf] %v452
          %485 = vst [vmem:[#allocation2 + $0x74] sm:$0xf] %v453
          %486 = vst [vmem:[#allocation2 + $0x78] sm:$0xf] %v454
          %487 = vst [vmem:[#allocation2 + $0x7c] sm:$0xf] %v455
          %488 = vst [vmem:[#allocation3] sm:$0xff] 0.0
          %489 = vst [vmem:[#allocation3 + $0x8] sm:$0xff] 0.0
          %490 = vst [vmem:[#allocation3 + $0x10] sm:$0xff] 0.0
          %491 = vst [vmem:[#allocation3 + $0x118] sm:$0xff] 0.0
          %492 = vst [vmem:[#allocation3 + $0x120] sm:$0xff] 0.0
          %493 = vst [vmem:[#allocation3 + $0x128] sm:$0xff] 0.0
        $region56: #{bottleneck_resnet.5} parent=47 // pred_fallthru
          _
        %v494 = vld [vmem:[#allocation2] sm:$0xf]
        %v495 = vld [vmem:[#allocation2 + $0x4] sm:$0xf]
        %v496 = vld [vmem:[#allocation2 + $0x8] sm:$0xf]
        %v497 = vld [vmem:[#allocation2 + $0xc] sm:$0xf]
        %v498 = vld [vmem:[#allocation2 + $0x10] sm:$0xf]
        %v499 = vld [vmem:[#allocation2 + $0x14] sm:$0xf]
        %v500 = vld [vmem:[#allocation2 + $0x18] sm:$0xf]
        %v501 = vld [vmem:[#allocation2 + $0x1c] sm:$0xf]
        %v502 = vld [vmem:[#allocation2 + $0x20] sm:$0xf]
        %v503 = vld [vmem:[#allocation2 + $0x24] sm:$0xf]
        %v504 = vld [vmem:[#allocation2 + $0x28] sm:$0xf]
        %v505 = vld [vmem:[#allocation2 + $0x2c] sm:$0xf]
        %v506 = vld [vmem:[#allocation2 + $0x30] sm:$0xf]
        %v507 = vld [vmem:[#allocation2 + $0x34] sm:$0xf]
        %v508 = vld [vmem:[#allocation2 + $0x38] sm:$0xf]
        %v509 = vld [vmem:[#allocation2 + $0x3c] sm:$0xf]
        %v510 = vld [vmem:[#allocation2 + $0x40] sm:$0xf]
        %v511 = vld [vmem:[#allocation2 + $0x44] sm:$0xf]
        %v512 = vld [vmem:[#allocation2 + $0x48] sm:$0xf]
        %v513 = vld [vmem:[#allocation2 + $0x4c] sm:$0xf]
        %v514 = vld [vmem:[#allocation2 + $0x50] sm:$0xf]
        %v515 = vld [vmem:[#allocation2 + $0x54] sm:$0xf]
        %v516 = vld [vmem:[#allocation2 + $0x58] sm:$0xf]
        %v517 = vld [vmem:[#allocation2 + $0x5c] sm:$0xf]
        %v518 = vld [vmem:[#allocation2 + $0x60] sm:$0xf]
        %v519 = vld [vmem:[#allocation2 + $0x64] sm:$0xf]
        %v520 = vld [vmem:[#allocation2 + $0x68] sm:$0xf]
        %v521 = vld [vmem:[#allocation2 + $0x6c] sm:$0xf]
        %v522 = vld [vmem:[#allocation2 + $0x70] sm:$0xf]
        %v523 = vld [vmem:[#allocation2 + $0x74] sm:$0xf]
        %v524 = vld [vmem:[#allocation2 + $0x78] sm:$0xf]
        %v525 = vld [vmem:[#allocation2 + $0x7c] sm:$0xf]
        %v526 = vld [vmem:[%s397] sm:$0xf]
        %v527 = vld [vmem:[%s397 + $0x4] sm:$0xf]
        %v528 = vld [vmem:[%s397 + $0x8] sm:$0xf]
        %v529 = vld [vmem:[%s397 + $0xc] sm:$0xf]
        %v530 = vld [vmem:[%s397 + $0x10] sm:$0xf]
        %v531 = vld [vmem:[%s397 + $0x14] sm:$0xf]
        %v532 = vld [vmem:[%s397 + $0x18] sm:$0xf]
        %v533 = vld [vmem:[%s397 + $0x1c] sm:$0xf]
        %v534 = vld [vmem:[%s397 + $0x20] sm:$0xf]
        %v535 = vld [vmem:[%s397 + $0x24] sm:$0xf]
        %v536 = vld [vmem:[%s397 + $0x28] sm:$0xf]
        %v537 = vld [vmem:[%s397 + $0x2c] sm:$0xf]
        %v538 = vld [vmem:[%s397 + $0x30] sm:$0xf]
        %v539 = vld [vmem:[%s397 + $0x34] sm:$0xf]
        %v540 = vld [vmem:[%s397 + $0x38] sm:$0xf]
        %v541 = vld [vmem:[%s397 + $0x3c] sm:$0xf]
        %v542 = vld [vmem:[%s401] sm:$0x1]
        %v544 = vperm.slane %v542, 0
        %v578 = vunpack.c.l.b16 %v494
        %v579 = vunpack.c.l.b16 %v495
        %v580 = vunpack.c.l.b16 %v496
        %v581 = vunpack.c.l.b16 %v497
        %v582 = vunpack.c.l.b16 %v498
        %v583 = vunpack.c.l.b16 %v499
        %v584 = vunpack.c.l.b16 %v500
        %v585 = vunpack.c.l.b16 %v501
        %v586 = vunpack.c.l.b16 %v502
        %v587 = vunpack.c.l.b16 %v503
        %v588 = vunpack.c.l.b16 %v504
        %v589 = vunpack.c.l.b16 %v505
        %v590 = vunpack.c.l.b16 %v506
        %v591 = vunpack.c.l.b16 %v507
        %v592 = vunpack.c.l.b16 %v508
        %v593 = vunpack.c.l.b16 %v509
        %v594 = vunpack.c.l.b16 %v510
        %v595 = vunpack.c.l.b16 %v511
        %v596 = vunpack.c.l.b16 %v512
        %v597 = vunpack.c.l.b16 %v513
        %v598 = vunpack.c.l.b16 %v514
        %v599 = vunpack.c.l.b16 %v515
        %v600 = vunpack.c.l.b16 %v516
        %v601 = vunpack.c.l.b16 %v517
        %v602 = vunpack.c.l.b16 %v518
        %v603 = vunpack.c.l.b16 %v519
        %v604 = vunpack.c.l.b16 %v520
        %v605 = vunpack.c.l.b16 %v521
        %v606 = vunpack.c.l.b16 %v522
        %v607 = vunpack.c.l.b16 %v523
        %v608 = vunpack.c.l.b16 %v524
        %v609 = vunpack.c.l.b16 %v525
        %v610 = vpack.c.b16 %v579, %v578
        %v611 = vpack.c.b16 %v581, %v580
        %v612 = vpack.c.b16 %v583, %v582
        %v613 = vpack.c.b16 %v585, %v584
        %v614 = vpack.c.b16 %v587, %v586
        %v615 = vpack.c.b16 %v589, %v588
        %v616 = vpack.c.b16 %v591, %v590
        %v617 = vpack.c.b16 %v593, %v592
        %v618 = vpack.c.b16 %v595, %v594
        %v619 = vpack.c.b16 %v597, %v596
        %v620 = vpack.c.b16 %v599, %v598
        %v621 = vpack.c.b16 %v601, %v600
        %v622 = vpack.c.b16 %v603, %v602
        %v623 = vpack.c.b16 %v605, %v604
        %v624 = vpack.c.b16 %v607, %v606
        %v625 = vpack.c.b16 %v609, %v608
        %v658 = vunpack.c.l.b16 %v526
        %v659 = vunpack.c.l.b16 %v527
        %v660 = vunpack.c.l.b16 %v528
        %v661 = vunpack.c.l.b16 %v529
        %v662 = vunpack.c.l.b16 %v530
        %v663 = vunpack.c.l.b16 %v531
        %v664 = vunpack.c.l.b16 %v532
        %v665 = vunpack.c.l.b16 %v533
        %v666 = vunpack.c.l.b16 %v534
        %v667 = vunpack.c.l.b16 %v535
        %v668 = vunpack.c.l.b16 %v536
        %v669 = vunpack.c.l.b16 %v537
        %v670 = vunpack.c.l.b16 %v538
        %v671 = vunpack.c.l.b16 %v539
        %v672 = vunpack.c.l.b16 %v540
        %v673 = vunpack.c.l.b16 %v541
        %v674 = vpack.c.b16 %v659, %v658
        %v675 = vpack.c.b16 %v661, %v660
        %v676 = vpack.c.b16 %v663, %v662
        %v677 = vpack.c.b16 %v665, %v664
        %v678 = vpack.c.b16 %v667, %v666
        %v679 = vpack.c.b16 %v669, %v668
        %v680 = vpack.c.b16 %v671, %v670
        %v681 = vpack.c.b16 %v673, %v672
        %690 = vmatpush.bf16.msra.mxu0 %v681
        %691 = vmatpush.bf16.msra.mxu0 %v680
        %692 = vmatpush.bf16.msra.mxu0 %v679
        %693 = vmatpush.bf16.msra.mxu0 %v678
        %694 = vmatpush.bf16.msra.mxu0 %v677
        %695 = vmatpush.bf16.msra.mxu0 %v676
        %696 = vmatpush.bf16.msra.mxu0 %v675
        %697 = vmatpush.bf16.msra.mxu0 %v674
        %698 = vmatmul.bf16.gmra.mxu0 %v610
        %v699 = vpop.f32.mrf.mxu0
        %v700 = vadd.f32 %v544, %v699
        %v701 = vpop.f32.mrf.mxu0
        %v702 = vadd.f32 %v544, %v701
        %703 = vmatmul.bf16.gmra.mxu0 %v611
        %v704 = vpop.f32.mrf.mxu0
        %v705 = vadd.f32 %v544, %v704
        %v706 = vpop.f32.mrf.mxu0
        %v707 = vadd.f32 %v544, %v706
        %708 = vmatmul.bf16.gmra.mxu0 %v612
        %v709 = vpop.f32.mrf.mxu0
        %v710 = vadd.f32 %v544, %v709
        %v711 = vpop.f32.mrf.mxu0
        %v712 = vadd.f32 %v544, %v711
        %713 = vmatmul.bf16.gmra.mxu0 %v613
        %v714 = vpop.f32.mrf.mxu0
        %v715 = vadd.f32 %v544, %v714
        %v716 = vpop.f32.mrf.mxu0
        %v717 = vadd.f32 %v544, %v716
        %718 = vmatmul.bf16.gmra.mxu0 %v614
        %v719 = vpop.f32.mrf.mxu0
        %v720 = vadd.f32 %v544, %v719
        %v721 = vpop.f32.mrf.mxu0
        %v722 = vadd.f32 %v544, %v721
        %723 = vmatmul.bf16.gmra.mxu0 %v615
        %v724 = vpop.f32.mrf.mxu0
        %v725 = vadd.f32 %v544, %v724
        %v726 = vpop.f32.mrf.mxu0
        %v727 = vadd.f32 %v544, %v726
        %728 = vmatmul.bf16.gmra.mxu0 %v616
        %v729 = vpop.f32.mrf.mxu0
        %v730 = vadd.f32 %v544, %v729
        %v731 = vpop.f32.mrf.mxu0
        %v732 = vadd.f32 %v544, %v731
        %733 = vmatmul.bf16.gmra.mxu0 %v617
        %v734 = vpop.f32.mrf.mxu0
        %v735 = vadd.f32 %v544, %v734
        %v736 = vpop.f32.mrf.mxu0
        %v737 = vadd.f32 %v544, %v736
        %738 = vmatmul.bf16.gmra.mxu0 %v618
        %v739 = vpop.f32.mrf.mxu0
        %v740 = vadd.f32 %v544, %v739
        %v741 = vpop.f32.mrf.mxu0
        %v742 = vadd.f32 %v544, %v741
        %743 = vmatmul.bf16.gmra.mxu0 %v619
        %v744 = vpop.f32.mrf.mxu0
        %v745 = vadd.f32 %v544, %v744
        %v746 = vpop.f32.mrf.mxu0
        %v747 = vadd.f32 %v544, %v746
        %748 = vmatmul.bf16.gmra.mxu0 %v620
        %v749 = vpop.f32.mrf.mxu0
        %v750 = vadd.f32 %v544, %v749
        %v751 = vpop.f32.mrf.mxu0
        %v752 = vadd.f32 %v544, %v751
        %753 = vmatmul.bf16.gmra.mxu0 %v621
        %v754 = vpop.f32.mrf.mxu0
        %v755 = vadd.f32 %v544, %v754
        %v756 = vpop.f32.mrf.mxu0
        %v757 = vadd.f32 %v544, %v756
        %758 = vmatmul.bf16.gmra.mxu0 %v622
        %v759 = vpop.f32.mrf.mxu0
        %v760 = vadd.f32 %v544, %v759
        %v761 = vpop.f32.mrf.mxu0
        %v762 = vadd.f32 %v544, %v761
        %763 = vmatmul.bf16.gmra.mxu0 %v623
        %v764 = vpop.f32.mrf.mxu0
        %v765 = vadd.f32 %v544, %v764
        %v766 = vpop.f32.mrf.mxu0
        %v767 = vadd.f32 %v544, %v766
        %768 = vmatmul.bf16.gmra.mxu0 %v624
        %v769 = vpop.f32.mrf.mxu0
        %v770 = vadd.f32 %v544, %v769
        %v771 = vpop.f32.mrf.mxu0
        %v772 = vadd.f32 %v544, %v771
        %773 = vmatmul.bf16.gmra.mxu0 %v625
        %v774 = vpop.f32.mrf.mxu0
        %v775 = vadd.f32 %v544, %v774
        %v776 = vpop.f32.mrf.mxu0
        %v777 = vadd.f32 %v544, %v776
        %778 = vdwg.mxu0
        %v779 = vmax.f32 %v700, 0.0
        %v780 = vmax.f32 %v702, 0.0
        %v781 = vmax.f32 %v705, 0.0
        %v782 = vmax.f32 %v707, 0.0
        %v783 = vmax.f32 %v710, 0.0
        %v784 = vmax.f32 %v712, 0.0
        %v785 = vmax.f32 %v715, 0.0
        %v786 = vmax.f32 %v717, 0.0
        %v787 = vmax.f32 %v720, 0.0
        %v788 = vmax.f32 %v722, 0.0
        %v789 = vmax.f32 %v725, 0.0
        %v790 = vmax.f32 %v727, 0.0
        %v791 = vmax.f32 %v730, 0.0
        %v792 = vmax.f32 %v732, 0.0
        %v793 = vmax.f32 %v735, 0.0
        %v794 = vmax.f32 %v737, 0.0
        %v795 = vmax.f32 %v740, 0.0
        %v796 = vmax.f32 %v742, 0.0
        %v797 = vmax.f32 %v745, 0.0
        %v798 = vmax.f32 %v747, 0.0
        %v799 = vmax.f32 %v750, 0.0
        %v800 = vmax.f32 %v752, 0.0
        %v801 = vmax.f32 %v755, 0.0
        %v802 = vmax.f32 %v757, 0.0
        %v803 = vmax.f32 %v760, 0.0
        %v804 = vmax.f32 %v762, 0.0
        %v805 = vmax.f32 %v765, 0.0
        %v806 = vmax.f32 %v767, 0.0
        %v807 = vmax.f32 %v770, 0.0
        %v808 = vmax.f32 %v772, 0.0
        %v809 = vmax.f32 %v775, 0.0
        %v810 = vmax.f32 %v777, 0.0
        %811 = vst [vmem:[#allocation3 + $0x18] sm:$0xff] %v779
        %812 = vst [vmem:[#allocation3 + $0x20] sm:$0xff] %v780
        %813 = vst [vmem:[#allocation3 + $0x28] sm:$0xff] %v781
        %814 = vst [vmem:[#allocation3 + $0x30] sm:$0xff] %v782
        %815 = vst [vmem:[#allocation3 + $0x38] sm:$0xff] %v783
        %816 = vst [vmem:[#allocation3 + $0x40] sm:$0xff] %v784
        %817 = vst [vmem:[#allocation3 + $0x48] sm:$0xff] %v785
        %818 = vst [vmem:[#allocation3 + $0x50] sm:$0xff] %v786
        %819 = vst [vmem:[#allocation3 + $0x58] sm:$0xff] %v787
        %820 = vst [vmem:[#allocation3 + $0x60] sm:$0xff] %v788
        %821 = vst [vmem:[#allocation3 + $0x68] sm:$0xff] %v789
        %822 = vst [vmem:[#allocation3 + $0x70] sm:$0xff] %v790
        %823 = vst [vmem:[#allocation3 + $0x78] sm:$0xff] %v791
        %824 = vst [vmem:[#allocation3 + $0x80] sm:$0xff] %v792
        %825 = vst [vmem:[#allocation3 + $0x88] sm:$0xff] %v793
        %826 = vst [vmem:[#allocation3 + $0x90] sm:$0xff] %v794
        %827 = vst [vmem:[#allocation3 + $0x98] sm:$0xff] %v795
        %828 = vst [vmem:[#allocation3 + $0xa0] sm:$0xff] %v796
        %829 = vst [vmem:[#allocation3 + $0xa8] sm:$0xff] %v797
        %830 = vst [vmem:[#allocation3 + $0xb0] sm:$0xff] %v798
        %831 = vst [vmem:[#allocation3 + $0xb8] sm:$0xff] %v799
        %832 = vst [vmem:[#allocation3 + $0xc0] sm:$0xff] %v800
        %833 = vst [vmem:[#allocation3 + $0xc8] sm:$0xff] %v801
        %834 = vst [vmem:[#allocation3 + $0xd0] sm:$0xff] %v802
        %835 = vst [vmem:[#allocation3 + $0xd8] sm:$0xff] %v803
        %836 = vst [vmem:[#allocation3 + $0xe0] sm:$0xff] %v804
        %837 = vst [vmem:[#allocation3 + $0xe8] sm:$0xff] %v805
        %838 = vst [vmem:[#allocation3 + $0xf0] sm:$0xff] %v806
        %839 = vst [vmem:[#allocation3 + $0xf8] sm:$0xff] %v807
        %840 = vst [vmem:[#allocation3 + $0x100] sm:$0xff] %v808
        %841 = vst [vmem:[#allocation3 + $0x108] sm:$0xff] %v809
        %842 = vst [vmem:[#allocation3 + $0x110] sm:$0xff] %v810
        %v843 = vlaneseq
        %v844 = vshrl.u32 %v843, 7
        %v845 = vadd.s32 %v844, 8
        %v846 = vadd.s32 %v844, 16
        %v847 = vadd.s32 %v844, 24
        %v848 = vadd.s32 %v844, 32
        %v849 = vadd.s32 %v844, 40
        %v850 = vadd.s32 %v844, 48
        %v851 = vadd.s32 %v844, 56
        %v852 = vadd.s32 %v844, 64
        %v853 = vadd.s32 %v844, 72
        %v854 = vadd.s32 %v844, 80
        %v855 = vadd.s32 %v844, 88
        %v856 = vadd.s32 %v844, 96
        %v857 = vadd.s32 %v844, 104
        %v858 = vadd.s32 %v844, 112
        %v859 = vadd.s32 %v844, 120
        %v860 = vadd.s32 %v844, 128
        %v861 = vadd.s32 %v844, 136
        %v862 = vadd.s32 %v844, 144
        %v863 = vadd.s32 %v844, 152
        %v864 = vadd.s32 %v844, 160
        %v865 = vadd.s32 %v844, 168
        %v866 = vadd.s32 %v844, 176
        %v867 = vadd.s32 %v844, 184
        %v868 = vadd.s32 %v844, 192
        %v869 = vadd.s32 %v844, 200
        %v870 = vadd.s32 %v844, 208
        %v871 = vadd.s32 %v844, 216
        %v872 = vadd.s32 %v844, 224
        %v873 = vadd.s32 %v844, 232
        %v874 = vadd.s32 %v844, 240
        %v875 = vadd.s32 %v844, 248
        %vm876 = vcmp.lt.s32.totalorder %v844, 0
        %v877 = vsub.s32 0, %v844
        %v878 = vsel %vm876, %v877, %v844
        %v879 = vshrl.u32 %v878, 4
        %v880 = vand.u32 %v878, 15
        %v881 = vsub.s32 0, %v880
        %v882 = vsel %vm876, %v881, %v880
        %vm883 = vcmp.lt.s32.totalorder %v845, 0
        %v884 = vsub.s32 0, %v845
        %v885 = vsel %vm883, %v884, %v845
        %v886 = vshrl.u32 %v885, 4
        %v887 = vand.u32 %v885, 15
        %v888 = vsub.s32 0, %v887
        %v889 = vsel %vm883, %v888, %v887
        %vm890 = vcmp.lt.s32.totalorder %v846, 0
        %v891 = vsub.s32 0, %v846
        %v892 = vsel %vm890, %v891, %v846
        %v893 = vshrl.u32 %v892, 4
        %v894 = vand.u32 %v892, 15
        %v895 = vsub.s32 0, %v894
        %v896 = vsel %vm890, %v895, %v894
        %vm897 = vcmp.lt.s32.totalorder %v847, 0
        %v898 = vsub.s32 0, %v847
        %v899 = vsel %vm897, %v898, %v847
        %v900 = vshrl.u32 %v899, 4
        %v901 = vand.u32 %v899, 15
        %v902 = vsub.s32 0, %v901
        %v903 = vsel %vm897, %v902, %v901
        %vm904 = vcmp.lt.s32.totalorder %v848, 0
        %v905 = vsub.s32 0, %v848
        %v906 = vsel %vm904, %v905, %v848
        %v907 = vshrl.u32 %v906, 4
        %v908 = vand.u32 %v906, 15
        %v909 = vsub.s32 0, %v908
        %v910 = vsel %vm904, %v909, %v908
        %vm911 = vcmp.lt.s32.totalorder %v849, 0
        %v912 = vsub.s32 0, %v849
        %v913 = vsel %vm911, %v912, %v849
        %v914 = vshrl.u32 %v913, 4
        %v915 = vand.u32 %v913, 15
        %v916 = vsub.s32 0, %v915
        %v917 = vsel %vm911, %v916, %v915
        %vm918 = vcmp.lt.s32.totalorder %v850, 0
        %v919 = vsub.s32 0, %v850
        %v920 = vsel %vm918, %v919, %v850
        %v921 = vshrl.u32 %v920, 4
        %v922 = vand.u32 %v920, 15
        %v923 = vsub.s32 0, %v922
        %v924 = vsel %vm918, %v923, %v922
        %vm925 = vcmp.lt.s32.totalorder %v851, 0
        %v926 = vsub.s32 0, %v851
        %v927 = vsel %vm925, %v926, %v851
        %v928 = vshrl.u32 %v927, 4
        %v929 = vand.u32 %v927, 15
        %v930 = vsub.s32 0, %v929
        %v931 = vsel %vm925, %v930, %v929
        %vm932 = vcmp.lt.s32.totalorder %v852, 0
        %v933 = vsub.s32 0, %v852
        %v934 = vsel %vm932, %v933, %v852
        %v935 = vshrl.u32 %v934, 4
        %v936 = vand.u32 %v934, 15
        %v937 = vsub.s32 0, %v936
        %v938 = vsel %vm932, %v937, %v936
        %vm939 = vcmp.lt.s32.totalorder %v853, 0
        %v940 = vsub.s32 0, %v853
        %v941 = vsel %vm939, %v940, %v853
        %v942 = vshrl.u32 %v941, 4
        %v943 = vand.u32 %v941, 15
        %v944 = vsub.s32 0, %v943
        %v945 = vsel %vm939, %v944, %v943
        %vm946 = vcmp.lt.s32.totalorder %v854, 0
        %v947 = vsub.s32 0, %v854
        %v948 = vsel %vm946, %v947, %v854
        %v949 = vshrl.u32 %v948, 4
        %v950 = vand.u32 %v948, 15
        %v951 = vsub.s32 0, %v950
        %v952 = vsel %vm946, %v951, %v950
        %vm953 = vcmp.lt.s32.totalorder %v855, 0
        %v954 = vsub.s32 0, %v855
        %v955 = vsel %vm953, %v954, %v855
        %v956 = vshrl.u32 %v955, 4
        %v957 = vand.u32 %v955, 15
        %v958 = vsub.s32 0, %v957
        %v959 = vsel %vm953, %v958, %v957
        %vm960 = vcmp.lt.s32.totalorder %v856, 0
        %v961 = vsub.s32 0, %v856
        %v962 = vsel %vm960, %v961, %v856
        %v963 = vshrl.u32 %v962, 4
        %v964 = vand.u32 %v962, 15
        %v965 = vsub.s32 0, %v964
        %v966 = vsel %vm960, %v965, %v964
        %vm967 = vcmp.lt.s32.totalorder %v857, 0
        %v968 = vsub.s32 0, %v857
        %v969 = vsel %vm967, %v968, %v857
        %v970 = vshrl.u32 %v969, 4
        %v971 = vand.u32 %v969, 15
        %v972 = vsub.s32 0, %v971
        %v973 = vsel %vm967, %v972, %v971
        %vm974 = vcmp.lt.s32.totalorder %v858, 0
        %v975 = vsub.s32 0, %v858
        %v976 = vsel %vm974, %v975, %v858
        %v977 = vshrl.u32 %v976, 4
        %v978 = vand.u32 %v976, 15
        %v979 = vsub.s32 0, %v978
        %v980 = vsel %vm974, %v979, %v978
        %vm981 = vcmp.lt.s32.totalorder %v859, 0
        %v982 = vsub.s32 0, %v859
        %v983 = vsel %vm981, %v982, %v859
        %v984 = vshrl.u32 %v983, 4
        %v985 = vand.u32 %v983, 15
        %v986 = vsub.s32 0, %v985
        %v987 = vsel %vm981, %v986, %v985
        %vm988 = vcmp.lt.s32.totalorder %v860, 0
        %v989 = vsub.s32 0, %v860
        %v990 = vsel %vm988, %v989, %v860
        %v991 = vshrl.u32 %v990, 4
        %v992 = vand.u32 %v990, 15
        %v993 = vsub.s32 0, %v992
        %v994 = vsel %vm988, %v993, %v992
        %vm995 = vcmp.lt.s32.totalorder %v861, 0
        %v996 = vsub.s32 0, %v861
        %v997 = vsel %vm995, %v996, %v861
        %v998 = vshrl.u32 %v997, 4
        %v999 = vand.u32 %v997, 15
        %v1000 = vsub.s32 0, %v999
        %v1001 = vsel %vm995, %v1000, %v999
        %vm1002 = vcmp.lt.s32.totalorder %v862, 0
        %v1003 = vsub.s32 0, %v862
        %v1004 = vsel %vm1002, %v1003, %v862
        %v1005 = vshrl.u32 %v1004, 4
        %v1006 = vand.u32 %v1004, 15
        %v1007 = vsub.s32 0, %v1006
        %v1008 = vsel %vm1002, %v1007, %v1006
        %vm1009 = vcmp.lt.s32.totalorder %v863, 0
        %v1010 = vsub.s32 0, %v863
        %v1011 = vsel %vm1009, %v1010, %v863
        %v1012 = vshrl.u32 %v1011, 4
        %v1013 = vand.u32 %v1011, 15
        %v1014 = vsub.s32 0, %v1013
        %v1015 = vsel %vm1009, %v1014, %v1013
        %vm1016 = vcmp.lt.s32.totalorder %v864, 0
        %v1017 = vsub.s32 0, %v864
        %v1018 = vsel %vm1016, %v1017, %v864
        %v1019 = vshrl.u32 %v1018, 4
        %v1020 = vand.u32 %v1018, 15
        %v1021 = vsub.s32 0, %v1020
        %v1022 = vsel %vm1016, %v1021, %v1020
        %vm1023 = vcmp.lt.s32.totalorder %v865, 0
        %v1024 = vsub.s32 0, %v865
        %v1025 = vsel %vm1023, %v1024, %v865
        %v1026 = vshrl.u32 %v1025, 4
        %v1027 = vand.u32 %v1025, 15
        %v1028 = vsub.s32 0, %v1027
        %v1029 = vsel %vm1023, %v1028, %v1027
        %vm1030 = vcmp.lt.s32.totalorder %v866, 0
        %v1031 = vsub.s32 0, %v866
        %v1032 = vsel %vm1030, %v1031, %v866
        %v1033 = vshrl.u32 %v1032, 4
        %v1034 = vand.u32 %v1032, 15
        %v1035 = vsub.s32 0, %v1034
        %v1036 = vsel %vm1030, %v1035, %v1034
        %vm1037 = vcmp.lt.s32.totalorder %v867, 0
        %v1038 = vsub.s32 0, %v867
        %v1039 = vsel %vm1037, %v1038, %v867
        %v1040 = vshrl.u32 %v1039, 4
        %v1041 = vand.u32 %v1039, 15
        %v1042 = vsub.s32 0, %v1041
        %v1043 = vsel %vm1037, %v1042, %v1041
        %vm1044 = vcmp.lt.s32.totalorder %v868, 0
        %v1045 = vsub.s32 0, %v868
        %v1046 = vsel %vm1044, %v1045, %v868
        %v1047 = vshrl.u32 %v1046, 4
        %v1048 = vand.u32 %v1046, 15
        %v1049 = vsub.s32 0, %v1048
        %v1050 = vsel %vm1044, %v1049, %v1048
        %vm1051 = vcmp.lt.s32.totalorder %v869, 0
        %v1052 = vsub.s32 0, %v869
        %v1053 = vsel %vm1051, %v1052, %v869
        %v1054 = vshrl.u32 %v1053, 4
        %v1055 = vand.u32 %v1053, 15
        %v1056 = vsub.s32 0, %v1055
        %v1057 = vsel %vm1051, %v1056, %v1055
        %vm1058 = vcmp.lt.s32.totalorder %v870, 0
        %v1059 = vsub.s32 0, %v870
        %v1060 = vsel %vm1058, %v1059, %v870
        %v1061 = vshrl.u32 %v1060, 4
        %v1062 = vand.u32 %v1060, 15
        %v1063 = vsub.s32 0, %v1062
        %v1064 = vsel %vm1058, %v1063, %v1062
        %vm1065 = vcmp.lt.s32.totalorder %v871, 0
        %v1066 = vsub.s32 0, %v871
        %v1067 = vsel %vm1065, %v1066, %v871
        %v1068 = vshrl.u32 %v1067, 4
        %v1069 = vand.u32 %v1067, 15
        %v1070 = vsub.s32 0, %v1069
        %v1071 = vsel %vm1065, %v1070, %v1069
        %vm1072 = vcmp.lt.s32.totalorder %v872, 0
        %v1073 = vsub.s32 0, %v872
        %v1074 = vsel %vm1072, %v1073, %v872
        %v1075 = vshrl.u32 %v1074, 4
        %v1076 = vand.u32 %v1074, 15
        %v1077 = vsub.s32 0, %v1076
        %v1078 = vsel %vm1072, %v1077, %v1076
        %vm1079 = vcmp.lt.s32.totalorder %v873, 0
        %v1080 = vsub.s32 0, %v873
        %v1081 = vsel %vm1079, %v1080, %v873
        %v1082 = vshrl.u32 %v1081, 4
        %v1083 = vand.u32 %v1081, 15
        %v1084 = vsub.s32 0, %v1083
        %v1085 = vsel %vm1079, %v1084, %v1083
        %vm1086 = vcmp.lt.s32.totalorder %v874, 0
        %v1087 = vsub.s32 0, %v874
        %v1088 = vsel %vm1086, %v1087, %v874
        %v1089 = vshrl.u32 %v1088, 4
        %v1090 = vand.u32 %v1088, 15
        %v1091 = vsub.s32 0, %v1090
        %v1092 = vsel %vm1086, %v1091, %v1090
        %vm1093 = vcmp.lt.s32.totalorder %v875, 0
        %v1094 = vsub.s32 0, %v875
        %v1095 = vsel %vm1093, %v1094, %v875
        %v1096 = vshrl.u32 %v1095, 4
        %v1097 = vand.u32 %v1095, 15
        %v1098 = vsub.s32 0, %v1097
        %v1099 = vsel %vm1093, %v1098, %v1097
        %vm1100 = vcmp.ne.s32.totalorder %v882, 0
        %vm1101 = vcmp.ne.s32.totalorder %v889, 0
        %vm1102 = vcmp.ne.s32.totalorder %v896, 0
        %vm1103 = vcmp.ne.s32.totalorder %v903, 0
        %vm1104 = vcmp.ne.s32.totalorder %v910, 0
        %vm1105 = vcmp.ne.s32.totalorder %v917, 0
        %vm1106 = vcmp.ne.s32.totalorder %v924, 0
        %vm1107 = vcmp.ne.s32.totalorder %v931, 0
        %vm1108 = vcmp.ne.s32.totalorder %v938, 0
        %vm1109 = vcmp.ne.s32.totalorder %v945, 0
        %vm1110 = vcmp.ne.s32.totalorder %v952, 0
        %vm1111 = vcmp.ne.s32.totalorder %v959, 0
        %vm1112 = vcmp.ne.s32.totalorder %v966, 0
        %vm1113 = vcmp.ne.s32.totalorder %v973, 0
        %vm1114 = vcmp.ne.s32.totalorder %v980, 0
        %vm1115 = vcmp.ne.s32.totalorder %v987, 0
        %vm1116 = vcmp.ne.s32.totalorder %v994, 0
        %vm1117 = vcmp.ne.s32.totalorder %v1001, 0
        %vm1118 = vcmp.ne.s32.totalorder %v1008, 0
        %vm1119 = vcmp.ne.s32.totalorder %v1015, 0
        %vm1120 = vcmp.ne.s32.totalorder %v1022, 0
        %vm1121 = vcmp.ne.s32.totalorder %v1029, 0
        %vm1122 = vcmp.ne.s32.totalorder %v1036, 0
        %vm1123 = vcmp.ne.s32.totalorder %v1043, 0
        %vm1124 = vcmp.ne.s32.totalorder %v1050, 0
        %vm1125 = vcmp.ne.s32.totalorder %v1057, 0
        %vm1126 = vcmp.ne.s32.totalorder %v1064, 0
        %vm1127 = vcmp.ne.s32.totalorder %v1071, 0
        %vm1128 = vcmp.ne.s32.totalorder %v1078, 0
        %vm1129 = vcmp.ne.s32.totalorder %v1085, 0
        %vm1130 = vcmp.ne.s32.totalorder %v1092, 0
        %vm1131 = vcmp.ne.s32.totalorder %v1099, 0
        %vm1132 = vcmp.lt.s32.totalorder %v882, 0
        %vm1133 = vcmp.lt.s32.totalorder %v889, 0
        %vm1134 = vcmp.lt.s32.totalorder %v896, 0
        %vm1135 = vcmp.lt.s32.totalorder %v903, 0
        %vm1136 = vcmp.lt.s32.totalorder %v910, 0
        %vm1137 = vcmp.lt.s32.totalorder %v917, 0
        %vm1138 = vcmp.lt.s32.totalorder %v924, 0
        %vm1139 = vcmp.lt.s32.totalorder %v931, 0
        %vm1140 = vcmp.lt.s32.totalorder %v938, 0
        %vm1141 = vcmp.lt.s32.totalorder %v945, 0
        %vm1142 = vcmp.lt.s32.totalorder %v952, 0
        %vm1143 = vcmp.lt.s32.totalorder %v959, 0
        %vm1144 = vcmp.lt.s32.totalorder %v966, 0
        %vm1145 = vcmp.lt.s32.totalorder %v973, 0
        %vm1146 = vcmp.lt.s32.totalorder %v980, 0
        %vm1147 = vcmp.lt.s32.totalorder %v987, 0
        %vm1148 = vcmp.lt.s32.totalorder %v994, 0
        %vm1149 = vcmp.lt.s32.totalorder %v1001, 0
        %vm1150 = vcmp.lt.s32.totalorder %v1008, 0
        %vm1151 = vcmp.lt.s32.totalorder %v1015, 0
        %vm1152 = vcmp.lt.s32.totalorder %v1022, 0
        %vm1153 = vcmp.lt.s32.totalorder %v1029, 0
        %vm1154 = vcmp.lt.s32.totalorder %v1036, 0
        %vm1155 = vcmp.lt.s32.totalorder %v1043, 0
        %vm1156 = vcmp.lt.s32.totalorder %v1050, 0
        %vm1157 = vcmp.lt.s32.totalorder %v1057, 0
        %vm1158 = vcmp.lt.s32.totalorder %v1064, 0
        %vm1159 = vcmp.lt.s32.totalorder %v1071, 0
        %vm1160 = vcmp.lt.s32.totalorder %v1078, 0
        %vm1161 = vcmp.lt.s32.totalorder %v1085, 0
        %vm1162 = vcmp.lt.s32.totalorder %v1092, 0
        %vm1163 = vcmp.lt.s32.totalorder %v1099, 0
        %vm1164 = vmand %vm1132, %vm1100
        %vm1165 = vmand %vm1133, %vm1101
        %vm1166 = vmand %vm1134, %vm1102
        %vm1167 = vmand %vm1135, %vm1103
        %vm1168 = vmand %vm1136, %vm1104
        %vm1169 = vmand %vm1137, %vm1105
        %vm1170 = vmand %vm1138, %vm1106
        %vm1171 = vmand %vm1139, %vm1107
        %vm1172 = vmand %vm1140, %vm1108
        %vm1173 = vmand %vm1141, %vm1109
        %vm1174 = vmand %vm1142, %vm1110
        %vm1175 = vmand %vm1143, %vm1111
        %vm1176 = vmand %vm1144, %vm1112
        %vm1177 = vmand %vm1145, %vm1113
        %vm1178 = vmand %vm1146, %vm1114
        %vm1179 = vmand %vm1147, %vm1115
        %vm1180 = vmand %vm1148, %vm1116
        %vm1181 = vmand %vm1149, %vm1117
        %vm1182 = vmand %vm1150, %vm1118
        %vm1183 = vmand %vm1151, %vm1119
        %vm1184 = vmand %vm1152, %vm1120
        %vm1185 = vmand %vm1153, %vm1121
        %vm1186 = vmand %vm1154, %vm1122
        %vm1187 = vmand %vm1155, %vm1123
        %vm1188 = vmand %vm1156, %vm1124
        %vm1189 = vmand %vm1157, %vm1125
        %vm1190 = vmand %vm1158, %vm1126
        %vm1191 = vmand %vm1159, %vm1127
        %vm1192 = vmand %vm1160, %vm1128
        %vm1193 = vmand %vm1161, %vm1129
        %vm1194 = vmand %vm1162, %vm1130
        %vm1195 = vmand %vm1163, %vm1131
        %v1196 = vadd.s32 %v882, 16
        %v1197 = vadd.s32 %v889, 16
        %v1198 = vadd.s32 %v896, 16
        %v1199 = vadd.s32 %v903, 16
        %v1200 = vadd.s32 %v910, 16
        %v1201 = vadd.s32 %v917, 16
        %v1202 = vadd.s32 %v924, 16
        %v1203 = vadd.s32 %v931, 16
        %v1204 = vadd.s32 %v938, 16
        %v1205 = vadd.s32 %v945, 16
        %v1206 = vadd.s32 %v952, 16
        %v1207 = vadd.s32 %v959, 16
        %v1208 = vadd.s32 %v966, 16
        %v1209 = vadd.s32 %v973, 16
        %v1210 = vadd.s32 %v980, 16
        %v1211 = vadd.s32 %v987, 16
        %v1212 = vadd.s32 %v994, 16
        %v1213 = vadd.s32 %v1001, 16
        %v1214 = vadd.s32 %v1008, 16
        %v1215 = vadd.s32 %v1015, 16
        %v1216 = vadd.s32 %v1022, 16
        %v1217 = vadd.s32 %v1029, 16
        %v1218 = vadd.s32 %v1036, 16
        %v1219 = vadd.s32 %v1043, 16
        %v1220 = vadd.s32 %v1050, 16
        %v1221 = vadd.s32 %v1057, 16
        %v1222 = vadd.s32 %v1064, 16
        %v1223 = vadd.s32 %v1071, 16
        %v1224 = vadd.s32 %v1078, 16
        %v1225 = vadd.s32 %v1085, 16
        %v1226 = vadd.s32 %v1092, 16
        %v1227 = vadd.s32 %v1099, 16
        %v1228 = vsel %vm1164, %v1196, %v882
        %v1229 = vsel %vm1165, %v1197, %v889
        %v1230 = vsel %vm1166, %v1198, %v896
        %v1231 = vsel %vm1167, %v1199, %v903
        %v1232 = vsel %vm1168, %v1200, %v910
        %v1233 = vsel %vm1169, %v1201, %v917
        %v1234 = vsel %vm1170, %v1202, %v924
        %v1235 = vsel %vm1171, %v1203, %v931
        %v1236 = vsel %vm1172, %v1204, %v938
        %v1237 = vsel %vm1173, %v1205, %v945
        %v1238 = vsel %vm1174, %v1206, %v952
        %v1239 = vsel %vm1175, %v1207, %v959
        %v1240 = vsel %vm1176, %v1208, %v966
        %v1241 = vsel %vm1177, %v1209, %v973
        %v1242 = vsel %vm1178, %v1210, %v980
        %v1243 = vsel %vm1179, %v1211, %v987
        %v1244 = vsel %vm1180, %v1212, %v994
        %v1245 = vsel %vm1181, %v1213, %v1001
        %v1246 = vsel %vm1182, %v1214, %v1008
        %v1247 = vsel %vm1183, %v1215, %v1015
        %v1248 = vsel %vm1184, %v1216, %v1022
        %v1249 = vsel %vm1185, %v1217, %v1029
        %v1250 = vsel %vm1186, %v1218, %v1036
        %v1251 = vsel %vm1187, %v1219, %v1043
        %v1252 = vsel %vm1188, %v1220, %v1050
        %v1253 = vsel %vm1189, %v1221, %v1057
        %v1254 = vsel %vm1190, %v1222, %v1064
        %v1255 = vsel %vm1191, %v1223, %v1071
        %v1256 = vsel %vm1192, %v1224, %v1078
        %v1257 = vsel %vm1193, %v1225, %v1085
        %v1258 = vsel %vm1194, %v1226, %v1092
        %v1259 = vsel %vm1195, %v1227, %v1099
        %vm1260 = vcmp.gt.s32.totalorder %v1228, 0
        %vm1261 = vcmp.gt.s32.totalorder %v1229, 0
        %vm1262 = vcmp.gt.s32.totalorder %v1230, 0
        %vm1263 = vcmp.gt.s32.totalorder %v1231, 0
        %vm1264 = vcmp.gt.s32.totalorder %v1232, 0
        %vm1265 = vcmp.gt.s32.totalorder %v1233, 0
        %vm1266 = vcmp.gt.s32.totalorder %v1234, 0
        %vm1267 = vcmp.gt.s32.totalorder %v1235, 0
        %vm1268 = vcmp.gt.s32.totalorder %v1236, 0
        %vm1269 = vcmp.gt.s32.totalorder %v1237, 0
        %vm1270 = vcmp.gt.s32.totalorder %v1238, 0
        %vm1271 = vcmp.gt.s32.totalorder %v1239, 0
        %vm1272 = vcmp.gt.s32.totalorder %v1240, 0
        %vm1273 = vcmp.gt.s32.totalorder %v1241, 0
        %vm1274 = vcmp.gt.s32.totalorder %v1242, 0
        %vm1275 = vcmp.gt.s32.totalorder %v1243, 0
        %vm1276 = vcmp.gt.s32.totalorder %v1244, 0
        %vm1277 = vcmp.gt.s32.totalorder %v1245, 0
        %vm1278 = vcmp.gt.s32.totalorder %v1246, 0
        %vm1279 = vcmp.gt.s32.totalorder %v1247, 0
        %vm1280 = vcmp.gt.s32.totalorder %v1248, 0
        %vm1281 = vcmp.gt.s32.totalorder %v1249, 0
        %vm1282 = vcmp.gt.s32.totalorder %v1250, 0
        %vm1283 = vcmp.gt.s32.totalorder %v1251, 0
        %vm1284 = vcmp.gt.s32.totalorder %v1252, 0
        %vm1285 = vcmp.gt.s32.totalorder %v1253, 0
        %vm1286 = vcmp.gt.s32.totalorder %v1254, 0
        %vm1287 = vcmp.gt.s32.totalorder %v1255, 0
        %vm1288 = vcmp.gt.s32.totalorder %v1256, 0
        %vm1289 = vcmp.gt.s32.totalorder %v1257, 0
        %vm1290 = vcmp.gt.s32.totalorder %v1258, 0
        %vm1291 = vcmp.gt.s32.totalorder %v1259, 0
        %vm1292 = vcmp.lt.s32.totalorder %v1228, 15
        %vm1293 = vcmp.lt.s32.totalorder %v1229, 15
        %vm1294 = vcmp.lt.s32.totalorder %v1230, 15
        %vm1295 = vcmp.lt.s32.totalorder %v1231, 15
        %vm1296 = vcmp.lt.s32.totalorder %v1232, 15
        %vm1297 = vcmp.lt.s32.totalorder %v1233, 15
        %vm1298 = vcmp.lt.s32.totalorder %v1234, 15
        %vm1299 = vcmp.lt.s32.totalorder %v1235, 15
        %vm1300 = vcmp.lt.s32.totalorder %v1236, 15
        %vm1301 = vcmp.lt.s32.totalorder %v1237, 15
        %vm1302 = vcmp.lt.s32.totalorder %v1238, 15
        %vm1303 = vcmp.lt.s32.totalorder %v1239, 15
        %vm1304 = vcmp.lt.s32.totalorder %v1240, 15
        %vm1305 = vcmp.lt.s32.totalorder %v1241, 15
        %vm1306 = vcmp.lt.s32.totalorder %v1242, 15
        %vm1307 = vcmp.lt.s32.totalorder %v1243, 15
        %vm1308 = vcmp.lt.s32.totalorder %v1244, 15
        %vm1309 = vcmp.lt.s32.totalorder %v1245, 15
        %vm1310 = vcmp.lt.s32.totalorder %v1246, 15
        %vm1311 = vcmp.lt.s32.totalorder %v1247, 15
        %vm1312 = vcmp.lt.s32.totalorder %v1248, 15
        %vm1313 = vcmp.lt.s32.totalorder %v1249, 15
        %vm1314 = vcmp.lt.s32.totalorder %v1250, 15
        %vm1315 = vcmp.lt.s32.totalorder %v1251, 15
        %vm1316 = vcmp.lt.s32.totalorder %v1252, 15
        %vm1317 = vcmp.lt.s32.totalorder %v1253, 15
        %vm1318 = vcmp.lt.s32.totalorder %v1254, 15
        %vm1319 = vcmp.lt.s32.totalorder %v1255, 15
        %vm1320 = vcmp.lt.s32.totalorder %v1256, 15
        %vm1321 = vcmp.lt.s32.totalorder %v1257, 15
        %vm1322 = vcmp.lt.s32.totalorder %v1258, 15
        %vm1323 = vcmp.lt.s32.totalorder %v1259, 15
        %v1324 = vld [vmem:[#allocation3 + $0x17] sm:$0xff]
        %v1325 = vld [vmem:[#allocation3 + $0x1f] sm:$0xff]
        %v1326 = vld [vmem:[#allocation3 + $0x27] sm:$0xff]
        %v1327 = vld [vmem:[#allocation3 + $0x2f] sm:$0xff]
        %v1328 = vld [vmem:[#allocation3 + $0x37] sm:$0xff]
        %v1329 = vld [vmem:[#allocation3 + $0x3f] sm:$0xff]
        %v1330 = vld [vmem:[#allocation3 + $0x47] sm:$0xff]
        %v1331 = vld [vmem:[#allocation3 + $0x4f] sm:$0xff]
        %v1332 = vld [vmem:[#allocation3 + $0x57] sm:$0xff]
        %v1333 = vld [vmem:[#allocation3 + $0x5f] sm:$0xff]
        %v1334 = vld [vmem:[#allocation3 + $0x67] sm:$0xff]
        %v1335 = vld [vmem:[#allocation3 + $0x6f] sm:$0xff]
        %v1336 = vld [vmem:[#allocation3 + $0x77] sm:$0xff]
        %v1337 = vld [vmem:[#allocation3 + $0x7f] sm:$0xff]
        %v1338 = vld [vmem:[#allocation3 + $0x87] sm:$0xff]
        %v1339 = vld [vmem:[#allocation3 + $0x8f] sm:$0xff]
        %v1340 = vld [vmem:[#allocation3 + $0x97] sm:$0xff]
        %v1341 = vld [vmem:[#allocation3 + $0x9f] sm:$0xff]
        %v1342 = vld [vmem:[#allocation3 + $0xa7] sm:$0xff]
        %v1343 = vld [vmem:[#allocation3 + $0xaf] sm:$0xff]
        %v1344 = vld [vmem:[#allocation3 + $0xb7] sm:$0xff]
        %v1345 = vld [vmem:[#allocation3 + $0xbf] sm:$0xff]
        %v1346 = vld [vmem:[#allocation3 + $0xc7] sm:$0xff]
        %v1347 = vld [vmem:[#allocation3 + $0xcf] sm:$0xff]
        %v1348 = vld [vmem:[#allocation3 + $0xd7] sm:$0xff]
        %v1349 = vld [vmem:[#allocation3 + $0xdf] sm:$0xff]
        %v1350 = vld [vmem:[#allocation3 + $0xe7] sm:$0xff]
        %v1351 = vld [vmem:[#allocation3 + $0xef] sm:$0xff]
        %v1352 = vld [vmem:[#allocation3 + $0xf7] sm:$0xff]
        %v1353 = vld [vmem:[#allocation3 + $0xff] sm:$0xff]
        %v1354 = vld [vmem:[#allocation3 + $0x107] sm:$0xff]
        %v1355 = vld [vmem:[#allocation3 + $0x10f] sm:$0xff]
        %v1356 = vsel %vm1260, %v1324, 0.0
        %v1357 = vsel %vm1261, %v1325, 0.0
        %v1358 = vsel %vm1262, %v1326, 0.0
        %v1359 = vsel %vm1263, %v1327, 0.0
        %v1360 = vsel %vm1264, %v1328, 0.0
        %v1361 = vsel %vm1265, %v1329, 0.0
        %v1362 = vsel %vm1266, %v1330, 0.0
        %v1363 = vsel %vm1267, %v1331, 0.0
        %v1364 = vsel %vm1268, %v1332, 0.0
        %v1365 = vsel %vm1269, %v1333, 0.0
        %v1366 = vsel %vm1270, %v1334, 0.0
        %v1367 = vsel %vm1271, %v1335, 0.0
        %v1368 = vsel %vm1272, %v1336, 0.0
        %v1369 = vsel %vm1273, %v1337, 0.0
        %v1370 = vsel %vm1274, %v1338, 0.0
        %v1371 = vsel %vm1275, %v1339, 0.0
        %v1372 = vsel %vm1276, %v1340, 0.0
        %v1373 = vsel %vm1277, %v1341, 0.0
        %v1374 = vsel %vm1278, %v1342, 0.0
        %v1375 = vsel %vm1279, %v1343, 0.0
        %v1376 = vsel %vm1280, %v1344, 0.0
        %v1377 = vsel %vm1281, %v1345, 0.0
        %v1378 = vsel %vm1282, %v1346, 0.0
        %v1379 = vsel %vm1283, %v1347, 0.0
        %v1380 = vsel %vm1284, %v1348, 0.0
        %v1381 = vsel %vm1285, %v1349, 0.0
        %v1382 = vsel %vm1286, %v1350, 0.0
        %v1383 = vsel %vm1287, %v1351, 0.0
        %v1384 = vsel %vm1288, %v1352, 0.0
        %v1385 = vsel %vm1289, %v1353, 0.0
        %v1386 = vsel %vm1290, %v1354, 0.0
        %v1387 = vsel %vm1291, %v1355, 0.0
        %v1388 = vld [vmem:[#allocation3 + $0x19] sm:$0xff]
        %v1389 = vld [vmem:[#allocation3 + $0x21] sm:$0xff]
        %v1390 = vld [vmem:[#allocation3 + $0x29] sm:$0xff]
        %v1391 = vld [vmem:[#allocation3 + $0x31] sm:$0xff]
        %v1392 = vld [vmem:[#allocation3 + $0x39] sm:$0xff]
        %v1393 = vld [vmem:[#allocation3 + $0x41] sm:$0xff]
        %v1394 = vld [vmem:[#allocation3 + $0x49] sm:$0xff]
        %v1395 = vld [vmem:[#allocation3 + $0x51] sm:$0xff]
        %v1396 = vld [vmem:[#allocation3 + $0x59] sm:$0xff]
        %v1397 = vld [vmem:[#allocation3 + $0x61] sm:$0xff]
        %v1398 = vld [vmem:[#allocation3 + $0x69] sm:$0xff]
        %v1399 = vld [vmem:[#allocation3 + $0x71] sm:$0xff]
        %v1400 = vld [vmem:[#allocation3 + $0x79] sm:$0xff]
        %v1401 = vld [vmem:[#allocation3 + $0x81] sm:$0xff]
        %v1402 = vld [vmem:[#allocation3 + $0x89] sm:$0xff]
        %v1403 = vld [vmem:[#allocation3 + $0x91] sm:$0xff]
        %v1404 = vld [vmem:[#allocation3 + $0x99] sm:$0xff]
        %v1405 = vld [vmem:[#allocation3 + $0xa1] sm:$0xff]
        %v1406 = vld [vmem:[#allocation3 + $0xa9] sm:$0xff]
        %v1407 = vld [vmem:[#allocation3 + $0xb1] sm:$0xff]
        %v1408 = vld [vmem:[#allocation3 + $0xb9] sm:$0xff]
        %v1409 = vld [vmem:[#allocation3 + $0xc1] sm:$0xff]
        %v1410 = vld [vmem:[#allocation3 + $0xc9] sm:$0xff]
        %v1411 = vld [vmem:[#allocation3 + $0xd1] sm:$0xff]
        %v1412 = vld [vmem:[#allocation3 + $0xd9] sm:$0xff]
        %v1413 = vld [vmem:[#allocation3 + $0xe1] sm:$0xff]
        %v1414 = vld [vmem:[#allocation3 + $0xe9] sm:$0xff]
        %v1415 = vld [vmem:[#allocation3 + $0xf1] sm:$0xff]
        %v1416 = vld [vmem:[#allocation3 + $0xf9] sm:$0xff]
        %v1417 = vld [vmem:[#allocation3 + $0x101] sm:$0xff]
        %v1418 = vld [vmem:[#allocation3 + $0x109] sm:$0xff]
        %v1419 = vld [vmem:[#allocation3 + $0x111] sm:$0xff]
        %v1420 = vsel %vm1292, %v1388, 0.0
        %v1421 = vsel %vm1293, %v1389, 0.0
        %v1422 = vsel %vm1294, %v1390, 0.0
        %v1423 = vsel %vm1295, %v1391, 0.0
        %v1424 = vsel %vm1296, %v1392, 0.0
        %v1425 = vsel %vm1297, %v1393, 0.0
        %v1426 = vsel %vm1298, %v1394, 0.0
        %v1427 = vsel %vm1299, %v1395, 0.0
        %v1428 = vsel %vm1300, %v1396, 0.0
        %v1429 = vsel %vm1301, %v1397, 0.0
        %v1430 = vsel %vm1302, %v1398, 0.0
        %v1431 = vsel %vm1303, %v1399, 0.0
        %v1432 = vsel %vm1304, %v1400, 0.0
        %v1433 = vsel %vm1305, %v1401, 0.0
        %v1434 = vsel %vm1306, %v1402, 0.0
        %v1435 = vsel %vm1307, %v1403, 0.0
        %v1436 = vsel %vm1308, %v1404, 0.0
        %v1437 = vsel %vm1309, %v1405, 0.0
        %v1438 = vsel %vm1310, %v1406, 0.0
        %v1439 = vsel %vm1311, %v1407, 0.0
        %v1440 = vsel %vm1312, %v1408, 0.0
        %v1441 = vsel %vm1313, %v1409, 0.0
        %v1442 = vsel %vm1314, %v1410, 0.0
        %v1443 = vsel %vm1315, %v1411, 0.0
        %v1444 = vsel %vm1316, %v1412, 0.0
        %v1445 = vsel %vm1317, %v1413, 0.0
        %v1446 = vsel %vm1318, %v1414, 0.0
        %v1447 = vsel %vm1319, %v1415, 0.0
        %v1448 = vsel %vm1320, %v1416, 0.0
        %v1449 = vsel %vm1321, %v1417, 0.0
        %v1450 = vsel %vm1322, %v1418, 0.0
        %v1451 = vsel %vm1323, %v1419, 0.0
        %v1452 = vpack.c.bf16 %v1357, %v1356
        %v1453 = vpack.c.bf16 %v780, %v779
        %v1454 = vpack.c.bf16 %v1421, %v1420
        %v1455 = vpack.c.bf16 %v1359, %v1358
        %v1456 = vpack.c.bf16 %v782, %v781
        %v1457 = vpack.c.bf16 %v1423, %v1422
        %v1458 = vpack.c.bf16 %v1361, %v1360
        %v1459 = vpack.c.bf16 %v784, %v783
        %v1460 = vpack.c.bf16 %v1425, %v1424
        %v1461 = vpack.c.bf16 %v1363, %v1362
        %v1462 = vpack.c.bf16 %v786, %v785
        %v1463 = vpack.c.bf16 %v1427, %v1426
        %v1464 = vpack.c.bf16 %v1365, %v1364
        %v1465 = vpack.c.bf16 %v788, %v787
        %v1466 = vpack.c.bf16 %v1429, %v1428
        %v1467 = vpack.c.bf16 %v1367, %v1366
        %v1468 = vpack.c.bf16 %v790, %v789
        %v1469 = vpack.c.bf16 %v1431, %v1430
        %v1470 = vpack.c.bf16 %v1369, %v1368
        %v1471 = vpack.c.bf16 %v792, %v791
        %v1472 = vpack.c.bf16 %v1433, %v1432
        %v1473 = vpack.c.bf16 %v1371, %v1370
        %v1474 = vpack.c.bf16 %v794, %v793
        %v1475 = vpack.c.bf16 %v1435, %v1434
        %v1476 = vpack.c.bf16 %v1373, %v1372
        %v1477 = vpack.c.bf16 %v796, %v795
        %v1478 = vpack.c.bf16 %v1437, %v1436
        %v1479 = vpack.c.bf16 %v1375, %v1374
        %v1480 = vpack.c.bf16 %v798, %v797
        %v1481 = vpack.c.bf16 %v1439, %v1438
        %v1482 = vpack.c.bf16 %v1377, %v1376
        %v1483 = vpack.c.bf16 %v800, %v799
        %v1484 = vpack.c.bf16 %v1441, %v1440
        %v1485 = vpack.c.bf16 %v1379, %v1378
        %v1486 = vpack.c.bf16 %v802, %v801
        %v1487 = vpack.c.bf16 %v1443, %v1442
        %v1488 = vpack.c.bf16 %v1381, %v1380
        %v1489 = vpack.c.bf16 %v804, %v803
        %v1490 = vpack.c.bf16 %v1445, %v1444
        %v1491 = vpack.c.bf16 %v1383, %v1382
        %v1492 = vpack.c.bf16 %v806, %v805
        %v1493 = vpack.c.bf16 %v1447, %v1446
        %v1494 = vpack.c.bf16 %v1385, %v1384
        %v1495 = vpack.c.bf16 %v808, %v807
        %v1496 = vpack.c.bf16 %v1449, %v1448
        %v1497 = vpack.c.bf16 %v1387, %v1386
        %v1498 = vpack.c.bf16 %v810, %v809
        %v1499 = vpack.c.bf16 %v1451, %v1450
        %v1500 = vld [vmem:[%s332 + $0xc0] sm:$0xf]
        %v1501 = vld [vmem:[%s332 + $0xc4] sm:$0xf]
        %v1502 = vld [vmem:[%s332 + $0xc8] sm:$0xf]
        %v1503 = vld [vmem:[%s332 + $0xcc] sm:$0xf]
        %v1504 = vld [vmem:[%s332 + $0xd0] sm:$0xf]
        %v1505 = vld [vmem:[%s332 + $0xd4] sm:$0xf]
        %v1506 = vld [vmem:[%s332 + $0xd8] sm:$0xf]
        %v1507 = vld [vmem:[%s332 + $0xdc] sm:$0xf]
        %v1508 = vld [vmem:[%s332 + $0xe0] sm:$0xf]
        %v1509 = vld [vmem:[%s332 + $0xe4] sm:$0xf]
        %v1510 = vld [vmem:[%s332 + $0xe8] sm:$0xf]
        %v1511 = vld [vmem:[%s332 + $0xec] sm:$0xf]
        %v1512 = vld [vmem:[%s332 + $0xf0] sm:$0xf]
        %v1513 = vld [vmem:[%s332 + $0xf4] sm:$0xf]
        %v1514 = vld [vmem:[%s332 + $0xf8] sm:$0xf]
        %v1515 = vld [vmem:[%s332 + $0xfc] sm:$0xf]
        %v1516 = vld [vmem:[%s332 + $0x100] sm:$0xf]
        %v1517 = vld [vmem:[%s332 + $0x104] sm:$0xf]
        %v1518 = vld [vmem:[%s332 + $0x108] sm:$0xf]
        %v1519 = vld [vmem:[%s332 + $0x10c] sm:$0xf]
        %v1520 = vld [vmem:[%s332 + $0x110] sm:$0xf]
        %v1521 = vld [vmem:[%s332 + $0x114] sm:$0xf]
        %v1522 = vld [vmem:[%s332 + $0x118] sm:$0xf]
        %v1523 = vld [vmem:[%s332 + $0x11c] sm:$0xf]
        %v1524 = vld [vmem:[%s332 + $0x120] sm:$0xf]
        %v1525 = vld [vmem:[%s332 + $0x124] sm:$0xf]
        %v1526 = vld [vmem:[%s332 + $0x128] sm:$0xf]
        %v1527 = vld [vmem:[%s332 + $0x12c] sm:$0xf]
        %v1528 = vld [vmem:[%s332 + $0x130] sm:$0xf]
        %v1529 = vld [vmem:[%s332 + $0x134] sm:$0xf]
        %v1530 = vld [vmem:[%s332 + $0x138] sm:$0xf]
        %v1531 = vld [vmem:[%s332 + $0x13c] sm:$0xf]
        %v1532 = vld [vmem:[%s332 + $0x140] sm:$0xf]
        %v1533 = vld [vmem:[%s332 + $0x144] sm:$0xf]
        %v1534 = vld [vmem:[%s332 + $0x148] sm:$0xf]
        %v1535 = vld [vmem:[%s332 + $0x14c] sm:$0xf]
        %v1536 = vld [vmem:[%s332 + $0x150] sm:$0xf]
        %v1537 = vld [vmem:[%s332 + $0x154] sm:$0xf]
        %v1538 = vld [vmem:[%s332 + $0x158] sm:$0xf]
        %v1539 = vld [vmem:[%s332 + $0x15c] sm:$0xf]
        %v1540 = vld [vmem:[%s332 + $0x160] sm:$0xf]
        %v1541 = vld [vmem:[%s332 + $0x164] sm:$0xf]
        %v1542 = vld [vmem:[%s332 + $0x168] sm:$0xf]
        %v1543 = vld [vmem:[%s332 + $0x16c] sm:$0xf]
        %v1544 = vld [vmem:[%s332 + $0x170] sm:$0xf]
        %v1545 = vld [vmem:[%s332 + $0x174] sm:$0xf]
        %v1546 = vld [vmem:[%s332 + $0x178] sm:$0xf]
        %v1547 = vld [vmem:[%s332 + $0x17c] sm:$0xf]
        %v1548 = vld [vmem:[#allocation3 + $0x8] sm:$0xff]
        %v1549 = vld [vmem:[#allocation3 + $0x10] sm:$0xff]
        %v1550 = vld [vmem:[#allocation3 + $0x18] sm:$0xff]
        %v1551 = vld [vmem:[#allocation3 + $0x20] sm:$0xff]
        %v1552 = vld [vmem:[#allocation3 + $0x28] sm:$0xff]
        %v1553 = vld [vmem:[#allocation3 + $0x30] sm:$0xff]
        %v1554 = vld [vmem:[#allocation3 + $0x38] sm:$0xff]
        %v1555 = vld [vmem:[#allocation3 + $0x40] sm:$0xff]
        %v1556 = vld [vmem:[#allocation3 + $0x48] sm:$0xff]
        %v1557 = vld [vmem:[#allocation3 + $0x50] sm:$0xff]
        %v1558 = vld [vmem:[#allocation3 + $0x58] sm:$0xff]
        %v1559 = vld [vmem:[#allocation3 + $0x60] sm:$0xff]
        %v1560 = vld [vmem:[#allocation3 + $0x68] sm:$0xff]
        %v1561 = vld [vmem:[#allocation3 + $0x70] sm:$0xff]
        %v1562 = vld [vmem:[#allocation3 + $0x78] sm:$0xff]
        %v1563 = vld [vmem:[#allocation3 + $0x80] sm:$0xff]
        %v1564 = vld [vmem:[#allocation3 + $0x88] sm:$0xff]
        %v1565 = vld [vmem:[#allocation3 + $0x90] sm:$0xff]
        %v1566 = vld [vmem:[#allocation3 + $0x98] sm:$0xff]
        %v1567 = vld [vmem:[#allocation3 + $0xa0] sm:$0xff]
        %v1568 = vld [vmem:[#allocation3 + $0xa8] sm:$0xff]
        %v1569 = vld [vmem:[#allocation3 + $0xb0] sm:$0xff]
        %v1570 = vld [vmem:[#allocation3 + $0xb8] sm:$0xff]
        %v1571 = vld [vmem:[#allocation3 + $0xc0] sm:$0xff]
        %v1572 = vld [vmem:[#allocation3 + $0xc8] sm:$0xff]
        %v1573 = vld [vmem:[#allocation3 + $0xd0] sm:$0xff]
        %v1574 = vld [vmem:[#allocation3 + $0xd8] sm:$0xff]
        %v1575 = vld [vmem:[#allocation3 + $0xe0] sm:$0xff]
        %v1576 = vld [vmem:[#allocation3 + $0xe8] sm:$0xff]
        %v1577 = vld [vmem:[#allocation3 + $0xf0] sm:$0xff]
        %v1578 = vld [vmem:[#allocation3 + $0xf8] sm:$0xff]
        %v1579 = vld [vmem:[#allocation3 + $0x100] sm:$0xff]
        %v1580 = vld [vmem:[#allocation3 + $0x7] sm:$0xff]
        %v1581 = vld [vmem:[#allocation3 + $0xf] sm:$0xff]
        %v1582 = vsel %vm1260, %v1580, 0.0
        %v1583 = vsel %vm1261, %v1581, 0.0
        %v1584 = vsel %vm1262, %v1324, 0.0
        %v1585 = vsel %vm1263, %v1325, 0.0
        %v1586 = vsel %vm1264, %v1326, 0.0
        %v1587 = vsel %vm1265, %v1327, 0.0
        %v1588 = vsel %vm1266, %v1328, 0.0
        %v1589 = vsel %vm1267, %v1329, 0.0
        %v1590 = vsel %vm1268, %v1330, 0.0
        %v1591 = vsel %vm1269, %v1331, 0.0
        %v1592 = vsel %vm1270, %v1332, 0.0
        %v1593 = vsel %vm1271, %v1333, 0.0
        %v1594 = vsel %vm1272, %v1334, 0.0
        %v1595 = vsel %vm1273, %v1335, 0.0
        %v1596 = vsel %vm1274, %v1336, 0.0
        %v1597 = vsel %vm1275, %v1337, 0.0
        %v1598 = vsel %vm1276, %v1338, 0.0
        %v1599 = vsel %vm1277, %v1339, 0.0
        %v1600 = vsel %vm1278, %v1340, 0.0
        %v1601 = vsel %vm1279, %v1341, 0.0
        %v1602 = vsel %vm1280, %v1342, 0.0
        %v1603 = vsel %vm1281, %v1343, 0.0
        %v1604 = vsel %vm1282, %v1344, 0.0
        %v1605 = vsel %vm1283, %v1345, 0.0
        %v1606 = vsel %vm1284, %v1346, 0.0
        %v1607 = vsel %vm1285, %v1347, 0.0
        %v1608 = vsel %vm1286, %v1348, 0.0
        %v1609 = vsel %vm1287, %v1349, 0.0
        %v1610 = vsel %vm1288, %v1350, 0.0
        %v1611 = vsel %vm1289, %v1351, 0.0
        %v1612 = vsel %vm1290, %v1352, 0.0
        %v1613 = vsel %vm1291, %v1353, 0.0
        %v1614 = vld [vmem:[#allocation3 + $0x9] sm:$0xff]
        %v1615 = vld [vmem:[#allocation3 + $0x11] sm:$0xff]
        %v1616 = vsel %vm1292, %v1614, 0.0
        %v1617 = vsel %vm1293, %v1615, 0.0
        %v1618 = vsel %vm1294, %v1388, 0.0
        %v1619 = vsel %vm1295, %v1389, 0.0
        %v1620 = vsel %vm1296, %v1390, 0.0
        %v1621 = vsel %vm1297, %v1391, 0.0
        %v1622 = vsel %vm1298, %v1392, 0.0
        %v1623 = vsel %vm1299, %v1393, 0.0
        %v1624 = vsel %vm1300, %v1394, 0.0
        %v1625 = vsel %vm1301, %v1395, 0.0
        %v1626 = vsel %vm1302, %v1396, 0.0
        %v1627 = vsel %vm1303, %v1397, 0.0
        %v1628 = vsel %vm1304, %v1398, 0.0
        %v1629 = vsel %vm1305, %v1399, 0.0
        %v1630 = vsel %vm1306, %v1400, 0.0
        %v1631 = vsel %vm1307, %v1401, 0.0
        %v1632 = vsel %vm1308, %v1402, 0.0
        %v1633 = vsel %vm1309, %v1403, 0.0
        %v1634 = vsel %vm1310, %v1404, 0.0
        %v1635 = vsel %vm1311, %v1405, 0.0
        %v1636 = vsel %vm1312, %v1406, 0.0
        %v1637 = vsel %vm1313, %v1407, 0.0
        %v1638 = vsel %vm1314, %v1408, 0.0
        %v1639 = vsel %vm1315, %v1409, 0.0
        %v1640 = vsel %vm1316, %v1410, 0.0
        %v1641 = vsel %vm1317, %v1411, 0.0
        %v1642 = vsel %vm1318, %v1412, 0.0
        %v1643 = vsel %vm1319, %v1413, 0.0
        %v1644 = vsel %vm1320, %v1414, 0.0
        %v1645 = vsel %vm1321, %v1415, 0.0
        %v1646 = vsel %vm1322, %v1416, 0.0
        %v1647 = vsel %vm1323, %v1417, 0.0
        %v1648 = vpack.c.bf16 %v1583, %v1582
        %v1649 = vpack.c.bf16 %v1549, %v1548
        %v1650 = vpack.c.bf16 %v1617, %v1616
        %v1651 = vpack.c.bf16 %v1585, %v1584
        %v1652 = vpack.c.bf16 %v1551, %v1550
        %v1653 = vpack.c.bf16 %v1619, %v1618
        %v1654 = vpack.c.bf16 %v1587, %v1586
        %v1655 = vpack.c.bf16 %v1553, %v1552
        %v1656 = vpack.c.bf16 %v1621, %v1620
        %v1657 = vpack.c.bf16 %v1589, %v1588
        %v1658 = vpack.c.bf16 %v1555, %v1554
        %v1659 = vpack.c.bf16 %v1623, %v1622
        %v1660 = vpack.c.bf16 %v1591, %v1590
        %v1661 = vpack.c.bf16 %v1557, %v1556
        %v1662 = vpack.c.bf16 %v1625, %v1624
        %v1663 = vpack.c.bf16 %v1593, %v1592
        %v1664 = vpack.c.bf16 %v1559, %v1558
        %v1665 = vpack.c.bf16 %v1627, %v1626
        %v1666 = vpack.c.bf16 %v1595, %v1594
        %v1667 = vpack.c.bf16 %v1561, %v1560
        %v1668 = vpack.c.bf16 %v1629, %v1628
        %v1669 = vpack.c.bf16 %v1597, %v1596
        %v1670 = vpack.c.bf16 %v1563, %v1562
        %v1671 = vpack.c.bf16 %v1631, %v1630
        %v1672 = vpack.c.bf16 %v1599, %v1598
        %v1673 = vpack.c.bf16 %v1565, %v1564
        %v1674 = vpack.c.bf16 %v1633, %v1632
        %v1675 = vpack.c.bf16 %v1601, %v1600
        %v1676 = vpack.c.bf16 %v1567, %v1566
        %v1677 = vpack.c.bf16 %v1635, %v1634
        %v1678 = vpack.c.bf16 %v1603, %v1602
        %v1679 = vpack.c.bf16 %v1569, %v1568
        %v1680 = vpack.c.bf16 %v1637, %v1636
        %v1681 = vpack.c.bf16 %v1605, %v1604
        %v1682 = vpack.c.bf16 %v1571, %v1570
        %v1683 = vpack.c.bf16 %v1639, %v1638
        %v1684 = vpack.c.bf16 %v1607, %v1606
        %v1685 = vpack.c.bf16 %v1573, %v1572
        %v1686 = vpack.c.bf16 %v1641, %v1640
        %v1687 = vpack.c.bf16 %v1609, %v1608
        %v1688 = vpack.c.bf16 %v1575, %v1574
        %v1689 = vpack.c.bf16 %v1643, %v1642
        %v1690 = vpack.c.bf16 %v1611, %v1610
        %v1691 = vpack.c.bf16 %v1577, %v1576
        %v1692 = vpack.c.bf16 %v1645, %v1644
        %v1693 = vpack.c.bf16 %v1613, %v1612
        %v1694 = vpack.c.bf16 %v1579, %v1578
        %v1695 = vpack.c.bf16 %v1647, %v1646
        %v1696 = vld [vmem:[%s332] sm:$0xf]
        %v1697 = vld [vmem:[%s332 + $0x4] sm:$0xf]
        %v1698 = vld [vmem:[%s332 + $0x8] sm:$0xf]
        %v1699 = vld [vmem:[%s332 + $0xc] sm:$0xf]
        %v1700 = vld [vmem:[%s332 + $0x10] sm:$0xf]
        %v1701 = vld [vmem:[%s332 + $0x14] sm:$0xf]
        %v1702 = vld [vmem:[%s332 + $0x18] sm:$0xf]
        %v1703 = vld [vmem:[%s332 + $0x1c] sm:$0xf]
        %v1704 = vld [vmem:[%s332 + $0x20] sm:$0xf]
        %v1705 = vld [vmem:[%s332 + $0x24] sm:$0xf]
        %v1706 = vld [vmem:[%s332 + $0x28] sm:$0xf]
        %v1707 = vld [vmem:[%s332 + $0x2c] sm:$0xf]
        %v1708 = vld [vmem:[%s332 + $0x30] sm:$0xf]
        %v1709 = vld [vmem:[%s332 + $0x34] sm:$0xf]
        %v1710 = vld [vmem:[%s332 + $0x38] sm:$0xf]
        %v1711 = vld [vmem:[%s332 + $0x3c] sm:$0xf]
        %v1712 = vld [vmem:[%s332 + $0x40] sm:$0xf]
        %v1713 = vld [vmem:[%s332 + $0x44] sm:$0xf]
        %v1714 = vld [vmem:[%s332 + $0x48] sm:$0xf]
        %v1715 = vld [vmem:[%s332 + $0x4c] sm:$0xf]
        %v1716 = vld [vmem:[%s332 + $0x50] sm:$0xf]
        %v1717 = vld [vmem:[%s332 + $0x54] sm:$0xf]
        %v1718 = vld [vmem:[%s332 + $0x58] sm:$0xf]
        %v1719 = vld [vmem:[%s332 + $0x5c] sm:$0xf]
        %v1720 = vld [vmem:[%s332 + $0x60] sm:$0xf]
        %v1721 = vld [vmem:[%s332 + $0x64] sm:$0xf]
        %v1722 = vld [vmem:[%s332 + $0x68] sm:$0xf]
        %v1723 = vld [vmem:[%s332 + $0x6c] sm:$0xf]
        %v1724 = vld [vmem:[%s332 + $0x70] sm:$0xf]
        %v1725 = vld [vmem:[%s332 + $0x74] sm:$0xf]
        %v1726 = vld [vmem:[%s332 + $0x78] sm:$0xf]
        %v1727 = vld [vmem:[%s332 + $0x7c] sm:$0xf]
        %v1728 = vld [vmem:[%s332 + $0x80] sm:$0xf]
        %v1729 = vld [vmem:[%s332 + $0x84] sm:$0xf]
        %v1730 = vld [vmem:[%s332 + $0x88] sm:$0xf]
        %v1731 = vld [vmem:[%s332 + $0x8c] sm:$0xf]
        %v1732 = vld [vmem:[%s332 + $0x90] sm:$0xf]
        %v1733 = vld [vmem:[%s332 + $0x94] sm:$0xf]
        %v1734 = vld [vmem:[%s332 + $0x98] sm:$0xf]
        %v1735 = vld [vmem:[%s332 + $0x9c] sm:$0xf]
        %v1736 = vld [vmem:[%s332 + $0xa0] sm:$0xf]
        %v1737 = vld [vmem:[%s332 + $0xa4] sm:$0xf]
        %v1738 = vld [vmem:[%s332 + $0xa8] sm:$0xf]
        %v1739 = vld [vmem:[%s332 + $0xac] sm:$0xf]
        %v1740 = vld [vmem:[%s332 + $0xb0] sm:$0xf]
        %v1741 = vld [vmem:[%s332 + $0xb4] sm:$0xf]
        %v1742 = vld [vmem:[%s332 + $0xb8] sm:$0xf]
        %v1743 = vld [vmem:[%s332 + $0xbc] sm:$0xf]
        %v1792 = vunpack.c.l.b16 %v1696
        %v1793 = vunpack.c.l.b16 %v1697
        %v1794 = vunpack.c.l.b16 %v1698
        %v1795 = vunpack.c.l.b16 %v1699
        %v1796 = vunpack.c.l.b16 %v1700
        %v1797 = vunpack.c.l.b16 %v1701
        %v1798 = vunpack.c.l.b16 %v1702
        %v1799 = vunpack.c.l.b16 %v1703
        %v1800 = vunpack.c.l.b16 %v1704
        %v1801 = vunpack.c.l.b16 %v1705
        %v1802 = vunpack.c.l.b16 %v1706
        %v1803 = vunpack.c.l.b16 %v1707
        %v1804 = vunpack.c.l.b16 %v1708
        %v1805 = vunpack.c.l.b16 %v1709
        %v1806 = vunpack.c.l.b16 %v1710
        %v1807 = vunpack.c.l.b16 %v1711
        %v1808 = vunpack.c.l.b16 %v1712
        %v1809 = vunpack.c.l.b16 %v1713
        %v1810 = vunpack.c.l.b16 %v1714
        %v1811 = vunpack.c.l.b16 %v1715
        %v1812 = vunpack.c.l.b16 %v1716
        %v1813 = vunpack.c.l.b16 %v1717
        %v1814 = vunpack.c.l.b16 %v1718
        %v1815 = vunpack.c.l.b16 %v1719
        %v1816 = vunpack.c.l.b16 %v1720
        %v1817 = vunpack.c.l.b16 %v1721
        %v1818 = vunpack.c.l.b16 %v1722
        %v1819 = vunpack.c.l.b16 %v1723
        %v1820 = vunpack.c.l.b16 %v1724
        %v1821 = vunpack.c.l.b16 %v1725
        %v1822 = vunpack.c.l.b16 %v1726
        %v1823 = vunpack.c.l.b16 %v1727
        %v1824 = vunpack.c.l.b16 %v1728
        %v1825 = vunpack.c.l.b16 %v1729
        %v1826 = vunpack.c.l.b16 %v1730
        %v1827 = vunpack.c.l.b16 %v1731
        %v1828 = vunpack.c.l.b16 %v1732
        %v1829 = vunpack.c.l.b16 %v1733
        %v1830 = vunpack.c.l.b16 %v1734
        %v1831 = vunpack.c.l.b16 %v1735
        %v1832 = vunpack.c.l.b16 %v1736
        %v1833 = vunpack.c.l.b16 %v1737
        %v1834 = vunpack.c.l.b16 %v1738
        %v1835 = vunpack.c.l.b16 %v1739
        %v1836 = vunpack.c.l.b16 %v1740
        %v1837 = vunpack.c.l.b16 %v1741
        %v1838 = vunpack.c.l.b16 %v1742
        %v1839 = vunpack.c.l.b16 %v1743
        %v1840 = vpack.c.b16 %v1793, %v1792
        %v1841 = vpack.c.b16 %v1795, %v1794
        %v1842 = vpack.c.b16 %v1797, %v1796
        %v1843 = vpack.c.b16 %v1799, %v1798
        %v1844 = vpack.c.b16 %v1801, %v1800
        %v1845 = vpack.c.b16 %v1803, %v1802
        %v1846 = vpack.c.b16 %v1805, %v1804
        %v1847 = vpack.c.b16 %v1807, %v1806
        %v1848 = vpack.c.b16 %v1809, %v1808
        %v1849 = vpack.c.b16 %v1811, %v1810
        %v1850 = vpack.c.b16 %v1813, %v1812
        %v1851 = vpack.c.b16 %v1815, %v1814
        %v1852 = vpack.c.b16 %v1817, %v1816
        %v1853 = vpack.c.b16 %v1819, %v1818
        %v1854 = vpack.c.b16 %v1821, %v1820
        %v1855 = vpack.c.b16 %v1823, %v1822
        %v1856 = vpack.c.b16 %v1825, %v1824
        %v1857 = vpack.c.b16 %v1827, %v1826
        %v1858 = vpack.c.b16 %v1829, %v1828
        %v1859 = vpack.c.b16 %v1831, %v1830
        %v1860 = vpack.c.b16 %v1833, %v1832
        %v1861 = vpack.c.b16 %v1835, %v1834
        %v1862 = vpack.c.b16 %v1837, %v1836
        %v1863 = vpack.c.b16 %v1839, %v1838
        %1888 = vmatpush.bf16.msra.mxu0 %v1847
        %1889 = vmatpush.bf16.msra.mxu0 %v1846
        %1890 = vmatpush.bf16.msra.mxu0 %v1845
        %1891 = vmatpush.bf16.msra.mxu0 %v1844
        %1892 = vmatpush.bf16.msra.mxu0 %v1843
        %1893 = vmatpush.bf16.msra.mxu0 %v1842
        %1894 = vmatpush.bf16.msra.mxu0 %v1841
        %1895 = vmatpush.bf16.msra.mxu0 %v1840
        %1896 = vmatmul.bf16.gmra.mxu0 %v1648
        %v1897 = vpop.f32.mrf.mxu0
        %v1898 = vadd.f32 0.0, %v1897
        %v1899 = vpop.f32.mrf.mxu0
        %v1900 = vadd.f32 0.0, %v1899
        %1901 = vmatmul.bf16.gmra.mxu0 %v1651
        %v1902 = vpop.f32.mrf.mxu0
        %v1903 = vadd.f32 0.0, %v1902
        %v1904 = vpop.f32.mrf.mxu0
        %v1905 = vadd.f32 0.0, %v1904
        %1906 = vmatmul.bf16.gmra.mxu0 %v1654
        %v1907 = vpop.f32.mrf.mxu0
        %v1908 = vadd.f32 0.0, %v1907
        %v1909 = vpop.f32.mrf.mxu0
        %v1910 = vadd.f32 0.0, %v1909
        %1911 = vmatmul.bf16.gmra.mxu0 %v1657
        %v1912 = vpop.f32.mrf.mxu0
        %v1913 = vadd.f32 0.0, %v1912
        %v1914 = vpop.f32.mrf.mxu0
        %v1915 = vadd.f32 0.0, %v1914
        %1916 = vmatmul.bf16.gmra.mxu0 %v1660
        %v1917 = vpop.f32.mrf.mxu0
        %v1918 = vadd.f32 0.0, %v1917
        %v1919 = vpop.f32.mrf.mxu0
        %v1920 = vadd.f32 0.0, %v1919
        %1921 = vmatmul.bf16.gmra.mxu0 %v1663
        %v1922 = vpop.f32.mrf.mxu0
        %v1923 = vadd.f32 0.0, %v1922
        %v1924 = vpop.f32.mrf.mxu0
        %v1925 = vadd.f32 0.0, %v1924
        %1926 = vmatmul.bf16.gmra.mxu0 %v1666
        %v1927 = vpop.f32.mrf.mxu0
        %v1928 = vadd.f32 0.0, %v1927
        %v1929 = vpop.f32.mrf.mxu0
        %v1930 = vadd.f32 0.0, %v1929
        %1931 = vmatmul.bf16.gmra.mxu0 %v1669
        %v1932 = vpop.f32.mrf.mxu0
        %v1933 = vadd.f32 0.0, %v1932
        %v1934 = vpop.f32.mrf.mxu0
        %v1935 = vadd.f32 0.0, %v1934
        %1936 = vmatmul.bf16.gmra.mxu0 %v1672
        %v1937 = vpop.f32.mrf.mxu0
        %v1938 = vadd.f32 0.0, %v1937
        %v1939 = vpop.f32.mrf.mxu0
        %v1940 = vadd.f32 0.0, %v1939
        %1941 = vmatmul.bf16.gmra.mxu0 %v1675
        %v1942 = vpop.f32.mrf.mxu0
        %v1943 = vadd.f32 0.0, %v1942
        %v1944 = vpop.f32.mrf.mxu0
        %v1945 = vadd.f32 0.0, %v1944
        %1946 = vmatmul.bf16.gmra.mxu0 %v1678
        %v1947 = vpop.f32.mrf.mxu0
        %v1948 = vadd.f32 0.0, %v1947
        %v1949 = vpop.f32.mrf.mxu0
        %v1950 = vadd.f32 0.0, %v1949
        %1951 = vmatmul.bf16.gmra.mxu0 %v1681
        %v1952 = vpop.f32.mrf.mxu0
        %v1953 = vadd.f32 0.0, %v1952
        %v1954 = vpop.f32.mrf.mxu0
        %v1955 = vadd.f32 0.0, %v1954
        %1956 = vmatmul.bf16.gmra.mxu0 %v1684
        %v1957 = vpop.f32.mrf.mxu0
        %v1958 = vadd.f32 0.0, %v1957
        %v1959 = vpop.f32.mrf.mxu0
        %v1960 = vadd.f32 0.0, %v1959
        %1961 = vmatmul.bf16.gmra.mxu0 %v1687
        %v1962 = vpop.f32.mrf.mxu0
        %v1963 = vadd.f32 0.0, %v1962
        %v1964 = vpop.f32.mrf.mxu0
        %v1965 = vadd.f32 0.0, %v1964
        %1966 = vmatmul.bf16.gmra.mxu0 %v1690
        %v1967 = vpop.f32.mrf.mxu0
        %v1968 = vadd.f32 0.0, %v1967
        %v1969 = vpop.f32.mrf.mxu0
        %v1970 = vadd.f32 0.0, %v1969
        %1971 = vmatmul.bf16.gmra.mxu0 %v1693
        %v1972 = vpop.f32.mrf.mxu0
        %v1973 = vadd.f32 0.0, %v1972
        %v1974 = vpop.f32.mrf.mxu0
        %v1975 = vadd.f32 0.0, %v1974
        %1976 = vdwg.mxu0
        %1977 = vmatpush.bf16.msra.mxu0 %v1855
        %1978 = vmatpush.bf16.msra.mxu0 %v1854
        %1979 = vmatpush.bf16.msra.mxu0 %v1853
        %1980 = vmatpush.bf16.msra.mxu0 %v1852
        %1981 = vmatpush.bf16.msra.mxu0 %v1851
        %1982 = vmatpush.bf16.msra.mxu0 %v1850
        %1983 = vmatpush.bf16.msra.mxu0 %v1849
        %1984 = vmatpush.bf16.msra.mxu0 %v1848
        %1985 = vmatmul.bf16.gmra.mxu0 %v1649
        %v1986 = vpop.f32.mrf.mxu0
        %v1987 = vadd.f32 %v1898, %v1986
        %v1988 = vpop.f32.mrf.mxu0
        %v1989 = vadd.f32 %v1900, %v1988
        %1990 = vmatmul.bf16.gmra.mxu0 %v1652
        %v1991 = vpop.f32.mrf.mxu0
        %v1992 = vadd.f32 %v1903, %v1991
        %v1993 = vpop.f32.mrf.mxu0
        %v1994 = vadd.f32 %v1905, %v1993
        %1995 = vmatmul.bf16.gmra.mxu0 %v1655
        %v1996 = vpop.f32.mrf.mxu0
        %v1997 = vadd.f32 %v1908, %v1996
        %v1998 = vpop.f32.mrf.mxu0
        %v1999 = vadd.f32 %v1910, %v1998
        %2000 = vmatmul.bf16.gmra.mxu0 %v1658
        %v2001 = vpop.f32.mrf.mxu0
        %v2002 = vadd.f32 %v1913, %v2001
        %v2003 = vpop.f32.mrf.mxu0
        %v2004 = vadd.f32 %v1915, %v2003
        %2005 = vmatmul.bf16.gmra.mxu0 %v1661
        %v2006 = vpop.f32.mrf.mxu0
        %v2007 = vadd.f32 %v1918, %v2006
        %v2008 = vpop.f32.mrf.mxu0
        %v2009 = vadd.f32 %v1920, %v2008
        %2010 = vmatmul.bf16.gmra.mxu0 %v1664
        %v2011 = vpop.f32.mrf.mxu0
        %v2012 = vadd.f32 %v1923, %v2011
        %v2013 = vpop.f32.mrf.mxu0
        %v2014 = vadd.f32 %v1925, %v2013
        %2015 = vmatmul.bf16.gmra.mxu0 %v1667
        %v2016 = vpop.f32.mrf.mxu0
        %v2017 = vadd.f32 %v1928, %v2016
        %v2018 = vpop.f32.mrf.mxu0
        %v2019 = vadd.f32 %v1930, %v2018
        %2020 = vmatmul.bf16.gmra.mxu0 %v1670
        %v2021 = vpop.f32.mrf.mxu0
        %v2022 = vadd.f32 %v1933, %v2021
        %v2023 = vpop.f32.mrf.mxu0
        %v2024 = vadd.f32 %v1935, %v2023
        %2025 = vmatmul.bf16.gmra.mxu0 %v1673
        %v2026 = vpop.f32.mrf.mxu0
        %v2027 = vadd.f32 %v1938, %v2026
        %v2028 = vpop.f32.mrf.mxu0
        %v2029 = vadd.f32 %v1940, %v2028
        %2030 = vmatmul.bf16.gmra.mxu0 %v1676
        %v2031 = vpop.f32.mrf.mxu0
        %v2032 = vadd.f32 %v1943, %v2031
        %v2033 = vpop.f32.mrf.mxu0
        %v2034 = vadd.f32 %v1945, %v2033
        %2035 = vmatmul.bf16.gmra.mxu0 %v1679
        %v2036 = vpop.f32.mrf.mxu0
        %v2037 = vadd.f32 %v1948, %v2036
        %v2038 = vpop.f32.mrf.mxu0
        %v2039 = vadd.f32 %v1950, %v2038
        %2040 = vmatmul.bf16.gmra.mxu0 %v1682
        %v2041 = vpop.f32.mrf.mxu0
        %v2042 = vadd.f32 %v1953, %v2041
        %v2043 = vpop.f32.mrf.mxu0
        %v2044 = vadd.f32 %v1955, %v2043
        %2045 = vmatmul.bf16.gmra.mxu0 %v1685
        %v2046 = vpop.f32.mrf.mxu0
        %v2047 = vadd.f32 %v1958, %v2046
        %v2048 = vpop.f32.mrf.mxu0
        %v2049 = vadd.f32 %v1960, %v2048
        %2050 = vmatmul.bf16.gmra.mxu0 %v1688
        %v2051 = vpop.f32.mrf.mxu0
        %v2052 = vadd.f32 %v1963, %v2051
        %v2053 = vpop.f32.mrf.mxu0
        %v2054 = vadd.f32 %v1965, %v2053
        %2055 = vmatmul.bf16.gmra.mxu0 %v1691
        %v2056 = vpop.f32.mrf.mxu0
        %v2057 = vadd.f32 %v1968, %v2056
        %v2058 = vpop.f32.mrf.mxu0
        %v2059 = vadd.f32 %v1970, %v2058
        %2060 = vmatmul.bf16.gmra.mxu0 %v1694
        %v2061 = vpop.f32.mrf.mxu0
        %v2062 = vadd.f32 %v1973, %v2061
        %v2063 = vpop.f32.mrf.mxu0
        %v2064 = vadd.f32 %v1975, %v2063
        %2065 = vdwg.mxu0
        %2066 = vmatpush.bf16.msra.mxu0 %v1863
        %2067 = vmatpush.bf16.msra.mxu0 %v1862
        %2068 = vmatpush.bf16.msra.mxu0 %v1861
        %2069 = vmatpush.bf16.msra.mxu0 %v1860
        %2070 = vmatpush.bf16.msra.mxu0 %v1859
        %2071 = vmatpush.bf16.msra.mxu0 %v1858
        %2072 = vmatpush.bf16.msra.mxu0 %v1857
        %2073 = vmatpush.bf16.msra.mxu0 %v1856
        %2074 = vmatmul.bf16.gmra.mxu0 %v1650
        %v2075 = vpop.f32.mrf.mxu0
        %v2076 = vadd.f32 %v1987, %v2075
        %v2077 = vpop.f32.mrf.mxu0
        %v2078 = vadd.f32 %v1989, %v2077
        %2079 = vmatmul.bf16.gmra.mxu0 %v1653
        %v2080 = vpop.f32.mrf.mxu0
        %v2081 = vadd.f32 %v1992, %v2080
        %v2082 = vpop.f32.mrf.mxu0
        %v2083 = vadd.f32 %v1994, %v2082
        %2084 = vmatmul.bf16.gmra.mxu0 %v1656
        %v2085 = vpop.f32.mrf.mxu0
        %v2086 = vadd.f32 %v1997, %v2085
        %v2087 = vpop.f32.mrf.mxu0
        %v2088 = vadd.f32 %v1999, %v2087
        %2089 = vmatmul.bf16.gmra.mxu0 %v1659
        %v2090 = vpop.f32.mrf.mxu0
        %v2091 = vadd.f32 %v2002, %v2090
        %v2092 = vpop.f32.mrf.mxu0
        %v2093 = vadd.f32 %v2004, %v2092
        %2094 = vmatmul.bf16.gmra.mxu0 %v1662
        %v2095 = vpop.f32.mrf.mxu0
        %v2096 = vadd.f32 %v2007, %v2095
        %v2097 = vpop.f32.mrf.mxu0
        %v2098 = vadd.f32 %v2009, %v2097
        %2099 = vmatmul.bf16.gmra.mxu0 %v1665
        %v2100 = vpop.f32.mrf.mxu0
        %v2101 = vadd.f32 %v2012, %v2100
        %v2102 = vpop.f32.mrf.mxu0
        %v2103 = vadd.f32 %v2014, %v2102
        %2104 = vmatmul.bf16.gmra.mxu0 %v1668
        %v2105 = vpop.f32.mrf.mxu0
        %v2106 = vadd.f32 %v2017, %v2105
        %v2107 = vpop.f32.mrf.mxu0
        %v2108 = vadd.f32 %v2019, %v2107
        %2109 = vmatmul.bf16.gmra.mxu0 %v1671
        %v2110 = vpop.f32.mrf.mxu0
        %v2111 = vadd.f32 %v2022, %v2110
        %v2112 = vpop.f32.mrf.mxu0
        %v2113 = vadd.f32 %v2024, %v2112
        %2114 = vmatmul.bf16.gmra.mxu0 %v1674
        %v2115 = vpop.f32.mrf.mxu0
        %v2116 = vadd.f32 %v2027, %v2115
        %v2117 = vpop.f32.mrf.mxu0
        %v2118 = vadd.f32 %v2029, %v2117
        %2119 = vmatmul.bf16.gmra.mxu0 %v1677
        %v2120 = vpop.f32.mrf.mxu0
        %v2121 = vadd.f32 %v2032, %v2120
        %v2122 = vpop.f32.mrf.mxu0
        %v2123 = vadd.f32 %v2034, %v2122
        %2124 = vmatmul.bf16.gmra.mxu0 %v1680
        %v2125 = vpop.f32.mrf.mxu0
        %v2126 = vadd.f32 %v2037, %v2125
        %v2127 = vpop.f32.mrf.mxu0
        %v2128 = vadd.f32 %v2039, %v2127
        %2129 = vmatmul.bf16.gmra.mxu0 %v1683
        %v2130 = vpop.f32.mrf.mxu0
        %v2131 = vadd.f32 %v2042, %v2130
        %v2132 = vpop.f32.mrf.mxu0
        %v2133 = vadd.f32 %v2044, %v2132
        %2134 = vmatmul.bf16.gmra.mxu0 %v1686
        %v2135 = vpop.f32.mrf.mxu0
        %v2136 = vadd.f32 %v2047, %v2135
        %v2137 = vpop.f32.mrf.mxu0
        %v2138 = vadd.f32 %v2049, %v2137
        %2139 = vmatmul.bf16.gmra.mxu0 %v1689
        %v2140 = vpop.f32.mrf.mxu0
        %v2141 = vadd.f32 %v2052, %v2140
        %v2142 = vpop.f32.mrf.mxu0
        %v2143 = vadd.f32 %v2054, %v2142
        %2144 = vmatmul.bf16.gmra.mxu0 %v1692
        %v2145 = vpop.f32.mrf.mxu0
        %v2146 = vadd.f32 %v2057, %v2145
        %v2147 = vpop.f32.mrf.mxu0
        %v2148 = vadd.f32 %v2059, %v2147
        %2149 = vmatmul.bf16.gmra.mxu0 %v1695
        %v2150 = vpop.f32.mrf.mxu0
        %v2151 = vadd.f32 %v2062, %v2150
        %v2152 = vpop.f32.mrf.mxu0
        %v2153 = vadd.f32 %v2064, %v2152
        %2154 = vdwg.mxu0
        %v2203 = vunpack.c.l.b16 %v1500
        %v2204 = vunpack.c.l.b16 %v1501
        %v2205 = vunpack.c.l.b16 %v1502
        %v2206 = vunpack.c.l.b16 %v1503
        %v2207 = vunpack.c.l.b16 %v1504
        %v2208 = vunpack.c.l.b16 %v1505
        %v2209 = vunpack.c.l.b16 %v1506
        %v2210 = vunpack.c.l.b16 %v1507
        %v2211 = vunpack.c.l.b16 %v1508
        %v2212 = vunpack.c.l.b16 %v1509
        %v2213 = vunpack.c.l.b16 %v1510
        %v2214 = vunpack.c.l.b16 %v1511
        %v2215 = vunpack.c.l.b16 %v1512
        %v2216 = vunpack.c.l.b16 %v1513
        %v2217 = vunpack.c.l.b16 %v1514
        %v2218 = vunpack.c.l.b16 %v1515
        %v2219 = vunpack.c.l.b16 %v1516
        %v2220 = vunpack.c.l.b16 %v1517
        %v2221 = vunpack.c.l.b16 %v1518
        %v2222 = vunpack.c.l.b16 %v1519
        %v2223 = vunpack.c.l.b16 %v1520
        %v2224 = vunpack.c.l.b16 %v1521
        %v2225 = vunpack.c.l.b16 %v1522
        %v2226 = vunpack.c.l.b16 %v1523
        %v2227 = vunpack.c.l.b16 %v1524
        %v2228 = vunpack.c.l.b16 %v1525
        %v2229 = vunpack.c.l.b16 %v1526
        %v2230 = vunpack.c.l.b16 %v1527
        %v2231 = vunpack.c.l.b16 %v1528
        %v2232 = vunpack.c.l.b16 %v1529
        %v2233 = vunpack.c.l.b16 %v1530
        %v2234 = vunpack.c.l.b16 %v1531
        %v2235 = vunpack.c.l.b16 %v1532
        %v2236 = vunpack.c.l.b16 %v1533
        %v2237 = vunpack.c.l.b16 %v1534
        %v2238 = vunpack.c.l.b16 %v1535
        %v2239 = vunpack.c.l.b16 %v1536
        %v2240 = vunpack.c.l.b16 %v1537
        %v2241 = vunpack.c.l.b16 %v1538
        %v2242 = vunpack.c.l.b16 %v1539
        %v2243 = vunpack.c.l.b16 %v1540
        %v2244 = vunpack.c.l.b16 %v1541
        %v2245 = vunpack.c.l.b16 %v1542
        %v2246 = vunpack.c.l.b16 %v1543
        %v2247 = vunpack.c.l.b16 %v1544
        %v2248 = vunpack.c.l.b16 %v1545
        %v2249 = vunpack.c.l.b16 %v1546
        %v2250 = vunpack.c.l.b16 %v1547
        %v2251 = vpack.c.b16 %v2204, %v2203
        %v2252 = vpack.c.b16 %v2206, %v2205
        %v2253 = vpack.c.b16 %v2208, %v2207
        %v2254 = vpack.c.b16 %v2210, %v2209
        %v2255 = vpack.c.b16 %v2212, %v2211
        %v2256 = vpack.c.b16 %v2214, %v2213
        %v2257 = vpack.c.b16 %v2216, %v2215
        %v2258 = vpack.c.b16 %v2218, %v2217
        %v2259 = vpack.c.b16 %v2220, %v2219
        %v2260 = vpack.c.b16 %v2222, %v2221
        %v2261 = vpack.c.b16 %v2224, %v2223
        %v2262 = vpack.c.b16 %v2226, %v2225
        %v2263 = vpack.c.b16 %v2228, %v2227
        %v2264 = vpack.c.b16 %v2230, %v2229
        %v2265 = vpack.c.b16 %v2232, %v2231
        %v2266 = vpack.c.b16 %v2234, %v2233
        %v2267 = vpack.c.b16 %v2236, %v2235
        %v2268 = vpack.c.b16 %v2238, %v2237
        %v2269 = vpack.c.b16 %v2240, %v2239
        %v2270 = vpack.c.b16 %v2242, %v2241
        %v2271 = vpack.c.b16 %v2244, %v2243
        %v2272 = vpack.c.b16 %v2246, %v2245
        %v2273 = vpack.c.b16 %v2248, %v2247
        %v2274 = vpack.c.b16 %v2250, %v2249
        %2299 = vmatpush.bf16.msra.mxu0 %v2258
        %2300 = vmatpush.bf16.msra.mxu0 %v2257
        %2301 = vmatpush.bf16.msra.mxu0 %v2256
        %2302 = vmatpush.bf16.msra.mxu0 %v2255
        %2303 = vmatpush.bf16.msra.mxu0 %v2254
        %2304 = vmatpush.bf16.msra.mxu0 %v2253
        %2305 = vmatpush.bf16.msra.mxu0 %v2252
        %2306 = vmatpush.bf16.msra.mxu0 %v2251
        %2307 = vmatmul.bf16.gmra.mxu0 %v1452
        %v2308 = vpop.f32.mrf.mxu0
        %v2309 = vadd.f32 %v2076, %v2308
        %v2310 = vpop.f32.mrf.mxu0
        %v2311 = vadd.f32 %v2078, %v2310
        %2312 = vmatmul.bf16.gmra.mxu0 %v1455
        %v2313 = vpop.f32.mrf.mxu0
        %v2314 = vadd.f32 %v2081, %v2313
        %v2315 = vpop.f32.mrf.mxu0
        %v2316 = vadd.f32 %v2083, %v2315
        %2317 = vmatmul.bf16.gmra.mxu0 %v1458
        %v2318 = vpop.f32.mrf.mxu0
        %v2319 = vadd.f32 %v2086, %v2318
        %v2320 = vpop.f32.mrf.mxu0
        %v2321 = vadd.f32 %v2088, %v2320
        %2322 = vmatmul.bf16.gmra.mxu0 %v1461
        %v2323 = vpop.f32.mrf.mxu0
        %v2324 = vadd.f32 %v2091, %v2323
        %v2325 = vpop.f32.mrf.mxu0
        %v2326 = vadd.f32 %v2093, %v2325
        %2327 = vmatmul.bf16.gmra.mxu0 %v1464
        %v2328 = vpop.f32.mrf.mxu0
        %v2329 = vadd.f32 %v2096, %v2328
        %v2330 = vpop.f32.mrf.mxu0
        %v2331 = vadd.f32 %v2098, %v2330
        %2332 = vmatmul.bf16.gmra.mxu0 %v1467
        %v2333 = vpop.f32.mrf.mxu0
        %v2334 = vadd.f32 %v2101, %v2333
        %v2335 = vpop.f32.mrf.mxu0
        %v2336 = vadd.f32 %v2103, %v2335
        %2337 = vmatmul.bf16.gmra.mxu0 %v1470
        %v2338 = vpop.f32.mrf.mxu0
        %v2339 = vadd.f32 %v2106, %v2338
        %v2340 = vpop.f32.mrf.mxu0
        %v2341 = vadd.f32 %v2108, %v2340
        %2342 = vmatmul.bf16.gmra.mxu0 %v1473
        %v2343 = vpop.f32.mrf.mxu0
        %v2344 = vadd.f32 %v2111, %v2343
        %v2345 = vpop.f32.mrf.mxu0
        %v2346 = vadd.f32 %v2113, %v2345
        %2347 = vmatmul.bf16.gmra.mxu0 %v1476
        %v2348 = vpop.f32.mrf.mxu0
        %v2349 = vadd.f32 %v2116, %v2348
        %v2350 = vpop.f32.mrf.mxu0
        %v2351 = vadd.f32 %v2118, %v2350
        %2352 = vmatmul.bf16.gmra.mxu0 %v1479
        %v2353 = vpop.f32.mrf.mxu0
        %v2354 = vadd.f32 %v2121, %v2353
        %v2355 = vpop.f32.mrf.mxu0
        %v2356 = vadd.f32 %v2123, %v2355
        %2357 = vmatmul.bf16.gmra.mxu0 %v1482
        %v2358 = vpop.f32.mrf.mxu0
        %v2359 = vadd.f32 %v2126, %v2358
        %v2360 = vpop.f32.mrf.mxu0
        %v2361 = vadd.f32 %v2128, %v2360
        %2362 = vmatmul.bf16.gmra.mxu0 %v1485
        %v2363 = vpop.f32.mrf.mxu0
        %v2364 = vadd.f32 %v2131, %v2363
        %v2365 = vpop.f32.mrf.mxu0
        %v2366 = vadd.f32 %v2133, %v2365
        %2367 = vmatmul.bf16.gmra.mxu0 %v1488
        %v2368 = vpop.f32.mrf.mxu0
        %v2369 = vadd.f32 %v2136, %v2368
        %v2370 = vpop.f32.mrf.mxu0
        %v2371 = vadd.f32 %v2138, %v2370
        %2372 = vmatmul.bf16.gmra.mxu0 %v1491
        %v2373 = vpop.f32.mrf.mxu0
        %v2374 = vadd.f32 %v2141, %v2373
        %v2375 = vpop.f32.mrf.mxu0
        %v2376 = vadd.f32 %v2143, %v2375
        %2377 = vmatmul.bf16.gmra.mxu0 %v1494
        %v2378 = vpop.f32.mrf.mxu0
        %v2379 = vadd.f32 %v2146, %v2378
        %v2380 = vpop.f32.mrf.mxu0
        %v2381 = vadd.f32 %v2148, %v2380
        %2382 = vmatmul.bf16.gmra.mxu0 %v1497
        %v2383 = vpop.f32.mrf.mxu0
        %v2384 = vadd.f32 %v2151, %v2383
        %v2385 = vpop.f32.mrf.mxu0
        %v2386 = vadd.f32 %v2153, %v2385
        %2387 = vdwg.mxu0
        %2388 = vmatpush.bf16.msra.mxu0 %v2266
        %2389 = vmatpush.bf16.msra.mxu0 %v2265
        %2390 = vmatpush.bf16.msra.mxu0 %v2264
        %2391 = vmatpush.bf16.msra.mxu0 %v2263
        %2392 = vmatpush.bf16.msra.mxu0 %v2262
        %2393 = vmatpush.bf16.msra.mxu0 %v2261
        %2394 = vmatpush.bf16.msra.mxu0 %v2260
        %2395 = vmatpush.bf16.msra.mxu0 %v2259
        %2396 = vmatmul.bf16.gmra.mxu0 %v1453
        %v2397 = vpop.f32.mrf.mxu0
        %v2398 = vadd.f32 %v2309, %v2397
        %v2399 = vpop.f32.mrf.mxu0
        %v2400 = vadd.f32 %v2311, %v2399
        %2401 = vmatmul.bf16.gmra.mxu0 %v1456
        %v2402 = vpop.f32.mrf.mxu0
        %v2403 = vadd.f32 %v2314, %v2402
        %v2404 = vpop.f32.mrf.mxu0
        %v2405 = vadd.f32 %v2316, %v2404
        %2406 = vmatmul.bf16.gmra.mxu0 %v1459
        %v2407 = vpop.f32.mrf.mxu0
        %v2408 = vadd.f32 %v2319, %v2407
        %v2409 = vpop.f32.mrf.mxu0
        %v2410 = vadd.f32 %v2321, %v2409
        %2411 = vmatmul.bf16.gmra.mxu0 %v1462
        %v2412 = vpop.f32.mrf.mxu0
        %v2413 = vadd.f32 %v2324, %v2412
        %v2414 = vpop.f32.mrf.mxu0
        %v2415 = vadd.f32 %v2326, %v2414
        %2416 = vmatmul.bf16.gmra.mxu0 %v1465
        %v2417 = vpop.f32.mrf.mxu0
        %v2418 = vadd.f32 %v2329, %v2417
        %v2419 = vpop.f32.mrf.mxu0
        %v2420 = vadd.f32 %v2331, %v2419
        %2421 = vmatmul.bf16.gmra.mxu0 %v1468
        %v2422 = vpop.f32.mrf.mxu0
        %v2423 = vadd.f32 %v2334, %v2422
        %v2424 = vpop.f32.mrf.mxu0
        %v2425 = vadd.f32 %v2336, %v2424
        %2426 = vmatmul.bf16.gmra.mxu0 %v1471
        %v2427 = vpop.f32.mrf.mxu0
        %v2428 = vadd.f32 %v2339, %v2427
        %v2429 = vpop.f32.mrf.mxu0
        %v2430 = vadd.f32 %v2341, %v2429
        %2431 = vmatmul.bf16.gmra.mxu0 %v1474
        %v2432 = vpop.f32.mrf.mxu0
        %v2433 = vadd.f32 %v2344, %v2432
        %v2434 = vpop.f32.mrf.mxu0
        %v2435 = vadd.f32 %v2346, %v2434
        %2436 = vmatmul.bf16.gmra.mxu0 %v1477
        %v2437 = vpop.f32.mrf.mxu0
        %v2438 = vadd.f32 %v2349, %v2437
        %v2439 = vpop.f32.mrf.mxu0
        %v2440 = vadd.f32 %v2351, %v2439
        %2441 = vmatmul.bf16.gmra.mxu0 %v1480
        %v2442 = vpop.f32.mrf.mxu0
        %v2443 = vadd.f32 %v2354, %v2442
        %v2444 = vpop.f32.mrf.mxu0
        %v2445 = vadd.f32 %v2356, %v2444
        %2446 = vmatmul.bf16.gmra.mxu0 %v1483
        %v2447 = vpop.f32.mrf.mxu0
        %v2448 = vadd.f32 %v2359, %v2447
        %v2449 = vpop.f32.mrf.mxu0
        %v2450 = vadd.f32 %v2361, %v2449
        %2451 = vmatmul.bf16.gmra.mxu0 %v1486
        %v2452 = vpop.f32.mrf.mxu0
        %v2453 = vadd.f32 %v2364, %v2452
        %v2454 = vpop.f32.mrf.mxu0
        %v2455 = vadd.f32 %v2366, %v2454
        %2456 = vmatmul.bf16.gmra.mxu0 %v1489
        %v2457 = vpop.f32.mrf.mxu0
        %v2458 = vadd.f32 %v2369, %v2457
        %v2459 = vpop.f32.mrf.mxu0
        %v2460 = vadd.f32 %v2371, %v2459
        %2461 = vmatmul.bf16.gmra.mxu0 %v1492
        %v2462 = vpop.f32.mrf.mxu0
        %v2463 = vadd.f32 %v2374, %v2462
        %v2464 = vpop.f32.mrf.mxu0
        %v2465 = vadd.f32 %v2376, %v2464
        %2466 = vmatmul.bf16.gmra.mxu0 %v1495
        %v2467 = vpop.f32.mrf.mxu0
        %v2468 = vadd.f32 %v2379, %v2467
        %v2469 = vpop.f32.mrf.mxu0
        %v2470 = vadd.f32 %v2381, %v2469
        %2471 = vmatmul.bf16.gmra.mxu0 %v1498
        %v2472 = vpop.f32.mrf.mxu0
        %v2473 = vadd.f32 %v2384, %v2472
        %v2474 = vpop.f32.mrf.mxu0
        %v2475 = vadd.f32 %v2386, %v2474
        %2476 = vdwg.mxu0
        %2477 = vmatpush.bf16.msra.mxu0 %v2274
        %2478 = vmatpush.bf16.msra.mxu0 %v2273
        %2479 = vmatpush.bf16.msra.mxu0 %v2272
        %2480 = vmatpush.bf16.msra.mxu0 %v2271
        %2481 = vmatpush.bf16.msra.mxu0 %v2270
        %2482 = vmatpush.bf16.msra.mxu0 %v2269
        %2483 = vmatpush.bf16.msra.mxu0 %v2268
        %2484 = vmatpush.bf16.msra.mxu0 %v2267
        %2485 = vmatmul.bf16.gmra.mxu0 %v1454
        %v2486 = vpop.f32.mrf.mxu0
        %v2487 = vadd.f32 %v2398, %v2486
        %v2488 = vpop.f32.mrf.mxu0
        %v2489 = vadd.f32 %v2400, %v2488
        %2490 = vmatmul.bf16.gmra.mxu0 %v1457
        %v2491 = vpop.f32.mrf.mxu0
        %v2492 = vadd.f32 %v2403, %v2491
        %v2493 = vpop.f32.mrf.mxu0
        %v2494 = vadd.f32 %v2405, %v2493
        %2495 = vmatmul.bf16.gmra.mxu0 %v1460
        %v2496 = vpop.f32.mrf.mxu0
        %v2497 = vadd.f32 %v2408, %v2496
        %v2498 = vpop.f32.mrf.mxu0
        %v2499 = vadd.f32 %v2410, %v2498
        %2500 = vmatmul.bf16.gmra.mxu0 %v1463
        %v2501 = vpop.f32.mrf.mxu0
        %v2502 = vadd.f32 %v2413, %v2501
        %v2503 = vpop.f32.mrf.mxu0
        %v2504 = vadd.f32 %v2415, %v2503
        %2505 = vmatmul.bf16.gmra.mxu0 %v1466
        %v2506 = vpop.f32.mrf.mxu0
        %v2507 = vadd.f32 %v2418, %v2506
        %v2508 = vpop.f32.mrf.mxu0
        %v2509 = vadd.f32 %v2420, %v2508
        %2510 = vmatmul.bf16.gmra.mxu0 %v1469
        %v2511 = vpop.f32.mrf.mxu0
        %v2512 = vadd.f32 %v2423, %v2511
        %v2513 = vpop.f32.mrf.mxu0
        %v2514 = vadd.f32 %v2425, %v2513
        %2515 = vmatmul.bf16.gmra.mxu0 %v1472
        %v2516 = vpop.f32.mrf.mxu0
        %v2517 = vadd.f32 %v2428, %v2516
        %v2518 = vpop.f32.mrf.mxu0
        %v2519 = vadd.f32 %v2430, %v2518
        %2520 = vmatmul.bf16.gmra.mxu0 %v1475
        %v2521 = vpop.f32.mrf.mxu0
        %v2522 = vadd.f32 %v2433, %v2521
        %v2523 = vpop.f32.mrf.mxu0
        %v2524 = vadd.f32 %v2435, %v2523
        %2525 = vmatmul.bf16.gmra.mxu0 %v1478
        %v2526 = vpop.f32.mrf.mxu0
        %v2527 = vadd.f32 %v2438, %v2526
        %v2528 = vpop.f32.mrf.mxu0
        %v2529 = vadd.f32 %v2440, %v2528
        %2530 = vmatmul.bf16.gmra.mxu0 %v1481
        %v2531 = vpop.f32.mrf.mxu0
        %v2532 = vadd.f32 %v2443, %v2531
        %v2533 = vpop.f32.mrf.mxu0
        %v2534 = vadd.f32 %v2445, %v2533
        %2535 = vmatmul.bf16.gmra.mxu0 %v1484
        %v2536 = vpop.f32.mrf.mxu0
        %v2537 = vadd.f32 %v2448, %v2536
        %v2538 = vpop.f32.mrf.mxu0
        %v2539 = vadd.f32 %v2450, %v2538
        %2540 = vmatmul.bf16.gmra.mxu0 %v1487
        %v2541 = vpop.f32.mrf.mxu0
        %v2542 = vadd.f32 %v2453, %v2541
        %v2543 = vpop.f32.mrf.mxu0
        %v2544 = vadd.f32 %v2455, %v2543
        %2545 = vmatmul.bf16.gmra.mxu0 %v1490
        %v2546 = vpop.f32.mrf.mxu0
        %v2547 = vadd.f32 %v2458, %v2546
        %v2548 = vpop.f32.mrf.mxu0
        %v2549 = vadd.f32 %v2460, %v2548
        %2550 = vmatmul.bf16.gmra.mxu0 %v1493
        %v2551 = vpop.f32.mrf.mxu0
        %v2552 = vadd.f32 %v2463, %v2551
        %v2553 = vpop.f32.mrf.mxu0
        %v2554 = vadd.f32 %v2465, %v2553
        %2555 = vmatmul.bf16.gmra.mxu0 %v1496
        %v2556 = vpop.f32.mrf.mxu0
        %v2557 = vadd.f32 %v2468, %v2556
        %v2558 = vpop.f32.mrf.mxu0
        %v2559 = vadd.f32 %v2470, %v2558
        %2560 = vmatmul.bf16.gmra.mxu0 %v1499
        %v2561 = vpop.f32.mrf.mxu0
        %v2562 = vadd.f32 %v2473, %v2561
        %v2563 = vpop.f32.mrf.mxu0
        %v2564 = vadd.f32 %v2475, %v2563
        %2565 = vdwg.mxu0
        %v2566 = vld [vmem:[#allocation3 + $0x28] sm:$0xff]
        %v2567 = vld [vmem:[#allocation3 + $0x30] sm:$0xff]
        %v2568 = vld [vmem:[#allocation3 + $0x38] sm:$0xff]
        %v2569 = vld [vmem:[#allocation3 + $0x40] sm:$0xff]
        %v2570 = vld [vmem:[#allocation3 + $0x48] sm:$0xff]
        %v2571 = vld [vmem:[#allocation3 + $0x50] sm:$0xff]
        %v2572 = vld [vmem:[#allocation3 + $0x58] sm:$0xff]
        %v2573 = vld [vmem:[#allocation3 + $0x60] sm:$0xff]
        %v2574 = vld [vmem:[#allocation3 + $0x68] sm:$0xff]
        %v2575 = vld [vmem:[#allocation3 + $0x70] sm:$0xff]
        %v2576 = vld [vmem:[#allocation3 + $0x78] sm:$0xff]
        %v2577 = vld [vmem:[#allocation3 + $0x80] sm:$0xff]
        %v2578 = vld [vmem:[#allocation3 + $0x88] sm:$0xff]
        %v2579 = vld [vmem:[#allocation3 + $0x90] sm:$0xff]
        %v2580 = vld [vmem:[#allocation3 + $0x98] sm:$0xff]
        %v2581 = vld [vmem:[#allocation3 + $0xa0] sm:$0xff]
        %v2582 = vld [vmem:[#allocation3 + $0xa8] sm:$0xff]
        %v2583 = vld [vmem:[#allocation3 + $0xb0] sm:$0xff]
        %v2584 = vld [vmem:[#allocation3 + $0xb8] sm:$0xff]
        %v2585 = vld [vmem:[#allocation3 + $0xc0] sm:$0xff]
        %v2586 = vld [vmem:[#allocation3 + $0xc8] sm:$0xff]
        %v2587 = vld [vmem:[#allocation3 + $0xd0] sm:$0xff]
        %v2588 = vld [vmem:[#allocation3 + $0xd8] sm:$0xff]
        %v2589 = vld [vmem:[#allocation3 + $0xe0] sm:$0xff]
        %v2590 = vld [vmem:[#allocation3 + $0xe8] sm:$0xff]
        %v2591 = vld [vmem:[#allocation3 + $0xf0] sm:$0xff]
        %v2592 = vld [vmem:[#allocation3 + $0xf8] sm:$0xff]
        %v2593 = vld [vmem:[#allocation3 + $0x100] sm:$0xff]
        %v2594 = vld [vmem:[#allocation3 + $0x108] sm:$0xff]
        %v2595 = vld [vmem:[#allocation3 + $0x110] sm:$0xff]
        %v2596 = vld [vmem:[#allocation3 + $0x118] sm:$0xff]
        %v2597 = vld [vmem:[#allocation3 + $0x120] sm:$0xff]
        %v2598 = vld [vmem:[#allocation3 + $0x27] sm:$0xff]
        %v2599 = vld [vmem:[#allocation3 + $0x2f] sm:$0xff]
        %v2600 = vld [vmem:[#allocation3 + $0x37] sm:$0xff]
        %v2601 = vld [vmem:[#allocation3 + $0x3f] sm:$0xff]
        %v2602 = vld [vmem:[#allocation3 + $0x47] sm:$0xff]
        %v2603 = vld [vmem:[#allocation3 + $0x4f] sm:$0xff]
        %v2604 = vld [vmem:[#allocation3 + $0x57] sm:$0xff]
        %v2605 = vld [vmem:[#allocation3 + $0x5f] sm:$0xff]
        %v2606 = vld [vmem:[#allocation3 + $0x67] sm:$0xff]
        %v2607 = vld [vmem:[#allocation3 + $0x6f] sm:$0xff]
        %v2608 = vld [vmem:[#allocation3 + $0x77] sm:$0xff]
        %v2609 = vld [vmem:[#allocation3 + $0x7f] sm:$0xff]
        %v2610 = vld [vmem:[#allocation3 + $0x87] sm:$0xff]
        %v2611 = vld [vmem:[#allocation3 + $0x8f] sm:$0xff]
        %v2612 = vld [vmem:[#allocation3 + $0x97] sm:$0xff]
        %v2613 = vld [vmem:[#allocation3 + $0x9f] sm:$0xff]
        %v2614 = vld [vmem:[#allocation3 + $0xa7] sm:$0xff]
        %v2615 = vld [vmem:[#allocation3 + $0xaf] sm:$0xff]
        %v2616 = vld [vmem:[#allocation3 + $0xb7] sm:$0xff]
        %v2617 = vld [vmem:[#allocation3 + $0xbf] sm:$0xff]
        %v2618 = vld [vmem:[#allocation3 + $0xc7] sm:$0xff]
        %v2619 = vld [vmem:[#allocation3 + $0xcf] sm:$0xff]
        %v2620 = vld [vmem:[#allocation3 + $0xd7] sm:$0xff]
        %v2621 = vld [vmem:[#allocation3 + $0xdf] sm:$0xff]
        %v2622 = vld [vmem:[#allocation3 + $0xe7] sm:$0xff]
        %v2623 = vld [vmem:[#allocation3 + $0xef] sm:$0xff]
        %v2624 = vld [vmem:[#allocation3 + $0xf7] sm:$0xff]
        %v2625 = vld [vmem:[#allocation3 + $0xff] sm:$0xff]
        %v2626 = vld [vmem:[#allocation3 + $0x107] sm:$0xff]
        %v2627 = vld [vmem:[#allocation3 + $0x10f] sm:$0xff]
        %v2628 = vld [vmem:[#allocation3 + $0x117] sm:$0xff]
        %v2629 = vld [vmem:[#allocation3 + $0x11f] sm:$0xff]
        %v2630 = vsel %vm1260, %v2598, 0.0
        %v2631 = vsel %vm1261, %v2599, 0.0
        %v2632 = vsel %vm1262, %v2600, 0.0
        %v2633 = vsel %vm1263, %v2601, 0.0
        %v2634 = vsel %vm1264, %v2602, 0.0
        %v2635 = vsel %vm1265, %v2603, 0.0
        %v2636 = vsel %vm1266, %v2604, 0.0
        %v2637 = vsel %vm1267, %v2605, 0.0
        %v2638 = vsel %vm1268, %v2606, 0.0
        %v2639 = vsel %vm1269, %v2607, 0.0
        %v2640 = vsel %vm1270, %v2608, 0.0
        %v2641 = vsel %vm1271, %v2609, 0.0
        %v2642 = vsel %vm1272, %v2610, 0.0
        %v2643 = vsel %vm1273, %v2611, 0.0
        %v2644 = vsel %vm1274, %v2612, 0.0
        %v2645 = vsel %vm1275, %v2613, 0.0
        %v2646 = vsel %vm1276, %v2614, 0.0
        %v2647 = vsel %vm1277, %v2615, 0.0
        %v2648 = vsel %vm1278, %v2616, 0.0
        %v2649 = vsel %vm1279, %v2617, 0.0
        %v2650 = vsel %vm1280, %v2618, 0.0
        %v2651 = vsel %vm1281, %v2619, 0.0
        %v2652 = vsel %vm1282, %v2620, 0.0
        %v2653 = vsel %vm1283, %v2621, 0.0
        %v2654 = vsel %vm1284, %v2622, 0.0
        %v2655 = vsel %vm1285, %v2623, 0.0
        %v2656 = vsel %vm1286, %v2624, 0.0
        %v2657 = vsel %vm1287, %v2625, 0.0
        %v2658 = vsel %vm1288, %v2626, 0.0
        %v2659 = vsel %vm1289, %v2627, 0.0
        %v2660 = vsel %vm1290, %v2628, 0.0
        %v2661 = vsel %vm1291, %v2629, 0.0
        %v2662 = vld [vmem:[#allocation3 + $0x29] sm:$0xff]
        %v2663 = vld [vmem:[#allocation3 + $0x31] sm:$0xff]
        %v2664 = vld [vmem:[#allocation3 + $0x39] sm:$0xff]
        %v2665 = vld [vmem:[#allocation3 + $0x41] sm:$0xff]
        %v2666 = vld [vmem:[#allocation3 + $0x49] sm:$0xff]
        %v2667 = vld [vmem:[#allocation3 + $0x51] sm:$0xff]
        %v2668 = vld [vmem:[#allocation3 + $0x59] sm:$0xff]
        %v2669 = vld [vmem:[#allocation3 + $0x61] sm:$0xff]
        %v2670 = vld [vmem:[#allocation3 + $0x69] sm:$0xff]
        %v2671 = vld [vmem:[#allocation3 + $0x71] sm:$0xff]
        %v2672 = vld [vmem:[#allocation3 + $0x79] sm:$0xff]
        %v2673 = vld [vmem:[#allocation3 + $0x81] sm:$0xff]
        %v2674 = vld [vmem:[#allocation3 + $0x89] sm:$0xff]
        %v2675 = vld [vmem:[#allocation3 + $0x91] sm:$0xff]
        %v2676 = vld [vmem:[#allocation3 + $0x99] sm:$0xff]
        %v2677 = vld [vmem:[#allocation3 + $0xa1] sm:$0xff]
        %v2678 = vld [vmem:[#allocation3 + $0xa9] sm:$0xff]
        %v2679 = vld [vmem:[#allocation3 + $0xb1] sm:$0xff]
        %v2680 = vld [vmem:[#allocation3 + $0xb9] sm:$0xff]
        %v2681 = vld [vmem:[#allocation3 + $0xc1] sm:$0xff]
        %v2682 = vld [vmem:[#allocation3 + $0xc9] sm:$0xff]
        %v2683 = vld [vmem:[#allocation3 + $0xd1] sm:$0xff]
        %v2684 = vld [vmem:[#allocation3 + $0xd9] sm:$0xff]
        %v2685 = vld [vmem:[#allocation3 + $0xe1] sm:$0xff]
        %v2686 = vld [vmem:[#allocation3 + $0xe9] sm:$0xff]
        %v2687 = vld [vmem:[#allocation3 + $0xf1] sm:$0xff]
        %v2688 = vld [vmem:[#allocation3 + $0xf9] sm:$0xff]
        %v2689 = vld [vmem:[#allocation3 + $0x101] sm:$0xff]
        %v2690 = vld [vmem:[#allocation3 + $0x109] sm:$0xff]
        %v2691 = vld [vmem:[#allocation3 + $0x111] sm:$0xff]
        %v2692 = vld [vmem:[#allocation3 + $0x119] sm:$0xff]
        %v2693 = vld [vmem:[#allocation3 + $0x121] sm:$0xff]
        %v2694 = vsel %vm1292, %v2662, 0.0
        %v2695 = vsel %vm1293, %v2663, 0.0
        %v2696 = vsel %vm1294, %v2664, 0.0
        %v2697 = vsel %vm1295, %v2665, 0.0
        %v2698 = vsel %vm1296, %v2666, 0.0
        %v2699 = vsel %vm1297, %v2667, 0.0
        %v2700 = vsel %vm1298, %v2668, 0.0
        %v2701 = vsel %vm1299, %v2669, 0.0
        %v2702 = vsel %vm1300, %v2670, 0.0
        %v2703 = vsel %vm1301, %v2671, 0.0
        %v2704 = vsel %vm1302, %v2672, 0.0
        %v2705 = vsel %vm1303, %v2673, 0.0
        %v2706 = vsel %vm1304, %v2674, 0.0
        %v2707 = vsel %vm1305, %v2675, 0.0
        %v2708 = vsel %vm1306, %v2676, 0.0
        %v2709 = vsel %vm1307, %v2677, 0.0
        %v2710 = vsel %vm1308, %v2678, 0.0
        %v2711 = vsel %vm1309, %v2679, 0.0
        %v2712 = vsel %vm1310, %v2680, 0.0
        %v2713 = vsel %vm1311, %v2681, 0.0
        %v2714 = vsel %vm1312, %v2682, 0.0
        %v2715 = vsel %vm1313, %v2683, 0.0
        %v2716 = vsel %vm1314, %v2684, 0.0
        %v2717 = vsel %vm1315, %v2685, 0.0
        %v2718 = vsel %vm1316, %v2686, 0.0
        %v2719 = vsel %vm1317, %v2687, 0.0
        %v2720 = vsel %vm1318, %v2688, 0.0
        %v2721 = vsel %vm1319, %v2689, 0.0
        %v2722 = vsel %vm1320, %v2690, 0.0
        %v2723 = vsel %vm1321, %v2691, 0.0
        %v2724 = vsel %vm1322, %v2692, 0.0
        %v2725 = vsel %vm1323, %v2693, 0.0
        %v2726 = vpack.c.bf16 %v2631, %v2630
        %v2727 = vpack.c.bf16 %v2567, %v2566
        %v2728 = vpack.c.bf16 %v2695, %v2694
        %v2729 = vpack.c.bf16 %v2633, %v2632
        %v2730 = vpack.c.bf16 %v2569, %v2568
        %v2731 = vpack.c.bf16 %v2697, %v2696
        %v2732 = vpack.c.bf16 %v2635, %v2634
        %v2733 = vpack.c.bf16 %v2571, %v2570
        %v2734 = vpack.c.bf16 %v2699, %v2698
        %v2735 = vpack.c.bf16 %v2637, %v2636
        %v2736 = vpack.c.bf16 %v2573, %v2572
        %v2737 = vpack.c.bf16 %v2701, %v2700
        %v2738 = vpack.c.bf16 %v2639, %v2638
        %v2739 = vpack.c.bf16 %v2575, %v2574
        %v2740 = vpack.c.bf16 %v2703, %v2702
        %v2741 = vpack.c.bf16 %v2641, %v2640
        %v2742 = vpack.c.bf16 %v2577, %v2576
        %v2743 = vpack.c.bf16 %v2705, %v2704
        %v2744 = vpack.c.bf16 %v2643, %v2642
        %v2745 = vpack.c.bf16 %v2579, %v2578
        %v2746 = vpack.c.bf16 %v2707, %v2706
        %v2747 = vpack.c.bf16 %v2645, %v2644
        %v2748 = vpack.c.bf16 %v2581, %v2580
        %v2749 = vpack.c.bf16 %v2709, %v2708
        %v2750 = vpack.c.bf16 %v2647, %v2646
        %v2751 = vpack.c.bf16 %v2583, %v2582
        %v2752 = vpack.c.bf16 %v2711, %v2710
        %v2753 = vpack.c.bf16 %v2649, %v2648
        %v2754 = vpack.c.bf16 %v2585, %v2584
        %v2755 = vpack.c.bf16 %v2713, %v2712
        %v2756 = vpack.c.bf16 %v2651, %v2650
        %v2757 = vpack.c.bf16 %v2587, %v2586
        %v2758 = vpack.c.bf16 %v2715, %v2714
        %v2759 = vpack.c.bf16 %v2653, %v2652
        %v2760 = vpack.c.bf16 %v2589, %v2588
        %v2761 = vpack.c.bf16 %v2717, %v2716
        %v2762 = vpack.c.bf16 %v2655, %v2654
        %v2763 = vpack.c.bf16 %v2591, %v2590
        %v2764 = vpack.c.bf16 %v2719, %v2718
        %v2765 = vpack.c.bf16 %v2657, %v2656
        %v2766 = vpack.c.bf16 %v2593, %v2592
        %v2767 = vpack.c.bf16 %v2721, %v2720
        %v2768 = vpack.c.bf16 %v2659, %v2658
        %v2769 = vpack.c.bf16 %v2595, %v2594
        %v2770 = vpack.c.bf16 %v2723, %v2722
        %v2771 = vpack.c.bf16 %v2661, %v2660
        %v2772 = vpack.c.bf16 %v2597, %v2596
        %v2773 = vpack.c.bf16 %v2725, %v2724
        %v2774 = vld [vmem:[%s332 + $0x180] sm:$0xf]
        %v2775 = vld [vmem:[%s332 + $0x184] sm:$0xf]
        %v2776 = vld [vmem:[%s332 + $0x188] sm:$0xf]
        %v2777 = vld [vmem:[%s332 + $0x18c] sm:$0xf]
        %v2778 = vld [vmem:[%s332 + $0x190] sm:$0xf]
        %v2779 = vld [vmem:[%s332 + $0x194] sm:$0xf]
        %v2780 = vld [vmem:[%s332 + $0x198] sm:$0xf]
        %v2781 = vld [vmem:[%s332 + $0x19c] sm:$0xf]
        %v2782 = vld [vmem:[%s332 + $0x1a0] sm:$0xf]
        %v2783 = vld [vmem:[%s332 + $0x1a4] sm:$0xf]
        %v2784 = vld [vmem:[%s332 + $0x1a8] sm:$0xf]
        %v2785 = vld [vmem:[%s332 + $0x1ac] sm:$0xf]
        %v2786 = vld [vmem:[%s332 + $0x1b0] sm:$0xf]
        %v2787 = vld [vmem:[%s332 + $0x1b4] sm:$0xf]
        %v2788 = vld [vmem:[%s332 + $0x1b8] sm:$0xf]
        %v2789 = vld [vmem:[%s332 + $0x1bc] sm:$0xf]
        %v2790 = vld [vmem:[%s332 + $0x1c0] sm:$0xf]
        %v2791 = vld [vmem:[%s332 + $0x1c4] sm:$0xf]
        %v2792 = vld [vmem:[%s332 + $0x1c8] sm:$0xf]
        %v2793 = vld [vmem:[%s332 + $0x1cc] sm:$0xf]
        %v2794 = vld [vmem:[%s332 + $0x1d0] sm:$0xf]
        %v2795 = vld [vmem:[%s332 + $0x1d4] sm:$0xf]
        %v2796 = vld [vmem:[%s332 + $0x1d8] sm:$0xf]
        %v2797 = vld [vmem:[%s332 + $0x1dc] sm:$0xf]
        %v2798 = vld [vmem:[%s332 + $0x1e0] sm:$0xf]
        %v2799 = vld [vmem:[%s332 + $0x1e4] sm:$0xf]
        %v2800 = vld [vmem:[%s332 + $0x1e8] sm:$0xf]
        %v2801 = vld [vmem:[%s332 + $0x1ec] sm:$0xf]
        %v2802 = vld [vmem:[%s332 + $0x1f0] sm:$0xf]
        %v2803 = vld [vmem:[%s332 + $0x1f4] sm:$0xf]
        %v2804 = vld [vmem:[%s332 + $0x1f8] sm:$0xf]
        %v2805 = vld [vmem:[%s332 + $0x1fc] sm:$0xf]
        %v2806 = vld [vmem:[%s332 + $0x200] sm:$0xf]
        %v2807 = vld [vmem:[%s332 + $0x204] sm:$0xf]
        %v2808 = vld [vmem:[%s332 + $0x208] sm:$0xf]
        %v2809 = vld [vmem:[%s332 + $0x20c] sm:$0xf]
        %v2810 = vld [vmem:[%s332 + $0x210] sm:$0xf]
        %v2811 = vld [vmem:[%s332 + $0x214] sm:$0xf]
        %v2812 = vld [vmem:[%s332 + $0x218] sm:$0xf]
        %v2813 = vld [vmem:[%s332 + $0x21c] sm:$0xf]
        %v2814 = vld [vmem:[%s332 + $0x220] sm:$0xf]
        %v2815 = vld [vmem:[%s332 + $0x224] sm:$0xf]
        %v2816 = vld [vmem:[%s332 + $0x228] sm:$0xf]
        %v2817 = vld [vmem:[%s332 + $0x22c] sm:$0xf]
        %v2818 = vld [vmem:[%s332 + $0x230] sm:$0xf]
        %v2819 = vld [vmem:[%s332 + $0x234] sm:$0xf]
        %v2820 = vld [vmem:[%s332 + $0x238] sm:$0xf]
        %v2821 = vld [vmem:[%s332 + $0x23c] sm:$0xf]
        %v2870 = vunpack.c.l.b16 %v2774
        %v2871 = vunpack.c.l.b16 %v2775
        %v2872 = vunpack.c.l.b16 %v2776
        %v2873 = vunpack.c.l.b16 %v2777
        %v2874 = vunpack.c.l.b16 %v2778
        %v2875 = vunpack.c.l.b16 %v2779
        %v2876 = vunpack.c.l.b16 %v2780
        %v2877 = vunpack.c.l.b16 %v2781
        %v2878 = vunpack.c.l.b16 %v2782
        %v2879 = vunpack.c.l.b16 %v2783
        %v2880 = vunpack.c.l.b16 %v2784
        %v2881 = vunpack.c.l.b16 %v2785
        %v2882 = vunpack.c.l.b16 %v2786
        %v2883 = vunpack.c.l.b16 %v2787
        %v2884 = vunpack.c.l.b16 %v2788
        %v2885 = vunpack.c.l.b16 %v2789
        %v2886 = vunpack.c.l.b16 %v2790
        %v2887 = vunpack.c.l.b16 %v2791
        %v2888 = vunpack.c.l.b16 %v2792
        %v2889 = vunpack.c.l.b16 %v2793
        %v2890 = vunpack.c.l.b16 %v2794
        %v2891 = vunpack.c.l.b16 %v2795
        %v2892 = vunpack.c.l.b16 %v2796
        %v2893 = vunpack.c.l.b16 %v2797
        %v2894 = vunpack.c.l.b16 %v2798
        %v2895 = vunpack.c.l.b16 %v2799
        %v2896 = vunpack.c.l.b16 %v2800
        %v2897 = vunpack.c.l.b16 %v2801
        %v2898 = vunpack.c.l.b16 %v2802
        %v2899 = vunpack.c.l.b16 %v2803
        %v2900 = vunpack.c.l.b16 %v2804
        %v2901 = vunpack.c.l.b16 %v2805
        %v2902 = vunpack.c.l.b16 %v2806
        %v2903 = vunpack.c.l.b16 %v2807
        %v2904 = vunpack.c.l.b16 %v2808
        %v2905 = vunpack.c.l.b16 %v2809
        %v2906 = vunpack.c.l.b16 %v2810
        %v2907 = vunpack.c.l.b16 %v2811
        %v2908 = vunpack.c.l.b16 %v2812
        %v2909 = vunpack.c.l.b16 %v2813
        %v2910 = vunpack.c.l.b16 %v2814
        %v2911 = vunpack.c.l.b16 %v2815
        %v2912 = vunpack.c.l.b16 %v2816
        %v2913 = vunpack.c.l.b16 %v2817
        %v2914 = vunpack.c.l.b16 %v2818
        %v2915 = vunpack.c.l.b16 %v2819
        %v2916 = vunpack.c.l.b16 %v2820
        %v2917 = vunpack.c.l.b16 %v2821
        %v2918 = vpack.c.b16 %v2871, %v2870
        %v2919 = vpack.c.b16 %v2873, %v2872
        %v2920 = vpack.c.b16 %v2875, %v2874
        %v2921 = vpack.c.b16 %v2877, %v2876
        %v2922 = vpack.c.b16 %v2879, %v2878
        %v2923 = vpack.c.b16 %v2881, %v2880
        %v2924 = vpack.c.b16 %v2883, %v2882
        %v2925 = vpack.c.b16 %v2885, %v2884
        %v2926 = vpack.c.b16 %v2887, %v2886
        %v2927 = vpack.c.b16 %v2889, %v2888
        %v2928 = vpack.c.b16 %v2891, %v2890
        %v2929 = vpack.c.b16 %v2893, %v2892
        %v2930 = vpack.c.b16 %v2895, %v2894
        %v2931 = vpack.c.b16 %v2897, %v2896
        %v2932 = vpack.c.b16 %v2899, %v2898
        %v2933 = vpack.c.b16 %v2901, %v2900
        %v2934 = vpack.c.b16 %v2903, %v2902
        %v2935 = vpack.c.b16 %v2905, %v2904
        %v2936 = vpack.c.b16 %v2907, %v2906
        %v2937 = vpack.c.b16 %v2909, %v2908
        %v2938 = vpack.c.b16 %v2911, %v2910
        %v2939 = vpack.c.b16 %v2913, %v2912
        %v2940 = vpack.c.b16 %v2915, %v2914
        %v2941 = vpack.c.b16 %v2917, %v2916
        %2966 = vmatpush.bf16.msra.mxu0 %v2925
        %2967 = vmatpush.bf16.msra.mxu0 %v2924
        %2968 = vmatpush.bf16.msra.mxu0 %v2923
        %2969 = vmatpush.bf16.msra.mxu0 %v2922
        %2970 = vmatpush.bf16.msra.mxu0 %v2921
        %2971 = vmatpush.bf16.msra.mxu0 %v2920
        %2972 = vmatpush.bf16.msra.mxu0 %v2919
        %2973 = vmatpush.bf16.msra.mxu0 %v2918
        %2974 = vmatmul.bf16.gmra.mxu0 %v2726
        %v2975 = vpop.f32.mrf.mxu0
        %v2976 = vadd.f32 0.0, %v2975
        %v2977 = vpop.f32.mrf.mxu0
        %v2978 = vadd.f32 0.0, %v2977
        %2979 = vmatmul.bf16.gmra.mxu0 %v2729
        %v2980 = vpop.f32.mrf.mxu0
        %v2981 = vadd.f32 0.0, %v2980
        %v2982 = vpop.f32.mrf.mxu0
        %v2983 = vadd.f32 0.0, %v2982
        %2984 = vmatmul.bf16.gmra.mxu0 %v2732
        %v2985 = vpop.f32.mrf.mxu0
        %v2986 = vadd.f32 0.0, %v2985
        %v2987 = vpop.f32.mrf.mxu0
        %v2988 = vadd.f32 0.0, %v2987
        %2989 = vmatmul.bf16.gmra.mxu0 %v2735
        %v2990 = vpop.f32.mrf.mxu0
        %v2991 = vadd.f32 0.0, %v2990
        %v2992 = vpop.f32.mrf.mxu0
        %v2993 = vadd.f32 0.0, %v2992
        %2994 = vmatmul.bf16.gmra.mxu0 %v2738
        %v2995 = vpop.f32.mrf.mxu0
        %v2996 = vadd.f32 0.0, %v2995
        %v2997 = vpop.f32.mrf.mxu0
        %v2998 = vadd.f32 0.0, %v2997
        %2999 = vmatmul.bf16.gmra.mxu0 %v2741
        %v3000 = vpop.f32.mrf.mxu0
        %v3001 = vadd.f32 0.0, %v3000
        %v3002 = vpop.f32.mrf.mxu0
        %v3003 = vadd.f32 0.0, %v3002
        %3004 = vmatmul.bf16.gmra.mxu0 %v2744
        %v3005 = vpop.f32.mrf.mxu0
        %v3006 = vadd.f32 0.0, %v3005
        %v3007 = vpop.f32.mrf.mxu0
        %v3008 = vadd.f32 0.0, %v3007
        %3009 = vmatmul.bf16.gmra.mxu0 %v2747
        %v3010 = vpop.f32.mrf.mxu0
        %v3011 = vadd.f32 0.0, %v3010
        %v3012 = vpop.f32.mrf.mxu0
        %v3013 = vadd.f32 0.0, %v3012
        %3014 = vmatmul.bf16.gmra.mxu0 %v2750
        %v3015 = vpop.f32.mrf.mxu0
        %v3016 = vadd.f32 0.0, %v3015
        %v3017 = vpop.f32.mrf.mxu0
        %v3018 = vadd.f32 0.0, %v3017
        %3019 = vmatmul.bf16.gmra.mxu0 %v2753
        %v3020 = vpop.f32.mrf.mxu0
        %v3021 = vadd.f32 0.0, %v3020
        %v3022 = vpop.f32.mrf.mxu0
        %v3023 = vadd.f32 0.0, %v3022
        %3024 = vmatmul.bf16.gmra.mxu0 %v2756
        %v3025 = vpop.f32.mrf.mxu0
        %v3026 = vadd.f32 0.0, %v3025
        %v3027 = vpop.f32.mrf.mxu0
        %v3028 = vadd.f32 0.0, %v3027
        %3029 = vmatmul.bf16.gmra.mxu0 %v2759
        %v3030 = vpop.f32.mrf.mxu0
        %v3031 = vadd.f32 0.0, %v3030
        %v3032 = vpop.f32.mrf.mxu0
        %v3033 = vadd.f32 0.0, %v3032
        %3034 = vmatmul.bf16.gmra.mxu0 %v2762
        %v3035 = vpop.f32.mrf.mxu0
        %v3036 = vadd.f32 0.0, %v3035
        %v3037 = vpop.f32.mrf.mxu0
        %v3038 = vadd.f32 0.0, %v3037
        %3039 = vmatmul.bf16.gmra.mxu0 %v2765
        %v3040 = vpop.f32.mrf.mxu0
        %v3041 = vadd.f32 0.0, %v3040
        %v3042 = vpop.f32.mrf.mxu0
        %v3043 = vadd.f32 0.0, %v3042
        %3044 = vmatmul.bf16.gmra.mxu0 %v2768
        %v3045 = vpop.f32.mrf.mxu0
        %v3046 = vadd.f32 0.0, %v3045
        %v3047 = vpop.f32.mrf.mxu0
        %v3048 = vadd.f32 0.0, %v3047
        %3049 = vmatmul.bf16.gmra.mxu0 %v2771
        %v3050 = vpop.f32.mrf.mxu0
        %v3051 = vadd.f32 0.0, %v3050
        %v3052 = vpop.f32.mrf.mxu0
        %v3053 = vadd.f32 0.0, %v3052
        %3054 = vdwg.mxu0
        %3055 = vmatpush.bf16.msra.mxu0 %v2933
        %3056 = vmatpush.bf16.msra.mxu0 %v2932
        %3057 = vmatpush.bf16.msra.mxu0 %v2931
        %3058 = vmatpush.bf16.msra.mxu0 %v2930
        %3059 = vmatpush.bf16.msra.mxu0 %v2929
        %3060 = vmatpush.bf16.msra.mxu0 %v2928
        %3061 = vmatpush.bf16.msra.mxu0 %v2927
        %3062 = vmatpush.bf16.msra.mxu0 %v2926
        %3063 = vmatmul.bf16.gmra.mxu0 %v2727
        %v3064 = vpop.f32.mrf.mxu0
        %v3065 = vadd.f32 %v2976, %v3064
        %v3066 = vpop.f32.mrf.mxu0
        %v3067 = vadd.f32 %v2978, %v3066
        %3068 = vmatmul.bf16.gmra.mxu0 %v2730
        %v3069 = vpop.f32.mrf.mxu0
        %v3070 = vadd.f32 %v2981, %v3069
        %v3071 = vpop.f32.mrf.mxu0
        %v3072 = vadd.f32 %v2983, %v3071
        %3073 = vmatmul.bf16.gmra.mxu0 %v2733
        %v3074 = vpop.f32.mrf.mxu0
        %v3075 = vadd.f32 %v2986, %v3074
        %v3076 = vpop.f32.mrf.mxu0
        %v3077 = vadd.f32 %v2988, %v3076
        %3078 = vmatmul.bf16.gmra.mxu0 %v2736
        %v3079 = vpop.f32.mrf.mxu0
        %v3080 = vadd.f32 %v2991, %v3079
        %v3081 = vpop.f32.mrf.mxu0
        %v3082 = vadd.f32 %v2993, %v3081
        %3083 = vmatmul.bf16.gmra.mxu0 %v2739
        %v3084 = vpop.f32.mrf.mxu0
        %v3085 = vadd.f32 %v2996, %v3084
        %v3086 = vpop.f32.mrf.mxu0
        %v3087 = vadd.f32 %v2998, %v3086
        %3088 = vmatmul.bf16.gmra.mxu0 %v2742
        %v3089 = vpop.f32.mrf.mxu0
        %v3090 = vadd.f32 %v3001, %v3089
        %v3091 = vpop.f32.mrf.mxu0
        %v3092 = vadd.f32 %v3003, %v3091
        %3093 = vmatmul.bf16.gmra.mxu0 %v2745
        %v3094 = vpop.f32.mrf.mxu0
        %v3095 = vadd.f32 %v3006, %v3094
        %v3096 = vpop.f32.mrf.mxu0
        %v3097 = vadd.f32 %v3008, %v3096
        %3098 = vmatmul.bf16.gmra.mxu0 %v2748
        %v3099 = vpop.f32.mrf.mxu0
        %v3100 = vadd.f32 %v3011, %v3099
        %v3101 = vpop.f32.mrf.mxu0
        %v3102 = vadd.f32 %v3013, %v3101
        %3103 = vmatmul.bf16.gmra.mxu0 %v2751
        %v3104 = vpop.f32.mrf.mxu0
        %v3105 = vadd.f32 %v3016, %v3104
        %v3106 = vpop.f32.mrf.mxu0
        %v3107 = vadd.f32 %v3018, %v3106
        %3108 = vmatmul.bf16.gmra.mxu0 %v2754
        %v3109 = vpop.f32.mrf.mxu0
        %v3110 = vadd.f32 %v3021, %v3109
        %v3111 = vpop.f32.mrf.mxu0
        %v3112 = vadd.f32 %v3023, %v3111
        %3113 = vmatmul.bf16.gmra.mxu0 %v2757
        %v3114 = vpop.f32.mrf.mxu0
        %v3115 = vadd.f32 %v3026, %v3114
        %v3116 = vpop.f32.mrf.mxu0
        %v3117 = vadd.f32 %v3028, %v3116
        %3118 = vmatmul.bf16.gmra.mxu0 %v2760
        %v3119 = vpop.f32.mrf.mxu0
        %v3120 = vadd.f32 %v3031, %v3119
        %v3121 = vpop.f32.mrf.mxu0
        %v3122 = vadd.f32 %v3033, %v3121
        %3123 = vmatmul.bf16.gmra.mxu0 %v2763
        %v3124 = vpop.f32.mrf.mxu0
        %v3125 = vadd.f32 %v3036, %v3124
        %v3126 = vpop.f32.mrf.mxu0
        %v3127 = vadd.f32 %v3038, %v3126
        %3128 = vmatmul.bf16.gmra.mxu0 %v2766
        %v3129 = vpop.f32.mrf.mxu0
        %v3130 = vadd.f32 %v3041, %v3129
        %v3131 = vpop.f32.mrf.mxu0
        %v3132 = vadd.f32 %v3043, %v3131
        %3133 = vmatmul.bf16.gmra.mxu0 %v2769
        %v3134 = vpop.f32.mrf.mxu0
        %v3135 = vadd.f32 %v3046, %v3134
        %v3136 = vpop.f32.mrf.mxu0
        %v3137 = vadd.f32 %v3048, %v3136
        %3138 = vmatmul.bf16.gmra.mxu0 %v2772
        %v3139 = vpop.f32.mrf.mxu0
        %v3140 = vadd.f32 %v3051, %v3139
        %v3141 = vpop.f32.mrf.mxu0
        %v3142 = vadd.f32 %v3053, %v3141
        %3143 = vdwg.mxu0
        %3144 = vmatpush.bf16.msra.mxu0 %v2941
        %3145 = vmatpush.bf16.msra.mxu0 %v2940
        %3146 = vmatpush.bf16.msra.mxu0 %v2939
        %3147 = vmatpush.bf16.msra.mxu0 %v2938
        %3148 = vmatpush.bf16.msra.mxu0 %v2937
        %3149 = vmatpush.bf16.msra.mxu0 %v2936
        %3150 = vmatpush.bf16.msra.mxu0 %v2935
        %3151 = vmatpush.bf16.msra.mxu0 %v2934
        %3152 = vmatmul.bf16.gmra.mxu0 %v2728
        %v3153 = vpop.f32.mrf.mxu0
        %v3154 = vadd.f32 %v3065, %v3153
        %v3155 = vpop.f32.mrf.mxu0
        %v3156 = vadd.f32 %v3067, %v3155
        %3157 = vmatmul.bf16.gmra.mxu0 %v2731
        %v3158 = vpop.f32.mrf.mxu0
        %v3159 = vadd.f32 %v3070, %v3158
        %v3160 = vpop.f32.mrf.mxu0
        %v3161 = vadd.f32 %v3072, %v3160
        %3162 = vmatmul.bf16.gmra.mxu0 %v2734
        %v3163 = vpop.f32.mrf.mxu0
        %v3164 = vadd.f32 %v3075, %v3163
        %v3165 = vpop.f32.mrf.mxu0
        %v3166 = vadd.f32 %v3077, %v3165
        %3167 = vmatmul.bf16.gmra.mxu0 %v2737
        %v3168 = vpop.f32.mrf.mxu0
        %v3169 = vadd.f32 %v3080, %v3168
        %v3170 = vpop.f32.mrf.mxu0
        %v3171 = vadd.f32 %v3082, %v3170
        %3172 = vmatmul.bf16.gmra.mxu0 %v2740
        %v3173 = vpop.f32.mrf.mxu0
        %v3174 = vadd.f32 %v3085, %v3173
        %v3175 = vpop.f32.mrf.mxu0
        %v3176 = vadd.f32 %v3087, %v3175
        %3177 = vmatmul.bf16.gmra.mxu0 %v2743
        %v3178 = vpop.f32.mrf.mxu0
        %v3179 = vadd.f32 %v3090, %v3178
        %v3180 = vpop.f32.mrf.mxu0
        %v3181 = vadd.f32 %v3092, %v3180
        %3182 = vmatmul.bf16.gmra.mxu0 %v2746
        %v3183 = vpop.f32.mrf.mxu0
        %v3184 = vadd.f32 %v3095, %v3183
        %v3185 = vpop.f32.mrf.mxu0
        %v3186 = vadd.f32 %v3097, %v3185
        %3187 = vmatmul.bf16.gmra.mxu0 %v2749
        %v3188 = vpop.f32.mrf.mxu0
        %v3189 = vadd.f32 %v3100, %v3188
        %v3190 = vpop.f32.mrf.mxu0
        %v3191 = vadd.f32 %v3102, %v3190
        %3192 = vmatmul.bf16.gmra.mxu0 %v2752
        %v3193 = vpop.f32.mrf.mxu0
        %v3194 = vadd.f32 %v3105, %v3193
        %v3195 = vpop.f32.mrf.mxu0
        %v3196 = vadd.f32 %v3107, %v3195
        %3197 = vmatmul.bf16.gmra.mxu0 %v2755
        %v3198 = vpop.f32.mrf.mxu0
        %v3199 = vadd.f32 %v3110, %v3198
        %v3200 = vpop.f32.mrf.mxu0
        %v3201 = vadd.f32 %v3112, %v3200
        %3202 = vmatmul.bf16.gmra.mxu0 %v2758
        %v3203 = vpop.f32.mrf.mxu0
        %v3204 = vadd.f32 %v3115, %v3203
        %v3205 = vpop.f32.mrf.mxu0
        %v3206 = vadd.f32 %v3117, %v3205
        %3207 = vmatmul.bf16.gmra.mxu0 %v2761
        %v3208 = vpop.f32.mrf.mxu0
        %v3209 = vadd.f32 %v3120, %v3208
        %v3210 = vpop.f32.mrf.mxu0
        %v3211 = vadd.f32 %v3122, %v3210
        %3212 = vmatmul.bf16.gmra.mxu0 %v2764
        %v3213 = vpop.f32.mrf.mxu0
        %v3214 = vadd.f32 %v3125, %v3213
        %v3215 = vpop.f32.mrf.mxu0
        %v3216 = vadd.f32 %v3127, %v3215
        %3217 = vmatmul.bf16.gmra.mxu0 %v2767
        %v3218 = vpop.f32.mrf.mxu0
        %v3219 = vadd.f32 %v3130, %v3218
        %v3220 = vpop.f32.mrf.mxu0
        %v3221 = vadd.f32 %v3132, %v3220
        %3222 = vmatmul.bf16.gmra.mxu0 %v2770
        %v3223 = vpop.f32.mrf.mxu0
        %v3224 = vadd.f32 %v3135, %v3223
        %v3225 = vpop.f32.mrf.mxu0
        %v3226 = vadd.f32 %v3137, %v3225
        %3227 = vmatmul.bf16.gmra.mxu0 %v2773
        %v3228 = vpop.f32.mrf.mxu0
        %v3229 = vadd.f32 %v3140, %v3228
        %v3230 = vpop.f32.mrf.mxu0
        %v3231 = vadd.f32 %v3142, %v3230
        %3232 = vdwg.mxu0
        %v3233 = vadd.f32 %v2487, %v3154
        %v3234 = vadd.f32 %v2489, %v3156
        %v3235 = vadd.f32 %v2492, %v3159
        %v3236 = vadd.f32 %v2494, %v3161
        %v3237 = vadd.f32 %v2497, %v3164
        %v3238 = vadd.f32 %v2499, %v3166
        %v3239 = vadd.f32 %v2502, %v3169
        %v3240 = vadd.f32 %v2504, %v3171
        %v3241 = vadd.f32 %v2507, %v3174
        %v3242 = vadd.f32 %v2509, %v3176
        %v3243 = vadd.f32 %v2512, %v3179
        %v3244 = vadd.f32 %v2514, %v3181
        %v3245 = vadd.f32 %v2517, %v3184
        %v3246 = vadd.f32 %v2519, %v3186
        %v3247 = vadd.f32 %v2522, %v3189
        %v3248 = vadd.f32 %v2524, %v3191
        %v3249 = vadd.f32 %v2527, %v3194
        %v3250 = vadd.f32 %v2529, %v3196
        %v3251 = vadd.f32 %v2532, %v3199
        %v3252 = vadd.f32 %v2534, %v3201
        %v3253 = vadd.f32 %v2537, %v3204
        %v3254 = vadd.f32 %v2539, %v3206
        %v3255 = vadd.f32 %v2542, %v3209
        %v3256 = vadd.f32 %v2544, %v3211
        %v3257 = vadd.f32 %v2547, %v3214
        %v3258 = vadd.f32 %v2549, %v3216
        %v3259 = vadd.f32 %v2552, %v3219
        %v3260 = vadd.f32 %v2554, %v3221
        %v3261 = vadd.f32 %v2557, %v3224
        %v3262 = vadd.f32 %v2559, %v3226
        %v3263 = vadd.f32 %v2562, %v3229
        %v3264 = vadd.f32 %v2564, %v3231
        %v3265 = vld [vmem:[%s405] sm:$0x1]
        %v3267 = vperm.slane %v3265, 0
        %v3269 = vadd.f32 %v3233, %v3267
        %v3270 = vadd.f32 %v3234, %v3267
        %v3271 = vadd.f32 %v3235, %v3267
        %v3272 = vadd.f32 %v3236, %v3267
        %v3273 = vadd.f32 %v3237, %v3267
        %v3274 = vadd.f32 %v3238, %v3267
        %v3275 = vadd.f32 %v3239, %v3267
        %v3276 = vadd.f32 %v3240, %v3267
        %v3277 = vadd.f32 %v3241, %v3267
        %v3278 = vadd.f32 %v3242, %v3267
        %v3279 = vadd.f32 %v3243, %v3267
        %v3280 = vadd.f32 %v3244, %v3267
        %v3281 = vadd.f32 %v3245, %v3267
        %v3282 = vadd.f32 %v3246, %v3267
        %v3283 = vadd.f32 %v3247, %v3267
        %v3284 = vadd.f32 %v3248, %v3267
        %v3285 = vadd.f32 %v3249, %v3267
        %v3286 = vadd.f32 %v3250, %v3267
        %v3287 = vadd.f32 %v3251, %v3267
        %v3288 = vadd.f32 %v3252, %v3267
        %v3289 = vadd.f32 %v3253, %v3267
        %v3290 = vadd.f32 %v3254, %v3267
        %v3291 = vadd.f32 %v3255, %v3267
        %v3292 = vadd.f32 %v3256, %v3267
        %v3293 = vadd.f32 %v3257, %v3267
        %v3294 = vadd.f32 %v3258, %v3267
        %v3295 = vadd.f32 %v3259, %v3267
        %v3296 = vadd.f32 %v3260, %v3267
        %v3297 = vadd.f32 %v3261, %v3267
        %v3298 = vadd.f32 %v3262, %v3267
        %v3299 = vadd.f32 %v3263, %v3267
        %v3300 = vadd.f32 %v3264, %v3267
        %v3301 = vmax.f32 %v3269, 0.0
        %v3302 = vmax.f32 %v3270, 0.0
        %v3303 = vmax.f32 %v3271, 0.0
        %v3304 = vmax.f32 %v3272, 0.0
        %v3305 = vmax.f32 %v3273, 0.0
        %v3306 = vmax.f32 %v3274, 0.0
        %v3307 = vmax.f32 %v3275, 0.0
        %v3308 = vmax.f32 %v3276, 0.0
        %v3309 = vmax.f32 %v3277, 0.0
        %v3310 = vmax.f32 %v3278, 0.0
        %v3311 = vmax.f32 %v3279, 0.0
        %v3312 = vmax.f32 %v3280, 0.0
        %v3313 = vmax.f32 %v3281, 0.0
        %v3314 = vmax.f32 %v3282, 0.0
        %v3315 = vmax.f32 %v3283, 0.0
        %v3316 = vmax.f32 %v3284, 0.0
        %v3317 = vmax.f32 %v3285, 0.0
        %v3318 = vmax.f32 %v3286, 0.0
        %v3319 = vmax.f32 %v3287, 0.0
        %v3320 = vmax.f32 %v3288, 0.0
        %v3321 = vmax.f32 %v3289, 0.0
        %v3322 = vmax.f32 %v3290, 0.0
        %v3323 = vmax.f32 %v3291, 0.0
        %v3324 = vmax.f32 %v3292, 0.0
        %v3325 = vmax.f32 %v3293, 0.0
        %v3326 = vmax.f32 %v3294, 0.0
        %v3327 = vmax.f32 %v3295, 0.0
        %v3328 = vmax.f32 %v3296, 0.0
        %v3329 = vmax.f32 %v3297, 0.0
        %v3330 = vmax.f32 %v3298, 0.0
        %v3331 = vmax.f32 %v3299, 0.0
        %v3332 = vmax.f32 %v3300, 0.0
        %v3333 = vpack.c.bf16 %v3302, %v3301
        %v3334 = vpack.c.bf16 %v3304, %v3303
        %v3335 = vpack.c.bf16 %v3306, %v3305
        %v3336 = vpack.c.bf16 %v3308, %v3307
        %v3337 = vpack.c.bf16 %v3310, %v3309
        %v3338 = vpack.c.bf16 %v3312, %v3311
        %v3339 = vpack.c.bf16 %v3314, %v3313
        %v3340 = vpack.c.bf16 %v3316, %v3315
        %v3341 = vpack.c.bf16 %v3318, %v3317
        %v3342 = vpack.c.bf16 %v3320, %v3319
        %v3343 = vpack.c.bf16 %v3322, %v3321
        %v3344 = vpack.c.bf16 %v3324, %v3323
        %v3345 = vpack.c.bf16 %v3326, %v3325
        %v3346 = vpack.c.bf16 %v3328, %v3327
        %v3347 = vpack.c.bf16 %v3330, %v3329
        %v3348 = vpack.c.bf16 %v3332, %v3331
        %v3349 = vld [vmem:[%s410] sm:$0xf]
        %v3350 = vld [vmem:[%s410 + $0x4] sm:$0xf]
        %v3351 = vld [vmem:[%s410 + $0x8] sm:$0xf]
        %v3352 = vld [vmem:[%s410 + $0xc] sm:$0xf]
        %v3353 = vld [vmem:[%s410 + $0x10] sm:$0xf]
        %v3354 = vld [vmem:[%s410 + $0x14] sm:$0xf]
        %v3355 = vld [vmem:[%s410 + $0x18] sm:$0xf]
        %v3356 = vld [vmem:[%s410 + $0x1c] sm:$0xf]
        %v3357 = vld [vmem:[%s410 + $0x20] sm:$0xf]
        %v3358 = vld [vmem:[%s410 + $0x24] sm:$0xf]
        %v3359 = vld [vmem:[%s410 + $0x28] sm:$0xf]
        %v3360 = vld [vmem:[%s410 + $0x2c] sm:$0xf]
        %v3361 = vld [vmem:[%s410 + $0x30] sm:$0xf]
        %v3362 = vld [vmem:[%s410 + $0x34] sm:$0xf]
        %v3363 = vld [vmem:[%s410 + $0x38] sm:$0xf]
        %v3364 = vld [vmem:[%s410 + $0x3c] sm:$0xf]
        %v3365 = vld [vmem:[%s414] sm:$0x1]
        %v3367 = vperm.slane %v3365, 0
        %v3385 = vunpack.c.l.b16 %v3349
        %v3386 = vunpack.c.l.b16 %v3350
        %v3387 = vunpack.c.l.b16 %v3351
        %v3388 = vunpack.c.l.b16 %v3352
        %v3389 = vunpack.c.l.b16 %v3353
        %v3390 = vunpack.c.l.b16 %v3354
        %v3391 = vunpack.c.l.b16 %v3355
        %v3392 = vunpack.c.l.b16 %v3356
        %v3393 = vunpack.c.l.b16 %v3357
        %v3394 = vunpack.c.l.b16 %v3358
        %v3395 = vunpack.c.l.b16 %v3359
        %v3396 = vunpack.c.l.b16 %v3360
        %v3397 = vunpack.c.l.b16 %v3361
        %v3398 = vunpack.c.l.b16 %v3362
        %v3399 = vunpack.c.l.b16 %v3363
        %v3400 = vunpack.c.l.b16 %v3364
        %v3401 = vpack.c.b16 %v3386, %v3385
        %v3402 = vpack.c.b16 %v3388, %v3387
        %v3403 = vpack.c.b16 %v3390, %v3389
        %v3404 = vpack.c.b16 %v3392, %v3391
        %v3405 = vpack.c.b16 %v3394, %v3393
        %v3406 = vpack.c.b16 %v3396, %v3395
        %v3407 = vpack.c.b16 %v3398, %v3397
        %v3408 = vpack.c.b16 %v3400, %v3399
        %3417 = vmatpush.bf16.msra.mxu0 %v3408
        %3418 = vmatpush.bf16.msra.mxu0 %v3407
        %3419 = vmatpush.bf16.msra.mxu0 %v3406
        %3420 = vmatpush.bf16.msra.mxu0 %v3405
        %3421 = vmatpush.bf16.msra.mxu0 %v3404
        %3422 = vmatpush.bf16.msra.mxu0 %v3403
        %3423 = vmatpush.bf16.msra.mxu0 %v3402
        %3424 = vmatpush.bf16.msra.mxu0 %v3401
        %3425 = vmatmul.bf16.gmra.mxu0 %v3333
        %v3426 = vpop.f32.mrf.mxu0
        %v3427 = vadd.f32 %v3367, %v3426
        %v3428 = vpop.f32.mrf.mxu0
        %v3429 = vadd.f32 %v3367, %v3428
        %3430 = vmatmul.bf16.gmra.mxu0 %v3334
        %v3431 = vpop.f32.mrf.mxu0
        %v3432 = vadd.f32 %v3367, %v3431
        %v3433 = vpop.f32.mrf.mxu0
        %v3434 = vadd.f32 %v3367, %v3433
        %3435 = vmatmul.bf16.gmra.mxu0 %v3335
        %v3436 = vpop.f32.mrf.mxu0
        %v3437 = vadd.f32 %v3367, %v3436
        %v3438 = vpop.f32.mrf.mxu0
        %v3439 = vadd.f32 %v3367, %v3438
        %3440 = vmatmul.bf16.gmra.mxu0 %v3336
        %v3441 = vpop.f32.mrf.mxu0
        %v3442 = vadd.f32 %v3367, %v3441
        %v3443 = vpop.f32.mrf.mxu0
        %v3444 = vadd.f32 %v3367, %v3443
        %3445 = vmatmul.bf16.gmra.mxu0 %v3337
        %v3446 = vpop.f32.mrf.mxu0
        %v3447 = vadd.f32 %v3367, %v3446
        %v3448 = vpop.f32.mrf.mxu0
        %v3449 = vadd.f32 %v3367, %v3448
        %3450 = vmatmul.bf16.gmra.mxu0 %v3338
        %v3451 = vpop.f32.mrf.mxu0
        %v3452 = vadd.f32 %v3367, %v3451
        %v3453 = vpop.f32.mrf.mxu0
        %v3454 = vadd.f32 %v3367, %v3453
        %3455 = vmatmul.bf16.gmra.mxu0 %v3339
        %v3456 = vpop.f32.mrf.mxu0
        %v3457 = vadd.f32 %v3367, %v3456
        %v3458 = vpop.f32.mrf.mxu0
        %v3459 = vadd.f32 %v3367, %v3458
        %3460 = vmatmul.bf16.gmra.mxu0 %v3340
        %v3461 = vpop.f32.mrf.mxu0
        %v3462 = vadd.f32 %v3367, %v3461
        %v3463 = vpop.f32.mrf.mxu0
        %v3464 = vadd.f32 %v3367, %v3463
        %3465 = vmatmul.bf16.gmra.mxu0 %v3341
        %v3466 = vpop.f32.mrf.mxu0
        %v3467 = vadd.f32 %v3367, %v3466
        %v3468 = vpop.f32.mrf.mxu0
        %v3469 = vadd.f32 %v3367, %v3468
        %3470 = vmatmul.bf16.gmra.mxu0 %v3342
        %v3471 = vpop.f32.mrf.mxu0
        %v3472 = vadd.f32 %v3367, %v3471
        %v3473 = vpop.f32.mrf.mxu0
        %v3474 = vadd.f32 %v3367, %v3473
        %3475 = vmatmul.bf16.gmra.mxu0 %v3343
        %v3476 = vpop.f32.mrf.mxu0
        %v3477 = vadd.f32 %v3367, %v3476
        %v3478 = vpop.f32.mrf.mxu0
        %v3479 = vadd.f32 %v3367, %v3478
        %3480 = vmatmul.bf16.gmra.mxu0 %v3344
        %v3481 = vpop.f32.mrf.mxu0
        %v3482 = vadd.f32 %v3367, %v3481
        %v3483 = vpop.f32.mrf.mxu0
        %v3484 = vadd.f32 %v3367, %v3483
        %3485 = vmatmul.bf16.gmra.mxu0 %v3345
        %v3486 = vpop.f32.mrf.mxu0
        %v3487 = vadd.f32 %v3367, %v3486
        %v3488 = vpop.f32.mrf.mxu0
        %v3489 = vadd.f32 %v3367, %v3488
        %3490 = vmatmul.bf16.gmra.mxu0 %v3346
        %v3491 = vpop.f32.mrf.mxu0
        %v3492 = vadd.f32 %v3367, %v3491
        %v3493 = vpop.f32.mrf.mxu0
        %v3494 = vadd.f32 %v3367, %v3493
        %3495 = vmatmul.bf16.gmra.mxu0 %v3347
        %v3496 = vpop.f32.mrf.mxu0
        %v3497 = vadd.f32 %v3367, %v3496
        %v3498 = vpop.f32.mrf.mxu0
        %v3499 = vadd.f32 %v3367, %v3498
        %3500 = vmatmul.bf16.gmra.mxu0 %v3348
        %v3501 = vpop.f32.mrf.mxu0
        %v3502 = vadd.f32 %v3367, %v3501
        %v3503 = vpop.f32.mrf.mxu0
        %v3504 = vadd.f32 %v3367, %v3503
        %3505 = vdwg.mxu0
        %v3506 = vunpack.c.l.bf16 %v494
        %v3507 = vunpack.c.l.bf16 %v495
        %v3508 = vunpack.c.l.bf16 %v496
        %v3509 = vunpack.c.l.bf16 %v497
        %v3510 = vunpack.c.l.bf16 %v498
        %v3511 = vunpack.c.l.bf16 %v499
        %v3512 = vunpack.c.l.bf16 %v500
        %v3513 = vunpack.c.l.bf16 %v501
        %v3514 = vunpack.c.l.bf16 %v502
        %v3515 = vunpack.c.l.bf16 %v503
        %v3516 = vunpack.c.l.bf16 %v504
        %v3517 = vunpack.c.l.bf16 %v505
        %v3518 = vunpack.c.l.bf16 %v506
        %v3519 = vunpack.c.l.bf16 %v507
        %v3520 = vunpack.c.l.bf16 %v508
        %v3521 = vunpack.c.l.bf16 %v509
        %v3522 = vunpack.c.l.bf16 %v510
        %v3523 = vunpack.c.l.bf16 %v511
        %v3524 = vunpack.c.l.bf16 %v512
        %v3525 = vunpack.c.l.bf16 %v513
        %v3526 = vunpack.c.l.bf16 %v514
        %v3527 = vunpack.c.l.bf16 %v515
        %v3528 = vunpack.c.l.bf16 %v516
        %v3529 = vunpack.c.l.bf16 %v517
        %v3530 = vunpack.c.l.bf16 %v518
        %v3531 = vunpack.c.l.bf16 %v519
        %v3532 = vunpack.c.l.bf16 %v520
        %v3533 = vunpack.c.l.bf16 %v521
        %v3534 = vunpack.c.l.bf16 %v522
        %v3535 = vunpack.c.l.bf16 %v523
        %v3536 = vunpack.c.l.bf16 %v524
        %v3537 = vunpack.c.l.bf16 %v525
        %v3538 = vadd.f32 %v3427, %v3506
        %v3539 = vadd.f32 %v3429, %v3507
        %v3540 = vadd.f32 %v3432, %v3508
        %v3541 = vadd.f32 %v3434, %v3509
        %v3542 = vadd.f32 %v3437, %v3510
        %v3543 = vadd.f32 %v3439, %v3511
        %v3544 = vadd.f32 %v3442, %v3512
        %v3545 = vadd.f32 %v3444, %v3513
        %v3546 = vadd.f32 %v3447, %v3514
        %v3547 = vadd.f32 %v3449, %v3515
        %v3548 = vadd.f32 %v3452, %v3516
        %v3549 = vadd.f32 %v3454, %v3517
        %v3550 = vadd.f32 %v3457, %v3518
        %v3551 = vadd.f32 %v3459, %v3519
        %v3552 = vadd.f32 %v3462, %v3520
        %v3553 = vadd.f32 %v3464, %v3521
        %v3554 = vadd.f32 %v3467, %v3522
        %v3555 = vadd.f32 %v3469, %v3523
        %v3556 = vadd.f32 %v3472, %v3524
        %v3557 = vadd.f32 %v3474, %v3525
        %v3558 = vadd.f32 %v3477, %v3526
        %v3559 = vadd.f32 %v3479, %v3527
        %v3560 = vadd.f32 %v3482, %v3528
        %v3561 = vadd.f32 %v3484, %v3529
        %v3562 = vadd.f32 %v3487, %v3530
        %v3563 = vadd.f32 %v3489, %v3531
        %v3564 = vadd.f32 %v3492, %v3532
        %v3565 = vadd.f32 %v3494, %v3533
        %v3566 = vadd.f32 %v3497, %v3534
        %v3567 = vadd.f32 %v3499, %v3535
        %v3568 = vadd.f32 %v3502, %v3536
        %v3569 = vadd.f32 %v3504, %v3537
        %v3570 = vmax.f32 %v3538, 0.0
        %v3571 = vmax.f32 %v3539, 0.0
        %v3572 = vmax.f32 %v3540, 0.0
        %v3573 = vmax.f32 %v3541, 0.0
        %v3574 = vmax.f32 %v3542, 0.0
        %v3575 = vmax.f32 %v3543, 0.0
        %v3576 = vmax.f32 %v3544, 0.0
        %v3577 = vmax.f32 %v3545, 0.0
        %v3578 = vmax.f32 %v3546, 0.0
        %v3579 = vmax.f32 %v3547, 0.0
        %v3580 = vmax.f32 %v3548, 0.0
        %v3581 = vmax.f32 %v3549, 0.0
        %v3582 = vmax.f32 %v3550, 0.0
        %v3583 = vmax.f32 %v3551, 0.0
        %v3584 = vmax.f32 %v3552, 0.0
        %v3585 = vmax.f32 %v3553, 0.0
        %v3586 = vmax.f32 %v3554, 0.0
        %v3587 = vmax.f32 %v3555, 0.0
        %v3588 = vmax.f32 %v3556, 0.0
        %v3589 = vmax.f32 %v3557, 0.0
        %v3590 = vmax.f32 %v3558, 0.0
        %v3591 = vmax.f32 %v3559, 0.0
        %v3592 = vmax.f32 %v3560, 0.0
        %v3593 = vmax.f32 %v3561, 0.0
        %v3594 = vmax.f32 %v3562, 0.0
        %v3595 = vmax.f32 %v3563, 0.0
        %v3596 = vmax.f32 %v3564, 0.0
        %v3597 = vmax.f32 %v3565, 0.0
        %v3598 = vmax.f32 %v3566, 0.0
        %v3599 = vmax.f32 %v3567, 0.0
        %v3600 = vmax.f32 %v3568, 0.0
        %v3601 = vmax.f32 %v3569, 0.0
        %v3602 = vpack.c.bf16 %v3570, %v3570
        %v3603 = vpack.c.bf16 %v3571, %v3571
        %v3604 = vpack.c.bf16 %v3572, %v3572
        %v3605 = vpack.c.bf16 %v3573, %v3573
        %v3606 = vpack.c.bf16 %v3574, %v3574
        %v3607 = vpack.c.bf16 %v3575, %v3575
        %v3608 = vpack.c.bf16 %v3576, %v3576
        %v3609 = vpack.c.bf16 %v3577, %v3577
        %v3610 = vpack.c.bf16 %v3578, %v3578
        %v3611 = vpack.c.bf16 %v3579, %v3579
        %v3612 = vpack.c.bf16 %v3580, %v3580
        %v3613 = vpack.c.bf16 %v3581, %v3581
        %v3614 = vpack.c.bf16 %v3582, %v3582
        %v3615 = vpack.c.bf16 %v3583, %v3583
        %v3616 = vpack.c.bf16 %v3584, %v3584
        %v3617 = vpack.c.bf16 %v3585, %v3585
        %v3618 = vpack.c.bf16 %v3586, %v3586
        %v3619 = vpack.c.bf16 %v3587, %v3587
        %v3620 = vpack.c.bf16 %v3588, %v3588
        %v3621 = vpack.c.bf16 %v3589, %v3589
        %v3622 = vpack.c.bf16 %v3590, %v3590
        %v3623 = vpack.c.bf16 %v3591, %v3591
        %v3624 = vpack.c.bf16 %v3592, %v3592
        %v3625 = vpack.c.bf16 %v3593, %v3593
        %v3626 = vpack.c.bf16 %v3594, %v3594
        %v3627 = vpack.c.bf16 %v3595, %v3595
        %v3628 = vpack.c.bf16 %v3596, %v3596
        %v3629 = vpack.c.bf16 %v3597, %v3597
        %v3630 = vpack.c.bf16 %v3598, %v3598
        %v3631 = vpack.c.bf16 %v3599, %v3599
        %v3632 = vpack.c.bf16 %v3600, %v3600
        %v3633 = vpack.c.bf16 %v3601, %v3601
        %3634 = vst [vmem:[#allocation2] sm:$0xf] %v3602
        %3635 = vst [vmem:[#allocation2 + $0x4] sm:$0xf] %v3603
        %3636 = vst [vmem:[#allocation2 + $0x8] sm:$0xf] %v3604
        %3637 = vst [vmem:[#allocation2 + $0xc] sm:$0xf] %v3605
        %3638 = vst [vmem:[#allocation2 + $0x10] sm:$0xf] %v3606
        %3639 = vst [vmem:[#allocation2 + $0x14] sm:$0xf] %v3607
        %3640 = vst [vmem:[#allocation2 + $0x18] sm:$0xf] %v3608
        %3641 = vst [vmem:[#allocation2 + $0x1c] sm:$0xf] %v3609
        %3642 = vst [vmem:[#allocation2 + $0x20] sm:$0xf] %v3610
        %3643 = vst [vmem:[#allocation2 + $0x24] sm:$0xf] %v3611
        %3644 = vst [vmem:[#allocation2 + $0x28] sm:$0xf] %v3612
        %3645 = vst [vmem:[#allocation2 + $0x2c] sm:$0xf] %v3613
        %3646 = vst [vmem:[#allocation2 + $0x30] sm:$0xf] %v3614
        %3647 = vst [vmem:[#allocation2 + $0x34] sm:$0xf] %v3615
        %3648 = vst [vmem:[#allocation2 + $0x38] sm:$0xf] %v3616
        %3649 = vst [vmem:[#allocation2 + $0x3c] sm:$0xf] %v3617
        %3650 = vst [vmem:[#allocation2 + $0x40] sm:$0xf] %v3618
        %3651 = vst [vmem:[#allocation2 + $0x44] sm:$0xf] %v3619
        %3652 = vst [vmem:[#allocation2 + $0x48] sm:$0xf] %v3620
        %3653 = vst [vmem:[#allocation2 + $0x4c] sm:$0xf] %v3621
        %3654 = vst [vmem:[#allocation2 + $0x50] sm:$0xf] %v3622
        %3655 = vst [vmem:[#allocation2 + $0x54] sm:$0xf] %v3623
        %3656 = vst [vmem:[#allocation2 + $0x58] sm:$0xf] %v3624
        %3657 = vst [vmem:[#allocation2 + $0x5c] sm:$0xf] %v3625
        %3658 = vst [vmem:[#allocation2 + $0x60] sm:$0xf] %v3626
        %3659 = vst [vmem:[#allocation2 + $0x64] sm:$0xf] %v3627
        %3660 = vst [vmem:[#allocation2 + $0x68] sm:$0xf] %v3628
        %3661 = vst [vmem:[#allocation2 + $0x6c] sm:$0xf] %v3629
        %3662 = vst [vmem:[#allocation2 + $0x70] sm:$0xf] %v3630
        %3663 = vst [vmem:[#allocation2 + $0x74] sm:$0xf] %v3631
        %3664 = vst [vmem:[#allocation2 + $0x78] sm:$0xf] %v3632
        %3665 = vst [vmem:[#allocation2 + $0x7c] sm:$0xf] %v3633
        %p3666 = scmp.eq.s32.totalorder %s26, 1
        // Predicated region
        $region57: #{bottleneck_resnet.5} parent=47 // pred_check
          %p3667 = pneg %p3666
        $region58: #{bottleneck_resnet.5} parent=47 // pred_check_branch
          %3669 = sbr.rel (%p3667) target = $region60
        $region59: #{bottleneck_resnet.5} parent=47 // pred_region
          %3670 = vst [vmem:[%s419] sm:$0xf] %v3602
          %3671 = vst [vmem:[%s419 + $0x4] sm:$0xf] %v3603
          %3672 = vst [vmem:[%s419 + $0x8] sm:$0xf] %v3604
          %3673 = vst [vmem:[%s419 + $0xc] sm:$0xf] %v3605
          %3674 = vst [vmem:[%s419 + $0x10] sm:$0xf] %v3606
          %3675 = vst [vmem:[%s419 + $0x14] sm:$0xf] %v3607
          %3676 = vst [vmem:[%s419 + $0x18] sm:$0xf] %v3608
          %3677 = vst [vmem:[%s419 + $0x1c] sm:$0xf] %v3609
          %3678 = vst [vmem:[%s419 + $0x20] sm:$0xf] %v3610
          %3679 = vst [vmem:[%s419 + $0x24] sm:$0xf] %v3611
          %3680 = vst [vmem:[%s419 + $0x28] sm:$0xf] %v3612
          %3681 = vst [vmem:[%s419 + $0x2c] sm:$0xf] %v3613
          %3682 = vst [vmem:[%s419 + $0x30] sm:$0xf] %v3614
          %3683 = vst [vmem:[%s419 + $0x34] sm:$0xf] %v3615
          %3684 = vst [vmem:[%s419 + $0x38] sm:$0xf] %v3616
          %3685 = vst [vmem:[%s419 + $0x3c] sm:$0xf] %v3617
          %3686 = vst [vmem:[%s419 + $0x40] sm:$0xf] %v3618
          %3687 = vst [vmem:[%s419 + $0x44] sm:$0xf] %v3619
          %3688 = vst [vmem:[%s419 + $0x48] sm:$0xf] %v3620
          %3689 = vst [vmem:[%s419 + $0x4c] sm:$0xf] %v3621
          %3690 = vst [vmem:[%s419 + $0x50] sm:$0xf] %v3622
          %3691 = vst [vmem:[%s419 + $0x54] sm:$0xf] %v3623
          %3692 = vst [vmem:[%s419 + $0x58] sm:$0xf] %v3624
          %3693 = vst [vmem:[%s419 + $0x5c] sm:$0xf] %v3625
          %3694 = vst [vmem:[%s419 + $0x60] sm:$0xf] %v3626
          %3695 = vst [vmem:[%s419 + $0x64] sm:$0xf] %v3627
          %3696 = vst [vmem:[%s419 + $0x68] sm:$0xf] %v3628
          %3697 = vst [vmem:[%s419 + $0x6c] sm:$0xf] %v3629
          %3698 = vst [vmem:[%s419 + $0x70] sm:$0xf] %v3630
          %3699 = vst [vmem:[%s419 + $0x74] sm:$0xf] %v3631
          %3700 = vst [vmem:[%s419 + $0x78] sm:$0xf] %v3632
          %3701 = vst [vmem:[%s419 + $0x7c] sm:$0xf] %v3633
        $region60: #{bottleneck_resnet.5} parent=47 // pred_fallthru
          _
        %p3702 = scmp.lt.s32.totalorder %s25, 1
        %s3703 = scalar_select %p3702, %s25, 1
        %s3704 = smul.addr %s3703, 32
        %s3705 = smul.addr %s3704, 4
        %s3706 = scalar_lea.vmem %s7, %s3705
        // Predicated region
        $region61: #{bottleneck_resnet.5} parent=47 // pred_check
          %p3707 = pneg %p233
        $region62: #{bottleneck_resnet.5} parent=47 // pred_check_branch
          %3709 = sbr.rel (%p3707) target = $region64
        $region63: #{bottleneck_resnet.5} parent=47 // pred_region
          _
        $region64: #{bottleneck_resnet.5} parent=47 // pred_fallthru
          _
      $region48: #{bottleneck_resnet.5} parent=5 // pred_fallthru
        _
      %p3710 = scmp.le.s32.totalorder 2, %s16
      // Predicated region
      $region65: #{bottleneck_resnet.5} parent=5 // pred_check
        %p3711 = pneg %p3710
      $region66: #{bottleneck_resnet.5} parent=5 // pred_check_branch
        %3713 = sbr.rel (%p3711) target = $region68
      $region67: #{bottleneck_resnet.5} parent=5 // pred_region
        %s3714 = ssub.s32 %s16, 2
        // Predicated region
        $region69: #{bottleneck_resnet.5} parent=67 // pred_check
          %p3715 = pneg %p239
        $region70: #{bottleneck_resnet.5} parent=67 // pred_check_branch
          %3717 = sbr.rel (%p3715) target = $region72
        $region71: #{bottleneck_resnet.5} parent=67 // pred_region
          %p3718 = scmp.lt.s32.totalorder %s27, 1
          %s3719 = scalar_select %p3718, %s27, 1
          %s3720 = smul.addr %s3719, 32
          %s3721 = smul.addr %s3720, 4
          %s3722 = scalar_lea.vmem %s7, %s3721
        $region72: #{bottleneck_resnet.5} parent=67 // pred_fallthru
          _
      $region68: #{bottleneck_resnet.5} parent=5 // pred_fallthru
        _
    $region6: #{bottleneck_resnet.5} parent=1 // loop_footer
      %s20 = sadd.s32 1, %s16
    $region7: #{bottleneck_resnet.5} parent=1 // loop_footer_branch
      %15 = sbr.rel target = $region3
    $region8: #{bottleneck_resnet.5} parent=1 // loop_exit
      _
    %3723 = vsyncpa [#allocation5], 1
    %s3724 = scalar_lea.sflag [#allocation5], 1
    %3725 = vsyncpa %s3724, 1

// kernel: bottleneck_resnet.7
$region0: #{bottleneck_resnet.7}
  #allocation0 [shape = 'u32[]', space=smem, size = 0x4, offset = 0x4, fixed_abs, tag = 'smem constant byte address 0x4 - core index']
  #allocation1 [shape = 'u32[72,128]{1,0:T(1,128)}', space=vmem, size = 0x9000, scoped, tag = 'internal scratch']
  #allocation2 [shape = 'bf16[64,128]{1,0:T(8,128)(2,1)}', space=vmem, size = 0x4000, scoped, tag = 'scratch operand']
  #allocation3 [shape = 'f32[96,128]{1,0:T(8,128)}', space=vmem, size = 0xc000, scoped, tag = 'scratch operand']
  %s0 = inlined_call_operand.vmem [shape: bf16[2,64,128], index: 0, kind: input, shape index: {}]
  %s1 = inlined_call_operand.vmem [shape: bf16[256,128], index: 1, kind: input, shape index: {}]
  %s2 = inlined_call_operand.vmem [shape: f32[2,1,128], index: 2, kind: input, shape index: {}]
  %s3 = inlined_call_operand.vmem [shape: bf16[2304,128], index: 3, kind: input, shape index: {}]
  %s4 = inlined_call_operand.vmem [shape: f32[2,1,128], index: 4, kind: input, shape index: {}]
  %s5 = inlined_call_operand.vmem [shape: bf16[256,128], index: 5, kind: input, shape index: {}]
  %s6 = inlined_call_operand.vmem [shape: f32[2,1,128], index: 6, kind: input, shape index: {}]
  %s7 = inlined_call_operand.vmem [shape: bf16[2,64,128], index: 7, kind: output, shape index: {}]
  %s8 = sld [smem:[#allocation0]]
  $region69: #{bottleneck_resnet.7} parent=0
    _
  %s10 = ssub.s32 1, %s8
  %s11 = scalar_select 0, %s10, %s8
  loop: start=0, step=1, limit=6
  $region2: #{bottleneck_resnet.7} parent=0 // loop_pre_header
    _
  $region3: #{bottleneck_resnet.7} parent=0 // loop_header
    %s13 = sphi 0, %s17
    %p14 = scmp.ge.s32.totalorder %s13, 6
    %s20 = sphi 0, %s32
    %s21 = sphi 0, %s28
    %s22 = sphi 0, %s20
    %s23 = sphi 0, %s21
    %s24 = sphi 0, %s22
    %s25 = sphi 0, %s23
    %s35 = sphi 0, %s37
    %s38 = sphi 0, %s35
    %s39 = sphi 0, %s38
    %s55 = sphi 0, %s39
    %s61 = sphi 0, %s63
    %s64 = sphi 0, %s61
    %s65 = sphi 0, %s64
    %s81 = sphi 0, %s65
    %s87 = sphi 0, %s89
    %s90 = sphi 0, %s87
    %s91 = sphi 0, %s90
    %s107 = sphi 0, %s91
    %s113 = sphi 0, %s115
    %s116 = sphi 0, %s113
    %s117 = sphi 0, %s116
    %s133 = sphi 0, %s117
    %s139 = sphi 0, %s141
    %s142 = sphi 0, %s139
    %s143 = sphi 0, %s142
    %s159 = sphi 0, %s143
    %s165 = sphi 0, %s167
    %s168 = sphi 0, %s165
    %s169 = sphi 0, %s168
    %s185 = sphi 0, %s169
    %s191 = sphi 0, %s193
    %s194 = sphi 0, %s191
    %s195 = sphi 0, %s194
    %s211 = sphi 0, %s195
    %s217 = sphi 0, %s219
    %s220 = sphi 0, %s217
    %s221 = sphi 0, %s220
    %s237 = sphi 0, %s221
  $region4: #{bottleneck_resnet.7} parent=0 // loop_header_branch
    %16 = sbr.rel (%p14) target = $region8
  $region5: #{bottleneck_resnet.7} parent=0 // loop_body
    %s18 = ssub.s32 %s13, 1
    %s19 = ssub.s32 %s13, 2
    %s26 = sadd.s32 1, %s21
    %p27 = scmp.ge.s32.totalorder %s26, 2
    %s28 = scalar_select %p27, 0, %s26
    %s29 = sadd.s32 1, %s20
    %s30 = scalar_select %p27, %s29, %s20
    %p31 = scmp.ge.s32.totalorder %s30, 2
    %s32 = scalar_select %p31, 0, %s30
    %s33 = ssub.s32 %s20, %s32
    %p34 = scmp.eq.s32.totalorder %s33, 0
    %s36 = sadd.s32 %s35, 1
    %s37 = scalar_select %p34, %s35, %s36
    %p40 = pneg %p34
    %p41 = scmp.eq.s32.totalorder %s13, 3
    %p42 = por %p40, %p41
    %p43 = scmp.ne.s32.totalorder %s35, %s38
    %p44 = scmp.eq.s32.totalorder %s13, 0
    %p45 = por %p43, %p44
    %p46 = scmp.ne.s32.totalorder %s35, %s38
    %p47 = scmp.eq.s32.totalorder %s18, 3
    %p48 = por %p46, %p47
    %p49 = scmp.ne.s32.totalorder %s38, %s39
    %p50 = scmp.eq.s32.totalorder %s18, 0
    %p51 = por %p49, %p50
    %p52 = scmp.ne.s32.totalorder %s38, %s39
    %p53 = scmp.eq.s32.totalorder %s19, 3
    %p54 = por %p52, %p53
    %p56 = scmp.ne.s32.totalorder %s39, %s55
    %p57 = scmp.eq.s32.totalorder %s19, 0
    %p58 = por %p56, %p57
    %s59 = ssub.s32 %s21, %s28
    %p60 = scmp.eq.s32.totalorder %s59, 0
    %s62 = sadd.s32 %s61, 1
    %s63 = scalar_select %p60, %s61, %s62
    %p66 = pneg %p60
    %p67 = scmp.eq.s32.totalorder %s13, 3
    %p68 = por %p66, %p67
    %p69 = scmp.ne.s32.totalorder %s61, %s64
    %p70 = scmp.eq.s32.totalorder %s13, 0
    %p71 = por %p69, %p70
    %p72 = scmp.ne.s32.totalorder %s61, %s64
    %p73 = scmp.eq.s32.totalorder %s18, 3
    %p74 = por %p72, %p73
    %p75 = scmp.ne.s32.totalorder %s64, %s65
    %p76 = scmp.eq.s32.totalorder %s18, 0
    %p77 = por %p75, %p76
    %p78 = scmp.ne.s32.totalorder %s64, %s65
    %p79 = scmp.eq.s32.totalorder %s19, 3
    %p80 = por %p78, %p79
    %p82 = scmp.ne.s32.totalorder %s65, %s81
    %p83 = scmp.eq.s32.totalorder %s19, 0
    %p84 = por %p82, %p83
    %s85 = ssub.s32 %s21, %s28
    %p86 = scmp.eq.s32.totalorder %s85, 0
    %s88 = sadd.s32 %s87, 1
    %s89 = scalar_select %p86, %s87, %s88
    %p92 = pneg %p86
    %p93 = scmp.eq.s32.totalorder %s13, 3
    %p94 = por %p92, %p93
    %p95 = scmp.ne.s32.totalorder %s87, %s90
    %p96 = scmp.eq.s32.totalorder %s13, 0
    %p97 = por %p95, %p96
    %p98 = scmp.ne.s32.totalorder %s87, %s90
    %p99 = scmp.eq.s32.totalorder %s18, 3
    %p100 = por %p98, %p99
    %p101 = scmp.ne.s32.totalorder %s90, %s91
    %p102 = scmp.eq.s32.totalorder %s18, 0
    %p103 = por %p101, %p102
    %p104 = scmp.ne.s32.totalorder %s90, %s91
    %p105 = scmp.eq.s32.totalorder %s19, 3
    %p106 = por %p104, %p105
    %p108 = scmp.ne.s32.totalorder %s91, %s107
    %p109 = scmp.eq.s32.totalorder %s19, 0
    %p110 = por %p108, %p109
    %s111 = ssub.s32 %s21, %s28
    %p112 = scmp.eq.s32.totalorder %s111, 0
    %s114 = sadd.s32 %s113, 1
    %s115 = scalar_select %p112, %s113, %s114
    %p118 = pneg %p112
    %p119 = scmp.eq.s32.totalorder %s13, 3
    %p120 = por %p118, %p119
    %p121 = scmp.ne.s32.totalorder %s113, %s116
    %p122 = scmp.eq.s32.totalorder %s13, 0
    %p123 = por %p121, %p122
    %p124 = scmp.ne.s32.totalorder %s113, %s116
    %p125 = scmp.eq.s32.totalorder %s18, 3
    %p126 = por %p124, %p125
    %p127 = scmp.ne.s32.totalorder %s116, %s117
    %p128 = scmp.eq.s32.totalorder %s18, 0
    %p129 = por %p127, %p128
    %p130 = scmp.ne.s32.totalorder %s116, %s117
    %p131 = scmp.eq.s32.totalorder %s19, 3
    %p132 = por %p130, %p131
    %p134 = scmp.ne.s32.totalorder %s117, %s133
    %p135 = scmp.eq.s32.totalorder %s19, 0
    %p136 = por %p134, %p135
    %s137 = ssub.s32 %s21, %s28
    %p138 = scmp.eq.s32.totalorder %s137, 0
    %s140 = sadd.s32 %s139, 1
    %s141 = scalar_select %p138, %s139, %s140
    %p144 = pneg %p138
    %p145 = scmp.eq.s32.totalorder %s13, 3
    %p146 = por %p144, %p145
    %p147 = scmp.ne.s32.totalorder %s139, %s142
    %p148 = scmp.eq.s32.totalorder %s13, 0
    %p149 = por %p147, %p148
    %p150 = scmp.ne.s32.totalorder %s139, %s142
    %p151 = scmp.eq.s32.totalorder %s18, 3
    %p152 = por %p150, %p151
    %p153 = scmp.ne.s32.totalorder %s142, %s143
    %p154 = scmp.eq.s32.totalorder %s18, 0
    %p155 = por %p153, %p154
    %p156 = scmp.ne.s32.totalorder %s142, %s143
    %p157 = scmp.eq.s32.totalorder %s19, 3
    %p158 = por %p156, %p157
    %p160 = scmp.ne.s32.totalorder %s143, %s159
    %p161 = scmp.eq.s32.totalorder %s19, 0
    %p162 = por %p160, %p161
    %s163 = ssub.s32 %s21, %s28
    %p164 = scmp.eq.s32.totalorder %s163, 0
    %s166 = sadd.s32 %s165, 1
    %s167 = scalar_select %p164, %s165, %s166
    %p170 = pneg %p164
    %p171 = scmp.eq.s32.totalorder %s13, 3
    %p172 = por %p170, %p171
    %p173 = scmp.ne.s32.totalorder %s165, %s168
    %p174 = scmp.eq.s32.totalorder %s13, 0
    %p175 = por %p173, %p174
    %p176 = scmp.ne.s32.totalorder %s165, %s168
    %p177 = scmp.eq.s32.totalorder %s18, 3
    %p178 = por %p176, %p177
    %p179 = scmp.ne.s32.totalorder %s168, %s169
    %p180 = scmp.eq.s32.totalorder %s18, 0
    %p181 = por %p179, %p180
    %p182 = scmp.ne.s32.totalorder %s168, %s169
    %p183 = scmp.eq.s32.totalorder %s19, 3
    %p184 = por %p182, %p183
    %p186 = scmp.ne.s32.totalorder %s169, %s185
    %p187 = scmp.eq.s32.totalorder %s19, 0
    %p188 = por %p186, %p187
    %s189 = ssub.s32 %s21, %s28
    %p190 = scmp.eq.s32.totalorder %s189, 0
    %s192 = sadd.s32 %s191, 1
    %s193 = scalar_select %p190, %s191, %s192
    %p196 = pneg %p190
    %p197 = scmp.eq.s32.totalorder %s13, 3
    %p198 = por %p196, %p197
    %p199 = scmp.ne.s32.totalorder %s191, %s194
    %p200 = scmp.eq.s32.totalorder %s13, 0
    %p201 = por %p199, %p200
    %p202 = scmp.ne.s32.totalorder %s191, %s194
    %p203 = scmp.eq.s32.totalorder %s18, 3
    %p204 = por %p202, %p203
    %p205 = scmp.ne.s32.totalorder %s194, %s195
    %p206 = scmp.eq.s32.totalorder %s18, 0
    %p207 = por %p205, %p206
    %p208 = scmp.ne.s32.totalorder %s194, %s195
    %p209 = scmp.eq.s32.totalorder %s19, 3
    %p210 = por %p208, %p209
    %p212 = scmp.ne.s32.totalorder %s195, %s211
    %p213 = scmp.eq.s32.totalorder %s19, 0
    %p214 = por %p212, %p213
    %s215 = ssub.s32 %s20, %s32
    %p216 = scmp.eq.s32.totalorder %s215, 0
    %s218 = sadd.s32 %s217, 1
    %s219 = scalar_select %p216, %s217, %s218
    %p222 = pneg %p216
    %p223 = scmp.eq.s32.totalorder %s13, 3
    %p224 = por %p222, %p223
    %p225 = scmp.ne.s32.totalorder %s217, %s220
    %p226 = scmp.eq.s32.totalorder %s13, 0
    %p227 = por %p225, %p226
    %p228 = scmp.ne.s32.totalorder %s217, %s220
    %p229 = scmp.eq.s32.totalorder %s18, 3
    %p230 = por %p228, %p229
    %p231 = scmp.ne.s32.totalorder %s220, %s221
    %p232 = scmp.eq.s32.totalorder %s18, 0
    %p233 = por %p231, %p232
    %p234 = scmp.ne.s32.totalorder %s220, %s221
    %p235 = scmp.eq.s32.totalorder %s19, 3
    %p236 = por %p234, %p235
    %p238 = scmp.ne.s32.totalorder %s221, %s237
    %p239 = scmp.eq.s32.totalorder %s19, 0
    %p240 = por %p238, %p239
    %p241 = scmp.le.s32.totalorder 1, %s13
    %p242 = scmp.lt.s32.totalorder %s13, 5
    %p243 = pnand %p241, %p242
    %p244 = pneg %p243
    // Predicated region
    $region9: #{bottleneck_resnet.7} parent=5 // pred_check
      _
    $region10: #{bottleneck_resnet.7} parent=5 // pred_check_branch
      %246 = sbr.rel (%p243) target = $region12
    $region11: #{bottleneck_resnet.7} parent=5 // pred_region
      %s247 = ssub.s32 %s13, 1
    $region12: #{bottleneck_resnet.7} parent=5 // pred_fallthru
      _
    %p248 = scmp.lt.s32.totalorder %s13, 4
    // Predicated region
    $region13: #{bottleneck_resnet.7} parent=5 // pred_check
      %p249 = pneg %p248
    $region14: #{bottleneck_resnet.7} parent=5 // pred_check_branch
      %251 = sbr.rel (%p249) target = $region16
    $region15: #{bottleneck_resnet.7} parent=5 // pred_region
      // Predicated region
      $region17: #{bottleneck_resnet.7} parent=15 // pred_check
        %p252 = pneg %p45
      $region18: #{bottleneck_resnet.7} parent=15 // pred_check_branch
        %254 = sbr.rel (%p252) target = $region20
      $region19: #{bottleneck_resnet.7} parent=15 // pred_region
        %p255 = scmp.lt.s32.totalorder %s20, 1
        %s256 = scalar_select %p255, %s20, 1
        %s257 = smul.addr %s256, 8
        %s258 = smul.addr %s257, 4
        %s259 = scalar_lea.vmem %s0, %s258
      $region20: #{bottleneck_resnet.7} parent=15 // pred_fallthru
        _
      // Predicated region
      $region21: #{bottleneck_resnet.7} parent=15 // pred_check
        %p260 = pneg %p71
      $region22: #{bottleneck_resnet.7} parent=15 // pred_check_branch
        %262 = sbr.rel (%p260) target = $region24
      $region23: #{bottleneck_resnet.7} parent=15 // pred_region
        %s263 = smul.u32 16, %s21
        %p264 = scmp.lt.s32.totalorder %s263, 31
        %s265 = scalar_select %p264, %s263, 31
        %s266 = smul.addr %s265, 4
        %s267 = scalar_lea.vmem %s1, %s266
        %s268 = smul.u32 16, %s21
      $region24: #{bottleneck_resnet.7} parent=15 // pred_fallthru
        _
      // Predicated region
      $region25: #{bottleneck_resnet.7} parent=15 // pred_check
        %p269 = pneg %p97
      $region26: #{bottleneck_resnet.7} parent=15 // pred_check_branch
        %271 = sbr.rel (%p269) target = $region28
      $region27: #{bottleneck_resnet.7} parent=15 // pred_region
        %p272 = scmp.lt.s32.totalorder %s21, 1
        %s273 = scalar_select %p272, %s21, 1
        %s274 = scalar_lea.vmem %s2, %s273
      $region28: #{bottleneck_resnet.7} parent=15 // pred_fallthru
        _
      // Predicated region
      $region29: #{bottleneck_resnet.7} parent=15 // pred_check
        %p275 = pneg %p123
      $region30: #{bottleneck_resnet.7} parent=15 // pred_check_branch
        %277 = sbr.rel (%p275) target = $region32
      $region31: #{bottleneck_resnet.7} parent=15 // pred_region
        %s278 = smul.u32 144, %s21
        %p279 = scmp.lt.s32.totalorder %s278, 287
        %s280 = scalar_select %p279, %s278, 287
        %s281 = smul.addr %s280, 4
        %s282 = scalar_lea.vmem %s3, %s281
        %s283 = smul.u32 144, %s21
      $region32: #{bottleneck_resnet.7} parent=15 // pred_fallthru
        _
      // Predicated region
      $region33: #{bottleneck_resnet.7} parent=15 // pred_check
        %p284 = pneg %p149
      $region34: #{bottleneck_resnet.7} parent=15 // pred_check_branch
        %286 = sbr.rel (%p284) target = $region36
      $region35: #{bottleneck_resnet.7} parent=15 // pred_region
        %p287 = scmp.lt.s32.totalorder %s21, 1
        %s288 = scalar_select %p287, %s21, 1
        %s289 = scalar_lea.vmem %s4, %s288
      $region36: #{bottleneck_resnet.7} parent=15 // pred_fallthru
        _
      // Predicated region
      $region37: #{bottleneck_resnet.7} parent=15 // pred_check
        %p290 = pneg %p175
      $region38: #{bottleneck_resnet.7} parent=15 // pred_check_branch
        %292 = sbr.rel (%p290) target = $region40
      $region39: #{bottleneck_resnet.7} parent=15 // pred_region
        %s293 = smul.u32 16, %s21
        %p294 = scmp.lt.s32.totalorder %s293, 31
        %s295 = scalar_select %p294, %s293, 31
        %s296 = smul.addr %s295, 4
        %s297 = scalar_lea.vmem %s5, %s296
        %s298 = smul.u32 16, %s21
      $region40: #{bottleneck_resnet.7} parent=15 // pred_fallthru
        _
      // Predicated region
      $region41: #{bottleneck_resnet.7} parent=15 // pred_check
        %p299 = pneg %p201
      $region42: #{bottleneck_resnet.7} parent=15 // pred_check_branch
        %301 = sbr.rel (%p299) target = $region44
      $region43: #{bottleneck_resnet.7} parent=15 // pred_region
        %p302 = scmp.lt.s32.totalorder %s21, 1
        %s303 = scalar_select %p302, %s21, 1
        %s304 = scalar_lea.vmem %s6, %s303
      $region44: #{bottleneck_resnet.7} parent=15 // pred_fallthru
        _
    $region16: #{bottleneck_resnet.7} parent=5 // pred_fallthru
      _
    %p305 = scmp.le.s32.totalorder 1, %s13
    %p306 = scmp.lt.s32.totalorder %s13, 5
    %p307 = pnand %p305, %p306
    %p308 = pneg %p307
    // Predicated region
    $region45: #{bottleneck_resnet.7} parent=5 // pred_check
      _
    $region46: #{bottleneck_resnet.7} parent=5 // pred_check_branch
      %310 = sbr.rel (%p307) target = $region48
    $region47: #{bottleneck_resnet.7} parent=5 // pred_region
      %s311 = ssub.s32 %s13, 1
      %p312 = scmp.lt.s32.totalorder %s22, 1
      %s313 = scalar_select %p312, %s22, 1
      %s314 = smul.addr %s313, 8
      %s315 = smul.addr %s314, 4
      %s316 = scalar_lea.vmem %s0, %s315
      %p317 = pneg %p51
      %p318 = pneg %p48
      %s319 = smul.u32 16, %s23
      %p320 = scmp.lt.s32.totalorder %s319, 31
      %s321 = scalar_select %p320, %s319, 31
      %s322 = smul.addr %s321, 4
      %s323 = scalar_lea.vmem %s1, %s322
      %p324 = pneg %p77
      %p325 = pneg %p74
      %p326 = scmp.lt.s32.totalorder %s23, 1
      %s327 = scalar_select %p326, %s23, 1
      %s328 = scalar_lea.vmem %s2, %s327
      %p329 = pneg %p103
      %p330 = pneg %p100
      %s331 = smul.u32 144, %s23
      %p332 = scmp.lt.s32.totalorder %s331, 287
      %s333 = scalar_select %p332, %s331, 287
      %s334 = smul.addr %s333, 4
      %s335 = scalar_lea.vmem %s3, %s334
      %p336 = pneg %p129
      %p337 = pneg %p126
      %p338 = scmp.lt.s32.totalorder %s23, 1
      %s339 = scalar_select %p338, %s23, 1
      %s340 = scalar_lea.vmem %s4, %s339
      %p341 = pneg %p155
      %p342 = pneg %p152
      %s343 = smul.u32 16, %s23
      %p344 = scmp.lt.s32.totalorder %s343, 31
      %s345 = scalar_select %p344, %s343, 31
      %s346 = smul.addr %s345, 4
      %s347 = scalar_lea.vmem %s5, %s346
      %p348 = pneg %p181
      %p349 = pneg %p178
      %p350 = scmp.lt.s32.totalorder %s23, 1
      %s351 = scalar_select %p350, %s23, 1
      %s352 = scalar_lea.vmem %s6, %s351
      %p353 = pneg %p207
      %p354 = pneg %p204
      %p355 = pneg %p233
      %p356 = pneg %p230
      %p357 = scmp.lt.s32.totalorder %s22, 1
      %s358 = scalar_select %p357, %s22, 1
      %s359 = smul.addr %s358, 8
      %s360 = smul.addr %s359, 4
      %s361 = scalar_lea.vmem %s7, %s360
      %p362 = scmp.lt.s32.totalorder %s22, 1
      %s363 = scalar_select %p362, %s22, 1
      %s364 = smul.addr %s363, 8
      %s365 = smul.addr %s364, 4
      %s366 = scalar_lea.vmem %s0, %s365
      %s367 = smul.u32 16, %s23
      %p368 = scmp.lt.s32.totalorder %s367, 31
      %s369 = scalar_select %p368, %s367, 31
      %s370 = smul.addr %s369, 4
      %s371 = scalar_lea.vmem %s1, %s370
      %s372 = smul.u32 16, %s23
      %p373 = scmp.lt.s32.totalorder %s23, 1
      %s374 = scalar_select %p373, %s23, 1
      %s375 = scalar_lea.vmem %s2, %s374
      %s376 = smul.u32 144, %s23
      %p377 = scmp.lt.s32.totalorder %s376, 287
      %s378 = scalar_select %p377, %s376, 287
      %s379 = smul.addr %s378, 4
      %s380 = scalar_lea.vmem %s3, %s379
      %s381 = smul.u32 144, %s23
      %p382 = scmp.lt.s32.totalorder %s23, 1
      %s383 = scalar_select %p382, %s23, 1
      %s384 = scalar_lea.vmem %s4, %s383
      %s385 = smul.u32 16, %s23
      %p386 = scmp.lt.s32.totalorder %s385, 31
      %s387 = scalar_select %p386, %s385, 31
      %s388 = smul.addr %s387, 4
      %s389 = scalar_lea.vmem %s5, %s388
      %s390 = smul.u32 16, %s23
      %p391 = scmp.lt.s32.totalorder %s23, 1
      %s392 = scalar_select %p391, %s23, 1
      %s393 = scalar_lea.vmem %s6, %s392
      %p394 = scmp.lt.s32.totalorder %s22, 1
      %s395 = scalar_select %p394, %s22, 1
      %s396 = smul.addr %s395, 8
      %s397 = smul.addr %s396, 4
      %s398 = scalar_lea.vmem %s7, %s397
      %p399 = scmp.eq.s32.totalorder %s23, 0
      // Predicated region
      $region49: #{bottleneck_resnet.7} parent=47 // pred_check
        %p400 = pneg %p399
      $region50: #{bottleneck_resnet.7} parent=47 // pred_check_branch
        %402 = sbr.rel (%p400) target = $region52
      $region51: #{bottleneck_resnet.7} parent=47 // pred_region
        %v403 = vld [vmem:[%s366] sm:$0xf]
        %v404 = vld [vmem:[%s366 + $0x4] sm:$0xf]
        %v405 = vld [vmem:[%s366 + $0x8] sm:$0xf]
        %v406 = vld [vmem:[%s366 + $0xc] sm:$0xf]
        %v407 = vld [vmem:[%s366 + $0x10] sm:$0xf]
        %v408 = vld [vmem:[%s366 + $0x14] sm:$0xf]
        %v409 = vld [vmem:[%s366 + $0x18] sm:$0xf]
        %v410 = vld [vmem:[%s366 + $0x1c] sm:$0xf]
        %411 = vst [vmem:[#allocation2] sm:$0xf] %v403
        %412 = vst [vmem:[#allocation2 + $0x4] sm:$0xf] %v404
        %413 = vst [vmem:[#allocation2 + $0x8] sm:$0xf] %v405
        %414 = vst [vmem:[#allocation2 + $0xc] sm:$0xf] %v406
        %415 = vst [vmem:[#allocation2 + $0x10] sm:$0xf] %v407
        %416 = vst [vmem:[#allocation2 + $0x14] sm:$0xf] %v408
        %417 = vst [vmem:[#allocation2 + $0x18] sm:$0xf] %v409
        %418 = vst [vmem:[#allocation2 + $0x1c] sm:$0xf] %v410
        %419 = vst [vmem:[#allocation3] sm:$0xff] 0.0
        %420 = vst [vmem:[#allocation3 + $0x8] sm:$0xff] 0.0
        %421 = vst [vmem:[#allocation3 + $0x50] sm:$0xff] 0.0
        %422 = vst [vmem:[#allocation3 + $0x58] sm:$0xff] 0.0
      $region52: #{bottleneck_resnet.7} parent=47 // pred_fallthru
        _
      %v423 = vld [vmem:[#allocation2] sm:$0xf]
      %v424 = vld [vmem:[#allocation2 + $0x4] sm:$0xf]
      %v425 = vld [vmem:[#allocation2 + $0x8] sm:$0xf]
      %v426 = vld [vmem:[#allocation2 + $0xc] sm:$0xf]
      %v427 = vld [vmem:[#allocation2 + $0x10] sm:$0xf]
      %v428 = vld [vmem:[#allocation2 + $0x14] sm:$0xf]
      %v429 = vld [vmem:[#allocation2 + $0x18] sm:$0xf]
      %v430 = vld [vmem:[#allocation2 + $0x1c] sm:$0xf]
      %v431 = vld [vmem:[%s371] sm:$0xf]
      %v432 = vld [vmem:[%s371 + $0x4] sm:$0xf]
      %v433 = vld [vmem:[%s371 + $0x8] sm:$0xf]
      %v434 = vld [vmem:[%s371 + $0xc] sm:$0xf]
      %v435 = vld [vmem:[%s371 + $0x10] sm:$0xf]
      %v436 = vld [vmem:[%s371 + $0x14] sm:$0xf]
      %v437 = vld [vmem:[%s371 + $0x18] sm:$0xf]
      %v438 = vld [vmem:[%s371 + $0x1c] sm:$0xf]
      %v439 = vld [vmem:[%s371 + $0x20] sm:$0xf]
      %v440 = vld [vmem:[%s371 + $0x24] sm:$0xf]
      %v441 = vld [vmem:[%s371 + $0x28] sm:$0xf]
      %v442 = vld [vmem:[%s371 + $0x2c] sm:$0xf]
      %v443 = vld [vmem:[%s371 + $0x30] sm:$0xf]
      %v444 = vld [vmem:[%s371 + $0x34] sm:$0xf]
      %v445 = vld [vmem:[%s371 + $0x38] sm:$0xf]
      %v446 = vld [vmem:[%s371 + $0x3c] sm:$0xf]
      %v447 = vld [vmem:[%s375] sm:$0x1]
      %v449 = vperm.slane %v447, 0
      %v459 = vunpack.c.l.b16 %v423
      %v460 = vunpack.c.l.b16 %v424
      %v461 = vunpack.c.l.b16 %v425
      %v462 = vunpack.c.l.b16 %v426
      %v463 = vunpack.c.l.b16 %v427
      %v464 = vunpack.c.l.b16 %v428
      %v465 = vunpack.c.l.b16 %v429
      %v466 = vunpack.c.l.b16 %v430
      %v467 = vpack.c.b16 %v460, %v459
      %v468 = vpack.c.b16 %v462, %v461
      %v469 = vpack.c.b16 %v464, %v463
      %v470 = vpack.c.b16 %v466, %v465
      %v491 = vunpack.c.l.b16 %v431
      %v492 = vunpack.c.l.b16 %v432
      %v493 = vunpack.c.l.b16 %v433
      %v494 = vunpack.c.l.b16 %v434
      %v495 = vunpack.c.l.b16 %v435
      %v496 = vunpack.c.l.b16 %v436
      %v497 = vunpack.c.l.b16 %v437
      %v498 = vunpack.c.l.b16 %v438
      %v499 = vunpack.c.l.b16 %v439
      %v500 = vunpack.c.l.b16 %v440
      %v501 = vunpack.c.l.b16 %v441
      %v502 = vunpack.c.l.b16 %v442
      %v503 = vunpack.c.l.b16 %v443
      %v504 = vunpack.c.l.b16 %v444
      %v505 = vunpack.c.l.b16 %v445
      %v506 = vunpack.c.l.b16 %v446
      %v507 = vpack.c.b16 %v492, %v491
      %v508 = vpack.c.b16 %v494, %v493
      %v509 = vpack.c.b16 %v496, %v495
      %v510 = vpack.c.b16 %v498, %v497
      %v511 = vpack.c.b16 %v500, %v499
      %v512 = vpack.c.b16 %v502, %v501
      %v513 = vpack.c.b16 %v504, %v503
      %v514 = vpack.c.b16 %v506, %v505
      %523 = vmatpush.bf16.msra.mxu0 %v514
      %524 = vmatpush.bf16.msra.mxu0 %v513
      %525 = vmatpush.bf16.msra.mxu0 %v512
      %526 = vmatpush.bf16.msra.mxu0 %v511
      %527 = vmatpush.bf16.msra.mxu0 %v510
      %528 = vmatpush.bf16.msra.mxu0 %v509
      %529 = vmatpush.bf16.msra.mxu0 %v508
      %530 = vmatpush.bf16.msra.mxu0 %v507
      %531 = vmatmul.bf16.gmra.mxu0 %v467
      %v532 = vpop.f32.mrf.mxu0
      %v533 = vadd.f32 %v449, %v532
      %v534 = vpop.f32.mrf.mxu0
      %v535 = vadd.f32 %v449, %v534
      %536 = vmatmul.bf16.gmra.mxu0 %v468
      %v537 = vpop.f32.mrf.mxu0
      %v538 = vadd.f32 %v449, %v537
      %v539 = vpop.f32.mrf.mxu0
      %v540 = vadd.f32 %v449, %v539
      %541 = vmatmul.bf16.gmra.mxu0 %v469
      %v542 = vpop.f32.mrf.mxu0
      %v543 = vadd.f32 %v449, %v542
      %v544 = vpop.f32.mrf.mxu0
      %v545 = vadd.f32 %v449, %v544
      %546 = vmatmul.bf16.gmra.mxu0 %v470
      %v547 = vpop.f32.mrf.mxu0
      %v548 = vadd.f32 %v449, %v547
      %v549 = vpop.f32.mrf.mxu0
      %v550 = vadd.f32 %v449, %v549
      %551 = vdwg.mxu0
      %v552 = vmax.f32 %v533, 0.0
      %v553 = vmax.f32 %v535, 0.0
      %v554 = vmax.f32 %v538, 0.0
      %v555 = vmax.f32 %v540, 0.0
      %v556 = vmax.f32 %v543, 0.0
      %v557 = vmax.f32 %v545, 0.0
      %v558 = vmax.f32 %v548, 0.0
      %v559 = vmax.f32 %v550, 0.0
      %560 = vst [vmem:[#allocation3 + $0x10] sm:$0xff] %v552
      %561 = vst [vmem:[#allocation3 + $0x18] sm:$0xff] %v553
      %562 = vst [vmem:[#allocation3 + $0x20] sm:$0xff] %v554
      %563 = vst [vmem:[#allocation3 + $0x28] sm:$0xff] %v555
      %564 = vst [vmem:[#allocation3 + $0x30] sm:$0xff] %v556
      %565 = vst [vmem:[#allocation3 + $0x38] sm:$0xff] %v557
      %566 = vst [vmem:[#allocation3 + $0x40] sm:$0xff] %v558
      %567 = vst [vmem:[#allocation3 + $0x48] sm:$0xff] %v559
      %v568 = vlaneseq
      %v569 = vshrl.u32 %v568, 7
      %v570 = vadd.s32 %v569, 8
      %v571 = vadd.s32 %v569, 16
      %v572 = vadd.s32 %v569, 24
      %v573 = vadd.s32 %v569, 32
      %v574 = vadd.s32 %v569, 40
      %v575 = vadd.s32 %v569, 48
      %v576 = vadd.s32 %v569, 56
      %vm577 = vcmp.lt.s32.totalorder %v569, 0
      %v578 = vsub.s32 0, %v569
      %v579 = vsel %vm577, %v578, %v569
      %v580 = vshrl.u32 %v579, 3
      %v581 = vand.u32 %v579, 7
      %v582 = vsub.s32 0, %v581
      %v583 = vsel %vm577, %v582, %v581
      %vm584 = vcmp.lt.s32.totalorder %v570, 0
      %v585 = vsub.s32 0, %v570
      %v586 = vsel %vm584, %v585, %v570
      %v587 = vshrl.u32 %v586, 3
      %v588 = vand.u32 %v586, 7
      %v589 = vsub.s32 0, %v588
      %v590 = vsel %vm584, %v589, %v588
      %vm591 = vcmp.lt.s32.totalorder %v571, 0
      %v592 = vsub.s32 0, %v571
      %v593 = vsel %vm591, %v592, %v571
      %v594 = vshrl.u32 %v593, 3
      %v595 = vand.u32 %v593, 7
      %v596 = vsub.s32 0, %v595
      %v597 = vsel %vm591, %v596, %v595
      %vm598 = vcmp.lt.s32.totalorder %v572, 0
      %v599 = vsub.s32 0, %v572
      %v600 = vsel %vm598, %v599, %v572
      %v601 = vshrl.u32 %v600, 3
      %v602 = vand.u32 %v600, 7
      %v603 = vsub.s32 0, %v602
      %v604 = vsel %vm598, %v603, %v602
      %vm605 = vcmp.lt.s32.totalorder %v573, 0
      %v606 = vsub.s32 0, %v573
      %v607 = vsel %vm605, %v606, %v573
      %v608 = vshrl.u32 %v607, 3
      %v609 = vand.u32 %v607, 7
      %v610 = vsub.s32 0, %v609
      %v611 = vsel %vm605, %v610, %v609
      %vm612 = vcmp.lt.s32.totalorder %v574, 0
      %v613 = vsub.s32 0, %v574
      %v614 = vsel %vm612, %v613, %v574
      %v615 = vshrl.u32 %v614, 3
      %v616 = vand.u32 %v614, 7
      %v617 = vsub.s32 0, %v616
      %v618 = vsel %vm612, %v617, %v616
      %vm619 = vcmp.lt.s32.totalorder %v575, 0
      %v620 = vsub.s32 0, %v575
      %v621 = vsel %vm619, %v620, %v575
      %v622 = vshrl.u32 %v621, 3
      %v623 = vand.u32 %v621, 7
      %v624 = vsub.s32 0, %v623
      %v625 = vsel %vm619, %v624, %v623
      %vm626 = vcmp.lt.s32.totalorder %v576, 0
      %v627 = vsub.s32 0, %v576
      %v628 = vsel %vm626, %v627, %v576
      %v629 = vshrl.u32 %v628, 3
      %v630 = vand.u32 %v628, 7
      %v631 = vsub.s32 0, %v630
      %v632 = vsel %vm626, %v631, %v630
      %vm633 = vcmp.ne.s32.totalorder %v583, 0
      %vm634 = vcmp.ne.s32.totalorder %v590, 0
      %vm635 = vcmp.ne.s32.totalorder %v597, 0
      %vm636 = vcmp.ne.s32.totalorder %v604, 0
      %vm637 = vcmp.ne.s32.totalorder %v611, 0
      %vm638 = vcmp.ne.s32.totalorder %v618, 0
      %vm639 = vcmp.ne.s32.totalorder %v625, 0
      %vm640 = vcmp.ne.s32.totalorder %v632, 0
      %vm641 = vcmp.lt.s32.totalorder %v583, 0
      %vm642 = vcmp.lt.s32.totalorder %v590, 0
      %vm643 = vcmp.lt.s32.totalorder %v597, 0
      %vm644 = vcmp.lt.s32.totalorder %v604, 0
      %vm645 = vcmp.lt.s32.totalorder %v611, 0
      %vm646 = vcmp.lt.s32.totalorder %v618, 0
      %vm647 = vcmp.lt.s32.totalorder %v625, 0
      %vm648 = vcmp.lt.s32.totalorder %v632, 0
      %vm649 = vmand %vm641, %vm633
      %vm650 = vmand %vm642, %vm634
      %vm651 = vmand %vm643, %vm635
      %vm652 = vmand %vm644, %vm636
      %vm653 = vmand %vm645, %vm637
      %vm654 = vmand %vm646, %vm638
      %vm655 = vmand %vm647, %vm639
      %vm656 = vmand %vm648, %vm640
      %v657 = vadd.s32 %v583, 8
      %v658 = vadd.s32 %v590, 8
      %v659 = vadd.s32 %v597, 8
      %v660 = vadd.s32 %v604, 8
      %v661 = vadd.s32 %v611, 8
      %v662 = vadd.s32 %v618, 8
      %v663 = vadd.s32 %v625, 8
      %v664 = vadd.s32 %v632, 8
      %v665 = vsel %vm649, %v657, %v583
      %v666 = vsel %vm650, %v658, %v590
      %v667 = vsel %vm651, %v659, %v597
      %v668 = vsel %vm652, %v660, %v604
      %v669 = vsel %vm653, %v661, %v611
      %v670 = vsel %vm654, %v662, %v618
      %v671 = vsel %vm655, %v663, %v625
      %v672 = vsel %vm656, %v664, %v632
      %vm673 = vcmp.gt.s32.totalorder %v665, 0
      %vm674 = vcmp.gt.s32.totalorder %v666, 0
      %vm675 = vcmp.gt.s32.totalorder %v667, 0
      %vm676 = vcmp.gt.s32.totalorder %v668, 0
      %vm677 = vcmp.gt.s32.totalorder %v669, 0
      %vm678 = vcmp.gt.s32.totalorder %v670, 0
      %vm679 = vcmp.gt.s32.totalorder %v671, 0
      %vm680 = vcmp.gt.s32.totalorder %v672, 0
      %vm681 = vcmp.lt.s32.totalorder %v665, 7
      %vm682 = vcmp.lt.s32.totalorder %v666, 7
      %vm683 = vcmp.lt.s32.totalorder %v667, 7
      %vm684 = vcmp.lt.s32.totalorder %v668, 7
      %vm685 = vcmp.lt.s32.totalorder %v669, 7
      %vm686 = vcmp.lt.s32.totalorder %v670, 7
      %vm687 = vcmp.lt.s32.totalorder %v671, 7
      %vm688 = vcmp.lt.s32.totalorder %v672, 7
      %v689 = vld [vmem:[#allocation3 + $0xf] sm:$0xff]
      %v690 = vld [vmem:[#allocation3 + $0x17] sm:$0xff]
      %v691 = vld [vmem:[#allocation3 + $0x1f] sm:$0xff]
      %v692 = vld [vmem:[#allocation3 + $0x27] sm:$0xff]
      %v693 = vld [vmem:[#allocation3 + $0x2f] sm:$0xff]
      %v694 = vld [vmem:[#allocation3 + $0x37] sm:$0xff]
      %v695 = vld [vmem:[#allocation3 + $0x3f] sm:$0xff]
      %v696 = vld [vmem:[#allocation3 + $0x47] sm:$0xff]
      %v697 = vsel %vm673, %v689, 0.0
      %v698 = vsel %vm674, %v690, 0.0
      %v699 = vsel %vm675, %v691, 0.0
      %v700 = vsel %vm676, %v692, 0.0
      %v701 = vsel %vm677, %v693, 0.0
      %v702 = vsel %vm678, %v694, 0.0
      %v703 = vsel %vm679, %v695, 0.0
      %v704 = vsel %vm680, %v696, 0.0
      %v705 = vld [vmem:[#allocation3 + $0x11] sm:$0xff]
      %v706 = vld [vmem:[#allocation3 + $0x19] sm:$0xff]
      %v707 = vld [vmem:[#allocation3 + $0x21] sm:$0xff]
      %v708 = vld [vmem:[#allocation3 + $0x29] sm:$0xff]
      %v709 = vld [vmem:[#allocation3 + $0x31] sm:$0xff]
      %v710 = vld [vmem:[#allocation3 + $0x39] sm:$0xff]
      %v711 = vld [vmem:[#allocation3 + $0x41] sm:$0xff]
      %v712 = vld [vmem:[#allocation3 + $0x49] sm:$0xff]
      %v713 = vsel %vm681, %v705, 0.0
      %v714 = vsel %vm682, %v706, 0.0
      %v715 = vsel %vm683, %v707, 0.0
      %v716 = vsel %vm684, %v708, 0.0
      %v717 = vsel %vm685, %v709, 0.0
      %v718 = vsel %vm686, %v710, 0.0
      %v719 = vsel %vm687, %v711, 0.0
      %v720 = vsel %vm688, %v712, 0.0
      %v721 = vpack.c.bf16 %v698, %v697
      %v722 = vpack.c.bf16 %v553, %v552
      %v723 = vpack.c.bf16 %v714, %v713
      %v724 = vpack.c.bf16 %v700, %v699
      %v725 = vpack.c.bf16 %v555, %v554
      %v726 = vpack.c.bf16 %v716, %v715
      %v727 = vpack.c.bf16 %v702, %v701
      %v728 = vpack.c.bf16 %v557, %v556
      %v729 = vpack.c.bf16 %v718, %v717
      %v730 = vpack.c.bf16 %v704, %v703
      %v731 = vpack.c.bf16 %v559, %v558
      %v732 = vpack.c.bf16 %v720, %v719
      %v733 = vld [vmem:[%s380 + $0xc0] sm:$0xf]
      %v734 = vld [vmem:[%s380 + $0xc4] sm:$0xf]
      %v735 = vld [vmem:[%s380 + $0xc8] sm:$0xf]
      %v736 = vld [vmem:[%s380 + $0xcc] sm:$0xf]
      %v737 = vld [vmem:[%s380 + $0xd0] sm:$0xf]
      %v738 = vld [vmem:[%s380 + $0xd4] sm:$0xf]
      %v739 = vld [vmem:[%s380 + $0xd8] sm:$0xf]
      %v740 = vld [vmem:[%s380 + $0xdc] sm:$0xf]
      %v741 = vld [vmem:[%s380 + $0xe0] sm:$0xf]
      %v742 = vld [vmem:[%s380 + $0xe4] sm:$0xf]
      %v743 = vld [vmem:[%s380 + $0xe8] sm:$0xf]
      %v744 = vld [vmem:[%s380 + $0xec] sm:$0xf]
      %v745 = vld [vmem:[%s380 + $0xf0] sm:$0xf]
      %v746 = vld [vmem:[%s380 + $0xf4] sm:$0xf]
      %v747 = vld [vmem:[%s380 + $0xf8] sm:$0xf]
      %v748 = vld [vmem:[%s380 + $0xfc] sm:$0xf]
      %v749 = vld [vmem:[%s380 + $0x100] sm:$0xf]
      %v750 = vld [vmem:[%s380 + $0x104] sm:$0xf]
      %v751 = vld [vmem:[%s380 + $0x108] sm:$0xf]
      %v752 = vld [vmem:[%s380 + $0x10c] sm:$0xf]
      %v753 = vld [vmem:[%s380 + $0x110] sm:$0xf]
      %v754 = vld [vmem:[%s380 + $0x114] sm:$0xf]
      %v755 = vld [vmem:[%s380 + $0x118] sm:$0xf]
      %v756 = vld [vmem:[%s380 + $0x11c] sm:$0xf]
      %v757 = vld [vmem:[%s380 + $0x120] sm:$0xf]
      %v758 = vld [vmem:[%s380 + $0x124] sm:$0xf]
      %v759 = vld [vmem:[%s380 + $0x128] sm:$0xf]
      %v760 = vld [vmem:[%s380 + $0x12c] sm:$0xf]
      %v761 = vld [vmem:[%s380 + $0x130] sm:$0xf]
      %v762 = vld [vmem:[%s380 + $0x134] sm:$0xf]
      %v763 = vld [vmem:[%s380 + $0x138] sm:$0xf]
      %v764 = vld [vmem:[%s380 + $0x13c] sm:$0xf]
      %v765 = vld [vmem:[%s380 + $0x140] sm:$0xf]
      %v766 = vld [vmem:[%s380 + $0x144] sm:$0xf]
      %v767 = vld [vmem:[%s380 + $0x148] sm:$0xf]
      %v768 = vld [vmem:[%s380 + $0x14c] sm:$0xf]
      %v769 = vld [vmem:[%s380 + $0x150] sm:$0xf]
      %v770 = vld [vmem:[%s380 + $0x154] sm:$0xf]
      %v771 = vld [vmem:[%s380 + $0x158] sm:$0xf]
      %v772 = vld [vmem:[%s380 + $0x15c] sm:$0xf]
      %v773 = vld [vmem:[%s380 + $0x160] sm:$0xf]
      %v774 = vld [vmem:[%s380 + $0x164] sm:$0xf]
      %v775 = vld [vmem:[%s380 + $0x168] sm:$0xf]
      %v776 = vld [vmem:[%s380 + $0x16c] sm:$0xf]
      %v777 = vld [vmem:[%s380 + $0x170] sm:$0xf]
      %v778 = vld [vmem:[%s380 + $0x174] sm:$0xf]
      %v779 = vld [vmem:[%s380 + $0x178] sm:$0xf]
      %v780 = vld [vmem:[%s380 + $0x17c] sm:$0xf]
      %v781 = vld [vmem:[#allocation3 + $0x8] sm:$0xff]
      %v782 = vld [vmem:[#allocation3 + $0x10] sm:$0xff]
      %v783 = vld [vmem:[#allocation3 + $0x18] sm:$0xff]
      %v784 = vld [vmem:[#allocation3 + $0x20] sm:$0xff]
      %v785 = vld [vmem:[#allocation3 + $0x28] sm:$0xff]
      %v786 = vld [vmem:[#allocation3 + $0x30] sm:$0xff]
      %v787 = vld [vmem:[#allocation3 + $0x38] sm:$0xff]
      %v788 = vld [vmem:[#allocation3 + $0x40] sm:$0xff]
      %v789 = vld [vmem:[#allocation3 + $0x7] sm:$0xff]
      %v790 = vsel %vm673, %v789, 0.0
      %v791 = vsel %vm674, %v689, 0.0
      %v792 = vsel %vm675, %v690, 0.0
      %v793 = vsel %vm676, %v691, 0.0
      %v794 = vsel %vm677, %v692, 0.0
      %v795 = vsel %vm678, %v693, 0.0
      %v796 = vsel %vm679, %v694, 0.0
      %v797 = vsel %vm680, %v695, 0.0
      %v798 = vld [vmem:[#allocation3 + $0x9] sm:$0xff]
      %v799 = vsel %vm681, %v798, 0.0
      %v800 = vsel %vm682, %v705, 0.0
      %v801 = vsel %vm683, %v706, 0.0
      %v802 = vsel %vm684, %v707, 0.0
      %v803 = vsel %vm685, %v708, 0.0
      %v804 = vsel %vm686, %v709, 0.0
      %v805 = vsel %vm687, %v710, 0.0
      %v806 = vsel %vm688, %v711, 0.0
      %v807 = vpack.c.bf16 %v791, %v790
      %v808 = vpack.c.bf16 %v782, %v781
      %v809 = vpack.c.bf16 %v800, %v799
      %v810 = vpack.c.bf16 %v793, %v792
      %v811 = vpack.c.bf16 %v784, %v783
      %v812 = vpack.c.bf16 %v802, %v801
      %v813 = vpack.c.bf16 %v795, %v794
      %v814 = vpack.c.bf16 %v786, %v785
      %v815 = vpack.c.bf16 %v804, %v803
      %v816 = vpack.c.bf16 %v797, %v796
      %v817 = vpack.c.bf16 %v788, %v787
      %v818 = vpack.c.bf16 %v806, %v805
      %v819 = vld [vmem:[%s380] sm:$0xf]
      %v820 = vld [vmem:[%s380 + $0x4] sm:$0xf]
      %v821 = vld [vmem:[%s380 + $0x8] sm:$0xf]
      %v822 = vld [vmem:[%s380 + $0xc] sm:$0xf]
      %v823 = vld [vmem:[%s380 + $0x10] sm:$0xf]
      %v824 = vld [vmem:[%s380 + $0x14] sm:$0xf]
      %v825 = vld [vmem:[%s380 + $0x18] sm:$0xf]
      %v826 = vld [vmem:[%s380 + $0x1c] sm:$0xf]
      %v827 = vld [vmem:[%s380 + $0x20] sm:$0xf]
      %v828 = vld [vmem:[%s380 + $0x24] sm:$0xf]
      %v829 = vld [vmem:[%s380 + $0x28] sm:$0xf]
      %v830 = vld [vmem:[%s380 + $0x2c] sm:$0xf]
      %v831 = vld [vmem:[%s380 + $0x30] sm:$0xf]
      %v832 = vld [vmem:[%s380 + $0x34] sm:$0xf]
      %v833 = vld [vmem:[%s380 + $0x38] sm:$0xf]
      %v834 = vld [vmem:[%s380 + $0x3c] sm:$0xf]
      %v835 = vld [vmem:[%s380 + $0x40] sm:$0xf]
      %v836 = vld [vmem:[%s380 + $0x44] sm:$0xf]
      %v837 = vld [vmem:[%s380 + $0x48] sm:$0xf]
      %v838 = vld [vmem:[%s380 + $0x4c] sm:$0xf]
      %v839 = vld [vmem:[%s380 + $0x50] sm:$0xf]
      %v840 = vld [vmem:[%s380 + $0x54] sm:$0xf]
      %v841 = vld [vmem:[%s380 + $0x58] sm:$0xf]
      %v842 = vld [vmem:[%s380 + $0x5c] sm:$0xf]
      %v843 = vld [vmem:[%s380 + $0x60] sm:$0xf]
      %v844 = vld [vmem:[%s380 + $0x64] sm:$0xf]
      %v845 = vld [vmem:[%s380 + $0x68] sm:$0xf]
      %v846 = vld [vmem:[%s380 + $0x6c] sm:$0xf]
      %v847 = vld [vmem:[%s380 + $0x70] sm:$0xf]
      %v848 = vld [vmem:[%s380 + $0x74] sm:$0xf]
      %v849 = vld [vmem:[%s380 + $0x78] sm:$0xf]
      %v850 = vld [vmem:[%s380 + $0x7c] sm:$0xf]
      %v851 = vld [vmem:[%s380 + $0x80] sm:$0xf]
      %v852 = vld [vmem:[%s380 + $0x84] sm:$0xf]
      %v853 = vld [vmem:[%s380 + $0x88] sm:$0xf]
      %v854 = vld [vmem:[%s380 + $0x8c] sm:$0xf]
      %v855 = vld [vmem:[%s380 + $0x90] sm:$0xf]
      %v856 = vld [vmem:[%s380 + $0x94] sm:$0xf]
      %v857 = vld [vmem:[%s380 + $0x98] sm:$0xf]
      %v858 = vld [vmem:[%s380 + $0x9c] sm:$0xf]
      %v859 = vld [vmem:[%s380 + $0xa0] sm:$0xf]
      %v860 = vld [vmem:[%s380 + $0xa4] sm:$0xf]
      %v861 = vld [vmem:[%s380 + $0xa8] sm:$0xf]
      %v862 = vld [vmem:[%s380 + $0xac] sm:$0xf]
      %v863 = vld [vmem:[%s380 + $0xb0] sm:$0xf]
      %v864 = vld [vmem:[%s380 + $0xb4] sm:$0xf]
      %v865 = vld [vmem:[%s380 + $0xb8] sm:$0xf]
      %v866 = vld [vmem:[%s380 + $0xbc] sm:$0xf]
      %v915 = vunpack.c.l.b16 %v819
      %v916 = vunpack.c.l.b16 %v820
      %v917 = vunpack.c.l.b16 %v821
      %v918 = vunpack.c.l.b16 %v822
      %v919 = vunpack.c.l.b16 %v823
      %v920 = vunpack.c.l.b16 %v824
      %v921 = vunpack.c.l.b16 %v825
      %v922 = vunpack.c.l.b16 %v826
      %v923 = vunpack.c.l.b16 %v827
      %v924 = vunpack.c.l.b16 %v828
      %v925 = vunpack.c.l.b16 %v829
      %v926 = vunpack.c.l.b16 %v830
      %v927 = vunpack.c.l.b16 %v831
      %v928 = vunpack.c.l.b16 %v832
      %v929 = vunpack.c.l.b16 %v833
      %v930 = vunpack.c.l.b16 %v834
      %v931 = vunpack.c.l.b16 %v835
      %v932 = vunpack.c.l.b16 %v836
      %v933 = vunpack.c.l.b16 %v837
      %v934 = vunpack.c.l.b16 %v838
      %v935 = vunpack.c.l.b16 %v839
      %v936 = vunpack.c.l.b16 %v840
      %v937 = vunpack.c.l.b16 %v841
      %v938 = vunpack.c.l.b16 %v842
      %v939 = vunpack.c.l.b16 %v843
      %v940 = vunpack.c.l.b16 %v844
      %v941 = vunpack.c.l.b16 %v845
      %v942 = vunpack.c.l.b16 %v846
      %v943 = vunpack.c.l.b16 %v847
      %v944 = vunpack.c.l.b16 %v848
      %v945 = vunpack.c.l.b16 %v849
      %v946 = vunpack.c.l.b16 %v850
      %v947 = vunpack.c.l.b16 %v851
      %v948 = vunpack.c.l.b16 %v852
      %v949 = vunpack.c.l.b16 %v853
      %v950 = vunpack.c.l.b16 %v854
      %v951 = vunpack.c.l.b16 %v855
      %v952 = vunpack.c.l.b16 %v856
      %v953 = vunpack.c.l.b16 %v857
      %v954 = vunpack.c.l.b16 %v858
      %v955 = vunpack.c.l.b16 %v859
      %v956 = vunpack.c.l.b16 %v860
      %v957 = vunpack.c.l.b16 %v861
      %v958 = vunpack.c.l.b16 %v862
      %v959 = vunpack.c.l.b16 %v863
      %v960 = vunpack.c.l.b16 %v864
      %v961 = vunpack.c.l.b16 %v865
      %v962 = vunpack.c.l.b16 %v866
      %v963 = vpack.c.b16 %v916, %v915
      %v964 = vpack.c.b16 %v918, %v917
      %v965 = vpack.c.b16 %v920, %v919
      %v966 = vpack.c.b16 %v922, %v921
      %v967 = vpack.c.b16 %v924, %v923
      %v968 = vpack.c.b16 %v926, %v925
      %v969 = vpack.c.b16 %v928, %v927
      %v970 = vpack.c.b16 %v930, %v929
      %v971 = vpack.c.b16 %v932, %v931
      %v972 = vpack.c.b16 %v934, %v933
      %v973 = vpack.c.b16 %v936, %v935
      %v974 = vpack.c.b16 %v938, %v937
      %v975 = vpack.c.b16 %v940, %v939
      %v976 = vpack.c.b16 %v942, %v941
      %v977 = vpack.c.b16 %v944, %v943
      %v978 = vpack.c.b16 %v946, %v945
      %v979 = vpack.c.b16 %v948, %v947
      %v980 = vpack.c.b16 %v950, %v949
      %v981 = vpack.c.b16 %v952, %v951
      %v982 = vpack.c.b16 %v954, %v953
      %v983 = vpack.c.b16 %v956, %v955
      %v984 = vpack.c.b16 %v958, %v957
      %v985 = vpack.c.b16 %v960, %v959
      %v986 = vpack.c.b16 %v962, %v961
      %1011 = vmatpush.bf16.msra.mxu0 %v970
      %1012 = vmatpush.bf16.msra.mxu0 %v969
      %1013 = vmatpush.bf16.msra.mxu0 %v968
      %1014 = vmatpush.bf16.msra.mxu0 %v967
      %1015 = vmatpush.bf16.msra.mxu0 %v966
      %1016 = vmatpush.bf16.msra.mxu0 %v965
      %1017 = vmatpush.bf16.msra.mxu0 %v964
      %1018 = vmatpush.bf16.msra.mxu0 %v963
      %1019 = vmatmul.bf16.gmra.mxu0 %v807
      %v1020 = vpop.f32.mrf.mxu0
      %v1021 = vadd.f32 0.0, %v1020
      %v1022 = vpop.f32.mrf.mxu0
      %v1023 = vadd.f32 0.0, %v1022
      %1024 = vmatmul.bf16.gmra.mxu0 %v810
      %v1025 = vpop.f32.mrf.mxu0
      %v1026 = vadd.f32 0.0, %v1025
      %v1027 = vpop.f32.mrf.mxu0
      %v1028 = vadd.f32 0.0, %v1027
      %1029 = vmatmul.bf16.gmra.mxu0 %v813
      %v1030 = vpop.f32.mrf.mxu0
      %v1031 = vadd.f32 0.0, %v1030
      %v1032 = vpop.f32.mrf.mxu0
      %v1033 = vadd.f32 0.0, %v1032
      %1034 = vmatmul.bf16.gmra.mxu0 %v816
      %v1035 = vpop.f32.mrf.mxu0
      %v1036 = vadd.f32 0.0, %v1035
      %v1037 = vpop.f32.mrf.mxu0
      %v1038 = vadd.f32 0.0, %v1037
      %1039 = vdwg.mxu0
      %1040 = vmatpush.bf16.msra.mxu0 %v978
      %1041 = vmatpush.bf16.msra.mxu0 %v977
      %1042 = vmatpush.bf16.msra.mxu0 %v976
      %1043 = vmatpush.bf16.msra.mxu0 %v975
      %1044 = vmatpush.bf16.msra.mxu0 %v974
      %1045 = vmatpush.bf16.msra.mxu0 %v973
      %1046 = vmatpush.bf16.msra.mxu0 %v972
      %1047 = vmatpush.bf16.msra.mxu0 %v971
      %1048 = vmatmul.bf16.gmra.mxu0 %v808
      %v1049 = vpop.f32.mrf.mxu0
      %v1050 = vadd.f32 %v1021, %v1049
      %v1051 = vpop.f32.mrf.mxu0
      %v1052 = vadd.f32 %v1023, %v1051
      %1053 = vmatmul.bf16.gmra.mxu0 %v811
      %v1054 = vpop.f32.mrf.mxu0
      %v1055 = vadd.f32 %v1026, %v1054
      %v1056 = vpop.f32.mrf.mxu0
      %v1057 = vadd.f32 %v1028, %v1056
      %1058 = vmatmul.bf16.gmra.mxu0 %v814
      %v1059 = vpop.f32.mrf.mxu0
      %v1060 = vadd.f32 %v1031, %v1059
      %v1061 = vpop.f32.mrf.mxu0
      %v1062 = vadd.f32 %v1033, %v1061
      %1063 = vmatmul.bf16.gmra.mxu0 %v817
      %v1064 = vpop.f32.mrf.mxu0
      %v1065 = vadd.f32 %v1036, %v1064
      %v1066 = vpop.f32.mrf.mxu0
      %v1067 = vadd.f32 %v1038, %v1066
      %1068 = vdwg.mxu0
      %1069 = vmatpush.bf16.msra.mxu0 %v986
      %1070 = vmatpush.bf16.msra.mxu0 %v985
      %1071 = vmatpush.bf16.msra.mxu0 %v984
      %1072 = vmatpush.bf16.msra.mxu0 %v983
      %1073 = vmatpush.bf16.msra.mxu0 %v982
      %1074 = vmatpush.bf16.msra.mxu0 %v981
      %1075 = vmatpush.bf16.msra.mxu0 %v980
      %1076 = vmatpush.bf16.msra.mxu0 %v979
      %1077 = vmatmul.bf16.gmra.mxu0 %v809
      %v1078 = vpop.f32.mrf.mxu0
      %v1079 = vadd.f32 %v1050, %v1078
      %v1080 = vpop.f32.mrf.mxu0
      %v1081 = vadd.f32 %v1052, %v1080
      %1082 = vmatmul.bf16.gmra.mxu0 %v812
      %v1083 = vpop.f32.mrf.mxu0
      %v1084 = vadd.f32 %v1055, %v1083
      %v1085 = vpop.f32.mrf.mxu0
      %v1086 = vadd.f32 %v1057, %v1085
      %1087 = vmatmul.bf16.gmra.mxu0 %v815
      %v1088 = vpop.f32.mrf.mxu0
      %v1089 = vadd.f32 %v1060, %v1088
      %v1090 = vpop.f32.mrf.mxu0
      %v1091 = vadd.f32 %v1062, %v1090
      %1092 = vmatmul.bf16.gmra.mxu0 %v818
      %v1093 = vpop.f32.mrf.mxu0
      %v1094 = vadd.f32 %v1065, %v1093
      %v1095 = vpop.f32.mrf.mxu0
      %v1096 = vadd.f32 %v1067, %v1095
      %1097 = vdwg.mxu0
      %v1146 = vunpack.c.l.b16 %v733
      %v1147 = vunpack.c.l.b16 %v734
      %v1148 = vunpack.c.l.b16 %v735
      %v1149 = vunpack.c.l.b16 %v736
      %v1150 = vunpack.c.l.b16 %v737
      %v1151 = vunpack.c.l.b16 %v738
      %v1152 = vunpack.c.l.b16 %v739
      %v1153 = vunpack.c.l.b16 %v740
      %v1154 = vunpack.c.l.b16 %v741
      %v1155 = vunpack.c.l.b16 %v742
      %v1156 = vunpack.c.l.b16 %v743
      %v1157 = vunpack.c.l.b16 %v744
      %v1158 = vunpack.c.l.b16 %v745
      %v1159 = vunpack.c.l.b16 %v746
      %v1160 = vunpack.c.l.b16 %v747
      %v1161 = vunpack.c.l.b16 %v748
      %v1162 = vunpack.c.l.b16 %v749
      %v1163 = vunpack.c.l.b16 %v750
      %v1164 = vunpack.c.l.b16 %v751
      %v1165 = vunpack.c.l.b16 %v752
      %v1166 = vunpack.c.l.b16 %v753
      %v1167 = vunpack.c.l.b16 %v754
      %v1168 = vunpack.c.l.b16 %v755
      %v1169 = vunpack.c.l.b16 %v756
      %v1170 = vunpack.c.l.b16 %v757
      %v1171 = vunpack.c.l.b16 %v758
      %v1172 = vunpack.c.l.b16 %v759
      %v1173 = vunpack.c.l.b16 %v760
      %v1174 = vunpack.c.l.b16 %v761
      %v1175 = vunpack.c.l.b16 %v762
      %v1176 = vunpack.c.l.b16 %v763
      %v1177 = vunpack.c.l.b16 %v764
      %v1178 = vunpack.c.l.b16 %v765
      %v1179 = vunpack.c.l.b16 %v766
      %v1180 = vunpack.c.l.b16 %v767
      %v1181 = vunpack.c.l.b16 %v768
      %v1182 = vunpack.c.l.b16 %v769
      %v1183 = vunpack.c.l.b16 %v770
      %v1184 = vunpack.c.l.b16 %v771
      %v1185 = vunpack.c.l.b16 %v772
      %v1186 = vunpack.c.l.b16 %v773
      %v1187 = vunpack.c.l.b16 %v774
      %v1188 = vunpack.c.l.b16 %v775
      %v1189 = vunpack.c.l.b16 %v776
      %v1190 = vunpack.c.l.b16 %v777
      %v1191 = vunpack.c.l.b16 %v778
      %v1192 = vunpack.c.l.b16 %v779
      %v1193 = vunpack.c.l.b16 %v780
      %v1194 = vpack.c.b16 %v1147, %v1146
      %v1195 = vpack.c.b16 %v1149, %v1148
      %v1196 = vpack.c.b16 %v1151, %v1150
      %v1197 = vpack.c.b16 %v1153, %v1152
      %v1198 = vpack.c.b16 %v1155, %v1154
      %v1199 = vpack.c.b16 %v1157, %v1156
      %v1200 = vpack.c.b16 %v1159, %v1158
      %v1201 = vpack.c.b16 %v1161, %v1160
      %v1202 = vpack.c.b16 %v1163, %v1162
      %v1203 = vpack.c.b16 %v1165, %v1164
      %v1204 = vpack.c.b16 %v1167, %v1166
      %v1205 = vpack.c.b16 %v1169, %v1168
      %v1206 = vpack.c.b16 %v1171, %v1170
      %v1207 = vpack.c.b16 %v1173, %v1172
      %v1208 = vpack.c.b16 %v1175, %v1174
      %v1209 = vpack.c.b16 %v1177, %v1176
      %v1210 = vpack.c.b16 %v1179, %v1178
      %v1211 = vpack.c.b16 %v1181, %v1180
      %v1212 = vpack.c.b16 %v1183, %v1182
      %v1213 = vpack.c.b16 %v1185, %v1184
      %v1214 = vpack.c.b16 %v1187, %v1186
      %v1215 = vpack.c.b16 %v1189, %v1188
      %v1216 = vpack.c.b16 %v1191, %v1190
      %v1217 = vpack.c.b16 %v1193, %v1192
      %1242 = vmatpush.bf16.msra.mxu0 %v1201
      %1243 = vmatpush.bf16.msra.mxu0 %v1200
      %1244 = vmatpush.bf16.msra.mxu0 %v1199
      %1245 = vmatpush.bf16.msra.mxu0 %v1198
      %1246 = vmatpush.bf16.msra.mxu0 %v1197
      %1247 = vmatpush.bf16.msra.mxu0 %v1196
      %1248 = vmatpush.bf16.msra.mxu0 %v1195
      %1249 = vmatpush.bf16.msra.mxu0 %v1194
      %1250 = vmatmul.bf16.gmra.mxu0 %v721
      %v1251 = vpop.f32.mrf.mxu0
      %v1252 = vadd.f32 %v1079, %v1251
      %v1253 = vpop.f32.mrf.mxu0
      %v1254 = vadd.f32 %v1081, %v1253
      %1255 = vmatmul.bf16.gmra.mxu0 %v724
      %v1256 = vpop.f32.mrf.mxu0
      %v1257 = vadd.f32 %v1084, %v1256
      %v1258 = vpop.f32.mrf.mxu0
      %v1259 = vadd.f32 %v1086, %v1258
      %1260 = vmatmul.bf16.gmra.mxu0 %v727
      %v1261 = vpop.f32.mrf.mxu0
      %v1262 = vadd.f32 %v1089, %v1261
      %v1263 = vpop.f32.mrf.mxu0
      %v1264 = vadd.f32 %v1091, %v1263
      %1265 = vmatmul.bf16.gmra.mxu0 %v730
      %v1266 = vpop.f32.mrf.mxu0
      %v1267 = vadd.f32 %v1094, %v1266
      %v1268 = vpop.f32.mrf.mxu0
      %v1269 = vadd.f32 %v1096, %v1268
      %1270 = vdwg.mxu0
      %1271 = vmatpush.bf16.msra.mxu0 %v1209
      %1272 = vmatpush.bf16.msra.mxu0 %v1208
      %1273 = vmatpush.bf16.msra.mxu0 %v1207
      %1274 = vmatpush.bf16.msra.mxu0 %v1206
      %1275 = vmatpush.bf16.msra.mxu0 %v1205
      %1276 = vmatpush.bf16.msra.mxu0 %v1204
      %1277 = vmatpush.bf16.msra.mxu0 %v1203
      %1278 = vmatpush.bf16.msra.mxu0 %v1202
      %1279 = vmatmul.bf16.gmra.mxu0 %v722
      %v1280 = vpop.f32.mrf.mxu0
      %v1281 = vadd.f32 %v1252, %v1280
      %v1282 = vpop.f32.mrf.mxu0
      %v1283 = vadd.f32 %v1254, %v1282
      %1284 = vmatmul.bf16.gmra.mxu0 %v725
      %v1285 = vpop.f32.mrf.mxu0
      %v1286 = vadd.f32 %v1257, %v1285
      %v1287 = vpop.f32.mrf.mxu0
      %v1288 = vadd.f32 %v1259, %v1287
      %1289 = vmatmul.bf16.gmra.mxu0 %v728
      %v1290 = vpop.f32.mrf.mxu0
      %v1291 = vadd.f32 %v1262, %v1290
      %v1292 = vpop.f32.mrf.mxu0
      %v1293 = vadd.f32 %v1264, %v1292
      %1294 = vmatmul.bf16.gmra.mxu0 %v731
      %v1295 = vpop.f32.mrf.mxu0
      %v1296 = vadd.f32 %v1267, %v1295
      %v1297 = vpop.f32.mrf.mxu0
      %v1298 = vadd.f32 %v1269, %v1297
      %1299 = vdwg.mxu0
      %1300 = vmatpush.bf16.msra.mxu0 %v1217
      %1301 = vmatpush.bf16.msra.mxu0 %v1216
      %1302 = vmatpush.bf16.msra.mxu0 %v1215
      %1303 = vmatpush.bf16.msra.mxu0 %v1214
      %1304 = vmatpush.bf16.msra.mxu0 %v1213
      %1305 = vmatpush.bf16.msra.mxu0 %v1212
      %1306 = vmatpush.bf16.msra.mxu0 %v1211
      %1307 = vmatpush.bf16.msra.mxu0 %v1210
      %1308 = vmatmul.bf16.gmra.mxu0 %v723
      %v1309 = vpop.f32.mrf.mxu0
      %v1310 = vadd.f32 %v1281, %v1309
      %v1311 = vpop.f32.mrf.mxu0
      %v1312 = vadd.f32 %v1283, %v1311
      %1313 = vmatmul.bf16.gmra.mxu0 %v726
      %v1314 = vpop.f32.mrf.mxu0
      %v1315 = vadd.f32 %v1286, %v1314
      %v1316 = vpop.f32.mrf.mxu0
      %v1317 = vadd.f32 %v1288, %v1316
      %1318 = vmatmul.bf16.gmra.mxu0 %v729
      %v1319 = vpop.f32.mrf.mxu0
      %v1320 = vadd.f32 %v1291, %v1319
      %v1321 = vpop.f32.mrf.mxu0
      %v1322 = vadd.f32 %v1293, %v1321
      %1323 = vmatmul.bf16.gmra.mxu0 %v732
      %v1324 = vpop.f32.mrf.mxu0
      %v1325 = vadd.f32 %v1296, %v1324
      %v1326 = vpop.f32.mrf.mxu0
      %v1327 = vadd.f32 %v1298, %v1326
      %1328 = vdwg.mxu0
      %v1329 = vld [vmem:[#allocation3 + $0x18] sm:$0xff]
      %v1330 = vld [vmem:[#allocation3 + $0x20] sm:$0xff]
      %v1331 = vld [vmem:[#allocation3 + $0x28] sm:$0xff]
      %v1332 = vld [vmem:[#allocation3 + $0x30] sm:$0xff]
      %v1333 = vld [vmem:[#allocation3 + $0x38] sm:$0xff]
      %v1334 = vld [vmem:[#allocation3 + $0x40] sm:$0xff]
      %v1335 = vld [vmem:[#allocation3 + $0x48] sm:$0xff]
      %v1336 = vld [vmem:[#allocation3 + $0x50] sm:$0xff]
      %v1337 = vld [vmem:[#allocation3 + $0x17] sm:$0xff]
      %v1338 = vld [vmem:[#allocation3 + $0x1f] sm:$0xff]
      %v1339 = vld [vmem:[#allocation3 + $0x27] sm:$0xff]
      %v1340 = vld [vmem:[#allocation3 + $0x2f] sm:$0xff]
      %v1341 = vld [vmem:[#allocation3 + $0x37] sm:$0xff]
      %v1342 = vld [vmem:[#allocation3 + $0x3f] sm:$0xff]
      %v1343 = vld [vmem:[#allocation3 + $0x47] sm:$0xff]
      %v1344 = vld [vmem:[#allocation3 + $0x4f] sm:$0xff]
      %v1345 = vsel %vm673, %v1337, 0.0
      %v1346 = vsel %vm674, %v1338, 0.0
      %v1347 = vsel %vm675, %v1339, 0.0
      %v1348 = vsel %vm676, %v1340, 0.0
      %v1349 = vsel %vm677, %v1341, 0.0
      %v1350 = vsel %vm678, %v1342, 0.0
      %v1351 = vsel %vm679, %v1343, 0.0
      %v1352 = vsel %vm680, %v1344, 0.0
      %v1353 = vld [vmem:[#allocation3 + $0x19] sm:$0xff]
      %v1354 = vld [vmem:[#allocation3 + $0x21] sm:$0xff]
      %v1355 = vld [vmem:[#allocation3 + $0x29] sm:$0xff]
      %v1356 = vld [vmem:[#allocation3 + $0x31] sm:$0xff]
      %v1357 = vld [vmem:[#allocation3 + $0x39] sm:$0xff]
      %v1358 = vld [vmem:[#allocation3 + $0x41] sm:$0xff]
      %v1359 = vld [vmem:[#allocation3 + $0x49] sm:$0xff]
      %v1360 = vld [vmem:[#allocation3 + $0x51] sm:$0xff]
      %v1361 = vsel %vm681, %v1353, 0.0
      %v1362 = vsel %vm682, %v1354, 0.0
      %v1363 = vsel %vm683, %v1355, 0.0
      %v1364 = vsel %vm684, %v1356, 0.0
      %v1365 = vsel %vm685, %v1357, 0.0
      %v1366 = vsel %vm686, %v1358, 0.0
      %v1367 = vsel %vm687, %v1359, 0.0
      %v1368 = vsel %vm688, %v1360, 0.0
      %v1369 = vpack.c.bf16 %v1346, %v1345
      %v1370 = vpack.c.bf16 %v1330, %v1329
      %v1371 = vpack.c.bf16 %v1362, %v1361
      %v1372 = vpack.c.bf16 %v1348, %v1347
      %v1373 = vpack.c.bf16 %v1332, %v1331
      %v1374 = vpack.c.bf16 %v1364, %v1363
      %v1375 = vpack.c.bf16 %v1350, %v1349
      %v1376 = vpack.c.bf16 %v1334, %v1333
      %v1377 = vpack.c.bf16 %v1366, %v1365
      %v1378 = vpack.c.bf16 %v1352, %v1351
      %v1379 = vpack.c.bf16 %v1336, %v1335
      %v1380 = vpack.c.bf16 %v1368, %v1367
      %v1381 = vld [vmem:[%s380 + $0x180] sm:$0xf]
      %v1382 = vld [vmem:[%s380 + $0x184] sm:$0xf]
      %v1383 = vld [vmem:[%s380 + $0x188] sm:$0xf]
      %v1384 = vld [vmem:[%s380 + $0x18c] sm:$0xf]
      %v1385 = vld [vmem:[%s380 + $0x190] sm:$0xf]
      %v1386 = vld [vmem:[%s380 + $0x194] sm:$0xf]
      %v1387 = vld [vmem:[%s380 + $0x198] sm:$0xf]
      %v1388 = vld [vmem:[%s380 + $0x19c] sm:$0xf]
      %v1389 = vld [vmem:[%s380 + $0x1a0] sm:$0xf]
      %v1390 = vld [vmem:[%s380 + $0x1a4] sm:$0xf]
      %v1391 = vld [vmem:[%s380 + $0x1a8] sm:$0xf]
      %v1392 = vld [vmem:[%s380 + $0x1ac] sm:$0xf]
      %v1393 = vld [vmem:[%s380 + $0x1b0] sm:$0xf]
      %v1394 = vld [vmem:[%s380 + $0x1b4] sm:$0xf]
      %v1395 = vld [vmem:[%s380 + $0x1b8] sm:$0xf]
      %v1396 = vld [vmem:[%s380 + $0x1bc] sm:$0xf]
      %v1397 = vld [vmem:[%s380 + $0x1c0] sm:$0xf]
      %v1398 = vld [vmem:[%s380 + $0x1c4] sm:$0xf]
      %v1399 = vld [vmem:[%s380 + $0x1c8] sm:$0xf]
      %v1400 = vld [vmem:[%s380 + $0x1cc] sm:$0xf]
      %v1401 = vld [vmem:[%s380 + $0x1d0] sm:$0xf]
      %v1402 = vld [vmem:[%s380 + $0x1d4] sm:$0xf]
      %v1403 = vld [vmem:[%s380 + $0x1d8] sm:$0xf]
      %v1404 = vld [vmem:[%s380 + $0x1dc] sm:$0xf]
      %v1405 = vld [vmem:[%s380 + $0x1e0] sm:$0xf]
      %v1406 = vld [vmem:[%s380 + $0x1e4] sm:$0xf]
      %v1407 = vld [vmem:[%s380 + $0x1e8] sm:$0xf]
      %v1408 = vld [vmem:[%s380 + $0x1ec] sm:$0xf]
      %v1409 = vld [vmem:[%s380 + $0x1f0] sm:$0xf]
      %v1410 = vld [vmem:[%s380 + $0x1f4] sm:$0xf]
      %v1411 = vld [vmem:[%s380 + $0x1f8] sm:$0xf]
      %v1412 = vld [vmem:[%s380 + $0x1fc] sm:$0xf]
      %v1413 = vld [vmem:[%s380 + $0x200] sm:$0xf]
      %v1414 = vld [vmem:[%s380 + $0x204] sm:$0xf]
      %v1415 = vld [vmem:[%s380 + $0x208] sm:$0xf]
      %v1416 = vld [vmem:[%s380 + $0x20c] sm:$0xf]
      %v1417 = vld [vmem:[%s380 + $0x210] sm:$0xf]
      %v1418 = vld [vmem:[%s380 + $0x214] sm:$0xf]
      %v1419 = vld [vmem:[%s380 + $0x218] sm:$0xf]
      %v1420 = vld [vmem:[%s380 + $0x21c] sm:$0xf]
      %v1421 = vld [vmem:[%s380 + $0x220] sm:$0xf]
      %v1422 = vld [vmem:[%s380 + $0x224] sm:$0xf]
      %v1423 = vld [vmem:[%s380 + $0x228] sm:$0xf]
      %v1424 = vld [vmem:[%s380 + $0x22c] sm:$0xf]
      %v1425 = vld [vmem:[%s380 + $0x230] sm:$0xf]
      %v1426 = vld [vmem:[%s380 + $0x234] sm:$0xf]
      %v1427 = vld [vmem:[%s380 + $0x238] sm:$0xf]
      %v1428 = vld [vmem:[%s380 + $0x23c] sm:$0xf]
      %v1477 = vunpack.c.l.b16 %v1381
      %v1478 = vunpack.c.l.b16 %v1382
      %v1479 = vunpack.c.l.b16 %v1383
      %v1480 = vunpack.c.l.b16 %v1384
      %v1481 = vunpack.c.l.b16 %v1385
      %v1482 = vunpack.c.l.b16 %v1386
      %v1483 = vunpack.c.l.b16 %v1387
      %v1484 = vunpack.c.l.b16 %v1388
      %v1485 = vunpack.c.l.b16 %v1389
      %v1486 = vunpack.c.l.b16 %v1390
      %v1487 = vunpack.c.l.b16 %v1391
      %v1488 = vunpack.c.l.b16 %v1392
      %v1489 = vunpack.c.l.b16 %v1393
      %v1490 = vunpack.c.l.b16 %v1394
      %v1491 = vunpack.c.l.b16 %v1395
      %v1492 = vunpack.c.l.b16 %v1396
      %v1493 = vunpack.c.l.b16 %v1397
      %v1494 = vunpack.c.l.b16 %v1398
      %v1495 = vunpack.c.l.b16 %v1399
      %v1496 = vunpack.c.l.b16 %v1400
      %v1497 = vunpack.c.l.b16 %v1401
      %v1498 = vunpack.c.l.b16 %v1402
      %v1499 = vunpack.c.l.b16 %v1403
      %v1500 = vunpack.c.l.b16 %v1404
      %v1501 = vunpack.c.l.b16 %v1405
      %v1502 = vunpack.c.l.b16 %v1406
      %v1503 = vunpack.c.l.b16 %v1407
      %v1504 = vunpack.c.l.b16 %v1408
      %v1505 = vunpack.c.l.b16 %v1409
      %v1506 = vunpack.c.l.b16 %v1410
      %v1507 = vunpack.c.l.b16 %v1411
      %v1508 = vunpack.c.l.b16 %v1412
      %v1509 = vunpack.c.l.b16 %v1413
      %v1510 = vunpack.c.l.b16 %v1414
      %v1511 = vunpack.c.l.b16 %v1415
      %v1512 = vunpack.c.l.b16 %v1416
      %v1513 = vunpack.c.l.b16 %v1417
      %v1514 = vunpack.c.l.b16 %v1418
      %v1515 = vunpack.c.l.b16 %v1419
      %v1516 = vunpack.c.l.b16 %v1420
      %v1517 = vunpack.c.l.b16 %v1421
      %v1518 = vunpack.c.l.b16 %v1422
      %v1519 = vunpack.c.l.b16 %v1423
      %v1520 = vunpack.c.l.b16 %v1424
      %v1521 = vunpack.c.l.b16 %v1425
      %v1522 = vunpack.c.l.b16 %v1426
      %v1523 = vunpack.c.l.b16 %v1427
      %v1524 = vunpack.c.l.b16 %v1428
      %v1525 = vpack.c.b16 %v1478, %v1477
      %v1526 = vpack.c.b16 %v1480, %v1479
      %v1527 = vpack.c.b16 %v1482, %v1481
      %v1528 = vpack.c.b16 %v1484, %v1483
      %v1529 = vpack.c.b16 %v1486, %v1485
      %v1530 = vpack.c.b16 %v1488, %v1487
      %v1531 = vpack.c.b16 %v1490, %v1489
      %v1532 = vpack.c.b16 %v1492, %v1491
      %v1533 = vpack.c.b16 %v1494, %v1493
      %v1534 = vpack.c.b16 %v1496, %v1495
      %v1535 = vpack.c.b16 %v1498, %v1497
      %v1536 = vpack.c.b16 %v1500, %v1499
      %v1537 = vpack.c.b16 %v1502, %v1501
      %v1538 = vpack.c.b16 %v1504, %v1503
      %v1539 = vpack.c.b16 %v1506, %v1505
      %v1540 = vpack.c.b16 %v1508, %v1507
      %v1541 = vpack.c.b16 %v1510, %v1509
      %v1542 = vpack.c.b16 %v1512, %v1511
      %v1543 = vpack.c.b16 %v1514, %v1513
      %v1544 = vpack.c.b16 %v1516, %v1515
      %v1545 = vpack.c.b16 %v1518, %v1517
      %v1546 = vpack.c.b16 %v1520, %v1519
      %v1547 = vpack.c.b16 %v1522, %v1521
      %v1548 = vpack.c.b16 %v1524, %v1523
      %1573 = vmatpush.bf16.msra.mxu0 %v1532
      %1574 = vmatpush.bf16.msra.mxu0 %v1531
      %1575 = vmatpush.bf16.msra.mxu0 %v1530
      %1576 = vmatpush.bf16.msra.mxu0 %v1529
      %1577 = vmatpush.bf16.msra.mxu0 %v1528
      %1578 = vmatpush.bf16.msra.mxu0 %v1527
      %1579 = vmatpush.bf16.msra.mxu0 %v1526
      %1580 = vmatpush.bf16.msra.mxu0 %v1525
      %1581 = vmatmul.bf16.gmra.mxu0 %v1369
      %v1582 = vpop.f32.mrf.mxu0
      %v1583 = vadd.f32 0.0, %v1582
      %v1584 = vpop.f32.mrf.mxu0
      %v1585 = vadd.f32 0.0, %v1584
      %1586 = vmatmul.bf16.gmra.mxu0 %v1372
      %v1587 = vpop.f32.mrf.mxu0
      %v1588 = vadd.f32 0.0, %v1587
      %v1589 = vpop.f32.mrf.mxu0
      %v1590 = vadd.f32 0.0, %v1589
      %1591 = vmatmul.bf16.gmra.mxu0 %v1375
      %v1592 = vpop.f32.mrf.mxu0
      %v1593 = vadd.f32 0.0, %v1592
      %v1594 = vpop.f32.mrf.mxu0
      %v1595 = vadd.f32 0.0, %v1594
      %1596 = vmatmul.bf16.gmra.mxu0 %v1378
      %v1597 = vpop.f32.mrf.mxu0
      %v1598 = vadd.f32 0.0, %v1597
      %v1599 = vpop.f32.mrf.mxu0
      %v1600 = vadd.f32 0.0, %v1599
      %1601 = vdwg.mxu0
      %1602 = vmatpush.bf16.msra.mxu0 %v1540
      %1603 = vmatpush.bf16.msra.mxu0 %v1539
      %1604 = vmatpush.bf16.msra.mxu0 %v1538
      %1605 = vmatpush.bf16.msra.mxu0 %v1537
      %1606 = vmatpush.bf16.msra.mxu0 %v1536
      %1607 = vmatpush.bf16.msra.mxu0 %v1535
      %1608 = vmatpush.bf16.msra.mxu0 %v1534
      %1609 = vmatpush.bf16.msra.mxu0 %v1533
      %1610 = vmatmul.bf16.gmra.mxu0 %v1370
      %v1611 = vpop.f32.mrf.mxu0
      %v1612 = vadd.f32 %v1583, %v1611
      %v1613 = vpop.f32.mrf.mxu0
      %v1614 = vadd.f32 %v1585, %v1613
      %1615 = vmatmul.bf16.gmra.mxu0 %v1373
      %v1616 = vpop.f32.mrf.mxu0
      %v1617 = vadd.f32 %v1588, %v1616
      %v1618 = vpop.f32.mrf.mxu0
      %v1619 = vadd.f32 %v1590, %v1618
      %1620 = vmatmul.bf16.gmra.mxu0 %v1376
      %v1621 = vpop.f32.mrf.mxu0
      %v1622 = vadd.f32 %v1593, %v1621
      %v1623 = vpop.f32.mrf.mxu0
      %v1624 = vadd.f32 %v1595, %v1623
      %1625 = vmatmul.bf16.gmra.mxu0 %v1379
      %v1626 = vpop.f32.mrf.mxu0
      %v1627 = vadd.f32 %v1598, %v1626
      %v1628 = vpop.f32.mrf.mxu0
      %v1629 = vadd.f32 %v1600, %v1628
      %1630 = vdwg.mxu0
      %1631 = vmatpush.bf16.msra.mxu0 %v1548
      %1632 = vmatpush.bf16.msra.mxu0 %v1547
      %1633 = vmatpush.bf16.msra.mxu0 %v1546
      %1634 = vmatpush.bf16.msra.mxu0 %v1545
      %1635 = vmatpush.bf16.msra.mxu0 %v1544
      %1636 = vmatpush.bf16.msra.mxu0 %v1543
      %1637 = vmatpush.bf16.msra.mxu0 %v1542
      %1638 = vmatpush.bf16.msra.mxu0 %v1541
      %1639 = vmatmul.bf16.gmra.mxu0 %v1371
      %v1640 = vpop.f32.mrf.mxu0
      %v1641 = vadd.f32 %v1612, %v1640
      %v1642 = vpop.f32.mrf.mxu0
      %v1643 = vadd.f32 %v1614, %v1642
      %1644 = vmatmul.bf16.gmra.mxu0 %v1374
      %v1645 = vpop.f32.mrf.mxu0
      %v1646 = vadd.f32 %v1617, %v1645
      %v1647 = vpop.f32.mrf.mxu0
      %v1648 = vadd.f32 %v1619, %v1647
      %1649 = vmatmul.bf16.gmra.mxu0 %v1377
      %v1650 = vpop.f32.mrf.mxu0
      %v1651 = vadd.f32 %v1622, %v1650
      %v1652 = vpop.f32.mrf.mxu0
      %v1653 = vadd.f32 %v1624, %v1652
      %1654 = vmatmul.bf16.gmra.mxu0 %v1380
      %v1655 = vpop.f32.mrf.mxu0
      %v1656 = vadd.f32 %v1627, %v1655
      %v1657 = vpop.f32.mrf.mxu0
      %v1658 = vadd.f32 %v1629, %v1657
      %1659 = vdwg.mxu0
      %v1660 = vadd.f32 %v1310, %v1641
      %v1661 = vadd.f32 %v1312, %v1643
      %v1662 = vadd.f32 %v1315, %v1646
      %v1663 = vadd.f32 %v1317, %v1648
      %v1664 = vadd.f32 %v1320, %v1651
      %v1665 = vadd.f32 %v1322, %v1653
      %v1666 = vadd.f32 %v1325, %v1656
      %v1667 = vadd.f32 %v1327, %v1658
      %v1668 = vld [vmem:[%s384] sm:$0x1]
      %v1670 = vperm.slane %v1668, 0
      %v1672 = vadd.f32 %v1660, %v1670
      %v1673 = vadd.f32 %v1661, %v1670
      %v1674 = vadd.f32 %v1662, %v1670
      %v1675 = vadd.f32 %v1663, %v1670
      %v1676 = vadd.f32 %v1664, %v1670
      %v1677 = vadd.f32 %v1665, %v1670
      %v1678 = vadd.f32 %v1666, %v1670
      %v1679 = vadd.f32 %v1667, %v1670
      %v1680 = vmax.f32 %v1672, 0.0
      %v1681 = vmax.f32 %v1673, 0.0
      %v1682 = vmax.f32 %v1674, 0.0
      %v1683 = vmax.f32 %v1675, 0.0
      %v1684 = vmax.f32 %v1676, 0.0
      %v1685 = vmax.f32 %v1677, 0.0
      %v1686 = vmax.f32 %v1678, 0.0
      %v1687 = vmax.f32 %v1679, 0.0
      %v1688 = vpack.c.bf16 %v1681, %v1680
      %v1689 = vpack.c.bf16 %v1683, %v1682
      %v1690 = vpack.c.bf16 %v1685, %v1684
      %v1691 = vpack.c.bf16 %v1687, %v1686
      %v1692 = vld [vmem:[%s389] sm:$0xf]
      %v1693 = vld [vmem:[%s389 + $0x4] sm:$0xf]
      %v1694 = vld [vmem:[%s389 + $0x8] sm:$0xf]
      %v1695 = vld [vmem:[%s389 + $0xc] sm:$0xf]
      %v1696 = vld [vmem:[%s389 + $0x10] sm:$0xf]
      %v1697 = vld [vmem:[%s389 + $0x14] sm:$0xf]
      %v1698 = vld [vmem:[%s389 + $0x18] sm:$0xf]
      %v1699 = vld [vmem:[%s389 + $0x1c] sm:$0xf]
      %v1700 = vld [vmem:[%s389 + $0x20] sm:$0xf]
      %v1701 = vld [vmem:[%s389 + $0x24] sm:$0xf]
      %v1702 = vld [vmem:[%s389 + $0x28] sm:$0xf]
      %v1703 = vld [vmem:[%s389 + $0x2c] sm:$0xf]
      %v1704 = vld [vmem:[%s389 + $0x30] sm:$0xf]
      %v1705 = vld [vmem:[%s389 + $0x34] sm:$0xf]
      %v1706 = vld [vmem:[%s389 + $0x38] sm:$0xf]
      %v1707 = vld [vmem:[%s389 + $0x3c] sm:$0xf]
      %v1708 = vld [vmem:[%s393] sm:$0x1]
      %v1710 = vperm.slane %v1708, 0
      %v1728 = vunpack.c.l.b16 %v1692
      %v1729 = vunpack.c.l.b16 %v1693
      %v1730 = vunpack.c.l.b16 %v1694
      %v1731 = vunpack.c.l.b16 %v1695
      %v1732 = vunpack.c.l.b16 %v1696
      %v1733 = vunpack.c.l.b16 %v1697
      %v1734 = vunpack.c.l.b16 %v1698
      %v1735 = vunpack.c.l.b16 %v1699
      %v1736 = vunpack.c.l.b16 %v1700
      %v1737 = vunpack.c.l.b16 %v1701
      %v1738 = vunpack.c.l.b16 %v1702
      %v1739 = vunpack.c.l.b16 %v1703
      %v1740 = vunpack.c.l.b16 %v1704
      %v1741 = vunpack.c.l.b16 %v1705
      %v1742 = vunpack.c.l.b16 %v1706
      %v1743 = vunpack.c.l.b16 %v1707
      %v1744 = vpack.c.b16 %v1729, %v1728
      %v1745 = vpack.c.b16 %v1731, %v1730
      %v1746 = vpack.c.b16 %v1733, %v1732
      %v1747 = vpack.c.b16 %v1735, %v1734
      %v1748 = vpack.c.b16 %v1737, %v1736
      %v1749 = vpack.c.b16 %v1739, %v1738
      %v1750 = vpack.c.b16 %v1741, %v1740
      %v1751 = vpack.c.b16 %v1743, %v1742
      %1760 = vmatpush.bf16.msra.mxu0 %v1751
      %1761 = vmatpush.bf16.msra.mxu0 %v1750
      %1762 = vmatpush.bf16.msra.mxu0 %v1749
      %1763 = vmatpush.bf16.msra.mxu0 %v1748
      %1764 = vmatpush.bf16.msra.mxu0 %v1747
      %1765 = vmatpush.bf16.msra.mxu0 %v1746
      %1766 = vmatpush.bf16.msra.mxu0 %v1745
      %1767 = vmatpush.bf16.msra.mxu0 %v1744
      %1768 = vmatmul.bf16.gmra.mxu0 %v1688
      %v1769 = vpop.f32.mrf.mxu0
      %v1770 = vadd.f32 %v1710, %v1769
      %v1771 = vpop.f32.mrf.mxu0
      %v1772 = vadd.f32 %v1710, %v1771
      %1773 = vmatmul.bf16.gmra.mxu0 %v1689
      %v1774 = vpop.f32.mrf.mxu0
      %v1775 = vadd.f32 %v1710, %v1774
      %v1776 = vpop.f32.mrf.mxu0
      %v1777 = vadd.f32 %v1710, %v1776
      %1778 = vmatmul.bf16.gmra.mxu0 %v1690
      %v1779 = vpop.f32.mrf.mxu0
      %v1780 = vadd.f32 %v1710, %v1779
      %v1781 = vpop.f32.mrf.mxu0
      %v1782 = vadd.f32 %v1710, %v1781
      %1783 = vmatmul.bf16.gmra.mxu0 %v1691
      %v1784 = vpop.f32.mrf.mxu0
      %v1785 = vadd.f32 %v1710, %v1784
      %v1786 = vpop.f32.mrf.mxu0
      %v1787 = vadd.f32 %v1710, %v1786
      %1788 = vdwg.mxu0
      %v1789 = vunpack.c.l.bf16 %v423
      %v1790 = vunpack.c.l.bf16 %v424
      %v1791 = vunpack.c.l.bf16 %v425
      %v1792 = vunpack.c.l.bf16 %v426
      %v1793 = vunpack.c.l.bf16 %v427
      %v1794 = vunpack.c.l.bf16 %v428
      %v1795 = vunpack.c.l.bf16 %v429
      %v1796 = vunpack.c.l.bf16 %v430
      %v1797 = vadd.f32 %v1770, %v1789
      %v1798 = vadd.f32 %v1772, %v1790
      %v1799 = vadd.f32 %v1775, %v1791
      %v1800 = vadd.f32 %v1777, %v1792
      %v1801 = vadd.f32 %v1780, %v1793
      %v1802 = vadd.f32 %v1782, %v1794
      %v1803 = vadd.f32 %v1785, %v1795
      %v1804 = vadd.f32 %v1787, %v1796
      %v1805 = vmax.f32 %v1797, 0.0
      %v1806 = vmax.f32 %v1798, 0.0
      %v1807 = vmax.f32 %v1799, 0.0
      %v1808 = vmax.f32 %v1800, 0.0
      %v1809 = vmax.f32 %v1801, 0.0
      %v1810 = vmax.f32 %v1802, 0.0
      %v1811 = vmax.f32 %v1803, 0.0
      %v1812 = vmax.f32 %v1804, 0.0
      %v1813 = vpack.c.bf16 %v1805, %v1805
      %v1814 = vpack.c.bf16 %v1806, %v1806
      %v1815 = vpack.c.bf16 %v1807, %v1807
      %v1816 = vpack.c.bf16 %v1808, %v1808
      %v1817 = vpack.c.bf16 %v1809, %v1809
      %v1818 = vpack.c.bf16 %v1810, %v1810
      %v1819 = vpack.c.bf16 %v1811, %v1811
      %v1820 = vpack.c.bf16 %v1812, %v1812
      %1821 = vst [vmem:[#allocation2] sm:$0xf] %v1813
      %1822 = vst [vmem:[#allocation2 + $0x4] sm:$0xf] %v1814
      %1823 = vst [vmem:[#allocation2 + $0x8] sm:$0xf] %v1815
      %1824 = vst [vmem:[#allocation2 + $0xc] sm:$0xf] %v1816
      %1825 = vst [vmem:[#allocation2 + $0x10] sm:$0xf] %v1817
      %1826 = vst [vmem:[#allocation2 + $0x14] sm:$0xf] %v1818
      %1827 = vst [vmem:[#allocation2 + $0x18] sm:$0xf] %v1819
      %1828 = vst [vmem:[#allocation2 + $0x1c] sm:$0xf] %v1820
      %p1829 = scmp.eq.s32.totalorder %s23, 1
      // Predicated region
      $region53: #{bottleneck_resnet.7} parent=47 // pred_check
        %p1830 = pneg %p1829
      $region54: #{bottleneck_resnet.7} parent=47 // pred_check_branch
        %1832 = sbr.rel (%p1830) target = $region56
      $region55: #{bottleneck_resnet.7} parent=47 // pred_region
        %1833 = vst [vmem:[%s398] sm:$0xf] %v1813
        %1834 = vst [vmem:[%s398 + $0x4] sm:$0xf] %v1814
        %1835 = vst [vmem:[%s398 + $0x8] sm:$0xf] %v1815
        %1836 = vst [vmem:[%s398 + $0xc] sm:$0xf] %v1816
        %1837 = vst [vmem:[%s398 + $0x10] sm:$0xf] %v1817
        %1838 = vst [vmem:[%s398 + $0x14] sm:$0xf] %v1818
        %1839 = vst [vmem:[%s398 + $0x18] sm:$0xf] %v1819
        %1840 = vst [vmem:[%s398 + $0x1c] sm:$0xf] %v1820
      $region56: #{bottleneck_resnet.7} parent=47 // pred_fallthru
        _
      %p1841 = scmp.lt.s32.totalorder %s22, 1
      %s1842 = scalar_select %p1841, %s22, 1
      %s1843 = smul.addr %s1842, 8
      %s1844 = smul.addr %s1843, 4
      %s1845 = scalar_lea.vmem %s7, %s1844
      // Predicated region
      $region57: #{bottleneck_resnet.7} parent=47 // pred_check
        %p1846 = pneg %p230
      $region58: #{bottleneck_resnet.7} parent=47 // pred_check_branch
        %1848 = sbr.rel (%p1846) target = $region60
      $region59: #{bottleneck_resnet.7} parent=47 // pred_region
        _
      $region60: #{bottleneck_resnet.7} parent=47 // pred_fallthru
        _
    $region48: #{bottleneck_resnet.7} parent=5 // pred_fallthru
      _
    %p1849 = scmp.le.s32.totalorder 2, %s13
    // Predicated region
    $region61: #{bottleneck_resnet.7} parent=5 // pred_check
      %p1850 = pneg %p1849
    $region62: #{bottleneck_resnet.7} parent=5 // pred_check_branch
      %1852 = sbr.rel (%p1850) target = $region64
    $region63: #{bottleneck_resnet.7} parent=5 // pred_region
      %s1853 = ssub.s32 %s13, 2
      // Predicated region
      $region65: #{bottleneck_resnet.7} parent=63 // pred_check
        %p1854 = pneg %p236
      $region66: #{bottleneck_resnet.7} parent=63 // pred_check_branch
        %1856 = sbr.rel (%p1854) target = $region68
      $region67: #{bottleneck_resnet.7} parent=63 // pred_region
        %p1857 = scmp.lt.s32.totalorder %s24, 1
        %s1858 = scalar_select %p1857, %s24, 1
        %s1859 = smul.addr %s1858, 8
        %s1860 = smul.addr %s1859, 4
        %s1861 = scalar_lea.vmem %s7, %s1860
      $region68: #{bottleneck_resnet.7} parent=63 // pred_fallthru
        _
    $region64: #{bottleneck_resnet.7} parent=5 // pred_fallthru
      _
  $region6: #{bottleneck_resnet.7} parent=0 // loop_footer
    %s17 = sadd.s32 1, %s13
  $region7: #{bottleneck_resnet.7} parent=0 // loop_footer_branch
    %12 = sbr.rel target = $region3
  $region8: #{bottleneck_resnet.7} parent=0 // loop_exit
    _

// kernel: bottleneck_resnet.6
$region0: #{bottleneck_resnet.6}
  #allocation0 [shape = 'u32[]', space=smem, size = 0x4, offset = 0x4, fixed_abs, tag = 'smem constant byte address 0x4 - core index']
  #allocation1 [shape = 'u32[72,128]{1,0:T(1,128)}', space=vmem, size = 0x9000, scoped, tag = 'internal scratch']
  %s0 = inlined_call_operand.vmem [shape: bf16[2,64,1152], index: 0, kind: input, shape index: {}]
  %s1 = inlined_call_operand.vmem [shape: bf16[1152,128], index: 1, kind: input, shape index: {}]
  %s2 = inlined_call_operand.vmem [shape: f32[1,128], index: 2, kind: input, shape index: {}]
  %s3 = inlined_call_operand.vmem [shape: bf16[2,64,128], index: 3, kind: output, shape index: {}]
  %s4 = sld [smem:[#allocation0]]
  $region45: #{bottleneck_resnet.6} parent=0
    _
  %s6 = ssub.s32 1, %s4
  %s7 = scalar_select 0, %s6, %s4
  loop: start=0, step=1, limit=4
  $region2: #{bottleneck_resnet.6} parent=0 // loop_pre_header
    _
  $region3: #{bottleneck_resnet.6} parent=0 // loop_header
    %s9 = sphi 0, %s13
    %p10 = scmp.ge.s32.totalorder %s9, 4
    %s19 = sphi 0, %s21
    %s22 = sphi 0, %s19
    %s23 = sphi 0, %s22
    %s39 = sphi 0, %s23
    %s43 = sphi 0, %s43
    %s45 = sphi 0, %s43
    %s46 = sphi 0, %s45
    %s60 = sphi 0, %s46
    %s64 = sphi 0, %s64
    %s66 = sphi 0, %s64
    %s67 = sphi 0, %s66
    %s81 = sphi 0, %s67
    %s87 = sphi 0, %s89
    %s90 = sphi 0, %s87
    %s91 = sphi 0, %s90
    %s107 = sphi 0, %s91
  $region4: #{bottleneck_resnet.6} parent=0 // loop_header_branch
    %12 = sbr.rel (%p10) target = $region8
  $region5: #{bottleneck_resnet.6} parent=0 // loop_body
    %s14 = ssub.s32 %s9, 1
    %s15 = ssub.s32 %s9, 2
    %s16 = sadd.s32 %s9, 1
    %s17 = ssub.s32 %s9, %s16
    %p18 = scmp.eq.s32.totalorder %s17, 0
    %s20 = sadd.s32 %s19, 1
    %s21 = scalar_select %p18, %s19, %s20
    %p24 = pneg %p18
    %p25 = scmp.eq.s32.totalorder %s9, 1
    %p26 = por %p24, %p25
    %p27 = scmp.ne.s32.totalorder %s19, %s22
    %p28 = scmp.eq.s32.totalorder %s9, 0
    %p29 = por %p27, %p28
    %p30 = scmp.ne.s32.totalorder %s19, %s22
    %p31 = scmp.eq.s32.totalorder %s14, 1
    %p32 = por %p30, %p31
    %p33 = scmp.ne.s32.totalorder %s22, %s23
    %p34 = scmp.eq.s32.totalorder %s14, 0
    %p35 = por %p33, %p34
    %p36 = scmp.ne.s32.totalorder %s22, %s23
    %p37 = scmp.eq.s32.totalorder %s15, 1
    %p38 = por %p36, %p37
    %p40 = scmp.ne.s32.totalorder %s23, %s39
    %p41 = scmp.eq.s32.totalorder %s15, 0
    %p42 = por %p40, %p41
    %s44 = sadd.s32 %s43, 1
    %p47 = scmp.eq.s32.totalorder %s9, 1
    %p48 = scmp.ne.s32.totalorder %s43, %s45
    %p49 = scmp.eq.s32.totalorder %s9, 0
    %p50 = por %p48, %p49
    %p51 = scmp.ne.s32.totalorder %s43, %s45
    %p52 = scmp.eq.s32.totalorder %s14, 1
    %p53 = por %p51, %p52
    %p54 = scmp.ne.s32.totalorder %s45, %s46
    %p55 = scmp.eq.s32.totalorder %s14, 0
    %p56 = por %p54, %p55
    %p57 = scmp.ne.s32.totalorder %s45, %s46
    %p58 = scmp.eq.s32.totalorder %s15, 1
    %p59 = por %p57, %p58
    %p61 = scmp.ne.s32.totalorder %s46, %s60
    %p62 = scmp.eq.s32.totalorder %s15, 0
    %p63 = por %p61, %p62
    %s65 = sadd.s32 %s64, 1
    %p68 = scmp.eq.s32.totalorder %s9, 1
    %p69 = scmp.ne.s32.totalorder %s64, %s66
    %p70 = scmp.eq.s32.totalorder %s9, 0
    %p71 = por %p69, %p70
    %p72 = scmp.ne.s32.totalorder %s64, %s66
    %p73 = scmp.eq.s32.totalorder %s14, 1
    %p74 = por %p72, %p73
    %p75 = scmp.ne.s32.totalorder %s66, %s67
    %p76 = scmp.eq.s32.totalorder %s14, 0
    %p77 = por %p75, %p76
    %p78 = scmp.ne.s32.totalorder %s66, %s67
    %p79 = scmp.eq.s32.totalorder %s15, 1
    %p80 = por %p78, %p79
    %p82 = scmp.ne.s32.totalorder %s67, %s81
    %p83 = scmp.eq.s32.totalorder %s15, 0
    %p84 = por %p82, %p83
    %s85 = ssub.s32 %s9, %s16
    %p86 = scmp.eq.s32.totalorder %s85, 0
    %s88 = sadd.s32 %s87, 1
    %s89 = scalar_select %p86, %s87, %s88
    %p92 = pneg %p86
    %p93 = scmp.eq.s32.totalorder %s9, 1
    %p94 = por %p92, %p93
    %p95 = scmp.ne.s32.totalorder %s87, %s90
    %p96 = scmp.eq.s32.totalorder %s9, 0
    %p97 = por %p95, %p96
    %p98 = scmp.ne.s32.totalorder %s87, %s90
    %p99 = scmp.eq.s32.totalorder %s14, 1
    %p100 = por %p98, %p99
    %p101 = scmp.ne.s32.totalorder %s90, %s91
    %p102 = scmp.eq.s32.totalorder %s14, 0
    %p103 = por %p101, %p102
    %p104 = scmp.ne.s32.totalorder %s90, %s91
    %p105 = scmp.eq.s32.totalorder %s15, 1
    %p106 = por %p104, %p105
    %p108 = scmp.ne.s32.totalorder %s91, %s107
    %p109 = scmp.eq.s32.totalorder %s15, 0
    %p110 = por %p108, %p109
    %p111 = scmp.le.s32.totalorder 1, %s9
    %p112 = scmp.lt.s32.totalorder %s9, 3
    %p113 = pnand %p111, %p112
    %p114 = pneg %p113
    // Predicated region
    $region9: #{bottleneck_resnet.6} parent=5 // pred_check
      _
    $region10: #{bottleneck_resnet.6} parent=5 // pred_check_branch
      %116 = sbr.rel (%p113) target = $region12
    $region11: #{bottleneck_resnet.6} parent=5 // pred_region
      %s117 = ssub.s32 %s9, 1
      // Predicated region
      $region13: #{bottleneck_resnet.6} parent=11 // pred_check
        %p118 = pneg %p56
      $region14: #{bottleneck_resnet.6} parent=11 // pred_check_branch
        %120 = sbr.rel (%p118) target = $region16
      $region15: #{bottleneck_resnet.6} parent=11 // pred_region
        _
      $region16: #{bottleneck_resnet.6} parent=11 // pred_fallthru
        _
      // Predicated region
      $region17: #{bottleneck_resnet.6} parent=11 // pred_check
        %p121 = pneg %p77
      $region18: #{bottleneck_resnet.6} parent=11 // pred_check_branch
        %123 = sbr.rel (%p121) target = $region20
      $region19: #{bottleneck_resnet.6} parent=11 // pred_region
        _
      $region20: #{bottleneck_resnet.6} parent=11 // pred_fallthru
        _
    $region12: #{bottleneck_resnet.6} parent=5 // pred_fallthru
      _
    %p124 = scmp.lt.s32.totalorder %s9, 2
    // Predicated region
    $region21: #{bottleneck_resnet.6} parent=5 // pred_check
      %p125 = pneg %p124
    $region22: #{bottleneck_resnet.6} parent=5 // pred_check_branch
      %127 = sbr.rel (%p125) target = $region24
    $region23: #{bottleneck_resnet.6} parent=5 // pred_region
      // Predicated region
      $region25: #{bottleneck_resnet.6} parent=23 // pred_check
        %p128 = pneg %p29
      $region26: #{bottleneck_resnet.6} parent=23 // pred_check_branch
        %130 = sbr.rel (%p128) target = $region28
      $region27: #{bottleneck_resnet.6} parent=23 // pred_region
        %p131 = scmp.lt.s32.totalorder %s9, 1
        %s132 = scalar_select %p131, %s9, 1
        %s133 = smul.addr %s132, 72
        %s134 = smul.addr %s133, 4
        %s135 = scalar_lea.vmem %s0, %s134
      $region28: #{bottleneck_resnet.6} parent=23 // pred_fallthru
        _
    $region24: #{bottleneck_resnet.6} parent=5 // pred_fallthru
      _
    %p136 = scmp.le.s32.totalorder 1, %s9
    %p137 = scmp.lt.s32.totalorder %s9, 3
    %p138 = pnand %p136, %p137
    %p139 = pneg %p138
    // Predicated region
    $region29: #{bottleneck_resnet.6} parent=5 // pred_check
      _
    $region30: #{bottleneck_resnet.6} parent=5 // pred_check_branch
      %141 = sbr.rel (%p138) target = $region32
    $region31: #{bottleneck_resnet.6} parent=5 // pred_region
      %s142 = ssub.s32 %s9, 1
      %p143 = scmp.lt.s32.totalorder %s14, 1
      %s144 = scalar_select %p143, %s14, 1
      %s145 = smul.addr %s144, 72
      %s146 = smul.addr %s145, 4
      %s147 = scalar_lea.vmem %s0, %s146
      %p148 = pneg %p35
      %p149 = pneg %p32
      %p150 = pneg %p56
      %p151 = pneg %p53
      %p152 = pneg %p77
      %p153 = pneg %p74
      %p154 = pneg %p103
      %p155 = pneg %p100
      %p156 = scmp.lt.s32.totalorder %s14, 1
      %s157 = scalar_select %p156, %s14, 1
      %s158 = smul.addr %s157, 8
      %s159 = smul.addr %s158, 4
      %s160 = scalar_lea.vmem %s3, %s159
      %p161 = scmp.lt.s32.totalorder %s14, 1
      %s162 = scalar_select %p161, %s14, 1
      %s163 = smul.addr %s162, 72
      %s164 = smul.addr %s163, 4
      %s165 = scalar_lea.vmem %s0, %s164
      %p166 = scmp.lt.s32.totalorder %s14, 1
      %s167 = scalar_select %p166, %s14, 1
      %s168 = smul.addr %s167, 8
      %s169 = smul.addr %s168, 4
      %s170 = scalar_lea.vmem %s3, %s169
      %v171 = vld [vmem:[%s165] sm:$0xff]
      %v172 = vld [vmem:[%s165 + $0x8] sm:$0xff]
      %v173 = vld [vmem:[%s165 + $0x10] sm:$0xff]
      %v174 = vld [vmem:[%s165 + $0x18] sm:$0xff]
      %v175 = vld [vmem:[%s165 + $0x20] sm:$0xf]
      %v176 = vld [vmem:[%s165 + $0x24] sm:$0xff]
      %v177 = vld [vmem:[%s165 + $0x2c] sm:$0xff]
      %v178 = vld [vmem:[%s165 + $0x34] sm:$0xff]
      %v179 = vld [vmem:[%s165 + $0x3c] sm:$0xff]
      %v180 = vld [vmem:[%s165 + $0x44] sm:$0xf]
      %v181 = vld [vmem:[%s165 + $0x48] sm:$0xff]
      %v182 = vld [vmem:[%s165 + $0x50] sm:$0xff]
      %v183 = vld [vmem:[%s165 + $0x58] sm:$0xff]
      %v184 = vld [vmem:[%s165 + $0x60] sm:$0xff]
      %v185 = vld [vmem:[%s165 + $0x68] sm:$0xf]
      %v186 = vld [vmem:[%s165 + $0x6c] sm:$0xff]
      %v187 = vld [vmem:[%s165 + $0x74] sm:$0xff]
      %v188 = vld [vmem:[%s165 + $0x7c] sm:$0xff]
      %v189 = vld [vmem:[%s165 + $0x84] sm:$0xff]
      %v190 = vld [vmem:[%s165 + $0x8c] sm:$0xf]
      %v191 = vld [vmem:[%s165 + $0x90] sm:$0xff]
      %v192 = vld [vmem:[%s165 + $0x98] sm:$0xff]
      %v193 = vld [vmem:[%s165 + $0xa0] sm:$0xff]
      %v194 = vld [vmem:[%s165 + $0xa8] sm:$0xff]
      %v195 = vld [vmem:[%s165 + $0xb0] sm:$0xf]
      %v196 = vld [vmem:[%s165 + $0xb4] sm:$0xff]
      %v197 = vld [vmem:[%s165 + $0xbc] sm:$0xff]
      %v198 = vld [vmem:[%s165 + $0xc4] sm:$0xff]
      %v199 = vld [vmem:[%s165 + $0xcc] sm:$0xff]
      %v200 = vld [vmem:[%s165 + $0xd4] sm:$0xf]
      %v201 = vld [vmem:[%s165 + $0xd8] sm:$0xff]
      %v202 = vld [vmem:[%s165 + $0xe0] sm:$0xff]
      %v203 = vld [vmem:[%s165 + $0xe8] sm:$0xff]
      %v204 = vld [vmem:[%s165 + $0xf0] sm:$0xff]
      %v205 = vld [vmem:[%s165 + $0xf8] sm:$0xf]
      %v206 = vld [vmem:[%s165 + $0xfc] sm:$0xff]
      %v207 = vld [vmem:[%s165 + $0x104] sm:$0xff]
      %v208 = vld [vmem:[%s165 + $0x10c] sm:$0xff]
      %v209 = vld [vmem:[%s165 + $0x114] sm:$0xff]
      %v210 = vld [vmem:[%s165 + $0x11c] sm:$0xf]
      %v211 = vld [vmem:[%s1] sm:$0xf]
      %v212 = vld [vmem:[%s1 + $0x4] sm:$0xf]
      %v213 = vld [vmem:[%s1 + $0x8] sm:$0xf]
      %v214 = vld [vmem:[%s1 + $0xc] sm:$0xf]
      %v215 = vld [vmem:[%s1 + $0x10] sm:$0xf]
      %v216 = vld [vmem:[%s1 + $0x14] sm:$0xf]
      %v217 = vld [vmem:[%s1 + $0x18] sm:$0xf]
      %v218 = vld [vmem:[%s1 + $0x1c] sm:$0xf]
      %v219 = vld [vmem:[%s1 + $0x20] sm:$0xf]
      %v220 = vld [vmem:[%s1 + $0x24] sm:$0xf]
      %v221 = vld [vmem:[%s1 + $0x28] sm:$0xf]
      %v222 = vld [vmem:[%s1 + $0x2c] sm:$0xf]
      %v223 = vld [vmem:[%s1 + $0x30] sm:$0xf]
      %v224 = vld [vmem:[%s1 + $0x34] sm:$0xf]
      %v225 = vld [vmem:[%s1 + $0x38] sm:$0xf]
      %v226 = vld [vmem:[%s1 + $0x3c] sm:$0xf]
      %v227 = vld [vmem:[%s1 + $0x40] sm:$0xf]
      %v228 = vld [vmem:[%s1 + $0x44] sm:$0xf]
      %v229 = vld [vmem:[%s1 + $0x48] sm:$0xf]
      %v230 = vld [vmem:[%s1 + $0x4c] sm:$0xf]
      %v231 = vld [vmem:[%s1 + $0x50] sm:$0xf]
      %v232 = vld [vmem:[%s1 + $0x54] sm:$0xf]
      %v233 = vld [vmem:[%s1 + $0x58] sm:$0xf]
      %v234 = vld [vmem:[%s1 + $0x5c] sm:$0xf]
      %v235 = vld [vmem:[%s1 + $0x60] sm:$0xf]
      %v236 = vld [vmem:[%s1 + $0x64] sm:$0xf]
      %v237 = vld [vmem:[%s1 + $0x68] sm:$0xf]
      %v238 = vld [vmem:[%s1 + $0x6c] sm:$0xf]
      %v239 = vld [vmem:[%s1 + $0x70] sm:$0xf]
      %v240 = vld [vmem:[%s1 + $0x74] sm:$0xf]
      %v241 = vld [vmem:[%s1 + $0x78] sm:$0xf]
      %v242 = vld [vmem:[%s1 + $0x7c] sm:$0xf]
      %v243 = vld [vmem:[%s1 + $0x80] sm:$0xf]
      %v244 = vld [vmem:[%s1 + $0x84] sm:$0xf]
      %v245 = vld [vmem:[%s1 + $0x88] sm:$0xf]
      %v246 = vld [vmem:[%s1 + $0x8c] sm:$0xf]
      %v247 = vld [vmem:[%s1 + $0x90] sm:$0xf]
      %v248 = vld [vmem:[%s1 + $0x94] sm:$0xf]
      %v249 = vld [vmem:[%s1 + $0x98] sm:$0xf]
      %v250 = vld [vmem:[%s1 + $0x9c] sm:$0xf]
      %v251 = vld [vmem:[%s1 + $0xa0] sm:$0xf]
      %v252 = vld [vmem:[%s1 + $0xa4] sm:$0xf]
      %v253 = vld [vmem:[%s1 + $0xa8] sm:$0xf]
      %v254 = vld [vmem:[%s1 + $0xac] sm:$0xf]
      %v255 = vld [vmem:[%s1 + $0xb0] sm:$0xf]
      %v256 = vld [vmem:[%s1 + $0xb4] sm:$0xf]
      %v257 = vld [vmem:[%s1 + $0xb8] sm:$0xf]
      %v258 = vld [vmem:[%s1 + $0xbc] sm:$0xf]
      %v259 = vld [vmem:[%s1 + $0xc0] sm:$0xf]
      %v260 = vld [vmem:[%s1 + $0xc4] sm:$0xf]
      %v261 = vld [vmem:[%s1 + $0xc8] sm:$0xf]
      %v262 = vld [vmem:[%s1 + $0xcc] sm:$0xf]
      %v263 = vld [vmem:[%s1 + $0xd0] sm:$0xf]
      %v264 = vld [vmem:[%s1 + $0xd4] sm:$0xf]
      %v265 = vld [vmem:[%s1 + $0xd8] sm:$0xf]
      %v266 = vld [vmem:[%s1 + $0xdc] sm:$0xf]
      %v267 = vld [vmem:[%s1 + $0xe0] sm:$0xf]
      %v268 = vld [vmem:[%s1 + $0xe4] sm:$0xf]
      %v269 = vld [vmem:[%s1 + $0xe8] sm:$0xf]
      %v270 = vld [vmem:[%s1 + $0xec] sm:$0xf]
      %v271 = vld [vmem:[%s1 + $0xf0] sm:$0xf]
      %v272 = vld [vmem:[%s1 + $0xf4] sm:$0xf]
      %v273 = vld [vmem:[%s1 + $0xf8] sm:$0xf]
      %v274 = vld [vmem:[%s1 + $0xfc] sm:$0xf]
      %v275 = vld [vmem:[%s1 + $0x100] sm:$0xf]
      %v276 = vld [vmem:[%s1 + $0x104] sm:$0xf]
      %v277 = vld [vmem:[%s1 + $0x108] sm:$0xf]
      %v278 = vld [vmem:[%s1 + $0x10c] sm:$0xf]
      %v279 = vld [vmem:[%s1 + $0x110] sm:$0xf]
      %v280 = vld [vmem:[%s1 + $0x114] sm:$0xf]
      %v281 = vld [vmem:[%s1 + $0x118] sm:$0xf]
      %v282 = vld [vmem:[%s1 + $0x11c] sm:$0xf]
      %v283 = vld [vmem:[%s1 + $0x120] sm:$0xf]
      %v284 = vld [vmem:[%s1 + $0x124] sm:$0xf]
      %v285 = vld [vmem:[%s1 + $0x128] sm:$0xf]
      %v286 = vld [vmem:[%s1 + $0x12c] sm:$0xf]
      %v287 = vld [vmem:[%s1 + $0x130] sm:$0xf]
      %v288 = vld [vmem:[%s1 + $0x134] sm:$0xf]
      %v289 = vld [vmem:[%s1 + $0x138] sm:$0xf]
      %v290 = vld [vmem:[%s1 + $0x13c] sm:$0xf]
      %v291 = vld [vmem:[%s1 + $0x140] sm:$0xf]
      %v292 = vld [vmem:[%s1 + $0x144] sm:$0xf]
      %v293 = vld [vmem:[%s1 + $0x148] sm:$0xf]
      %v294 = vld [vmem:[%s1 + $0x14c] sm:$0xf]
      %v295 = vld [vmem:[%s1 + $0x150] sm:$0xf]
      %v296 = vld [vmem:[%s1 + $0x154] sm:$0xf]
      %v297 = vld [vmem:[%s1 + $0x158] sm:$0xf]
      %v298 = vld [vmem:[%s1 + $0x15c] sm:$0xf]
      %v299 = vld [vmem:[%s1 + $0x160] sm:$0xf]
      %v300 = vld [vmem:[%s1 + $0x164] sm:$0xf]
      %v301 = vld [vmem:[%s1 + $0x168] sm:$0xf]
      %v302 = vld [vmem:[%s1 + $0x16c] sm:$0xf]
      %v303 = vld [vmem:[%s1 + $0x170] sm:$0xf]
      %v304 = vld [vmem:[%s1 + $0x174] sm:$0xf]
      %v305 = vld [vmem:[%s1 + $0x178] sm:$0xf]
      %v306 = vld [vmem:[%s1 + $0x17c] sm:$0xf]
      %v307 = vld [vmem:[%s1 + $0x180] sm:$0xf]
      %v308 = vld [vmem:[%s1 + $0x184] sm:$0xf]
      %v309 = vld [vmem:[%s1 + $0x188] sm:$0xf]
      %v310 = vld [vmem:[%s1 + $0x18c] sm:$0xf]
      %v311 = vld [vmem:[%s1 + $0x190] sm:$0xf]
      %v312 = vld [vmem:[%s1 + $0x194] sm:$0xf]
      %v313 = vld [vmem:[%s1 + $0x198] sm:$0xf]
      %v314 = vld [vmem:[%s1 + $0x19c] sm:$0xf]
      %v315 = vld [vmem:[%s1 + $0x1a0] sm:$0xf]
      %v316 = vld [vmem:[%s1 + $0x1a4] sm:$0xf]
      %v317 = vld [vmem:[%s1 + $0x1a8] sm:$0xf]
      %v318 = vld [vmem:[%s1 + $0x1ac] sm:$0xf]
      %v319 = vld [vmem:[%s1 + $0x1b0] sm:$0xf]
      %v320 = vld [vmem:[%s1 + $0x1b4] sm:$0xf]
      %v321 = vld [vmem:[%s1 + $0x1b8] sm:$0xf]
      %v322 = vld [vmem:[%s1 + $0x1bc] sm:$0xf]
      %v323 = vld [vmem:[%s1 + $0x1c0] sm:$0xf]
      %v324 = vld [vmem:[%s1 + $0x1c4] sm:$0xf]
      %v325 = vld [vmem:[%s1 + $0x1c8] sm:$0xf]
      %v326 = vld [vmem:[%s1 + $0x1cc] sm:$0xf]
      %v327 = vld [vmem:[%s1 + $0x1d0] sm:$0xf]
      %v328 = vld [vmem:[%s1 + $0x1d4] sm:$0xf]
      %v329 = vld [vmem:[%s1 + $0x1d8] sm:$0xf]
      %v330 = vld [vmem:[%s1 + $0x1dc] sm:$0xf]
      %v331 = vld [vmem:[%s1 + $0x1e0] sm:$0xf]
      %v332 = vld [vmem:[%s1 + $0x1e4] sm:$0xf]
      %v333 = vld [vmem:[%s1 + $0x1e8] sm:$0xf]
      %v334 = vld [vmem:[%s1 + $0x1ec] sm:$0xf]
      %v335 = vld [vmem:[%s1 + $0x1f0] sm:$0xf]
      %v336 = vld [vmem:[%s1 + $0x1f4] sm:$0xf]
      %v337 = vld [vmem:[%s1 + $0x1f8] sm:$0xf]
      %v338 = vld [vmem:[%s1 + $0x1fc] sm:$0xf]
      %v339 = vld [vmem:[%s1 + $0x200] sm:$0xf]
      %v340 = vld [vmem:[%s1 + $0x204] sm:$0xf]
      %v341 = vld [vmem:[%s1 + $0x208] sm:$0xf]
      %v342 = vld [vmem:[%s1 + $0x20c] sm:$0xf]
      %v343 = vld [vmem:[%s1 + $0x210] sm:$0xf]
      %v344 = vld [vmem:[%s1 + $0x214] sm:$0xf]
      %v345 = vld [vmem:[%s1 + $0x218] sm:$0xf]
      %v346 = vld [vmem:[%s1 + $0x21c] sm:$0xf]
      %v347 = vld [vmem:[%s1 + $0x220] sm:$0xf]
      %v348 = vld [vmem:[%s1 + $0x224] sm:$0xf]
      %v349 = vld [vmem:[%s1 + $0x228] sm:$0xf]
      %v350 = vld [vmem:[%s1 + $0x22c] sm:$0xf]
      %v351 = vld [vmem:[%s1 + $0x230] sm:$0xf]
      %v352 = vld [vmem:[%s1 + $0x234] sm:$0xf]
      %v353 = vld [vmem:[%s1 + $0x238] sm:$0xf]
      %v354 = vld [vmem:[%s1 + $0x23c] sm:$0xf]
      %v355 = vld [vmem:[%s2] sm:$0x1]
      %v357 = vperm.slane %v355, 0
      %v399 = vunpack.c.l.b16 %v171
      %v400 = vunpack.c.h.b16 %v171
      %v401 = vunpack.c.l.b16 %v172
      %v402 = vunpack.c.h.b16 %v172
      %v403 = vunpack.c.l.b16 %v173
      %v404 = vunpack.c.h.b16 %v173
      %v405 = vunpack.c.l.b16 %v174
      %v406 = vunpack.c.h.b16 %v174
      %v407 = vunpack.c.l.b16 %v175
      %v408 = vunpack.c.l.b16 %v176
      %v409 = vunpack.c.h.b16 %v176
      %v410 = vunpack.c.l.b16 %v177
      %v411 = vunpack.c.h.b16 %v177
      %v412 = vunpack.c.l.b16 %v178
      %v413 = vunpack.c.h.b16 %v178
      %v414 = vunpack.c.l.b16 %v179
      %v415 = vunpack.c.h.b16 %v179
      %v416 = vunpack.c.l.b16 %v180
      %v417 = vunpack.c.l.b16 %v181
      %v418 = vunpack.c.h.b16 %v181
      %v419 = vunpack.c.l.b16 %v182
      %v420 = vunpack.c.h.b16 %v182
      %v421 = vunpack.c.l.b16 %v183
      %v422 = vunpack.c.h.b16 %v183
      %v423 = vunpack.c.l.b16 %v184
      %v424 = vunpack.c.h.b16 %v184
      %v425 = vunpack.c.l.b16 %v185
      %v426 = vunpack.c.l.b16 %v186
      %v427 = vunpack.c.h.b16 %v186
      %v428 = vunpack.c.l.b16 %v187
      %v429 = vunpack.c.h.b16 %v187
      %v430 = vunpack.c.l.b16 %v188
      %v431 = vunpack.c.h.b16 %v188
      %v432 = vunpack.c.l.b16 %v189
      %v433 = vunpack.c.h.b16 %v189
      %v434 = vunpack.c.l.b16 %v190
      %v435 = vunpack.c.l.b16 %v191
      %v436 = vunpack.c.h.b16 %v191
      %v437 = vunpack.c.l.b16 %v192
      %v438 = vunpack.c.h.b16 %v192
      %v439 = vunpack.c.l.b16 %v193
      %v440 = vunpack.c.h.b16 %v193
      %v441 = vunpack.c.l.b16 %v194
      %v442 = vunpack.c.h.b16 %v194
      %v443 = vunpack.c.l.b16 %v195
      %v444 = vunpack.c.l.b16 %v196
      %v445 = vunpack.c.h.b16 %v196
      %v446 = vunpack.c.l.b16 %v197
      %v447 = vunpack.c.h.b16 %v197
      %v448 = vunpack.c.l.b16 %v198
      %v449 = vunpack.c.h.b16 %v198
      %v450 = vunpack.c.l.b16 %v199
      %v451 = vunpack.c.h.b16 %v199
      %v452 = vunpack.c.l.b16 %v200
      %v453 = vunpack.c.l.b16 %v201
      %v454 = vunpack.c.h.b16 %v201
      %v455 = vunpack.c.l.b16 %v202
      %v456 = vunpack.c.h.b16 %v202
      %v457 = vunpack.c.l.b16 %v203
      %v458 = vunpack.c.h.b16 %v203
      %v459 = vunpack.c.l.b16 %v204
      %v460 = vunpack.c.h.b16 %v204
      %v461 = vunpack.c.l.b16 %v205
      %v462 = vunpack.c.l.b16 %v206
      %v463 = vunpack.c.h.b16 %v206
      %v464 = vunpack.c.l.b16 %v207
      %v465 = vunpack.c.h.b16 %v207
      %v466 = vunpack.c.l.b16 %v208
      %v467 = vunpack.c.h.b16 %v208
      %v468 = vunpack.c.l.b16 %v209
      %v469 = vunpack.c.h.b16 %v209
      %v470 = vunpack.c.l.b16 %v210
      %v471 = vpack.c.b16 %v408, %v399
      %v472 = vpack.c.b16 %v409, %v400
      %v473 = vpack.c.b16 %v410, %v401
      %v474 = vpack.c.b16 %v411, %v402
      %v475 = vpack.c.b16 %v412, %v403
      %v476 = vpack.c.b16 %v413, %v404
      %v477 = vpack.c.b16 %v414, %v405
      %v478 = vpack.c.b16 %v415, %v406
      %v479 = vpack.c.b16 %v416, %v407
      %v480 = vpack.c.b16 %v426, %v417
      %v481 = vpack.c.b16 %v427, %v418
      %v482 = vpack.c.b16 %v428, %v419
      %v483 = vpack.c.b16 %v429, %v420
      %v484 = vpack.c.b16 %v430, %v421
      %v485 = vpack.c.b16 %v431, %v422
      %v486 = vpack.c.b16 %v432, %v423
      %v487 = vpack.c.b16 %v433, %v424
      %v488 = vpack.c.b16 %v434, %v425
      %v489 = vpack.c.b16 %v444, %v435
      %v490 = vpack.c.b16 %v445, %v436
      %v491 = vpack.c.b16 %v446, %v437
      %v492 = vpack.c.b16 %v447, %v438
      %v493 = vpack.c.b16 %v448, %v439
      %v494 = vpack.c.b16 %v449, %v440
      %v495 = vpack.c.b16 %v450, %v441
      %v496 = vpack.c.b16 %v451, %v442
      %v497 = vpack.c.b16 %v452, %v443
      %v498 = vpack.c.b16 %v462, %v453
      %v499 = vpack.c.b16 %v463, %v454
      %v500 = vpack.c.b16 %v464, %v455
      %v501 = vpack.c.b16 %v465, %v456
      %v502 = vpack.c.b16 %v466, %v457
      %v503 = vpack.c.b16 %v467, %v458
      %v504 = vpack.c.b16 %v468, %v459
      %v505 = vpack.c.b16 %v469, %v460
      %v506 = vpack.c.b16 %v470, %v461
      %v687 = vunpack.c.l.b16 %v211
      %v688 = vunpack.c.l.b16 %v212
      %v689 = vunpack.c.l.b16 %v213
      %v690 = vunpack.c.l.b16 %v214
      %v691 = vunpack.c.l.b16 %v215
      %v692 = vunpack.c.l.b16 %v216
      %v693 = vunpack.c.l.b16 %v217
      %v694 = vunpack.c.l.b16 %v218
      %v695 = vunpack.c.l.b16 %v219
      %v696 = vunpack.c.l.b16 %v220
      %v697 = vunpack.c.l.b16 %v221
      %v698 = vunpack.c.l.b16 %v222
      %v699 = vunpack.c.l.b16 %v223
      %v700 = vunpack.c.l.b16 %v224
      %v701 = vunpack.c.l.b16 %v225
      %v702 = vunpack.c.l.b16 %v226
      %v703 = vunpack.c.l.b16 %v227
      %v704 = vunpack.c.l.b16 %v228
      %v705 = vunpack.c.l.b16 %v229
      %v706 = vunpack.c.l.b16 %v230
      %v707 = vunpack.c.l.b16 %v231
      %v708 = vunpack.c.l.b16 %v232
      %v709 = vunpack.c.l.b16 %v233
      %v710 = vunpack.c.l.b16 %v234
      %v711 = vunpack.c.l.b16 %v235
      %v712 = vunpack.c.l.b16 %v236
      %v713 = vunpack.c.l.b16 %v237
      %v714 = vunpack.c.l.b16 %v238
      %v715 = vunpack.c.l.b16 %v239
      %v716 = vunpack.c.l.b16 %v240
      %v717 = vunpack.c.l.b16 %v241
      %v718 = vunpack.c.l.b16 %v242
      %v719 = vunpack.c.l.b16 %v243
      %v720 = vunpack.c.l.b16 %v244
      %v721 = vunpack.c.l.b16 %v245
      %v722 = vunpack.c.l.b16 %v246
      %v723 = vunpack.c.l.b16 %v247
      %v724 = vunpack.c.l.b16 %v248
      %v725 = vunpack.c.l.b16 %v249
      %v726 = vunpack.c.l.b16 %v250
      %v727 = vunpack.c.l.b16 %v251
      %v728 = vunpack.c.l.b16 %v252
      %v729 = vunpack.c.l.b16 %v253
      %v730 = vunpack.c.l.b16 %v254
      %v731 = vunpack.c.l.b16 %v255
      %v732 = vunpack.c.l.b16 %v256
      %v733 = vunpack.c.l.b16 %v257
      %v734 = vunpack.c.l.b16 %v258
      %v735 = vunpack.c.l.b16 %v259
      %v736 = vunpack.c.l.b16 %v260
      %v737 = vunpack.c.l.b16 %v261
      %v738 = vunpack.c.l.b16 %v262
      %v739 = vunpack.c.l.b16 %v263
      %v740 = vunpack.c.l.b16 %v264
      %v741 = vunpack.c.l.b16 %v265
      %v742 = vunpack.c.l.b16 %v266
      %v743 = vunpack.c.l.b16 %v267
      %v744 = vunpack.c.l.b16 %v268
      %v745 = vunpack.c.l.b16 %v269
      %v746 = vunpack.c.l.b16 %v270
      %v747 = vunpack.c.l.b16 %v271
      %v748 = vunpack.c.l.b16 %v272
      %v749 = vunpack.c.l.b16 %v273
      %v750 = vunpack.c.l.b16 %v274
      %v751 = vunpack.c.l.b16 %v275
      %v752 = vunpack.c.l.b16 %v276
      %v753 = vunpack.c.l.b16 %v277
      %v754 = vunpack.c.l.b16 %v278
      %v755 = vunpack.c.l.b16 %v279
      %v756 = vunpack.c.l.b16 %v280
      %v757 = vunpack.c.l.b16 %v281
      %v758 = vunpack.c.l.b16 %v282
      %v759 = vunpack.c.l.b16 %v283
      %v760 = vunpack.c.l.b16 %v284
      %v761 = vunpack.c.l.b16 %v285
      %v762 = vunpack.c.l.b16 %v286
      %v763 = vunpack.c.l.b16 %v287
      %v764 = vunpack.c.l.b16 %v288
      %v765 = vunpack.c.l.b16 %v289
      %v766 = vunpack.c.l.b16 %v290
      %v767 = vunpack.c.l.b16 %v291
      %v768 = vunpack.c.l.b16 %v292
      %v769 = vunpack.c.l.b16 %v293
      %v770 = vunpack.c.l.b16 %v294
      %v771 = vunpack.c.l.b16 %v295
      %v772 = vunpack.c.l.b16 %v296
      %v773 = vunpack.c.l.b16 %v297
      %v774 = vunpack.c.l.b16 %v298
      %v775 = vunpack.c.l.b16 %v299
      %v776 = vunpack.c.l.b16 %v300
      %v777 = vunpack.c.l.b16 %v301
      %v778 = vunpack.c.l.b16 %v302
      %v779 = vunpack.c.l.b16 %v303
      %v780 = vunpack.c.l.b16 %v304
      %v781 = vunpack.c.l.b16 %v305
      %v782 = vunpack.c.l.b16 %v306
      %v783 = vunpack.c.l.b16 %v307
      %v784 = vunpack.c.l.b16 %v308
      %v785 = vunpack.c.l.b16 %v309
      %v786 = vunpack.c.l.b16 %v310
      %v787 = vunpack.c.l.b16 %v311
      %v788 = vunpack.c.l.b16 %v312
      %v789 = vunpack.c.l.b16 %v313
      %v790 = vunpack.c.l.b16 %v314
      %v791 = vunpack.c.l.b16 %v315
      %v792 = vunpack.c.l.b16 %v316
      %v793 = vunpack.c.l.b16 %v317
      %v794 = vunpack.c.l.b16 %v318
      %v795 = vunpack.c.l.b16 %v319
      %v796 = vunpack.c.l.b16 %v320
      %v797 = vunpack.c.l.b16 %v321
      %v798 = vunpack.c.l.b16 %v322
      %v799 = vunpack.c.l.b16 %v323
      %v800 = vunpack.c.l.b16 %v324
      %v801 = vunpack.c.l.b16 %v325
      %v802 = vunpack.c.l.b16 %v326
      %v803 = vunpack.c.l.b16 %v327
      %v804 = vunpack.c.l.b16 %v328
      %v805 = vunpack.c.l.b16 %v329
      %v806 = vunpack.c.l.b16 %v330
      %v807 = vunpack.c.l.b16 %v331
      %v808 = vunpack.c.l.b16 %v332
      %v809 = vunpack.c.l.b16 %v333
      %v810 = vunpack.c.l.b16 %v334
      %v811 = vunpack.c.l.b16 %v335
      %v812 = vunpack.c.l.b16 %v336
      %v813 = vunpack.c.l.b16 %v337
      %v814 = vunpack.c.l.b16 %v338
      %v815 = vunpack.c.l.b16 %v339
      %v816 = vunpack.c.l.b16 %v340
      %v817 = vunpack.c.l.b16 %v341
      %v818 = vunpack.c.l.b16 %v342
      %v819 = vunpack.c.l.b16 %v343
      %v820 = vunpack.c.l.b16 %v344
      %v821 = vunpack.c.l.b16 %v345
      %v822 = vunpack.c.l.b16 %v346
      %v823 = vunpack.c.l.b16 %v347
      %v824 = vunpack.c.l.b16 %v348
      %v825 = vunpack.c.l.b16 %v349
      %v826 = vunpack.c.l.b16 %v350
      %v827 = vunpack.c.l.b16 %v351
      %v828 = vunpack.c.l.b16 %v352
      %v829 = vunpack.c.l.b16 %v353
      %v830 = vunpack.c.l.b16 %v354
      %v831 = vpack.c.b16 %v688, %v687
      %v832 = vpack.c.b16 %v690, %v689
      %v833 = vpack.c.b16 %v692, %v691
      %v834 = vpack.c.b16 %v694, %v693
      %v835 = vpack.c.b16 %v696, %v695
      %v836 = vpack.c.b16 %v698, %v697
      %v837 = vpack.c.b16 %v700, %v699
      %v838 = vpack.c.b16 %v702, %v701
      %v839 = vpack.c.b16 %v704, %v703
      %v840 = vpack.c.b16 %v706, %v705
      %v841 = vpack.c.b16 %v708, %v707
      %v842 = vpack.c.b16 %v710, %v709
      %v843 = vpack.c.b16 %v712, %v711
      %v844 = vpack.c.b16 %v714, %v713
      %v845 = vpack.c.b16 %v716, %v715
      %v846 = vpack.c.b16 %v718, %v717
      %v847 = vpack.c.b16 %v720, %v719
      %v848 = vpack.c.b16 %v722, %v721
      %v849 = vpack.c.b16 %v724, %v723
      %v850 = vpack.c.b16 %v726, %v725
      %v851 = vpack.c.b16 %v728, %v727
      %v852 = vpack.c.b16 %v730, %v729
      %v853 = vpack.c.b16 %v732, %v731
      %v854 = vpack.c.b16 %v734, %v733
      %v855 = vpack.c.b16 %v736, %v735
      %v856 = vpack.c.b16 %v738, %v737
      %v857 = vpack.c.b16 %v740, %v739
      %v858 = vpack.c.b16 %v742, %v741
      %v859 = vpack.c.b16 %v744, %v743
      %v860 = vpack.c.b16 %v746, %v745
      %v861 = vpack.c.b16 %v748, %v747
      %v862 = vpack.c.b16 %v750, %v749
      %v863 = vpack.c.b16 %v752, %v751
      %v864 = vpack.c.b16 %v754, %v753
      %v865 = vpack.c.b16 %v756, %v755
      %v866 = vpack.c.b16 %v758, %v757
      %v867 = vpack.c.b16 %v760, %v759
      %v868 = vpack.c.b16 %v762, %v761
      %v869 = vpack.c.b16 %v764, %v763
      %v870 = vpack.c.b16 %v766, %v765
      %v871 = vpack.c.b16 %v768, %v767
      %v872 = vpack.c.b16 %v770, %v769
      %v873 = vpack.c.b16 %v772, %v771
      %v874 = vpack.c.b16 %v774, %v773
      %v875 = vpack.c.b16 %v776, %v775
      %v876 = vpack.c.b16 %v778, %v777
      %v877 = vpack.c.b16 %v780, %v779
      %v878 = vpack.c.b16 %v782, %v781
      %v879 = vpack.c.b16 %v784, %v783
      %v880 = vpack.c.b16 %v786, %v785
      %v881 = vpack.c.b16 %v788, %v787
      %v882 = vpack.c.b16 %v790, %v789
      %v883 = vpack.c.b16 %v792, %v791
      %v884 = vpack.c.b16 %v794, %v793
      %v885 = vpack.c.b16 %v796, %v795
      %v886 = vpack.c.b16 %v798, %v797
      %v887 = vpack.c.b16 %v800, %v799
      %v888 = vpack.c.b16 %v802, %v801
      %v889 = vpack.c.b16 %v804, %v803
      %v890 = vpack.c.b16 %v806, %v805
      %v891 = vpack.c.b16 %v808, %v807
      %v892 = vpack.c.b16 %v810, %v809
      %v893 = vpack.c.b16 %v812, %v811
      %v894 = vpack.c.b16 %v814, %v813
      %v895 = vpack.c.b16 %v816, %v815
      %v896 = vpack.c.b16 %v818, %v817
      %v897 = vpack.c.b16 %v820, %v819
      %v898 = vpack.c.b16 %v822, %v821
      %v899 = vpack.c.b16 %v824, %v823
      %v900 = vpack.c.b16 %v826, %v825
      %v901 = vpack.c.b16 %v828, %v827
      %v902 = vpack.c.b16 %v830, %v829
      %975 = vmatpush.bf16.msra.mxu0 %v838
      %976 = vmatpush.bf16.msra.mxu0 %v837
      %977 = vmatpush.bf16.msra.mxu0 %v836
      %978 = vmatpush.bf16.msra.mxu0 %v835
      %979 = vmatpush.bf16.msra.mxu0 %v834
      %980 = vmatpush.bf16.msra.mxu0 %v833
      %981 = vmatpush.bf16.msra.mxu0 %v832
      %982 = vmatpush.bf16.msra.mxu0 %v831
      %983 = vmatmul.bf16.gmra.mxu0 %v471
      %v984 = vpop.f32.mrf.mxu0
      %v985 = vadd.f32 %v357, %v984
      %v986 = vpop.f32.mrf.mxu0
      %v987 = vadd.f32 %v357, %v986
      %988 = vmatmul.bf16.gmra.mxu0 %v480
      %v989 = vpop.f32.mrf.mxu0
      %v990 = vadd.f32 %v357, %v989
      %v991 = vpop.f32.mrf.mxu0
      %v992 = vadd.f32 %v357, %v991
      %993 = vmatmul.bf16.gmra.mxu0 %v489
      %v994 = vpop.f32.mrf.mxu0
      %v995 = vadd.f32 %v357, %v994
      %v996 = vpop.f32.mrf.mxu0
      %v997 = vadd.f32 %v357, %v996
      %998 = vmatmul.bf16.gmra.mxu0 %v498
      %v999 = vpop.f32.mrf.mxu0
      %v1000 = vadd.f32 %v357, %v999
      %v1001 = vpop.f32.mrf.mxu0
      %v1002 = vadd.f32 %v357, %v1001
      %1003 = vdwg.mxu0
      %1004 = vmatpush.bf16.msra.mxu0 %v846
      %1005 = vmatpush.bf16.msra.mxu0 %v845
      %1006 = vmatpush.bf16.msra.mxu0 %v844
      %1007 = vmatpush.bf16.msra.mxu0 %v843
      %1008 = vmatpush.bf16.msra.mxu0 %v842
      %1009 = vmatpush.bf16.msra.mxu0 %v841
      %1010 = vmatpush.bf16.msra.mxu0 %v840
      %1011 = vmatpush.bf16.msra.mxu0 %v839
      %1012 = vmatmul.bf16.gmra.mxu0 %v472
      %v1013 = vpop.f32.mrf.mxu0
      %v1014 = vadd.f32 %v985, %v1013
      %v1015 = vpop.f32.mrf.mxu0
      %v1016 = vadd.f32 %v987, %v1015
      %1017 = vmatmul.bf16.gmra.mxu0 %v481
      %v1018 = vpop.f32.mrf.mxu0
      %v1019 = vadd.f32 %v990, %v1018
      %v1020 = vpop.f32.mrf.mxu0
      %v1021 = vadd.f32 %v992, %v1020
      %1022 = vmatmul.bf16.gmra.mxu0 %v490
      %v1023 = vpop.f32.mrf.mxu0
      %v1024 = vadd.f32 %v995, %v1023
      %v1025 = vpop.f32.mrf.mxu0
      %v1026 = vadd.f32 %v997, %v1025
      %1027 = vmatmul.bf16.gmra.mxu0 %v499
      %v1028 = vpop.f32.mrf.mxu0
      %v1029 = vadd.f32 %v1000, %v1028
      %v1030 = vpop.f32.mrf.mxu0
      %v1031 = vadd.f32 %v1002, %v1030
      %1032 = vdwg.mxu0
      %1033 = vmatpush.bf16.msra.mxu0 %v854
      %1034 = vmatpush.bf16.msra.mxu0 %v853
      %1035 = vmatpush.bf16.msra.mxu0 %v852
      %1036 = vmatpush.bf16.msra.mxu0 %v851
      %1037 = vmatpush.bf16.msra.mxu0 %v850
      %1038 = vmatpush.bf16.msra.mxu0 %v849
      %1039 = vmatpush.bf16.msra.mxu0 %v848
      %1040 = vmatpush.bf16.msra.mxu0 %v847
      %1041 = vmatmul.bf16.gmra.mxu0 %v473
      %v1042 = vpop.f32.mrf.mxu0
      %v1043 = vadd.f32 %v1014, %v1042
      %v1044 = vpop.f32.mrf.mxu0
      %v1045 = vadd.f32 %v1016, %v1044
      %1046 = vmatmul.bf16.gmra.mxu0 %v482
      %v1047 = vpop.f32.mrf.mxu0
      %v1048 = vadd.f32 %v1019, %v1047
      %v1049 = vpop.f32.mrf.mxu0
      %v1050 = vadd.f32 %v1021, %v1049
      %1051 = vmatmul.bf16.gmra.mxu0 %v491
      %v1052 = vpop.f32.mrf.mxu0
      %v1053 = vadd.f32 %v1024, %v1052
      %v1054 = vpop.f32.mrf.mxu0
      %v1055 = vadd.f32 %v1026, %v1054
      %1056 = vmatmul.bf16.gmra.mxu0 %v500
      %v1057 = vpop.f32.mrf.mxu0
      %v1058 = vadd.f32 %v1029, %v1057
      %v1059 = vpop.f32.mrf.mxu0
      %v1060 = vadd.f32 %v1031, %v1059
      %1061 = vdwg.mxu0
      %1062 = vmatpush.bf16.msra.mxu0 %v862
      %1063 = vmatpush.bf16.msra.mxu0 %v861
      %1064 = vmatpush.bf16.msra.mxu0 %v860
      %1065 = vmatpush.bf16.msra.mxu0 %v859
      %1066 = vmatpush.bf16.msra.mxu0 %v858
      %1067 = vmatpush.bf16.msra.mxu0 %v857
      %1068 = vmatpush.bf16.msra.mxu0 %v856
      %1069 = vmatpush.bf16.msra.mxu0 %v855
      %1070 = vmatmul.bf16.gmra.mxu0 %v474
      %v1071 = vpop.f32.mrf.mxu0
      %v1072 = vadd.f32 %v1043, %v1071
      %v1073 = vpop.f32.mrf.mxu0
      %v1074 = vadd.f32 %v1045, %v1073
      %1075 = vmatmul.bf16.gmra.mxu0 %v483
      %v1076 = vpop.f32.mrf.mxu0
      %v1077 = vadd.f32 %v1048, %v1076
      %v1078 = vpop.f32.mrf.mxu0
      %v1079 = vadd.f32 %v1050, %v1078
      %1080 = vmatmul.bf16.gmra.mxu0 %v492
      %v1081 = vpop.f32.mrf.mxu0
      %v1082 = vadd.f32 %v1053, %v1081
      %v1083 = vpop.f32.mrf.mxu0
      %v1084 = vadd.f32 %v1055, %v1083
      %1085 = vmatmul.bf16.gmra.mxu0 %v501
      %v1086 = vpop.f32.mrf.mxu0
      %v1087 = vadd.f32 %v1058, %v1086
      %v1088 = vpop.f32.mrf.mxu0
      %v1089 = vadd.f32 %v1060, %v1088
      %1090 = vdwg.mxu0
      %1091 = vmatpush.bf16.msra.mxu0 %v870
      %1092 = vmatpush.bf16.msra.mxu0 %v869
      %1093 = vmatpush.bf16.msra.mxu0 %v868
      %1094 = vmatpush.bf16.msra.mxu0 %v867
      %1095 = vmatpush.bf16.msra.mxu0 %v866
      %1096 = vmatpush.bf16.msra.mxu0 %v865
      %1097 = vmatpush.bf16.msra.mxu0 %v864
      %1098 = vmatpush.bf16.msra.mxu0 %v863
      %1099 = vmatmul.bf16.gmra.mxu0 %v475
      %v1100 = vpop.f32.mrf.mxu0
      %v1101 = vadd.f32 %v1072, %v1100
      %v1102 = vpop.f32.mrf.mxu0
      %v1103 = vadd.f32 %v1074, %v1102
      %1104 = vmatmul.bf16.gmra.mxu0 %v484
      %v1105 = vpop.f32.mrf.mxu0
      %v1106 = vadd.f32 %v1077, %v1105
      %v1107 = vpop.f32.mrf.mxu0
      %v1108 = vadd.f32 %v1079, %v1107
      %1109 = vmatmul.bf16.gmra.mxu0 %v493
      %v1110 = vpop.f32.mrf.mxu0
      %v1111 = vadd.f32 %v1082, %v1110
      %v1112 = vpop.f32.mrf.mxu0
      %v1113 = vadd.f32 %v1084, %v1112
      %1114 = vmatmul.bf16.gmra.mxu0 %v502
      %v1115 = vpop.f32.mrf.mxu0
      %v1116 = vadd.f32 %v1087, %v1115
      %v1117 = vpop.f32.mrf.mxu0
      %v1118 = vadd.f32 %v1089, %v1117
      %1119 = vdwg.mxu0
      %1120 = vmatpush.bf16.msra.mxu0 %v878
      %1121 = vmatpush.bf16.msra.mxu0 %v877
      %1122 = vmatpush.bf16.msra.mxu0 %v876
      %1123 = vmatpush.bf16.msra.mxu0 %v875
      %1124 = vmatpush.bf16.msra.mxu0 %v874
      %1125 = vmatpush.bf16.msra.mxu0 %v873
      %1126 = vmatpush.bf16.msra.mxu0 %v872
      %1127 = vmatpush.bf16.msra.mxu0 %v871
      %1128 = vmatmul.bf16.gmra.mxu0 %v476
      %v1129 = vpop.f32.mrf.mxu0
      %v1130 = vadd.f32 %v1101, %v1129
      %v1131 = vpop.f32.mrf.mxu0
      %v1132 = vadd.f32 %v1103, %v1131
      %1133 = vmatmul.bf16.gmra.mxu0 %v485
      %v1134 = vpop.f32.mrf.mxu0
      %v1135 = vadd.f32 %v1106, %v1134
      %v1136 = vpop.f32.mrf.mxu0
      %v1137 = vadd.f32 %v1108, %v1136
      %1138 = vmatmul.bf16.gmra.mxu0 %v494
      %v1139 = vpop.f32.mrf.mxu0
      %v1140 = vadd.f32 %v1111, %v1139
      %v1141 = vpop.f32.mrf.mxu0
      %v1142 = vadd.f32 %v1113, %v1141
      %1143 = vmatmul.bf16.gmra.mxu0 %v503
      %v1144 = vpop.f32.mrf.mxu0
      %v1145 = vadd.f32 %v1116, %v1144
      %v1146 = vpop.f32.mrf.mxu0
      %v1147 = vadd.f32 %v1118, %v1146
      %1148 = vdwg.mxu0
      %1149 = vmatpush.bf16.msra.mxu0 %v886
      %1150 = vmatpush.bf16.msra.mxu0 %v885
      %1151 = vmatpush.bf16.msra.mxu0 %v884
      %1152 = vmatpush.bf16.msra.mxu0 %v883
      %1153 = vmatpush.bf16.msra.mxu0 %v882
      %1154 = vmatpush.bf16.msra.mxu0 %v881
      %1155 = vmatpush.bf16.msra.mxu0 %v880
      %1156 = vmatpush.bf16.msra.mxu0 %v879
      %1157 = vmatmul.bf16.gmra.mxu0 %v477
      %v1158 = vpop.f32.mrf.mxu0
      %v1159 = vadd.f32 %v1130, %v1158
      %v1160 = vpop.f32.mrf.mxu0
      %v1161 = vadd.f32 %v1132, %v1160
      %1162 = vmatmul.bf16.gmra.mxu0 %v486
      %v1163 = vpop.f32.mrf.mxu0
      %v1164 = vadd.f32 %v1135, %v1163
      %v1165 = vpop.f32.mrf.mxu0
      %v1166 = vadd.f32 %v1137, %v1165
      %1167 = vmatmul.bf16.gmra.mxu0 %v495
      %v1168 = vpop.f32.mrf.mxu0
      %v1169 = vadd.f32 %v1140, %v1168
      %v1170 = vpop.f32.mrf.mxu0
      %v1171 = vadd.f32 %v1142, %v1170
      %1172 = vmatmul.bf16.gmra.mxu0 %v504
      %v1173 = vpop.f32.mrf.mxu0
      %v1174 = vadd.f32 %v1145, %v1173
      %v1175 = vpop.f32.mrf.mxu0
      %v1176 = vadd.f32 %v1147, %v1175
      %1177 = vdwg.mxu0
      %1178 = vmatpush.bf16.msra.mxu0 %v894
      %1179 = vmatpush.bf16.msra.mxu0 %v893
      %1180 = vmatpush.bf16.msra.mxu0 %v892
      %1181 = vmatpush.bf16.msra.mxu0 %v891
      %1182 = vmatpush.bf16.msra.mxu0 %v890
      %1183 = vmatpush.bf16.msra.mxu0 %v889
      %1184 = vmatpush.bf16.msra.mxu0 %v888
      %1185 = vmatpush.bf16.msra.mxu0 %v887
      %1186 = vmatmul.bf16.gmra.mxu0 %v478
      %v1187 = vpop.f32.mrf.mxu0
      %v1188 = vadd.f32 %v1159, %v1187
      %v1189 = vpop.f32.mrf.mxu0
      %v1190 = vadd.f32 %v1161, %v1189
      %1191 = vmatmul.bf16.gmra.mxu0 %v487
      %v1192 = vpop.f32.mrf.mxu0
      %v1193 = vadd.f32 %v1164, %v1192
      %v1194 = vpop.f32.mrf.mxu0
      %v1195 = vadd.f32 %v1166, %v1194
      %1196 = vmatmul.bf16.gmra.mxu0 %v496
      %v1197 = vpop.f32.mrf.mxu0
      %v1198 = vadd.f32 %v1169, %v1197
      %v1199 = vpop.f32.mrf.mxu0
      %v1200 = vadd.f32 %v1171, %v1199
      %1201 = vmatmul.bf16.gmra.mxu0 %v505
      %v1202 = vpop.f32.mrf.mxu0
      %v1203 = vadd.f32 %v1174, %v1202
      %v1204 = vpop.f32.mrf.mxu0
      %v1205 = vadd.f32 %v1176, %v1204
      %1206 = vdwg.mxu0
      %1207 = vmatpush.bf16.msra.mxu0 %v902
      %1208 = vmatpush.bf16.msra.mxu0 %v901
      %1209 = vmatpush.bf16.msra.mxu0 %v900
      %1210 = vmatpush.bf16.msra.mxu0 %v899
      %1211 = vmatpush.bf16.msra.mxu0 %v898
      %1212 = vmatpush.bf16.msra.mxu0 %v897
      %1213 = vmatpush.bf16.msra.mxu0 %v896
      %1214 = vmatpush.bf16.msra.mxu0 %v895
      %1215 = vmatmul.bf16.gmra.mxu0 %v479
      %v1216 = vpop.f32.mrf.mxu0
      %v1217 = vadd.f32 %v1188, %v1216
      %v1218 = vpop.f32.mrf.mxu0
      %v1219 = vadd.f32 %v1190, %v1218
      %1220 = vmatmul.bf16.gmra.mxu0 %v488
      %v1221 = vpop.f32.mrf.mxu0
      %v1222 = vadd.f32 %v1193, %v1221
      %v1223 = vpop.f32.mrf.mxu0
      %v1224 = vadd.f32 %v1195, %v1223
      %1225 = vmatmul.bf16.gmra.mxu0 %v497
      %v1226 = vpop.f32.mrf.mxu0
      %v1227 = vadd.f32 %v1198, %v1226
      %v1228 = vpop.f32.mrf.mxu0
      %v1229 = vadd.f32 %v1200, %v1228
      %1230 = vmatmul.bf16.gmra.mxu0 %v506
      %v1231 = vpop.f32.mrf.mxu0
      %v1232 = vadd.f32 %v1203, %v1231
      %v1233 = vpop.f32.mrf.mxu0
      %v1234 = vadd.f32 %v1205, %v1233
      %1235 = vdwg.mxu0
      %v1236 = vpack.c.bf16 %v1217, %v1217
      %v1237 = vpack.c.bf16 %v1219, %v1219
      %v1238 = vpack.c.bf16 %v1222, %v1222
      %v1239 = vpack.c.bf16 %v1224, %v1224
      %v1240 = vpack.c.bf16 %v1227, %v1227
      %v1241 = vpack.c.bf16 %v1229, %v1229
      %v1242 = vpack.c.bf16 %v1232, %v1232
      %v1243 = vpack.c.bf16 %v1234, %v1234
      %1244 = vst [vmem:[%s170] sm:$0xf] %v1236
      %1245 = vst [vmem:[%s170 + $0x4] sm:$0xf] %v1237
      %1246 = vst [vmem:[%s170 + $0x8] sm:$0xf] %v1238
      %1247 = vst [vmem:[%s170 + $0xc] sm:$0xf] %v1239
      %1248 = vst [vmem:[%s170 + $0x10] sm:$0xf] %v1240
      %1249 = vst [vmem:[%s170 + $0x14] sm:$0xf] %v1241
      %1250 = vst [vmem:[%s170 + $0x18] sm:$0xf] %v1242
      %1251 = vst [vmem:[%s170 + $0x1c] sm:$0xf] %v1243
      %p1252 = scmp.lt.s32.totalorder %s14, 1
      %s1253 = scalar_select %p1252, %s14, 1
      %s1254 = smul.addr %s1253, 8
      %s1255 = smul.addr %s1254, 4
      %s1256 = scalar_lea.vmem %s3, %s1255
      // Predicated region
      $region33: #{bottleneck_resnet.6} parent=31 // pred_check
        %p1257 = pneg %p100
      $region34: #{bottleneck_resnet.6} parent=31 // pred_check_branch
        %1259 = sbr.rel (%p1257) target = $region36
      $region35: #{bottleneck_resnet.6} parent=31 // pred_region
        _
      $region36: #{bottleneck_resnet.6} parent=31 // pred_fallthru
        _
    $region32: #{bottleneck_resnet.6} parent=5 // pred_fallthru
      _
    %p1260 = scmp.le.s32.totalorder 2, %s9
    // Predicated region
    $region37: #{bottleneck_resnet.6} parent=5 // pred_check
      %p1261 = pneg %p1260
    $region38: #{bottleneck_resnet.6} parent=5 // pred_check_branch
      %1263 = sbr.rel (%p1261) target = $region40
    $region39: #{bottleneck_resnet.6} parent=5 // pred_region
      %s1264 = ssub.s32 %s9, 2
      // Predicated region
      $region41: #{bottleneck_resnet.6} parent=39 // pred_check
        %p1265 = pneg %p106
      $region42: #{bottleneck_resnet.6} parent=39 // pred_check_branch
        %1267 = sbr.rel (%p1265) target = $region44
      $region43: #{bottleneck_resnet.6} parent=39 // pred_region
        %p1268 = scmp.lt.s32.totalorder %s15, 1
        %s1269 = scalar_select %p1268, %s15, 1
        %s1270 = smul.addr %s1269, 8
        %s1271 = smul.addr %s1270, 4
        %s1272 = scalar_lea.vmem %s3, %s1271
      $region44: #{bottleneck_resnet.6} parent=39 // pred_fallthru
        _
    $region40: #{bottleneck_resnet.6} parent=5 // pred_fallthru
      _
  $region6: #{bottleneck_resnet.6} parent=0 // loop_footer
    %s13 = sadd.s32 1, %s9
  $region7: #{bottleneck_resnet.6} parent=0 // loop_footer_branch
    %8 = sbr.rel target = $region3
  $region8: #{bottleneck_resnet.6} parent=0 // loop_exit
    _

// kernel: bottleneck_resnet.8
$region0: #{bottleneck_resnet.8}
  #allocation0 [shape = 'u32[]', space=smem, size = 0x4, offset = 0x4, fixed_abs, tag = 'smem constant byte address 0x4 - core index']
  #allocation1 [shape = 'u32[72,128]{1,0:T(1,128)}', space=vmem, size = 0x9000, scoped, tag = 'internal scratch']
  %s0 = inlined_call_operand.vmem [shape: bf16[2,16,1152], index: 0, kind: input, shape index: {}]
  %s1 = inlined_call_operand.vmem [shape: bf16[1152,128], index: 1, kind: input, shape index: {}]
  %s2 = inlined_call_operand.vmem [shape: f32[1,128], index: 2, kind: input, shape index: {}]
  %s3 = inlined_call_operand.vmem [shape: bf16[2,16,128], index: 3, kind: output, shape index: {}]
  %s4 = sld [smem:[#allocation0]]
  $region45: #{bottleneck_resnet.8} parent=0
    _
  %s6 = ssub.s32 1, %s4
  %s7 = scalar_select 0, %s6, %s4
  loop: start=0, step=1, limit=4
  $region2: #{bottleneck_resnet.8} parent=0 // loop_pre_header
    _
  $region3: #{bottleneck_resnet.8} parent=0 // loop_header
    %s9 = sphi 0, %s13
    %p10 = scmp.ge.s32.totalorder %s9, 4
    %s19 = sphi 0, %s21
    %s22 = sphi 0, %s19
    %s23 = sphi 0, %s22
    %s39 = sphi 0, %s23
    %s43 = sphi 0, %s43
    %s45 = sphi 0, %s43
    %s46 = sphi 0, %s45
    %s60 = sphi 0, %s46
    %s64 = sphi 0, %s64
    %s66 = sphi 0, %s64
    %s67 = sphi 0, %s66
    %s81 = sphi 0, %s67
    %s87 = sphi 0, %s89
    %s90 = sphi 0, %s87
    %s91 = sphi 0, %s90
    %s107 = sphi 0, %s91
  $region4: #{bottleneck_resnet.8} parent=0 // loop_header_branch
    %12 = sbr.rel (%p10) target = $region8
  $region5: #{bottleneck_resnet.8} parent=0 // loop_body
    %s14 = ssub.s32 %s9, 1
    %s15 = ssub.s32 %s9, 2
    %s16 = sadd.s32 %s9, 1
    %s17 = ssub.s32 %s9, %s16
    %p18 = scmp.eq.s32.totalorder %s17, 0
    %s20 = sadd.s32 %s19, 1
    %s21 = scalar_select %p18, %s19, %s20
    %p24 = pneg %p18
    %p25 = scmp.eq.s32.totalorder %s9, 1
    %p26 = por %p24, %p25
    %p27 = scmp.ne.s32.totalorder %s19, %s22
    %p28 = scmp.eq.s32.totalorder %s9, 0
    %p29 = por %p27, %p28
    %p30 = scmp.ne.s32.totalorder %s19, %s22
    %p31 = scmp.eq.s32.totalorder %s14, 1
    %p32 = por %p30, %p31
    %p33 = scmp.ne.s32.totalorder %s22, %s23
    %p34 = scmp.eq.s32.totalorder %s14, 0
    %p35 = por %p33, %p34
    %p36 = scmp.ne.s32.totalorder %s22, %s23
    %p37 = scmp.eq.s32.totalorder %s15, 1
    %p38 = por %p36, %p37
    %p40 = scmp.ne.s32.totalorder %s23, %s39
    %p41 = scmp.eq.s32.totalorder %s15, 0
    %p42 = por %p40, %p41
    %s44 = sadd.s32 %s43, 1
    %p47 = scmp.eq.s32.totalorder %s9, 1
    %p48 = scmp.ne.s32.totalorder %s43, %s45
    %p49 = scmp.eq.s32.totalorder %s9, 0
    %p50 = por %p48, %p49
    %p51 = scmp.ne.s32.totalorder %s43, %s45
    %p52 = scmp.eq.s32.totalorder %s14, 1
    %p53 = por %p51, %p52
    %p54 = scmp.ne.s32.totalorder %s45, %s46
    %p55 = scmp.eq.s32.totalorder %s14, 0
    %p56 = por %p54, %p55
    %p57 = scmp.ne.s32.totalorder %s45, %s46
    %p58 = scmp.eq.s32.totalorder %s15, 1
    %p59 = por %p57, %p58
    %p61 = scmp.ne.s32.totalorder %s46, %s60
    %p62 = scmp.eq.s32.totalorder %s15, 0
    %p63 = por %p61, %p62
    %s65 = sadd.s32 %s64, 1
    %p68 = scmp.eq.s32.totalorder %s9, 1
    %p69 = scmp.ne.s32.totalorder %s64, %s66
    %p70 = scmp.eq.s32.totalorder %s9, 0
    %p71 = por %p69, %p70
    %p72 = scmp.ne.s32.totalorder %s64, %s66
    %p73 = scmp.eq.s32.totalorder %s14, 1
    %p74 = por %p72, %p73
    %p75 = scmp.ne.s32.totalorder %s66, %s67
    %p76 = scmp.eq.s32.totalorder %s14, 0
    %p77 = por %p75, %p76
    %p78 = scmp.ne.s32.totalorder %s66, %s67
    %p79 = scmp.eq.s32.totalorder %s15, 1
    %p80 = por %p78, %p79
    %p82 = scmp.ne.s32.totalorder %s67, %s81
    %p83 = scmp.eq.s32.totalorder %s15, 0
    %p84 = por %p82, %p83
    %s85 = ssub.s32 %s9, %s16
    %p86 = scmp.eq.s32.totalorder %s85, 0
    %s88 = sadd.s32 %s87, 1
    %s89 = scalar_select %p86, %s87, %s88
    %p92 = pneg %p86
    %p93 = scmp.eq.s32.totalorder %s9, 1
    %p94 = por %p92, %p93
    %p95 = scmp.ne.s32.totalorder %s87, %s90
    %p96 = scmp.eq.s32.totalorder %s9, 0
    %p97 = por %p95, %p96
    %p98 = scmp.ne.s32.totalorder %s87, %s90
    %p99 = scmp.eq.s32.totalorder %s14, 1
    %p100 = por %p98, %p99
    %p101 = scmp.ne.s32.totalorder %s90, %s91
    %p102 = scmp.eq.s32.totalorder %s14, 0
    %p103 = por %p101, %p102
    %p104 = scmp.ne.s32.totalorder %s90, %s91
    %p105 = scmp.eq.s32.totalorder %s15, 1
    %p106 = por %p104, %p105
    %p108 = scmp.ne.s32.totalorder %s91, %s107
    %p109 = scmp.eq.s32.totalorder %s15, 0
    %p110 = por %p108, %p109
    %p111 = scmp.le.s32.totalorder 1, %s9
    %p112 = scmp.lt.s32.totalorder %s9, 3
    %p113 = pnand %p111, %p112
    %p114 = pneg %p113
    // Predicated region
    $region9: #{bottleneck_resnet.8} parent=5 // pred_check
      _
    $region10: #{bottleneck_resnet.8} parent=5 // pred_check_branch
      %116 = sbr.rel (%p113) target = $region12
    $region11: #{bottleneck_resnet.8} parent=5 // pred_region
      %s117 = ssub.s32 %s9, 1
      // Predicated region
      $region13: #{bottleneck_resnet.8} parent=11 // pred_check
        %p118 = pneg %p56
      $region14: #{bottleneck_resnet.8} parent=11 // pred_check_branch
        %120 = sbr.rel (%p118) target = $region16
      $region15: #{bottleneck_resnet.8} parent=11 // pred_region
        _
      $region16: #{bottleneck_resnet.8} parent=11 // pred_fallthru
        _
      // Predicated region
      $region17: #{bottleneck_resnet.8} parent=11 // pred_check
        %p121 = pneg %p77
      $region18: #{bottleneck_resnet.8} parent=11 // pred_check_branch
        %123 = sbr.rel (%p121) target = $region20
      $region19: #{bottleneck_resnet.8} parent=11 // pred_region
        _
      $region20: #{bottleneck_resnet.8} parent=11 // pred_fallthru
        _
    $region12: #{bottleneck_resnet.8} parent=5 // pred_fallthru
      _
    %p124 = scmp.lt.s32.totalorder %s9, 2
    // Predicated region
    $region21: #{bottleneck_resnet.8} parent=5 // pred_check
      %p125 = pneg %p124
    $region22: #{bottleneck_resnet.8} parent=5 // pred_check_branch
      %127 = sbr.rel (%p125) target = $region24
    $region23: #{bottleneck_resnet.8} parent=5 // pred_region
      // Predicated region
      $region25: #{bottleneck_resnet.8} parent=23 // pred_check
        %p128 = pneg %p29
      $region26: #{bottleneck_resnet.8} parent=23 // pred_check_branch
        %130 = sbr.rel (%p128) target = $region28
      $region27: #{bottleneck_resnet.8} parent=23 // pred_region
        %p131 = scmp.lt.s32.totalorder %s9, 1
        %s132 = scalar_select %p131, %s9, 1
        %s133 = smul.addr %s132, 18
        %s134 = smul.addr %s133, 4
        %s135 = scalar_lea.vmem %s0, %s134
      $region28: #{bottleneck_resnet.8} parent=23 // pred_fallthru
        _
    $region24: #{bottleneck_resnet.8} parent=5 // pred_fallthru
      _
    %p136 = scmp.le.s32.totalorder 1, %s9
    %p137 = scmp.lt.s32.totalorder %s9, 3
    %p138 = pnand %p136, %p137
    %p139 = pneg %p138
    // Predicated region
    $region29: #{bottleneck_resnet.8} parent=5 // pred_check
      _
    $region30: #{bottleneck_resnet.8} parent=5 // pred_check_branch
      %141 = sbr.rel (%p138) target = $region32
    $region31: #{bottleneck_resnet.8} parent=5 // pred_region
      %s142 = ssub.s32 %s9, 1
      %p143 = scmp.lt.s32.totalorder %s14, 1
      %s144 = scalar_select %p143, %s14, 1
      %s145 = smul.addr %s144, 18
      %s146 = smul.addr %s145, 4
      %s147 = scalar_lea.vmem %s0, %s146
      %p148 = pneg %p35
      %p149 = pneg %p32
      %p150 = pneg %p56
      %p151 = pneg %p53
      %p152 = pneg %p77
      %p153 = pneg %p74
      %p154 = pneg %p103
      %p155 = pneg %p100
      %p156 = scmp.lt.s32.totalorder %s14, 1
      %s157 = scalar_select %p156, %s14, 1
      %s158 = smul.addr %s157, 2
      %s159 = smul.addr %s158, 4
      %s160 = scalar_lea.vmem %s3, %s159
      %p161 = scmp.lt.s32.totalorder %s14, 1
      %s162 = scalar_select %p161, %s14, 1
      %s163 = smul.addr %s162, 18
      %s164 = smul.addr %s163, 4
      %s165 = scalar_lea.vmem %s0, %s164
      %p166 = scmp.lt.s32.totalorder %s14, 1
      %s167 = scalar_select %p166, %s14, 1
      %s168 = smul.addr %s167, 2
      %s169 = smul.addr %s168, 4
      %s170 = scalar_lea.vmem %s3, %s169
      %v171 = vld [vmem:[%s165] sm:$0xff]
      %v172 = vld [vmem:[%s165 + $0x8] sm:$0xff]
      %v173 = vld [vmem:[%s165 + $0x10] sm:$0xff]
      %v174 = vld [vmem:[%s165 + $0x18] sm:$0xff]
      %v175 = vld [vmem:[%s165 + $0x20] sm:$0xf]
      %v176 = vld [vmem:[%s165 + $0x24] sm:$0xff]
      %v177 = vld [vmem:[%s165 + $0x2c] sm:$0xff]
      %v178 = vld [vmem:[%s165 + $0x34] sm:$0xff]
      %v179 = vld [vmem:[%s165 + $0x3c] sm:$0xff]
      %v180 = vld [vmem:[%s165 + $0x44] sm:$0xf]
      %v181 = vld [vmem:[%s1] sm:$0xf]
      %v182 = vld [vmem:[%s1 + $0x4] sm:$0xf]
      %v183 = vld [vmem:[%s1 + $0x8] sm:$0xf]
      %v184 = vld [vmem:[%s1 + $0xc] sm:$0xf]
      %v185 = vld [vmem:[%s1 + $0x10] sm:$0xf]
      %v186 = vld [vmem:[%s1 + $0x14] sm:$0xf]
      %v187 = vld [vmem:[%s1 + $0x18] sm:$0xf]
      %v188 = vld [vmem:[%s1 + $0x1c] sm:$0xf]
      %v189 = vld [vmem:[%s1 + $0x20] sm:$0xf]
      %v190 = vld [vmem:[%s1 + $0x24] sm:$0xf]
      %v191 = vld [vmem:[%s1 + $0x28] sm:$0xf]
      %v192 = vld [vmem:[%s1 + $0x2c] sm:$0xf]
      %v193 = vld [vmem:[%s1 + $0x30] sm:$0xf]
      %v194 = vld [vmem:[%s1 + $0x34] sm:$0xf]
      %v195 = vld [vmem:[%s1 + $0x38] sm:$0xf]
      %v196 = vld [vmem:[%s1 + $0x3c] sm:$0xf]
      %v197 = vld [vmem:[%s1 + $0x40] sm:$0xf]
      %v198 = vld [vmem:[%s1 + $0x44] sm:$0xf]
      %v199 = vld [vmem:[%s1 + $0x48] sm:$0xf]
      %v200 = vld [vmem:[%s1 + $0x4c] sm:$0xf]
      %v201 = vld [vmem:[%s1 + $0x50] sm:$0xf]
      %v202 = vld [vmem:[%s1 + $0x54] sm:$0xf]
      %v203 = vld [vmem:[%s1 + $0x58] sm:$0xf]
      %v204 = vld [vmem:[%s1 + $0x5c] sm:$0xf]
      %v205 = vld [vmem:[%s1 + $0x60] sm:$0xf]
      %v206 = vld [vmem:[%s1 + $0x64] sm:$0xf]
      %v207 = vld [vmem:[%s1 + $0x68] sm:$0xf]
      %v208 = vld [vmem:[%s1 + $0x6c] sm:$0xf]
      %v209 = vld [vmem:[%s1 + $0x70] sm:$0xf]
      %v210 = vld [vmem:[%s1 + $0x74] sm:$0xf]
      %v211 = vld [vmem:[%s1 + $0x78] sm:$0xf]
      %v212 = vld [vmem:[%s1 + $0x7c] sm:$0xf]
      %v213 = vld [vmem:[%s1 + $0x80] sm:$0xf]
      %v214 = vld [vmem:[%s1 + $0x84] sm:$0xf]
      %v215 = vld [vmem:[%s1 + $0x88] sm:$0xf]
      %v216 = vld [vmem:[%s1 + $0x8c] sm:$0xf]
      %v217 = vld [vmem:[%s1 + $0x90] sm:$0xf]
      %v218 = vld [vmem:[%s1 + $0x94] sm:$0xf]
      %v219 = vld [vmem:[%s1 + $0x98] sm:$0xf]
      %v220 = vld [vmem:[%s1 + $0x9c] sm:$0xf]
      %v221 = vld [vmem:[%s1 + $0xa0] sm:$0xf]
      %v222 = vld [vmem:[%s1 + $0xa4] sm:$0xf]
      %v223 = vld [vmem:[%s1 + $0xa8] sm:$0xf]
      %v224 = vld [vmem:[%s1 + $0xac] sm:$0xf]
      %v225 = vld [vmem:[%s1 + $0xb0] sm:$0xf]
      %v226 = vld [vmem:[%s1 + $0xb4] sm:$0xf]
      %v227 = vld [vmem:[%s1 + $0xb8] sm:$0xf]
      %v228 = vld [vmem:[%s1 + $0xbc] sm:$0xf]
      %v229 = vld [vmem:[%s1 + $0xc0] sm:$0xf]
      %v230 = vld [vmem:[%s1 + $0xc4] sm:$0xf]
      %v231 = vld [vmem:[%s1 + $0xc8] sm:$0xf]
      %v232 = vld [vmem:[%s1 + $0xcc] sm:$0xf]
      %v233 = vld [vmem:[%s1 + $0xd0] sm:$0xf]
      %v234 = vld [vmem:[%s1 + $0xd4] sm:$0xf]
      %v235 = vld [vmem:[%s1 + $0xd8] sm:$0xf]
      %v236 = vld [vmem:[%s1 + $0xdc] sm:$0xf]
      %v237 = vld [vmem:[%s1 + $0xe0] sm:$0xf]
      %v238 = vld [vmem:[%s1 + $0xe4] sm:$0xf]
      %v239 = vld [vmem:[%s1 + $0xe8] sm:$0xf]
      %v240 = vld [vmem:[%s1 + $0xec] sm:$0xf]
      %v241 = vld [vmem:[%s1 + $0xf0] sm:$0xf]
      %v242 = vld [vmem:[%s1 + $0xf4] sm:$0xf]
      %v243 = vld [vmem:[%s1 + $0xf8] sm:$0xf]
      %v244 = vld [vmem:[%s1 + $0xfc] sm:$0xf]
      %v245 = vld [vmem:[%s1 + $0x100] sm:$0xf]
      %v246 = vld [vmem:[%s1 + $0x104] sm:$0xf]
      %v247 = vld [vmem:[%s1 + $0x108] sm:$0xf]
      %v248 = vld [vmem:[%s1 + $0x10c] sm:$0xf]
      %v249 = vld [vmem:[%s1 + $0x110] sm:$0xf]
      %v250 = vld [vmem:[%s1 + $0x114] sm:$0xf]
      %v251 = vld [vmem:[%s1 + $0x118] sm:$0xf]
      %v252 = vld [vmem:[%s1 + $0x11c] sm:$0xf]
      %v253 = vld [vmem:[%s1 + $0x120] sm:$0xf]
      %v254 = vld [vmem:[%s1 + $0x124] sm:$0xf]
      %v255 = vld [vmem:[%s1 + $0x128] sm:$0xf]
      %v256 = vld [vmem:[%s1 + $0x12c] sm:$0xf]
      %v257 = vld [vmem:[%s1 + $0x130] sm:$0xf]
      %v258 = vld [vmem:[%s1 + $0x134] sm:$0xf]
      %v259 = vld [vmem:[%s1 + $0x138] sm:$0xf]
      %v260 = vld [vmem:[%s1 + $0x13c] sm:$0xf]
      %v261 = vld [vmem:[%s1 + $0x140] sm:$0xf]
      %v262 = vld [vmem:[%s1 + $0x144] sm:$0xf]
      %v263 = vld [vmem:[%s1 + $0x148] sm:$0xf]
      %v264 = vld [vmem:[%s1 + $0x14c] sm:$0xf]
      %v265 = vld [vmem:[%s1 + $0x150] sm:$0xf]
      %v266 = vld [vmem:[%s1 + $0x154] sm:$0xf]
      %v267 = vld [vmem:[%s1 + $0x158] sm:$0xf]
      %v268 = vld [vmem:[%s1 + $0x15c] sm:$0xf]
      %v269 = vld [vmem:[%s1 + $0x160] sm:$0xf]
      %v270 = vld [vmem:[%s1 + $0x164] sm:$0xf]
      %v271 = vld [vmem:[%s1 + $0x168] sm:$0xf]
      %v272 = vld [vmem:[%s1 + $0x16c] sm:$0xf]
      %v273 = vld [vmem:[%s1 + $0x170] sm:$0xf]
      %v274 = vld [vmem:[%s1 + $0x174] sm:$0xf]
      %v275 = vld [vmem:[%s1 + $0x178] sm:$0xf]
      %v276 = vld [vmem:[%s1 + $0x17c] sm:$0xf]
      %v277 = vld [vmem:[%s1 + $0x180] sm:$0xf]
      %v278 = vld [vmem:[%s1 + $0x184] sm:$0xf]
      %v279 = vld [vmem:[%s1 + $0x188] sm:$0xf]
      %v280 = vld [vmem:[%s1 + $0x18c] sm:$0xf]
      %v281 = vld [vmem:[%s1 + $0x190] sm:$0xf]
      %v282 = vld [vmem:[%s1 + $0x194] sm:$0xf]
      %v283 = vld [vmem:[%s1 + $0x198] sm:$0xf]
      %v284 = vld [vmem:[%s1 + $0x19c] sm:$0xf]
      %v285 = vld [vmem:[%s1 + $0x1a0] sm:$0xf]
      %v286 = vld [vmem:[%s1 + $0x1a4] sm:$0xf]
      %v287 = vld [vmem:[%s1 + $0x1a8] sm:$0xf]
      %v288 = vld [vmem:[%s1 + $0x1ac] sm:$0xf]
      %v289 = vld [vmem:[%s1 + $0x1b0] sm:$0xf]
      %v290 = vld [vmem:[%s1 + $0x1b4] sm:$0xf]
      %v291 = vld [vmem:[%s1 + $0x1b8] sm:$0xf]
      %v292 = vld [vmem:[%s1 + $0x1bc] sm:$0xf]
      %v293 = vld [vmem:[%s1 + $0x1c0] sm:$0xf]
      %v294 = vld [vmem:[%s1 + $0x1c4] sm:$0xf]
      %v295 = vld [vmem:[%s1 + $0x1c8] sm:$0xf]
      %v296 = vld [vmem:[%s1 + $0x1cc] sm:$0xf]
      %v297 = vld [vmem:[%s1 + $0x1d0] sm:$0xf]
      %v298 = vld [vmem:[%s1 + $0x1d4] sm:$0xf]
      %v299 = vld [vmem:[%s1 + $0x1d8] sm:$0xf]
      %v300 = vld [vmem:[%s1 + $0x1dc] sm:$0xf]
      %v301 = vld [vmem:[%s1 + $0x1e0] sm:$0xf]
      %v302 = vld [vmem:[%s1 + $0x1e4] sm:$0xf]
      %v303 = vld [vmem:[%s1 + $0x1e8] sm:$0xf]
      %v304 = vld [vmem:[%s1 + $0x1ec] sm:$0xf]
      %v305 = vld [vmem:[%s1 + $0x1f0] sm:$0xf]
      %v306 = vld [vmem:[%s1 + $0x1f4] sm:$0xf]
      %v307 = vld [vmem:[%s1 + $0x1f8] sm:$0xf]
      %v308 = vld [vmem:[%s1 + $0x1fc] sm:$0xf]
      %v309 = vld [vmem:[%s1 + $0x200] sm:$0xf]
      %v310 = vld [vmem:[%s1 + $0x204] sm:$0xf]
      %v311 = vld [vmem:[%s1 + $0x208] sm:$0xf]
      %v312 = vld [vmem:[%s1 + $0x20c] sm:$0xf]
      %v313 = vld [vmem:[%s1 + $0x210] sm:$0xf]
      %v314 = vld [vmem:[%s1 + $0x214] sm:$0xf]
      %v315 = vld [vmem:[%s1 + $0x218] sm:$0xf]
      %v316 = vld [vmem:[%s1 + $0x21c] sm:$0xf]
      %v317 = vld [vmem:[%s1 + $0x220] sm:$0xf]
      %v318 = vld [vmem:[%s1 + $0x224] sm:$0xf]
      %v319 = vld [vmem:[%s1 + $0x228] sm:$0xf]
      %v320 = vld [vmem:[%s1 + $0x22c] sm:$0xf]
      %v321 = vld [vmem:[%s1 + $0x230] sm:$0xf]
      %v322 = vld [vmem:[%s1 + $0x234] sm:$0xf]
      %v323 = vld [vmem:[%s1 + $0x238] sm:$0xf]
      %v324 = vld [vmem:[%s1 + $0x23c] sm:$0xf]
      %v325 = vld [vmem:[%s2] sm:$0x1]
      %v327 = vperm.slane %v325, 0
      %v339 = vunpack.c.l.b16 %v171
      %v340 = vunpack.c.h.b16 %v171
      %v341 = vunpack.c.l.b16 %v172
      %v342 = vunpack.c.h.b16 %v172
      %v343 = vunpack.c.l.b16 %v173
      %v344 = vunpack.c.h.b16 %v173
      %v345 = vunpack.c.l.b16 %v174
      %v346 = vunpack.c.h.b16 %v174
      %v347 = vunpack.c.l.b16 %v175
      %v348 = vunpack.c.l.b16 %v176
      %v349 = vunpack.c.h.b16 %v176
      %v350 = vunpack.c.l.b16 %v177
      %v351 = vunpack.c.h.b16 %v177
      %v352 = vunpack.c.l.b16 %v178
      %v353 = vunpack.c.h.b16 %v178
      %v354 = vunpack.c.l.b16 %v179
      %v355 = vunpack.c.h.b16 %v179
      %v356 = vunpack.c.l.b16 %v180
      %v357 = vpack.c.b16 %v348, %v339
      %v358 = vpack.c.b16 %v349, %v340
      %v359 = vpack.c.b16 %v350, %v341
      %v360 = vpack.c.b16 %v351, %v342
      %v361 = vpack.c.b16 %v352, %v343
      %v362 = vpack.c.b16 %v353, %v344
      %v363 = vpack.c.b16 %v354, %v345
      %v364 = vpack.c.b16 %v355, %v346
      %v365 = vpack.c.b16 %v356, %v347
      %v519 = vunpack.c.l.b16 %v181
      %v520 = vunpack.c.l.b16 %v182
      %v521 = vunpack.c.l.b16 %v183
      %v522 = vunpack.c.l.b16 %v184
      %v523 = vunpack.c.l.b16 %v185
      %v524 = vunpack.c.l.b16 %v186
      %v525 = vunpack.c.l.b16 %v187
      %v526 = vunpack.c.l.b16 %v188
      %v527 = vunpack.c.l.b16 %v189
      %v528 = vunpack.c.l.b16 %v190
      %v529 = vunpack.c.l.b16 %v191
      %v530 = vunpack.c.l.b16 %v192
      %v531 = vunpack.c.l.b16 %v193
      %v532 = vunpack.c.l.b16 %v194
      %v533 = vunpack.c.l.b16 %v195
      %v534 = vunpack.c.l.b16 %v196
      %v535 = vunpack.c.l.b16 %v197
      %v536 = vunpack.c.l.b16 %v198
      %v537 = vunpack.c.l.b16 %v199
      %v538 = vunpack.c.l.b16 %v200
      %v539 = vunpack.c.l.b16 %v201
      %v540 = vunpack.c.l.b16 %v202
      %v541 = vunpack.c.l.b16 %v203
      %v542 = vunpack.c.l.b16 %v204
      %v543 = vunpack.c.l.b16 %v205
      %v544 = vunpack.c.l.b16 %v206
      %v545 = vunpack.c.l.b16 %v207
      %v546 = vunpack.c.l.b16 %v208
      %v547 = vunpack.c.l.b16 %v209
      %v548 = vunpack.c.l.b16 %v210
      %v549 = vunpack.c.l.b16 %v211
      %v550 = vunpack.c.l.b16 %v212
      %v551 = vunpack.c.l.b16 %v213
      %v552 = vunpack.c.l.b16 %v214
      %v553 = vunpack.c.l.b16 %v215
      %v554 = vunpack.c.l.b16 %v216
      %v555 = vunpack.c.l.b16 %v217
      %v556 = vunpack.c.l.b16 %v218
      %v557 = vunpack.c.l.b16 %v219
      %v558 = vunpack.c.l.b16 %v220
      %v559 = vunpack.c.l.b16 %v221
      %v560 = vunpack.c.l.b16 %v222
      %v561 = vunpack.c.l.b16 %v223
      %v562 = vunpack.c.l.b16 %v224
      %v563 = vunpack.c.l.b16 %v225
      %v564 = vunpack.c.l.b16 %v226
      %v565 = vunpack.c.l.b16 %v227
      %v566 = vunpack.c.l.b16 %v228
      %v567 = vunpack.c.l.b16 %v229
      %v568 = vunpack.c.l.b16 %v230
      %v569 = vunpack.c.l.b16 %v231
      %v570 = vunpack.c.l.b16 %v232
      %v571 = vunpack.c.l.b16 %v233
      %v572 = vunpack.c.l.b16 %v234
      %v573 = vunpack.c.l.b16 %v235
      %v574 = vunpack.c.l.b16 %v236
      %v575 = vunpack.c.l.b16 %v237
      %v576 = vunpack.c.l.b16 %v238
      %v577 = vunpack.c.l.b16 %v239
      %v578 = vunpack.c.l.b16 %v240
      %v579 = vunpack.c.l.b16 %v241
      %v580 = vunpack.c.l.b16 %v242
      %v581 = vunpack.c.l.b16 %v243
      %v582 = vunpack.c.l.b16 %v244
      %v583 = vunpack.c.l.b16 %v245
      %v584 = vunpack.c.l.b16 %v246
      %v585 = vunpack.c.l.b16 %v247
      %v586 = vunpack.c.l.b16 %v248
      %v587 = vunpack.c.l.b16 %v249
      %v588 = vunpack.c.l.b16 %v250
      %v589 = vunpack.c.l.b16 %v251
      %v590 = vunpack.c.l.b16 %v252
      %v591 = vunpack.c.l.b16 %v253
      %v592 = vunpack.c.l.b16 %v254
      %v593 = vunpack.c.l.b16 %v255
      %v594 = vunpack.c.l.b16 %v256
      %v595 = vunpack.c.l.b16 %v257
      %v596 = vunpack.c.l.b16 %v258
      %v597 = vunpack.c.l.b16 %v259
      %v598 = vunpack.c.l.b16 %v260
      %v599 = vunpack.c.l.b16 %v261
      %v600 = vunpack.c.l.b16 %v262
      %v601 = vunpack.c.l.b16 %v263
      %v602 = vunpack.c.l.b16 %v264
      %v603 = vunpack.c.l.b16 %v265
      %v604 = vunpack.c.l.b16 %v266
      %v605 = vunpack.c.l.b16 %v267
      %v606 = vunpack.c.l.b16 %v268
      %v607 = vunpack.c.l.b16 %v269
      %v608 = vunpack.c.l.b16 %v270
      %v609 = vunpack.c.l.b16 %v271
      %v610 = vunpack.c.l.b16 %v272
      %v611 = vunpack.c.l.b16 %v273
      %v612 = vunpack.c.l.b16 %v274
      %v613 = vunpack.c.l.b16 %v275
      %v614 = vunpack.c.l.b16 %v276
      %v615 = vunpack.c.l.b16 %v277
      %v616 = vunpack.c.l.b16 %v278
      %v617 = vunpack.c.l.b16 %v279
      %v618 = vunpack.c.l.b16 %v280
      %v619 = vunpack.c.l.b16 %v281
      %v620 = vunpack.c.l.b16 %v282
      %v621 = vunpack.c.l.b16 %v283
      %v622 = vunpack.c.l.b16 %v284
      %v623 = vunpack.c.l.b16 %v285
      %v624 = vunpack.c.l.b16 %v286
      %v625 = vunpack.c.l.b16 %v287
      %v626 = vunpack.c.l.b16 %v288
      %v627 = vunpack.c.l.b16 %v289
      %v628 = vunpack.c.l.b16 %v290
      %v629 = vunpack.c.l.b16 %v291
      %v630 = vunpack.c.l.b16 %v292
      %v631 = vunpack.c.l.b16 %v293
      %v632 = vunpack.c.l.b16 %v294
      %v633 = vunpack.c.l.b16 %v295
      %v634 = vunpack.c.l.b16 %v296
      %v635 = vunpack.c.l.b16 %v297
      %v636 = vunpack.c.l.b16 %v298
      %v637 = vunpack.c.l.b16 %v299
      %v638 = vunpack.c.l.b16 %v300
      %v639 = vunpack.c.l.b16 %v301
      %v640 = vunpack.c.l.b16 %v302
      %v641 = vunpack.c.l.b16 %v303
      %v642 = vunpack.c.l.b16 %v304
      %v643 = vunpack.c.l.b16 %v305
      %v644 = vunpack.c.l.b16 %v306
      %v645 = vunpack.c.l.b16 %v307
      %v646 = vunpack.c.l.b16 %v308
      %v647 = vunpack.c.l.b16 %v309
      %v648 = vunpack.c.l.b16 %v310
      %v649 = vunpack.c.l.b16 %v311
      %v650 = vunpack.c.l.b16 %v312
      %v651 = vunpack.c.l.b16 %v313
      %v652 = vunpack.c.l.b16 %v314
      %v653 = vunpack.c.l.b16 %v315
      %v654 = vunpack.c.l.b16 %v316
      %v655 = vunpack.c.l.b16 %v317
      %v656 = vunpack.c.l.b16 %v318
      %v657 = vunpack.c.l.b16 %v319
      %v658 = vunpack.c.l.b16 %v320
      %v659 = vunpack.c.l.b16 %v321
      %v660 = vunpack.c.l.b16 %v322
      %v661 = vunpack.c.l.b16 %v323
      %v662 = vunpack.c.l.b16 %v324
      %v663 = vpack.c.b16 %v520, %v519
      %v664 = vpack.c.b16 %v522, %v521
      %v665 = vpack.c.b16 %v524, %v523
      %v666 = vpack.c.b16 %v526, %v525
      %v667 = vpack.c.b16 %v528, %v527
      %v668 = vpack.c.b16 %v530, %v529
      %v669 = vpack.c.b16 %v532, %v531
      %v670 = vpack.c.b16 %v534, %v533
      %v671 = vpack.c.b16 %v536, %v535
      %v672 = vpack.c.b16 %v538, %v537
      %v673 = vpack.c.b16 %v540, %v539
      %v674 = vpack.c.b16 %v542, %v541
      %v675 = vpack.c.b16 %v544, %v543
      %v676 = vpack.c.b16 %v546, %v545
      %v677 = vpack.c.b16 %v548, %v547
      %v678 = vpack.c.b16 %v550, %v549
      %v679 = vpack.c.b16 %v552, %v551
      %v680 = vpack.c.b16 %v554, %v553
      %v681 = vpack.c.b16 %v556, %v555
      %v682 = vpack.c.b16 %v558, %v557
      %v683 = vpack.c.b16 %v560, %v559
      %v684 = vpack.c.b16 %v562, %v561
      %v685 = vpack.c.b16 %v564, %v563
      %v686 = vpack.c.b16 %v566, %v565
      %v687 = vpack.c.b16 %v568, %v567
      %v688 = vpack.c.b16 %v570, %v569
      %v689 = vpack.c.b16 %v572, %v571
      %v690 = vpack.c.b16 %v574, %v573
      %v691 = vpack.c.b16 %v576, %v575
      %v692 = vpack.c.b16 %v578, %v577
      %v693 = vpack.c.b16 %v580, %v579
      %v694 = vpack.c.b16 %v582, %v581
      %v695 = vpack.c.b16 %v584, %v583
      %v696 = vpack.c.b16 %v586, %v585
      %v697 = vpack.c.b16 %v588, %v587
      %v698 = vpack.c.b16 %v590, %v589
      %v699 = vpack.c.b16 %v592, %v591
      %v700 = vpack.c.b16 %v594, %v593
      %v701 = vpack.c.b16 %v596, %v595
      %v702 = vpack.c.b16 %v598, %v597
      %v703 = vpack.c.b16 %v600, %v599
      %v704 = vpack.c.b16 %v602, %v601
      %v705 = vpack.c.b16 %v604, %v603
      %v706 = vpack.c.b16 %v606, %v605
      %v707 = vpack.c.b16 %v608, %v607
      %v708 = vpack.c.b16 %v610, %v609
      %v709 = vpack.c.b16 %v612, %v611
      %v710 = vpack.c.b16 %v614, %v613
      %v711 = vpack.c.b16 %v616, %v615
      %v712 = vpack.c.b16 %v618, %v617
      %v713 = vpack.c.b16 %v620, %v619
      %v714 = vpack.c.b16 %v622, %v621
      %v715 = vpack.c.b16 %v624, %v623
      %v716 = vpack.c.b16 %v626, %v625
      %v717 = vpack.c.b16 %v628, %v627
      %v718 = vpack.c.b16 %v630, %v629
      %v719 = vpack.c.b16 %v632, %v631
      %v720 = vpack.c.b16 %v634, %v633
      %v721 = vpack.c.b16 %v636, %v635
      %v722 = vpack.c.b16 %v638, %v637
      %v723 = vpack.c.b16 %v640, %v639
      %v724 = vpack.c.b16 %v642, %v641
      %v725 = vpack.c.b16 %v644, %v643
      %v726 = vpack.c.b16 %v646, %v645
      %v727 = vpack.c.b16 %v648, %v647
      %v728 = vpack.c.b16 %v650, %v649
      %v729 = vpack.c.b16 %v652, %v651
      %v730 = vpack.c.b16 %v654, %v653
      %v731 = vpack.c.b16 %v656, %v655
      %v732 = vpack.c.b16 %v658, %v657
      %v733 = vpack.c.b16 %v660, %v659
      %v734 = vpack.c.b16 %v662, %v661
      %807 = vmatpush.bf16.msra.mxu0 %v670
      %808 = vmatpush.bf16.msra.mxu0 %v669
      %809 = vmatpush.bf16.msra.mxu0 %v668
      %810 = vmatpush.bf16.msra.mxu0 %v667
      %811 = vmatpush.bf16.msra.mxu0 %v666
      %812 = vmatpush.bf16.msra.mxu0 %v665
      %813 = vmatpush.bf16.msra.mxu0 %v664
      %814 = vmatpush.bf16.msra.mxu0 %v663
      %815 = vmatmul.bf16.gmra.mxu0 %v357
      %v816 = vpop.f32.mrf.mxu0
      %v817 = vadd.f32 %v327, %v816
      %v818 = vpop.f32.mrf.mxu0
      %v819 = vadd.f32 %v327, %v818
      %820 = vdwg.mxu0
      %821 = vmatpush.bf16.msra.mxu0 %v678
      %822 = vmatpush.bf16.msra.mxu0 %v677
      %823 = vmatpush.bf16.msra.mxu0 %v676
      %824 = vmatpush.bf16.msra.mxu0 %v675
      %825 = vmatpush.bf16.msra.mxu0 %v674
      %826 = vmatpush.bf16.msra.mxu0 %v673
      %827 = vmatpush.bf16.msra.mxu0 %v672
      %828 = vmatpush.bf16.msra.mxu0 %v671
      %829 = vmatmul.bf16.gmra.mxu0 %v358
      %v830 = vpop.f32.mrf.mxu0
      %v831 = vadd.f32 %v817, %v830
      %v832 = vpop.f32.mrf.mxu0
      %v833 = vadd.f32 %v819, %v832
      %834 = vdwg.mxu0
      %835 = vmatpush.bf16.msra.mxu0 %v686
      %836 = vmatpush.bf16.msra.mxu0 %v685
      %837 = vmatpush.bf16.msra.mxu0 %v684
      %838 = vmatpush.bf16.msra.mxu0 %v683
      %839 = vmatpush.bf16.msra.mxu0 %v682
      %840 = vmatpush.bf16.msra.mxu0 %v681
      %841 = vmatpush.bf16.msra.mxu0 %v680
      %842 = vmatpush.bf16.msra.mxu0 %v679
      %843 = vmatmul.bf16.gmra.mxu0 %v359
      %v844 = vpop.f32.mrf.mxu0
      %v845 = vadd.f32 %v831, %v844
      %v846 = vpop.f32.mrf.mxu0
      %v847 = vadd.f32 %v833, %v846
      %848 = vdwg.mxu0
      %849 = vmatpush.bf16.msra.mxu0 %v694
      %850 = vmatpush.bf16.msra.mxu0 %v693
      %851 = vmatpush.bf16.msra.mxu0 %v692
      %852 = vmatpush.bf16.msra.mxu0 %v691
      %853 = vmatpush.bf16.msra.mxu0 %v690
      %854 = vmatpush.bf16.msra.mxu0 %v689
      %855 = vmatpush.bf16.msra.mxu0 %v688
      %856 = vmatpush.bf16.msra.mxu0 %v687
      %857 = vmatmul.bf16.gmra.mxu0 %v360
      %v858 = vpop.f32.mrf.mxu0
      %v859 = vadd.f32 %v845, %v858
      %v860 = vpop.f32.mrf.mxu0
      %v861 = vadd.f32 %v847, %v860
      %862 = vdwg.mxu0
      %863 = vmatpush.bf16.msra.mxu0 %v702
      %864 = vmatpush.bf16.msra.mxu0 %v701
      %865 = vmatpush.bf16.msra.mxu0 %v700
      %866 = vmatpush.bf16.msra.mxu0 %v699
      %867 = vmatpush.bf16.msra.mxu0 %v698
      %868 = vmatpush.bf16.msra.mxu0 %v697
      %869 = vmatpush.bf16.msra.mxu0 %v696
      %870 = vmatpush.bf16.msra.mxu0 %v695
      %871 = vmatmul.bf16.gmra.mxu0 %v361
      %v872 = vpop.f32.mrf.mxu0
      %v873 = vadd.f32 %v859, %v872
      %v874 = vpop.f32.mrf.mxu0
      %v875 = vadd.f32 %v861, %v874
      %876 = vdwg.mxu0
      %877 = vmatpush.bf16.msra.mxu0 %v710
      %878 = vmatpush.bf16.msra.mxu0 %v709
      %879 = vmatpush.bf16.msra.mxu0 %v708
      %880 = vmatpush.bf16.msra.mxu0 %v707
      %881 = vmatpush.bf16.msra.mxu0 %v706
      %882 = vmatpush.bf16.msra.mxu0 %v705
      %883 = vmatpush.bf16.msra.mxu0 %v704
      %884 = vmatpush.bf16.msra.mxu0 %v703
      %885 = vmatmul.bf16.gmra.mxu0 %v362
      %v886 = vpop.f32.mrf.mxu0
      %v887 = vadd.f32 %v873, %v886
      %v888 = vpop.f32.mrf.mxu0
      %v889 = vadd.f32 %v875, %v888
      %890 = vdwg.mxu0
      %891 = vmatpush.bf16.msra.mxu0 %v718
      %892 = vmatpush.bf16.msra.mxu0 %v717
      %893 = vmatpush.bf16.msra.mxu0 %v716
      %894 = vmatpush.bf16.msra.mxu0 %v715
      %895 = vmatpush.bf16.msra.mxu0 %v714
      %896 = vmatpush.bf16.msra.mxu0 %v713
      %897 = vmatpush.bf16.msra.mxu0 %v712
      %898 = vmatpush.bf16.msra.mxu0 %v711
      %899 = vmatmul.bf16.gmra.mxu0 %v363
      %v900 = vpop.f32.mrf.mxu0
      %v901 = vadd.f32 %v887, %v900
      %v902 = vpop.f32.mrf.mxu0
      %v903 = vadd.f32 %v889, %v902
      %904 = vdwg.mxu0
      %905 = vmatpush.bf16.msra.mxu0 %v726
      %906 = vmatpush.bf16.msra.mxu0 %v725
      %907 = vmatpush.bf16.msra.mxu0 %v724
      %908 = vmatpush.bf16.msra.mxu0 %v723
      %909 = vmatpush.bf16.msra.mxu0 %v722
      %910 = vmatpush.bf16.msra.mxu0 %v721
      %911 = vmatpush.bf16.msra.mxu0 %v720
      %912 = vmatpush.bf16.msra.mxu0 %v719
      %913 = vmatmul.bf16.gmra.mxu0 %v364
      %v914 = vpop.f32.mrf.mxu0
      %v915 = vadd.f32 %v901, %v914
      %v916 = vpop.f32.mrf.mxu0
      %v917 = vadd.f32 %v903, %v916
      %918 = vdwg.mxu0
      %919 = vmatpush.bf16.msra.mxu0 %v734
      %920 = vmatpush.bf16.msra.mxu0 %v733
      %921 = vmatpush.bf16.msra.mxu0 %v732
      %922 = vmatpush.bf16.msra.mxu0 %v731
      %923 = vmatpush.bf16.msra.mxu0 %v730
      %924 = vmatpush.bf16.msra.mxu0 %v729
      %925 = vmatpush.bf16.msra.mxu0 %v728
      %926 = vmatpush.bf16.msra.mxu0 %v727
      %927 = vmatmul.bf16.gmra.mxu0 %v365
      %v928 = vpop.f32.mrf.mxu0
      %v929 = vadd.f32 %v915, %v928
      %v930 = vpop.f32.mrf.mxu0
      %v931 = vadd.f32 %v917, %v930
      %932 = vdwg.mxu0
      %v933 = vpack.c.bf16 %v929, %v929
      %v934 = vpack.c.bf16 %v931, %v931
      %935 = vst [vmem:[%s170] sm:$0xf] %v933
      %936 = vst [vmem:[%s170 + $0x4] sm:$0xf] %v934
      %p937 = scmp.lt.s32.totalorder %s14, 1
      %s938 = scalar_select %p937, %s14, 1
      %s939 = smul.addr %s938, 2
      %s940 = smul.addr %s939, 4
      %s941 = scalar_lea.vmem %s3, %s940
      // Predicated region
      $region33: #{bottleneck_resnet.8} parent=31 // pred_check
        %p942 = pneg %p100
      $region34: #{bottleneck_resnet.8} parent=31 // pred_check_branch
        %944 = sbr.rel (%p942) target = $region36
      $region35: #{bottleneck_resnet.8} parent=31 // pred_region
        _
      $region36: #{bottleneck_resnet.8} parent=31 // pred_fallthru
        _
    $region32: #{bottleneck_resnet.8} parent=5 // pred_fallthru
      _
    %p945 = scmp.le.s32.totalorder 2, %s9
    // Predicated region
    $region37: #{bottleneck_resnet.8} parent=5 // pred_check
      %p946 = pneg %p945
    $region38: #{bottleneck_resnet.8} parent=5 // pred_check_branch
      %948 = sbr.rel (%p946) target = $region40
    $region39: #{bottleneck_resnet.8} parent=5 // pred_region
      %s949 = ssub.s32 %s9, 2
      // Predicated region
      $region41: #{bottleneck_resnet.8} parent=39 // pred_check
        %p950 = pneg %p106
      $region42: #{bottleneck_resnet.8} parent=39 // pred_check_branch
        %952 = sbr.rel (%p950) target = $region44
      $region43: #{bottleneck_resnet.8} parent=39 // pred_region
        %p953 = scmp.lt.s32.totalorder %s15, 1
        %s954 = scalar_select %p953, %s15, 1
        %s955 = smul.addr %s954, 2
        %s956 = smul.addr %s955, 4
        %s957 = scalar_lea.vmem %s3, %s956
      $region44: #{bottleneck_resnet.8} parent=39 // pred_fallthru
        _
    $region40: #{bottleneck_resnet.8} parent=5 // pred_fallthru
      _
  $region6: #{bottleneck_resnet.8} parent=0 // loop_footer
    %s13 = sadd.s32 1, %s9
  $region7: #{bottleneck_resnet.8} parent=0 // loop_footer_branch
    %8 = sbr.rel target = $region3
  $region8: #{bottleneck_resnet.8} parent=0 // loop_exit
    _

// kernel: bottleneck_resnet.9
$region0: #{bottleneck_resnet.9}
  #allocation0 [shape = 'u32[]', space=smem, size = 0x4, offset = 0x4, fixed_abs, tag = 'smem constant byte address 0x4 - core index']
  #allocation1 [shape = 'u32[72,128]{1,0:T(1,128)}', space=vmem, size = 0x9000, scoped, tag = 'internal scratch']
  #allocation2 [shape = 'bf16[16,128]{1,0:T(8,128)(2,1)}', space=vmem, size = 0x1000, scoped, tag = 'scratch operand']
  #allocation3 [shape = 'f32[32,128]{1,0:T(8,128)}', space=vmem, size = 0x4000, scoped, tag = 'scratch operand']
  %s0 = inlined_call_operand.vmem [shape: bf16[2,16,128], index: 0, kind: input, shape index: {}]
  %s1 = inlined_call_operand.vmem [shape: bf16[256,128], index: 1, kind: input, shape index: {}]
  %s2 = inlined_call_operand.vmem [shape: f32[2,1,128], index: 2, kind: input, shape index: {}]
  %s3 = inlined_call_operand.vmem [shape: bf16[2304,128], index: 3, kind: input, shape index: {}]
  %s4 = inlined_call_operand.vmem [shape: f32[2,1,128], index: 4, kind: input, shape index: {}]
  %s5 = inlined_call_operand.vmem [shape: bf16[256,128], index: 5, kind: input, shape index: {}]
  %s6 = inlined_call_operand.vmem [shape: f32[2,1,128], index: 6, kind: input, shape index: {}]
  %s7 = inlined_call_operand.vmem [shape: bf16[2,16,128], index: 7, kind: output, shape index: {}]
  %s8 = sld [smem:[#allocation0]]
  $region69: #{bottleneck_resnet.9} parent=0
    _
  %s10 = ssub.s32 1, %s8
  %s11 = scalar_select 0, %s10, %s8
  loop: start=0, step=1, limit=6
  $region2: #{bottleneck_resnet.9} parent=0 // loop_pre_header
    _
  $region3: #{bottleneck_resnet.9} parent=0 // loop_header
    %s13 = sphi 0, %s17
    %p14 = scmp.ge.s32.totalorder %s13, 6
    %s20 = sphi 0, %s32
    %s21 = sphi 0, %s28
    %s22 = sphi 0, %s20
    %s23 = sphi 0, %s21
    %s24 = sphi 0, %s22
    %s25 = sphi 0, %s23
    %s35 = sphi 0, %s37
    %s38 = sphi 0, %s35
    %s39 = sphi 0, %s38
    %s55 = sphi 0, %s39
    %s61 = sphi 0, %s63
    %s64 = sphi 0, %s61
    %s65 = sphi 0, %s64
    %s81 = sphi 0, %s65
    %s87 = sphi 0, %s89
    %s90 = sphi 0, %s87
    %s91 = sphi 0, %s90
    %s107 = sphi 0, %s91
    %s113 = sphi 0, %s115
    %s116 = sphi 0, %s113
    %s117 = sphi 0, %s116
    %s133 = sphi 0, %s117
    %s139 = sphi 0, %s141
    %s142 = sphi 0, %s139
    %s143 = sphi 0, %s142
    %s159 = sphi 0, %s143
    %s165 = sphi 0, %s167
    %s168 = sphi 0, %s165
    %s169 = sphi 0, %s168
    %s185 = sphi 0, %s169
    %s191 = sphi 0, %s193
    %s194 = sphi 0, %s191
    %s195 = sphi 0, %s194
    %s211 = sphi 0, %s195
    %s217 = sphi 0, %s219
    %s220 = sphi 0, %s217
    %s221 = sphi 0, %s220
    %s237 = sphi 0, %s221
  $region4: #{bottleneck_resnet.9} parent=0 // loop_header_branch
    %16 = sbr.rel (%p14) target = $region8
  $region5: #{bottleneck_resnet.9} parent=0 // loop_body
    %s18 = ssub.s32 %s13, 1
    %s19 = ssub.s32 %s13, 2
    %s26 = sadd.s32 1, %s21
    %p27 = scmp.ge.s32.totalorder %s26, 2
    %s28 = scalar_select %p27, 0, %s26
    %s29 = sadd.s32 1, %s20
    %s30 = scalar_select %p27, %s29, %s20
    %p31 = scmp.ge.s32.totalorder %s30, 2
    %s32 = scalar_select %p31, 0, %s30
    %s33 = ssub.s32 %s20, %s32
    %p34 = scmp.eq.s32.totalorder %s33, 0
    %s36 = sadd.s32 %s35, 1
    %s37 = scalar_select %p34, %s35, %s36
    %p40 = pneg %p34
    %p41 = scmp.eq.s32.totalorder %s13, 3
    %p42 = por %p40, %p41
    %p43 = scmp.ne.s32.totalorder %s35, %s38
    %p44 = scmp.eq.s32.totalorder %s13, 0
    %p45 = por %p43, %p44
    %p46 = scmp.ne.s32.totalorder %s35, %s38
    %p47 = scmp.eq.s32.totalorder %s18, 3
    %p48 = por %p46, %p47
    %p49 = scmp.ne.s32.totalorder %s38, %s39
    %p50 = scmp.eq.s32.totalorder %s18, 0
    %p51 = por %p49, %p50
    %p52 = scmp.ne.s32.totalorder %s38, %s39
    %p53 = scmp.eq.s32.totalorder %s19, 3
    %p54 = por %p52, %p53
    %p56 = scmp.ne.s32.totalorder %s39, %s55
    %p57 = scmp.eq.s32.totalorder %s19, 0
    %p58 = por %p56, %p57
    %s59 = ssub.s32 %s21, %s28
    %p60 = scmp.eq.s32.totalorder %s59, 0
    %s62 = sadd.s32 %s61, 1
    %s63 = scalar_select %p60, %s61, %s62
    %p66 = pneg %p60
    %p67 = scmp.eq.s32.totalorder %s13, 3
    %p68 = por %p66, %p67
    %p69 = scmp.ne.s32.totalorder %s61, %s64
    %p70 = scmp.eq.s32.totalorder %s13, 0
    %p71 = por %p69, %p70
    %p72 = scmp.ne.s32.totalorder %s61, %s64
    %p73 = scmp.eq.s32.totalorder %s18, 3
    %p74 = por %p72, %p73
    %p75 = scmp.ne.s32.totalorder %s64, %s65
    %p76 = scmp.eq.s32.totalorder %s18, 0
    %p77 = por %p75, %p76
    %p78 = scmp.ne.s32.totalorder %s64, %s65
    %p79 = scmp.eq.s32.totalorder %s19, 3
    %p80 = por %p78, %p79
    %p82 = scmp.ne.s32.totalorder %s65, %s81
    %p83 = scmp.eq.s32.totalorder %s19, 0
    %p84 = por %p82, %p83
    %s85 = ssub.s32 %s21, %s28
    %p86 = scmp.eq.s32.totalorder %s85, 0
    %s88 = sadd.s32 %s87, 1
    %s89 = scalar_select %p86, %s87, %s88
    %p92 = pneg %p86
    %p93 = scmp.eq.s32.totalorder %s13, 3
    %p94 = por %p92, %p93
    %p95 = scmp.ne.s32.totalorder %s87, %s90
    %p96 = scmp.eq.s32.totalorder %s13, 0
    %p97 = por %p95, %p96
    %p98 = scmp.ne.s32.totalorder %s87, %s90
    %p99 = scmp.eq.s32.totalorder %s18, 3
    %p100 = por %p98, %p99
    %p101 = scmp.ne.s32.totalorder %s90, %s91
    %p102 = scmp.eq.s32.totalorder %s18, 0
    %p103 = por %p101, %p102
    %p104 = scmp.ne.s32.totalorder %s90, %s91
    %p105 = scmp.eq.s32.totalorder %s19, 3
    %p106 = por %p104, %p105
    %p108 = scmp.ne.s32.totalorder %s91, %s107
    %p109 = scmp.eq.s32.totalorder %s19, 0
    %p110 = por %p108, %p109
    %s111 = ssub.s32 %s21, %s28
    %p112 = scmp.eq.s32.totalorder %s111, 0
    %s114 = sadd.s32 %s113, 1
    %s115 = scalar_select %p112, %s113, %s114
    %p118 = pneg %p112
    %p119 = scmp.eq.s32.totalorder %s13, 3
    %p120 = por %p118, %p119
    %p121 = scmp.ne.s32.totalorder %s113, %s116
    %p122 = scmp.eq.s32.totalorder %s13, 0
    %p123 = por %p121, %p122
    %p124 = scmp.ne.s32.totalorder %s113, %s116
    %p125 = scmp.eq.s32.totalorder %s18, 3
    %p126 = por %p124, %p125
    %p127 = scmp.ne.s32.totalorder %s116, %s117
    %p128 = scmp.eq.s32.totalorder %s18, 0
    %p129 = por %p127, %p128
    %p130 = scmp.ne.s32.totalorder %s116, %s117
    %p131 = scmp.eq.s32.totalorder %s19, 3
    %p132 = por %p130, %p131
    %p134 = scmp.ne.s32.totalorder %s117, %s133
    %p135 = scmp.eq.s32.totalorder %s19, 0
    %p136 = por %p134, %p135
    %s137 = ssub.s32 %s21, %s28
    %p138 = scmp.eq.s32.totalorder %s137, 0
    %s140 = sadd.s32 %s139, 1
    %s141 = scalar_select %p138, %s139, %s140
    %p144 = pneg %p138
    %p145 = scmp.eq.s32.totalorder %s13, 3
    %p146 = por %p144, %p145
    %p147 = scmp.ne.s32.totalorder %s139, %s142
    %p148 = scmp.eq.s32.totalorder %s13, 0
    %p149 = por %p147, %p148
    %p150 = scmp.ne.s32.totalorder %s139, %s142
    %p151 = scmp.eq.s32.totalorder %s18, 3
    %p152 = por %p150, %p151
    %p153 = scmp.ne.s32.totalorder %s142, %s143
    %p154 = scmp.eq.s32.totalorder %s18, 0
    %p155 = por %p153, %p154
    %p156 = scmp.ne.s32.totalorder %s142, %s143
    %p157 = scmp.eq.s32.totalorder %s19, 3
    %p158 = por %p156, %p157
    %p160 = scmp.ne.s32.totalorder %s143, %s159
    %p161 = scmp.eq.s32.totalorder %s19, 0
    %p162 = por %p160, %p161
    %s163 = ssub.s32 %s21, %s28
    %p164 = scmp.eq.s32.totalorder %s163, 0
    %s166 = sadd.s32 %s165, 1
    %s167 = scalar_select %p164, %s165, %s166
    %p170 = pneg %p164
    %p171 = scmp.eq.s32.totalorder %s13, 3
    %p172 = por %p170, %p171
    %p173 = scmp.ne.s32.totalorder %s165, %s168
    %p174 = scmp.eq.s32.totalorder %s13, 0
    %p175 = por %p173, %p174
    %p176 = scmp.ne.s32.totalorder %s165, %s168
    %p177 = scmp.eq.s32.totalorder %s18, 3
    %p178 = por %p176, %p177
    %p179 = scmp.ne.s32.totalorder %s168, %s169
    %p180 = scmp.eq.s32.totalorder %s18, 0
    %p181 = por %p179, %p180
    %p182 = scmp.ne.s32.totalorder %s168, %s169
    %p183 = scmp.eq.s32.totalorder %s19, 3
    %p184 = por %p182, %p183
    %p186 = scmp.ne.s32.totalorder %s169, %s185
    %p187 = scmp.eq.s32.totalorder %s19, 0
    %p188 = por %p186, %p187
    %s189 = ssub.s32 %s21, %s28
    %p190 = scmp.eq.s32.totalorder %s189, 0
    %s192 = sadd.s32 %s191, 1
    %s193 = scalar_select %p190, %s191, %s192
    %p196 = pneg %p190
    %p197 = scmp.eq.s32.totalorder %s13, 3
    %p198 = por %p196, %p197
    %p199 = scmp.ne.s32.totalorder %s191, %s194
    %p200 = scmp.eq.s32.totalorder %s13, 0
    %p201 = por %p199, %p200
    %p202 = scmp.ne.s32.totalorder %s191, %s194
    %p203 = scmp.eq.s32.totalorder %s18, 3
    %p204 = por %p202, %p203
    %p205 = scmp.ne.s32.totalorder %s194, %s195
    %p206 = scmp.eq.s32.totalorder %s18, 0
    %p207 = por %p205, %p206
    %p208 = scmp.ne.s32.totalorder %s194, %s195
    %p209 = scmp.eq.s32.totalorder %s19, 3
    %p210 = por %p208, %p209
    %p212 = scmp.ne.s32.totalorder %s195, %s211
    %p213 = scmp.eq.s32.totalorder %s19, 0
    %p214 = por %p212, %p213
    %s215 = ssub.s32 %s20, %s32
    %p216 = scmp.eq.s32.totalorder %s215, 0
    %s218 = sadd.s32 %s217, 1
    %s219 = scalar_select %p216, %s217, %s218
    %p222 = pneg %p216
    %p223 = scmp.eq.s32.totalorder %s13, 3
    %p224 = por %p222, %p223
    %p225 = scmp.ne.s32.totalorder %s217, %s220
    %p226 = scmp.eq.s32.totalorder %s13, 0
    %p227 = por %p225, %p226
    %p228 = scmp.ne.s32.totalorder %s217, %s220
    %p229 = scmp.eq.s32.totalorder %s18, 3
    %p230 = por %p228, %p229
    %p231 = scmp.ne.s32.totalorder %s220, %s221
    %p232 = scmp.eq.s32.totalorder %s18, 0
    %p233 = por %p231, %p232
    %p234 = scmp.ne.s32.totalorder %s220, %s221
    %p235 = scmp.eq.s32.totalorder %s19, 3
    %p236 = por %p234, %p235
    %p238 = scmp.ne.s32.totalorder %s221, %s237
    %p239 = scmp.eq.s32.totalorder %s19, 0
    %p240 = por %p238, %p239
    %p241 = scmp.le.s32.totalorder 1, %s13
    %p242 = scmp.lt.s32.totalorder %s13, 5
    %p243 = pnand %p241, %p242
    %p244 = pneg %p243
    // Predicated region
    $region9: #{bottleneck_resnet.9} parent=5 // pred_check
      _
    $region10: #{bottleneck_resnet.9} parent=5 // pred_check_branch
      %246 = sbr.rel (%p243) target = $region12
    $region11: #{bottleneck_resnet.9} parent=5 // pred_region
      %s247 = ssub.s32 %s13, 1
    $region12: #{bottleneck_resnet.9} parent=5 // pred_fallthru
      _
    %p248 = scmp.lt.s32.totalorder %s13, 4
    // Predicated region
    $region13: #{bottleneck_resnet.9} parent=5 // pred_check
      %p249 = pneg %p248
    $region14: #{bottleneck_resnet.9} parent=5 // pred_check_branch
      %251 = sbr.rel (%p249) target = $region16
    $region15: #{bottleneck_resnet.9} parent=5 // pred_region
      // Predicated region
      $region17: #{bottleneck_resnet.9} parent=15 // pred_check
        %p252 = pneg %p45
      $region18: #{bottleneck_resnet.9} parent=15 // pred_check_branch
        %254 = sbr.rel (%p252) target = $region20
      $region19: #{bottleneck_resnet.9} parent=15 // pred_region
        %p255 = scmp.lt.s32.totalorder %s20, 1
        %s256 = scalar_select %p255, %s20, 1
        %s257 = smul.addr %s256, 2
        %s258 = smul.addr %s257, 4
        %s259 = scalar_lea.vmem %s0, %s258
      $region20: #{bottleneck_resnet.9} parent=15 // pred_fallthru
        _
      // Predicated region
      $region21: #{bottleneck_resnet.9} parent=15 // pred_check
        %p260 = pneg %p71
      $region22: #{bottleneck_resnet.9} parent=15 // pred_check_branch
        %262 = sbr.rel (%p260) target = $region24
      $region23: #{bottleneck_resnet.9} parent=15 // pred_region
        %s263 = smul.u32 16, %s21
        %p264 = scmp.lt.s32.totalorder %s263, 31
        %s265 = scalar_select %p264, %s263, 31
        %s266 = smul.addr %s265, 4
        %s267 = scalar_lea.vmem %s1, %s266
        %s268 = smul.u32 16, %s21
      $region24: #{bottleneck_resnet.9} parent=15 // pred_fallthru
        _
      // Predicated region
      $region25: #{bottleneck_resnet.9} parent=15 // pred_check
        %p269 = pneg %p97
      $region26: #{bottleneck_resnet.9} parent=15 // pred_check_branch
        %271 = sbr.rel (%p269) target = $region28
      $region27: #{bottleneck_resnet.9} parent=15 // pred_region
        %p272 = scmp.lt.s32.totalorder %s21, 1
        %s273 = scalar_select %p272, %s21, 1
        %s274 = scalar_lea.vmem %s2, %s273
      $region28: #{bottleneck_resnet.9} parent=15 // pred_fallthru
        _
      // Predicated region
      $region29: #{bottleneck_resnet.9} parent=15 // pred_check
        %p275 = pneg %p123
      $region30: #{bottleneck_resnet.9} parent=15 // pred_check_branch
        %277 = sbr.rel (%p275) target = $region32
      $region31: #{bottleneck_resnet.9} parent=15 // pred_region
        %s278 = smul.u32 144, %s21
        %p279 = scmp.lt.s32.totalorder %s278, 287
        %s280 = scalar_select %p279, %s278, 287
        %s281 = smul.addr %s280, 4
        %s282 = scalar_lea.vmem %s3, %s281
        %s283 = smul.u32 144, %s21
      $region32: #{bottleneck_resnet.9} parent=15 // pred_fallthru
        _
      // Predicated region
      $region33: #{bottleneck_resnet.9} parent=15 // pred_check
        %p284 = pneg %p149
      $region34: #{bottleneck_resnet.9} parent=15 // pred_check_branch
        %286 = sbr.rel (%p284) target = $region36
      $region35: #{bottleneck_resnet.9} parent=15 // pred_region
        %p287 = scmp.lt.s32.totalorder %s21, 1
        %s288 = scalar_select %p287, %s21, 1
        %s289 = scalar_lea.vmem %s4, %s288
      $region36: #{bottleneck_resnet.9} parent=15 // pred_fallthru
        _
      // Predicated region
      $region37: #{bottleneck_resnet.9} parent=15 // pred_check
        %p290 = pneg %p175
      $region38: #{bottleneck_resnet.9} parent=15 // pred_check_branch
        %292 = sbr.rel (%p290) target = $region40
      $region39: #{bottleneck_resnet.9} parent=15 // pred_region
        %s293 = smul.u32 16, %s21
        %p294 = scmp.lt.s32.totalorder %s293, 31
        %s295 = scalar_select %p294, %s293, 31
        %s296 = smul.addr %s295, 4
        %s297 = scalar_lea.vmem %s5, %s296
        %s298 = smul.u32 16, %s21
      $region40: #{bottleneck_resnet.9} parent=15 // pred_fallthru
        _
      // Predicated region
      $region41: #{bottleneck_resnet.9} parent=15 // pred_check
        %p299 = pneg %p201
      $region42: #{bottleneck_resnet.9} parent=15 // pred_check_branch
        %301 = sbr.rel (%p299) target = $region44
      $region43: #{bottleneck_resnet.9} parent=15 // pred_region
        %p302 = scmp.lt.s32.totalorder %s21, 1
        %s303 = scalar_select %p302, %s21, 1
        %s304 = scalar_lea.vmem %s6, %s303
      $region44: #{bottleneck_resnet.9} parent=15 // pred_fallthru
        _
    $region16: #{bottleneck_resnet.9} parent=5 // pred_fallthru
      _
    %p305 = scmp.le.s32.totalorder 1, %s13
    %p306 = scmp.lt.s32.totalorder %s13, 5
    %p307 = pnand %p305, %p306
    %p308 = pneg %p307
    // Predicated region
    $region45: #{bottleneck_resnet.9} parent=5 // pred_check
      _
    $region46: #{bottleneck_resnet.9} parent=5 // pred_check_branch
      %310 = sbr.rel (%p307) target = $region48
    $region47: #{bottleneck_resnet.9} parent=5 // pred_region
      %s311 = ssub.s32 %s13, 1
      %p312 = scmp.lt.s32.totalorder %s22, 1
      %s313 = scalar_select %p312, %s22, 1
      %s314 = smul.addr %s313, 2
      %s315 = smul.addr %s314, 4
      %s316 = scalar_lea.vmem %s0, %s315
      %p317 = pneg %p51
      %p318 = pneg %p48
      %s319 = smul.u32 16, %s23
      %p320 = scmp.lt.s32.totalorder %s319, 31
      %s321 = scalar_select %p320, %s319, 31
      %s322 = smul.addr %s321, 4
      %s323 = scalar_lea.vmem %s1, %s322
      %p324 = pneg %p77
      %p325 = pneg %p74
      %p326 = scmp.lt.s32.totalorder %s23, 1
      %s327 = scalar_select %p326, %s23, 1
      %s328 = scalar_lea.vmem %s2, %s327
      %p329 = pneg %p103
      %p330 = pneg %p100
      %s331 = smul.u32 144, %s23
      %p332 = scmp.lt.s32.totalorder %s331, 287
      %s333 = scalar_select %p332, %s331, 287
      %s334 = smul.addr %s333, 4
      %s335 = scalar_lea.vmem %s3, %s334
      %p336 = pneg %p129
      %p337 = pneg %p126
      %p338 = scmp.lt.s32.totalorder %s23, 1
      %s339 = scalar_select %p338, %s23, 1
      %s340 = scalar_lea.vmem %s4, %s339
      %p341 = pneg %p155
      %p342 = pneg %p152
      %s343 = smul.u32 16, %s23
      %p344 = scmp.lt.s32.totalorder %s343, 31
      %s345 = scalar_select %p344, %s343, 31
      %s346 = smul.addr %s345, 4
      %s347 = scalar_lea.vmem %s5, %s346
      %p348 = pneg %p181
      %p349 = pneg %p178
      %p350 = scmp.lt.s32.totalorder %s23, 1
      %s351 = scalar_select %p350, %s23, 1
      %s352 = scalar_lea.vmem %s6, %s351
      %p353 = pneg %p207
      %p354 = pneg %p204
      %p355 = pneg %p233
      %p356 = pneg %p230
      %p357 = scmp.lt.s32.totalorder %s22, 1
      %s358 = scalar_select %p357, %s22, 1
      %s359 = smul.addr %s358, 2
      %s360 = smul.addr %s359, 4
      %s361 = scalar_lea.vmem %s7, %s360
      %p362 = scmp.lt.s32.totalorder %s22, 1
      %s363 = scalar_select %p362, %s22, 1
      %s364 = smul.addr %s363, 2
      %s365 = smul.addr %s364, 4
      %s366 = scalar_lea.vmem %s0, %s365
      %s367 = smul.u32 16, %s23
      %p368 = scmp.lt.s32.totalorder %s367, 31
      %s369 = scalar_select %p368, %s367, 31
      %s370 = smul.addr %s369, 4
      %s371 = scalar_lea.vmem %s1, %s370
      %s372 = smul.u32 16, %s23
      %p373 = scmp.lt.s32.totalorder %s23, 1
      %s374 = scalar_select %p373, %s23, 1
      %s375 = scalar_lea.vmem %s2, %s374
      %s376 = smul.u32 144, %s23
      %p377 = scmp.lt.s32.totalorder %s376, 287
      %s378 = scalar_select %p377, %s376, 287
      %s379 = smul.addr %s378, 4
      %s380 = scalar_lea.vmem %s3, %s379
      %s381 = smul.u32 144, %s23
      %p382 = scmp.lt.s32.totalorder %s23, 1
      %s383 = scalar_select %p382, %s23, 1
      %s384 = scalar_lea.vmem %s4, %s383
      %s385 = smul.u32 16, %s23
      %p386 = scmp.lt.s32.totalorder %s385, 31
      %s387 = scalar_select %p386, %s385, 31
      %s388 = smul.addr %s387, 4
      %s389 = scalar_lea.vmem %s5, %s388
      %s390 = smul.u32 16, %s23
      %p391 = scmp.lt.s32.totalorder %s23, 1
      %s392 = scalar_select %p391, %s23, 1
      %s393 = scalar_lea.vmem %s6, %s392
      %p394 = scmp.lt.s32.totalorder %s22, 1
      %s395 = scalar_select %p394, %s22, 1
      %s396 = smul.addr %s395, 2
      %s397 = smul.addr %s396, 4
      %s398 = scalar_lea.vmem %s7, %s397
      %p399 = scmp.eq.s32.totalorder %s23, 0
      // Predicated region
      $region49: #{bottleneck_resnet.9} parent=47 // pred_check
        %p400 = pneg %p399
      $region50: #{bottleneck_resnet.9} parent=47 // pred_check_branch
        %402 = sbr.rel (%p400) target = $region52
      $region51: #{bottleneck_resnet.9} parent=47 // pred_region
        %v403 = vld [vmem:[%s366] sm:$0xf]
        %v404 = vld [vmem:[%s366 + $0x4] sm:$0xf]
        %405 = vst [vmem:[#allocation2] sm:$0xf] %v403
        %406 = vst [vmem:[#allocation2 + $0x4] sm:$0xf] %v404
        %407 = vst [vmem:[#allocation3] sm:$0xff] 0.0
        %408 = vst [vmem:[#allocation3 + $0x18] sm:$0xff] 0.0
      $region52: #{bottleneck_resnet.9} parent=47 // pred_fallthru
        _
      %v409 = vld [vmem:[#allocation2] sm:$0xf]
      %v410 = vld [vmem:[#allocation2 + $0x4] sm:$0xf]
      %v411 = vld [vmem:[%s371] sm:$0xf]
      %v412 = vld [vmem:[%s371 + $0x4] sm:$0xf]
      %v413 = vld [vmem:[%s371 + $0x8] sm:$0xf]
      %v414 = vld [vmem:[%s371 + $0xc] sm:$0xf]
      %v415 = vld [vmem:[%s371 + $0x10] sm:$0xf]
      %v416 = vld [vmem:[%s371 + $0x14] sm:$0xf]
      %v417 = vld [vmem:[%s371 + $0x18] sm:$0xf]
      %v418 = vld [vmem:[%s371 + $0x1c] sm:$0xf]
      %v419 = vld [vmem:[%s371 + $0x20] sm:$0xf]
      %v420 = vld [vmem:[%s371 + $0x24] sm:$0xf]
      %v421 = vld [vmem:[%s371 + $0x28] sm:$0xf]
      %v422 = vld [vmem:[%s371 + $0x2c] sm:$0xf]
      %v423 = vld [vmem:[%s371 + $0x30] sm:$0xf]
      %v424 = vld [vmem:[%s371 + $0x34] sm:$0xf]
      %v425 = vld [vmem:[%s371 + $0x38] sm:$0xf]
      %v426 = vld [vmem:[%s371 + $0x3c] sm:$0xf]
      %v427 = vld [vmem:[%s375] sm:$0x1]
      %v429 = vperm.slane %v427, 0
      %v433 = vunpack.c.l.b16 %v409
      %v434 = vunpack.c.l.b16 %v410
      %v435 = vpack.c.b16 %v434, %v433
      %v453 = vunpack.c.l.b16 %v411
      %v454 = vunpack.c.l.b16 %v412
      %v455 = vunpack.c.l.b16 %v413
      %v456 = vunpack.c.l.b16 %v414
      %v457 = vunpack.c.l.b16 %v415
      %v458 = vunpack.c.l.b16 %v416
      %v459 = vunpack.c.l.b16 %v417
      %v460 = vunpack.c.l.b16 %v418
      %v461 = vunpack.c.l.b16 %v419
      %v462 = vunpack.c.l.b16 %v420
      %v463 = vunpack.c.l.b16 %v421
      %v464 = vunpack.c.l.b16 %v422
      %v465 = vunpack.c.l.b16 %v423
      %v466 = vunpack.c.l.b16 %v424
      %v467 = vunpack.c.l.b16 %v425
      %v468 = vunpack.c.l.b16 %v426
      %v469 = vpack.c.b16 %v454, %v453
      %v470 = vpack.c.b16 %v456, %v455
      %v471 = vpack.c.b16 %v458, %v457
      %v472 = vpack.c.b16 %v460, %v459
      %v473 = vpack.c.b16 %v462, %v461
      %v474 = vpack.c.b16 %v464, %v463
      %v475 = vpack.c.b16 %v466, %v465
      %v476 = vpack.c.b16 %v468, %v467
      %485 = vmatpush.bf16.msra.mxu0 %v476
      %486 = vmatpush.bf16.msra.mxu0 %v475
      %487 = vmatpush.bf16.msra.mxu0 %v474
      %488 = vmatpush.bf16.msra.mxu0 %v473
      %489 = vmatpush.bf16.msra.mxu0 %v472
      %490 = vmatpush.bf16.msra.mxu0 %v471
      %491 = vmatpush.bf16.msra.mxu0 %v470
      %492 = vmatpush.bf16.msra.mxu0 %v469
      %493 = vmatmul.bf16.gmra.mxu0 %v435
      %v494 = vpop.f32.mrf.mxu0
      %v495 = vadd.f32 %v429, %v494
      %v496 = vpop.f32.mrf.mxu0
      %v497 = vadd.f32 %v429, %v496
      %498 = vdwg.mxu0
      %v499 = vmax.f32 %v495, 0.0
      %v500 = vmax.f32 %v497, 0.0
      %501 = vst [vmem:[#allocation3 + $0x8] sm:$0xff] %v499
      %502 = vst [vmem:[#allocation3 + $0x10] sm:$0xff] %v500
      %v503 = vlaneseq
      %v504 = vshrl.u32 %v503, 7
      %v505 = vadd.s32 %v504, 8
      %vm506 = vcmp.lt.s32.totalorder %v504, 0
      %v507 = vsub.s32 0, %v504
      %v508 = vsel %vm506, %v507, %v504
      %v509 = vshrl.u32 %v508, 2
      %v510 = vand.u32 %v508, 3
      %v511 = vsub.s32 0, %v510
      %v512 = vsel %vm506, %v511, %v510
      %vm513 = vcmp.lt.s32.totalorder %v505, 0
      %v514 = vsub.s32 0, %v505
      %v515 = vsel %vm513, %v514, %v505
      %v516 = vshrl.u32 %v515, 2
      %v517 = vand.u32 %v515, 3
      %v518 = vsub.s32 0, %v517
      %v519 = vsel %vm513, %v518, %v517
      %vm520 = vcmp.ne.s32.totalorder %v512, 0
      %vm521 = vcmp.ne.s32.totalorder %v519, 0
      %vm522 = vcmp.lt.s32.totalorder %v512, 0
      %vm523 = vcmp.lt.s32.totalorder %v519, 0
      %vm524 = vmand %vm522, %vm520
      %vm525 = vmand %vm523, %vm521
      %v526 = vadd.s32 %v512, 4
      %v527 = vadd.s32 %v519, 4
      %v528 = vsel %vm524, %v526, %v512
      %v529 = vsel %vm525, %v527, %v519
      %vm530 = vcmp.gt.s32.totalorder %v528, 0
      %vm531 = vcmp.gt.s32.totalorder %v529, 0
      %vm532 = vcmp.lt.s32.totalorder %v528, 3
      %vm533 = vcmp.lt.s32.totalorder %v529, 3
      %v534 = vld [vmem:[#allocation3 + $0x7] sm:$0xff]
      %v535 = vld [vmem:[#allocation3 + $0xf] sm:$0xff]
      %v536 = vsel %vm530, %v534, 0.0
      %v537 = vsel %vm531, %v535, 0.0
      %v538 = vld [vmem:[#allocation3 + $0x9] sm:$0xff]
      %v539 = vld [vmem:[#allocation3 + $0x11] sm:$0xff]
      %v540 = vsel %vm532, %v538, 0.0
      %v541 = vsel %vm533, %v539, 0.0
      %v542 = vpack.c.bf16 %v537, %v536
      %v543 = vpack.c.bf16 %v500, %v499
      %v544 = vpack.c.bf16 %v541, %v540
      %v545 = vld [vmem:[%s380 + $0xc0] sm:$0xf]
      %v546 = vld [vmem:[%s380 + $0xc4] sm:$0xf]
      %v547 = vld [vmem:[%s380 + $0xc8] sm:$0xf]
      %v548 = vld [vmem:[%s380 + $0xcc] sm:$0xf]
      %v549 = vld [vmem:[%s380 + $0xd0] sm:$0xf]
      %v550 = vld [vmem:[%s380 + $0xd4] sm:$0xf]
      %v551 = vld [vmem:[%s380 + $0xd8] sm:$0xf]
      %v552 = vld [vmem:[%s380 + $0xdc] sm:$0xf]
      %v553 = vld [vmem:[%s380 + $0xe0] sm:$0xf]
      %v554 = vld [vmem:[%s380 + $0xe4] sm:$0xf]
      %v555 = vld [vmem:[%s380 + $0xe8] sm:$0xf]
      %v556 = vld [vmem:[%s380 + $0xec] sm:$0xf]
      %v557 = vld [vmem:[%s380 + $0xf0] sm:$0xf]
      %v558 = vld [vmem:[%s380 + $0xf4] sm:$0xf]
      %v559 = vld [vmem:[%s380 + $0xf8] sm:$0xf]
      %v560 = vld [vmem:[%s380 + $0xfc] sm:$0xf]
      %v561 = vld [vmem:[%s380 + $0x100] sm:$0xf]
      %v562 = vld [vmem:[%s380 + $0x104] sm:$0xf]
      %v563 = vld [vmem:[%s380 + $0x108] sm:$0xf]
      %v564 = vld [vmem:[%s380 + $0x10c] sm:$0xf]
      %v565 = vld [vmem:[%s380 + $0x110] sm:$0xf]
      %v566 = vld [vmem:[%s380 + $0x114] sm:$0xf]
      %v567 = vld [vmem:[%s380 + $0x118] sm:$0xf]
      %v568 = vld [vmem:[%s380 + $0x11c] sm:$0xf]
      %v569 = vld [vmem:[%s380 + $0x120] sm:$0xf]
      %v570 = vld [vmem:[%s380 + $0x124] sm:$0xf]
      %v571 = vld [vmem:[%s380 + $0x128] sm:$0xf]
      %v572 = vld [vmem:[%s380 + $0x12c] sm:$0xf]
      %v573 = vld [vmem:[%s380 + $0x130] sm:$0xf]
      %v574 = vld [vmem:[%s380 + $0x134] sm:$0xf]
      %v575 = vld [vmem:[%s380 + $0x138] sm:$0xf]
      %v576 = vld [vmem:[%s380 + $0x13c] sm:$0xf]
      %v577 = vld [vmem:[%s380 + $0x140] sm:$0xf]
      %v578 = vld [vmem:[%s380 + $0x144] sm:$0xf]
      %v579 = vld [vmem:[%s380 + $0x148] sm:$0xf]
      %v580 = vld [vmem:[%s380 + $0x14c] sm:$0xf]
      %v581 = vld [vmem:[%s380 + $0x150] sm:$0xf]
      %v582 = vld [vmem:[%s380 + $0x154] sm:$0xf]
      %v583 = vld [vmem:[%s380 + $0x158] sm:$0xf]
      %v584 = vld [vmem:[%s380 + $0x15c] sm:$0xf]
      %v585 = vld [vmem:[%s380 + $0x160] sm:$0xf]
      %v586 = vld [vmem:[%s380 + $0x164] sm:$0xf]
      %v587 = vld [vmem:[%s380 + $0x168] sm:$0xf]
      %v588 = vld [vmem:[%s380 + $0x16c] sm:$0xf]
      %v589 = vld [vmem:[%s380 + $0x170] sm:$0xf]
      %v590 = vld [vmem:[%s380 + $0x174] sm:$0xf]
      %v591 = vld [vmem:[%s380 + $0x178] sm:$0xf]
      %v592 = vld [vmem:[%s380 + $0x17c] sm:$0xf]
      %v593 = vld [vmem:[#allocation3 + $0x4] sm:$0xff]
      %v594 = vld [vmem:[#allocation3 + $0xc] sm:$0xff]
      %v595 = vld [vmem:[#allocation3 + $0x3] sm:$0xff]
      %v596 = vld [vmem:[#allocation3 + $0xb] sm:$0xff]
      %v597 = vsel %vm530, %v595, 0.0
      %v598 = vsel %vm531, %v596, 0.0
      %v599 = vld [vmem:[#allocation3 + $0x5] sm:$0xff]
      %v600 = vld [vmem:[#allocation3 + $0xd] sm:$0xff]
      %v601 = vsel %vm532, %v599, 0.0
      %v602 = vsel %vm533, %v600, 0.0
      %v603 = vpack.c.bf16 %v598, %v597
      %v604 = vpack.c.bf16 %v594, %v593
      %v605 = vpack.c.bf16 %v602, %v601
      %v606 = vld [vmem:[%s380] sm:$0xf]
      %v607 = vld [vmem:[%s380 + $0x4] sm:$0xf]
      %v608 = vld [vmem:[%s380 + $0x8] sm:$0xf]
      %v609 = vld [vmem:[%s380 + $0xc] sm:$0xf]
      %v610 = vld [vmem:[%s380 + $0x10] sm:$0xf]
      %v611 = vld [vmem:[%s380 + $0x14] sm:$0xf]
      %v612 = vld [vmem:[%s380 + $0x18] sm:$0xf]
      %v613 = vld [vmem:[%s380 + $0x1c] sm:$0xf]
      %v614 = vld [vmem:[%s380 + $0x20] sm:$0xf]
      %v615 = vld [vmem:[%s380 + $0x24] sm:$0xf]
      %v616 = vld [vmem:[%s380 + $0x28] sm:$0xf]
      %v617 = vld [vmem:[%s380 + $0x2c] sm:$0xf]
      %v618 = vld [vmem:[%s380 + $0x30] sm:$0xf]
      %v619 = vld [vmem:[%s380 + $0x34] sm:$0xf]
      %v620 = vld [vmem:[%s380 + $0x38] sm:$0xf]
      %v621 = vld [vmem:[%s380 + $0x3c] sm:$0xf]
      %v622 = vld [vmem:[%s380 + $0x40] sm:$0xf]
      %v623 = vld [vmem:[%s380 + $0x44] sm:$0xf]
      %v624 = vld [vmem:[%s380 + $0x48] sm:$0xf]
      %v625 = vld [vmem:[%s380 + $0x4c] sm:$0xf]
      %v626 = vld [vmem:[%s380 + $0x50] sm:$0xf]
      %v627 = vld [vmem:[%s380 + $0x54] sm:$0xf]
      %v628 = vld [vmem:[%s380 + $0x58] sm:$0xf]
      %v629 = vld [vmem:[%s380 + $0x5c] sm:$0xf]
      %v630 = vld [vmem:[%s380 + $0x60] sm:$0xf]
      %v631 = vld [vmem:[%s380 + $0x64] sm:$0xf]
      %v632 = vld [vmem:[%s380 + $0x68] sm:$0xf]
      %v633 = vld [vmem:[%s380 + $0x6c] sm:$0xf]
      %v634 = vld [vmem:[%s380 + $0x70] sm:$0xf]
      %v635 = vld [vmem:[%s380 + $0x74] sm:$0xf]
      %v636 = vld [vmem:[%s380 + $0x78] sm:$0xf]
      %v637 = vld [vmem:[%s380 + $0x7c] sm:$0xf]
      %v638 = vld [vmem:[%s380 + $0x80] sm:$0xf]
      %v639 = vld [vmem:[%s380 + $0x84] sm:$0xf]
      %v640 = vld [vmem:[%s380 + $0x88] sm:$0xf]
      %v641 = vld [vmem:[%s380 + $0x8c] sm:$0xf]
      %v642 = vld [vmem:[%s380 + $0x90] sm:$0xf]
      %v643 = vld [vmem:[%s380 + $0x94] sm:$0xf]
      %v644 = vld [vmem:[%s380 + $0x98] sm:$0xf]
      %v645 = vld [vmem:[%s380 + $0x9c] sm:$0xf]
      %v646 = vld [vmem:[%s380 + $0xa0] sm:$0xf]
      %v647 = vld [vmem:[%s380 + $0xa4] sm:$0xf]
      %v648 = vld [vmem:[%s380 + $0xa8] sm:$0xf]
      %v649 = vld [vmem:[%s380 + $0xac] sm:$0xf]
      %v650 = vld [vmem:[%s380 + $0xb0] sm:$0xf]
      %v651 = vld [vmem:[%s380 + $0xb4] sm:$0xf]
      %v652 = vld [vmem:[%s380 + $0xb8] sm:$0xf]
      %v653 = vld [vmem:[%s380 + $0xbc] sm:$0xf]
      %v702 = vunpack.c.l.b16 %v606
      %v703 = vunpack.c.l.b16 %v607
      %v704 = vunpack.c.l.b16 %v608
      %v705 = vunpack.c.l.b16 %v609
      %v706 = vunpack.c.l.b16 %v610
      %v707 = vunpack.c.l.b16 %v611
      %v708 = vunpack.c.l.b16 %v612
      %v709 = vunpack.c.l.b16 %v613
      %v710 = vunpack.c.l.b16 %v614
      %v711 = vunpack.c.l.b16 %v615
      %v712 = vunpack.c.l.b16 %v616
      %v713 = vunpack.c.l.b16 %v617
      %v714 = vunpack.c.l.b16 %v618
      %v715 = vunpack.c.l.b16 %v619
      %v716 = vunpack.c.l.b16 %v620
      %v717 = vunpack.c.l.b16 %v621
      %v718 = vunpack.c.l.b16 %v622
      %v719 = vunpack.c.l.b16 %v623
      %v720 = vunpack.c.l.b16 %v624
      %v721 = vunpack.c.l.b16 %v625
      %v722 = vunpack.c.l.b16 %v626
      %v723 = vunpack.c.l.b16 %v627
      %v724 = vunpack.c.l.b16 %v628
      %v725 = vunpack.c.l.b16 %v629
      %v726 = vunpack.c.l.b16 %v630
      %v727 = vunpack.c.l.b16 %v631
      %v728 = vunpack.c.l.b16 %v632
      %v729 = vunpack.c.l.b16 %v633
      %v730 = vunpack.c.l.b16 %v634
      %v731 = vunpack.c.l.b16 %v635
      %v732 = vunpack.c.l.b16 %v636
      %v733 = vunpack.c.l.b16 %v637
      %v734 = vunpack.c.l.b16 %v638
      %v735 = vunpack.c.l.b16 %v639
      %v736 = vunpack.c.l.b16 %v640
      %v737 = vunpack.c.l.b16 %v641
      %v738 = vunpack.c.l.b16 %v642
      %v739 = vunpack.c.l.b16 %v643
      %v740 = vunpack.c.l.b16 %v644
      %v741 = vunpack.c.l.b16 %v645
      %v742 = vunpack.c.l.b16 %v646
      %v743 = vunpack.c.l.b16 %v647
      %v744 = vunpack.c.l.b16 %v648
      %v745 = vunpack.c.l.b16 %v649
      %v746 = vunpack.c.l.b16 %v650
      %v747 = vunpack.c.l.b16 %v651
      %v748 = vunpack.c.l.b16 %v652
      %v749 = vunpack.c.l.b16 %v653
      %v750 = vpack.c.b16 %v703, %v702
      %v751 = vpack.c.b16 %v705, %v704
      %v752 = vpack.c.b16 %v707, %v706
      %v753 = vpack.c.b16 %v709, %v708
      %v754 = vpack.c.b16 %v711, %v710
      %v755 = vpack.c.b16 %v713, %v712
      %v756 = vpack.c.b16 %v715, %v714
      %v757 = vpack.c.b16 %v717, %v716
      %v758 = vpack.c.b16 %v719, %v718
      %v759 = vpack.c.b16 %v721, %v720
      %v760 = vpack.c.b16 %v723, %v722
      %v761 = vpack.c.b16 %v725, %v724
      %v762 = vpack.c.b16 %v727, %v726
      %v763 = vpack.c.b16 %v729, %v728
      %v764 = vpack.c.b16 %v731, %v730
      %v765 = vpack.c.b16 %v733, %v732
      %v766 = vpack.c.b16 %v735, %v734
      %v767 = vpack.c.b16 %v737, %v736
      %v768 = vpack.c.b16 %v739, %v738
      %v769 = vpack.c.b16 %v741, %v740
      %v770 = vpack.c.b16 %v743, %v742
      %v771 = vpack.c.b16 %v745, %v744
      %v772 = vpack.c.b16 %v747, %v746
      %v773 = vpack.c.b16 %v749, %v748
      %798 = vmatpush.bf16.msra.mxu0 %v757
      %799 = vmatpush.bf16.msra.mxu0 %v756
      %800 = vmatpush.bf16.msra.mxu0 %v755
      %801 = vmatpush.bf16.msra.mxu0 %v754
      %802 = vmatpush.bf16.msra.mxu0 %v753
      %803 = vmatpush.bf16.msra.mxu0 %v752
      %804 = vmatpush.bf16.msra.mxu0 %v751
      %805 = vmatpush.bf16.msra.mxu0 %v750
      %806 = vmatmul.bf16.gmra.mxu0 %v603
      %v807 = vpop.f32.mrf.mxu0
      %v808 = vadd.f32 0.0, %v807
      %v809 = vpop.f32.mrf.mxu0
      %v810 = vadd.f32 0.0, %v809
      %811 = vdwg.mxu0
      %812 = vmatpush.bf16.msra.mxu0 %v765
      %813 = vmatpush.bf16.msra.mxu0 %v764
      %814 = vmatpush.bf16.msra.mxu0 %v763
      %815 = vmatpush.bf16.msra.mxu0 %v762
      %816 = vmatpush.bf16.msra.mxu0 %v761
      %817 = vmatpush.bf16.msra.mxu0 %v760
      %818 = vmatpush.bf16.msra.mxu0 %v759
      %819 = vmatpush.bf16.msra.mxu0 %v758
      %820 = vmatmul.bf16.gmra.mxu0 %v604
      %v821 = vpop.f32.mrf.mxu0
      %v822 = vadd.f32 %v808, %v821
      %v823 = vpop.f32.mrf.mxu0
      %v824 = vadd.f32 %v810, %v823
      %825 = vdwg.mxu0
      %826 = vmatpush.bf16.msra.mxu0 %v773
      %827 = vmatpush.bf16.msra.mxu0 %v772
      %828 = vmatpush.bf16.msra.mxu0 %v771
      %829 = vmatpush.bf16.msra.mxu0 %v770
      %830 = vmatpush.bf16.msra.mxu0 %v769
      %831 = vmatpush.bf16.msra.mxu0 %v768
      %832 = vmatpush.bf16.msra.mxu0 %v767
      %833 = vmatpush.bf16.msra.mxu0 %v766
      %834 = vmatmul.bf16.gmra.mxu0 %v605
      %v835 = vpop.f32.mrf.mxu0
      %v836 = vadd.f32 %v822, %v835
      %v837 = vpop.f32.mrf.mxu0
      %v838 = vadd.f32 %v824, %v837
      %839 = vdwg.mxu0
      %v888 = vunpack.c.l.b16 %v545
      %v889 = vunpack.c.l.b16 %v546
      %v890 = vunpack.c.l.b16 %v547
      %v891 = vunpack.c.l.b16 %v548
      %v892 = vunpack.c.l.b16 %v549
      %v893 = vunpack.c.l.b16 %v550
      %v894 = vunpack.c.l.b16 %v551
      %v895 = vunpack.c.l.b16 %v552
      %v896 = vunpack.c.l.b16 %v553
      %v897 = vunpack.c.l.b16 %v554
      %v898 = vunpack.c.l.b16 %v555
      %v899 = vunpack.c.l.b16 %v556
      %v900 = vunpack.c.l.b16 %v557
      %v901 = vunpack.c.l.b16 %v558
      %v902 = vunpack.c.l.b16 %v559
      %v903 = vunpack.c.l.b16 %v560
      %v904 = vunpack.c.l.b16 %v561
      %v905 = vunpack.c.l.b16 %v562
      %v906 = vunpack.c.l.b16 %v563
      %v907 = vunpack.c.l.b16 %v564
      %v908 = vunpack.c.l.b16 %v565
      %v909 = vunpack.c.l.b16 %v566
      %v910 = vunpack.c.l.b16 %v567
      %v911 = vunpack.c.l.b16 %v568
      %v912 = vunpack.c.l.b16 %v569
      %v913 = vunpack.c.l.b16 %v570
      %v914 = vunpack.c.l.b16 %v571
      %v915 = vunpack.c.l.b16 %v572
      %v916 = vunpack.c.l.b16 %v573
      %v917 = vunpack.c.l.b16 %v574
      %v918 = vunpack.c.l.b16 %v575
      %v919 = vunpack.c.l.b16 %v576
      %v920 = vunpack.c.l.b16 %v577
      %v921 = vunpack.c.l.b16 %v578
      %v922 = vunpack.c.l.b16 %v579
      %v923 = vunpack.c.l.b16 %v580
      %v924 = vunpack.c.l.b16 %v581
      %v925 = vunpack.c.l.b16 %v582
      %v926 = vunpack.c.l.b16 %v583
      %v927 = vunpack.c.l.b16 %v584
      %v928 = vunpack.c.l.b16 %v585
      %v929 = vunpack.c.l.b16 %v586
      %v930 = vunpack.c.l.b16 %v587
      %v931 = vunpack.c.l.b16 %v588
      %v932 = vunpack.c.l.b16 %v589
      %v933 = vunpack.c.l.b16 %v590
      %v934 = vunpack.c.l.b16 %v591
      %v935 = vunpack.c.l.b16 %v592
      %v936 = vpack.c.b16 %v889, %v888
      %v937 = vpack.c.b16 %v891, %v890
      %v938 = vpack.c.b16 %v893, %v892
      %v939 = vpack.c.b16 %v895, %v894
      %v940 = vpack.c.b16 %v897, %v896
      %v941 = vpack.c.b16 %v899, %v898
      %v942 = vpack.c.b16 %v901, %v900
      %v943 = vpack.c.b16 %v903, %v902
      %v944 = vpack.c.b16 %v905, %v904
      %v945 = vpack.c.b16 %v907, %v906
      %v946 = vpack.c.b16 %v909, %v908
      %v947 = vpack.c.b16 %v911, %v910
      %v948 = vpack.c.b16 %v913, %v912
      %v949 = vpack.c.b16 %v915, %v914
      %v950 = vpack.c.b16 %v917, %v916
      %v951 = vpack.c.b16 %v919, %v918
      %v952 = vpack.c.b16 %v921, %v920
      %v953 = vpack.c.b16 %v923, %v922
      %v954 = vpack.c.b16 %v925, %v924
      %v955 = vpack.c.b16 %v927, %v926
      %v956 = vpack.c.b16 %v929, %v928
      %v957 = vpack.c.b16 %v931, %v930
      %v958 = vpack.c.b16 %v933, %v932
      %v959 = vpack.c.b16 %v935, %v934
      %984 = vmatpush.bf16.msra.mxu0 %v943
      %985 = vmatpush.bf16.msra.mxu0 %v942
      %986 = vmatpush.bf16.msra.mxu0 %v941
      %987 = vmatpush.bf16.msra.mxu0 %v940
      %988 = vmatpush.bf16.msra.mxu0 %v939
      %989 = vmatpush.bf16.msra.mxu0 %v938
      %990 = vmatpush.bf16.msra.mxu0 %v937
      %991 = vmatpush.bf16.msra.mxu0 %v936
      %992 = vmatmul.bf16.gmra.mxu0 %v542
      %v993 = vpop.f32.mrf.mxu0
      %v994 = vadd.f32 %v836, %v993
      %v995 = vpop.f32.mrf.mxu0
      %v996 = vadd.f32 %v838, %v995
      %997 = vdwg.mxu0
      %998 = vmatpush.bf16.msra.mxu0 %v951
      %999 = vmatpush.bf16.msra.mxu0 %v950
      %1000 = vmatpush.bf16.msra.mxu0 %v949
      %1001 = vmatpush.bf16.msra.mxu0 %v948
      %1002 = vmatpush.bf16.msra.mxu0 %v947
      %1003 = vmatpush.bf16.msra.mxu0 %v946
      %1004 = vmatpush.bf16.msra.mxu0 %v945
      %1005 = vmatpush.bf16.msra.mxu0 %v944
      %1006 = vmatmul.bf16.gmra.mxu0 %v543
      %v1007 = vpop.f32.mrf.mxu0
      %v1008 = vadd.f32 %v994, %v1007
      %v1009 = vpop.f32.mrf.mxu0
      %v1010 = vadd.f32 %v996, %v1009
      %1011 = vdwg.mxu0
      %1012 = vmatpush.bf16.msra.mxu0 %v959
      %1013 = vmatpush.bf16.msra.mxu0 %v958
      %1014 = vmatpush.bf16.msra.mxu0 %v957
      %1015 = vmatpush.bf16.msra.mxu0 %v956
      %1016 = vmatpush.bf16.msra.mxu0 %v955
      %1017 = vmatpush.bf16.msra.mxu0 %v954
      %1018 = vmatpush.bf16.msra.mxu0 %v953
      %1019 = vmatpush.bf16.msra.mxu0 %v952
      %1020 = vmatmul.bf16.gmra.mxu0 %v544
      %v1021 = vpop.f32.mrf.mxu0
      %v1022 = vadd.f32 %v1008, %v1021
      %v1023 = vpop.f32.mrf.mxu0
      %v1024 = vadd.f32 %v1010, %v1023
      %1025 = vdwg.mxu0
      %v1026 = vld [vmem:[#allocation3 + $0xc] sm:$0xff]
      %v1027 = vld [vmem:[#allocation3 + $0x14] sm:$0xff]
      %v1028 = vld [vmem:[#allocation3 + $0xb] sm:$0xff]
      %v1029 = vld [vmem:[#allocation3 + $0x13] sm:$0xff]
      %v1030 = vsel %vm530, %v1028, 0.0
      %v1031 = vsel %vm531, %v1029, 0.0
      %v1032 = vld [vmem:[#allocation3 + $0xd] sm:$0xff]
      %v1033 = vld [vmem:[#allocation3 + $0x15] sm:$0xff]
      %v1034 = vsel %vm532, %v1032, 0.0
      %v1035 = vsel %vm533, %v1033, 0.0
      %v1036 = vpack.c.bf16 %v1031, %v1030
      %v1037 = vpack.c.bf16 %v1027, %v1026
      %v1038 = vpack.c.bf16 %v1035, %v1034
      %v1039 = vld [vmem:[%s380 + $0x180] sm:$0xf]
      %v1040 = vld [vmem:[%s380 + $0x184] sm:$0xf]
      %v1041 = vld [vmem:[%s380 + $0x188] sm:$0xf]
      %v1042 = vld [vmem:[%s380 + $0x18c] sm:$0xf]
      %v1043 = vld [vmem:[%s380 + $0x190] sm:$0xf]
      %v1044 = vld [vmem:[%s380 + $0x194] sm:$0xf]
      %v1045 = vld [vmem:[%s380 + $0x198] sm:$0xf]
      %v1046 = vld [vmem:[%s380 + $0x19c] sm:$0xf]
      %v1047 = vld [vmem:[%s380 + $0x1a0] sm:$0xf]
      %v1048 = vld [vmem:[%s380 + $0x1a4] sm:$0xf]
      %v1049 = vld [vmem:[%s380 + $0x1a8] sm:$0xf]
      %v1050 = vld [vmem:[%s380 + $0x1ac] sm:$0xf]
      %v1051 = vld [vmem:[%s380 + $0x1b0] sm:$0xf]
      %v1052 = vld [vmem:[%s380 + $0x1b4] sm:$0xf]
      %v1053 = vld [vmem:[%s380 + $0x1b8] sm:$0xf]
      %v1054 = vld [vmem:[%s380 + $0x1bc] sm:$0xf]
      %v1055 = vld [vmem:[%s380 + $0x1c0] sm:$0xf]
      %v1056 = vld [vmem:[%s380 + $0x1c4] sm:$0xf]
      %v1057 = vld [vmem:[%s380 + $0x1c8] sm:$0xf]
      %v1058 = vld [vmem:[%s380 + $0x1cc] sm:$0xf]
      %v1059 = vld [vmem:[%s380 + $0x1d0] sm:$0xf]
      %v1060 = vld [vmem:[%s380 + $0x1d4] sm:$0xf]
      %v1061 = vld [vmem:[%s380 + $0x1d8] sm:$0xf]
      %v1062 = vld [vmem:[%s380 + $0x1dc] sm:$0xf]
      %v1063 = vld [vmem:[%s380 + $0x1e0] sm:$0xf]
      %v1064 = vld [vmem:[%s380 + $0x1e4] sm:$0xf]
      %v1065 = vld [vmem:[%s380 + $0x1e8] sm:$0xf]
      %v1066 = vld [vmem:[%s380 + $0x1ec] sm:$0xf]
      %v1067 = vld [vmem:[%s380 + $0x1f0] sm:$0xf]
      %v1068 = vld [vmem:[%s380 + $0x1f4] sm:$0xf]
      %v1069 = vld [vmem:[%s380 + $0x1f8] sm:$0xf]
      %v1070 = vld [vmem:[%s380 + $0x1fc] sm:$0xf]
      %v1071 = vld [vmem:[%s380 + $0x200] sm:$0xf]
      %v1072 = vld [vmem:[%s380 + $0x204] sm:$0xf]
      %v1073 = vld [vmem:[%s380 + $0x208] sm:$0xf]
      %v1074 = vld [vmem:[%s380 + $0x20c] sm:$0xf]
      %v1075 = vld [vmem:[%s380 + $0x210] sm:$0xf]
      %v1076 = vld [vmem:[%s380 + $0x214] sm:$0xf]
      %v1077 = vld [vmem:[%s380 + $0x218] sm:$0xf]
      %v1078 = vld [vmem:[%s380 + $0x21c] sm:$0xf]
      %v1079 = vld [vmem:[%s380 + $0x220] sm:$0xf]
      %v1080 = vld [vmem:[%s380 + $0x224] sm:$0xf]
      %v1081 = vld [vmem:[%s380 + $0x228] sm:$0xf]
      %v1082 = vld [vmem:[%s380 + $0x22c] sm:$0xf]
      %v1083 = vld [vmem:[%s380 + $0x230] sm:$0xf]
      %v1084 = vld [vmem:[%s380 + $0x234] sm:$0xf]
      %v1085 = vld [vmem:[%s380 + $0x238] sm:$0xf]
      %v1086 = vld [vmem:[%s380 + $0x23c] sm:$0xf]
      %v1135 = vunpack.c.l.b16 %v1039
      %v1136 = vunpack.c.l.b16 %v1040
      %v1137 = vunpack.c.l.b16 %v1041
      %v1138 = vunpack.c.l.b16 %v1042
      %v1139 = vunpack.c.l.b16 %v1043
      %v1140 = vunpack.c.l.b16 %v1044
      %v1141 = vunpack.c.l.b16 %v1045
      %v1142 = vunpack.c.l.b16 %v1046
      %v1143 = vunpack.c.l.b16 %v1047
      %v1144 = vunpack.c.l.b16 %v1048
      %v1145 = vunpack.c.l.b16 %v1049
      %v1146 = vunpack.c.l.b16 %v1050
      %v1147 = vunpack.c.l.b16 %v1051
      %v1148 = vunpack.c.l.b16 %v1052
      %v1149 = vunpack.c.l.b16 %v1053
      %v1150 = vunpack.c.l.b16 %v1054
      %v1151 = vunpack.c.l.b16 %v1055
      %v1152 = vunpack.c.l.b16 %v1056
      %v1153 = vunpack.c.l.b16 %v1057
      %v1154 = vunpack.c.l.b16 %v1058
      %v1155 = vunpack.c.l.b16 %v1059
      %v1156 = vunpack.c.l.b16 %v1060
      %v1157 = vunpack.c.l.b16 %v1061
      %v1158 = vunpack.c.l.b16 %v1062
      %v1159 = vunpack.c.l.b16 %v1063
      %v1160 = vunpack.c.l.b16 %v1064
      %v1161 = vunpack.c.l.b16 %v1065
      %v1162 = vunpack.c.l.b16 %v1066
      %v1163 = vunpack.c.l.b16 %v1067
      %v1164 = vunpack.c.l.b16 %v1068
      %v1165 = vunpack.c.l.b16 %v1069
      %v1166 = vunpack.c.l.b16 %v1070
      %v1167 = vunpack.c.l.b16 %v1071
      %v1168 = vunpack.c.l.b16 %v1072
      %v1169 = vunpack.c.l.b16 %v1073
      %v1170 = vunpack.c.l.b16 %v1074
      %v1171 = vunpack.c.l.b16 %v1075
      %v1172 = vunpack.c.l.b16 %v1076
      %v1173 = vunpack.c.l.b16 %v1077
      %v1174 = vunpack.c.l.b16 %v1078
      %v1175 = vunpack.c.l.b16 %v1079
      %v1176 = vunpack.c.l.b16 %v1080
      %v1177 = vunpack.c.l.b16 %v1081
      %v1178 = vunpack.c.l.b16 %v1082
      %v1179 = vunpack.c.l.b16 %v1083
      %v1180 = vunpack.c.l.b16 %v1084
      %v1181 = vunpack.c.l.b16 %v1085
      %v1182 = vunpack.c.l.b16 %v1086
      %v1183 = vpack.c.b16 %v1136, %v1135
      %v1184 = vpack.c.b16 %v1138, %v1137
      %v1185 = vpack.c.b16 %v1140, %v1139
      %v1186 = vpack.c.b16 %v1142, %v1141
      %v1187 = vpack.c.b16 %v1144, %v1143
      %v1188 = vpack.c.b16 %v1146, %v1145
      %v1189 = vpack.c.b16 %v1148, %v1147
      %v1190 = vpack.c.b16 %v1150, %v1149
      %v1191 = vpack.c.b16 %v1152, %v1151
      %v1192 = vpack.c.b16 %v1154, %v1153
      %v1193 = vpack.c.b16 %v1156, %v1155
      %v1194 = vpack.c.b16 %v1158, %v1157
      %v1195 = vpack.c.b16 %v1160, %v1159
      %v1196 = vpack.c.b16 %v1162, %v1161
      %v1197 = vpack.c.b16 %v1164, %v1163
      %v1198 = vpack.c.b16 %v1166, %v1165
      %v1199 = vpack.c.b16 %v1168, %v1167
      %v1200 = vpack.c.b16 %v1170, %v1169
      %v1201 = vpack.c.b16 %v1172, %v1171
      %v1202 = vpack.c.b16 %v1174, %v1173
      %v1203 = vpack.c.b16 %v1176, %v1175
      %v1204 = vpack.c.b16 %v1178, %v1177
      %v1205 = vpack.c.b16 %v1180, %v1179
      %v1206 = vpack.c.b16 %v1182, %v1181
      %1231 = vmatpush.bf16.msra.mxu0 %v1190
      %1232 = vmatpush.bf16.msra.mxu0 %v1189
      %1233 = vmatpush.bf16.msra.mxu0 %v1188
      %1234 = vmatpush.bf16.msra.mxu0 %v1187
      %1235 = vmatpush.bf16.msra.mxu0 %v1186
      %1236 = vmatpush.bf16.msra.mxu0 %v1185
      %1237 = vmatpush.bf16.msra.mxu0 %v1184
      %1238 = vmatpush.bf16.msra.mxu0 %v1183
      %1239 = vmatmul.bf16.gmra.mxu0 %v1036
      %v1240 = vpop.f32.mrf.mxu0
      %v1241 = vadd.f32 0.0, %v1240
      %v1242 = vpop.f32.mrf.mxu0
      %v1243 = vadd.f32 0.0, %v1242
      %1244 = vdwg.mxu0
      %1245 = vmatpush.bf16.msra.mxu0 %v1198
      %1246 = vmatpush.bf16.msra.mxu0 %v1197
      %1247 = vmatpush.bf16.msra.mxu0 %v1196
      %1248 = vmatpush.bf16.msra.mxu0 %v1195
      %1249 = vmatpush.bf16.msra.mxu0 %v1194
      %1250 = vmatpush.bf16.msra.mxu0 %v1193
      %1251 = vmatpush.bf16.msra.mxu0 %v1192
      %1252 = vmatpush.bf16.msra.mxu0 %v1191
      %1253 = vmatmul.bf16.gmra.mxu0 %v1037
      %v1254 = vpop.f32.mrf.mxu0
      %v1255 = vadd.f32 %v1241, %v1254
      %v1256 = vpop.f32.mrf.mxu0
      %v1257 = vadd.f32 %v1243, %v1256
      %1258 = vdwg.mxu0
      %1259 = vmatpush.bf16.msra.mxu0 %v1206
      %1260 = vmatpush.bf16.msra.mxu0 %v1205
      %1261 = vmatpush.bf16.msra.mxu0 %v1204
      %1262 = vmatpush.bf16.msra.mxu0 %v1203
      %1263 = vmatpush.bf16.msra.mxu0 %v1202
      %1264 = vmatpush.bf16.msra.mxu0 %v1201
      %1265 = vmatpush.bf16.msra.mxu0 %v1200
      %1266 = vmatpush.bf16.msra.mxu0 %v1199
      %1267 = vmatmul.bf16.gmra.mxu0 %v1038
      %v1268 = vpop.f32.mrf.mxu0
      %v1269 = vadd.f32 %v1255, %v1268
      %v1270 = vpop.f32.mrf.mxu0
      %v1271 = vadd.f32 %v1257, %v1270
      %1272 = vdwg.mxu0
      %v1273 = vadd.f32 %v1022, %v1269
      %v1274 = vadd.f32 %v1024, %v1271
      %v1275 = vld [vmem:[%s384] sm:$0x1]
      %v1277 = vperm.slane %v1275, 0
      %v1279 = vadd.f32 %v1273, %v1277
      %v1280 = vadd.f32 %v1274, %v1277
      %v1281 = vmax.f32 %v1279, 0.0
      %v1282 = vmax.f32 %v1280, 0.0
      %v1283 = vpack.c.bf16 %v1282, %v1281
      %v1284 = vld [vmem:[%s389] sm:$0xf]
      %v1285 = vld [vmem:[%s389 + $0x4] sm:$0xf]
      %v1286 = vld [vmem:[%s389 + $0x8] sm:$0xf]
      %v1287 = vld [vmem:[%s389 + $0xc] sm:$0xf]
      %v1288 = vld [vmem:[%s389 + $0x10] sm:$0xf]
      %v1289 = vld [vmem:[%s389 + $0x14] sm:$0xf]
      %v1290 = vld [vmem:[%s389 + $0x18] sm:$0xf]
      %v1291 = vld [vmem:[%s389 + $0x1c] sm:$0xf]
      %v1292 = vld [vmem:[%s389 + $0x20] sm:$0xf]
      %v1293 = vld [vmem:[%s389 + $0x24] sm:$0xf]
      %v1294 = vld [vmem:[%s389 + $0x28] sm:$0xf]
      %v1295 = vld [vmem:[%s389 + $0x2c] sm:$0xf]
      %v1296 = vld [vmem:[%s389 + $0x30] sm:$0xf]
      %v1297 = vld [vmem:[%s389 + $0x34] sm:$0xf]
      %v1298 = vld [vmem:[%s389 + $0x38] sm:$0xf]
      %v1299 = vld [vmem:[%s389 + $0x3c] sm:$0xf]
      %v1300 = vld [vmem:[%s393] sm:$0x1]
      %v1302 = vperm.slane %v1300, 0
      %v1320 = vunpack.c.l.b16 %v1284
      %v1321 = vunpack.c.l.b16 %v1285
      %v1322 = vunpack.c.l.b16 %v1286
      %v1323 = vunpack.c.l.b16 %v1287
      %v1324 = vunpack.c.l.b16 %v1288
      %v1325 = vunpack.c.l.b16 %v1289
      %v1326 = vunpack.c.l.b16 %v1290
      %v1327 = vunpack.c.l.b16 %v1291
      %v1328 = vunpack.c.l.b16 %v1292
      %v1329 = vunpack.c.l.b16 %v1293
      %v1330 = vunpack.c.l.b16 %v1294
      %v1331 = vunpack.c.l.b16 %v1295
      %v1332 = vunpack.c.l.b16 %v1296
      %v1333 = vunpack.c.l.b16 %v1297
      %v1334 = vunpack.c.l.b16 %v1298
      %v1335 = vunpack.c.l.b16 %v1299
      %v1336 = vpack.c.b16 %v1321, %v1320
      %v1337 = vpack.c.b16 %v1323, %v1322
      %v1338 = vpack.c.b16 %v1325, %v1324
      %v1339 = vpack.c.b16 %v1327, %v1326
      %v1340 = vpack.c.b16 %v1329, %v1328
      %v1341 = vpack.c.b16 %v1331, %v1330
      %v1342 = vpack.c.b16 %v1333, %v1332
      %v1343 = vpack.c.b16 %v1335, %v1334
      %1352 = vmatpush.bf16.msra.mxu0 %v1343
      %1353 = vmatpush.bf16.msra.mxu0 %v1342
      %1354 = vmatpush.bf16.msra.mxu0 %v1341
      %1355 = vmatpush.bf16.msra.mxu0 %v1340
      %1356 = vmatpush.bf16.msra.mxu0 %v1339
      %1357 = vmatpush.bf16.msra.mxu0 %v1338
      %1358 = vmatpush.bf16.msra.mxu0 %v1337
      %1359 = vmatpush.bf16.msra.mxu0 %v1336
      %1360 = vmatmul.bf16.gmra.mxu0 %v1283
      %v1361 = vpop.f32.mrf.mxu0
      %v1362 = vadd.f32 %v1302, %v1361
      %v1363 = vpop.f32.mrf.mxu0
      %v1364 = vadd.f32 %v1302, %v1363
      %1365 = vdwg.mxu0
      %v1366 = vunpack.c.l.bf16 %v409
      %v1367 = vunpack.c.l.bf16 %v410
      %v1368 = vadd.f32 %v1362, %v1366
      %v1369 = vadd.f32 %v1364, %v1367
      %v1370 = vmax.f32 %v1368, 0.0
      %v1371 = vmax.f32 %v1369, 0.0
      %v1372 = vpack.c.bf16 %v1370, %v1370
      %v1373 = vpack.c.bf16 %v1371, %v1371
      %1374 = vst [vmem:[#allocation2] sm:$0xf] %v1372
      %1375 = vst [vmem:[#allocation2 + $0x4] sm:$0xf] %v1373
      %p1376 = scmp.eq.s32.totalorder %s23, 1
      // Predicated region
      $region53: #{bottleneck_resnet.9} parent=47 // pred_check
        %p1377 = pneg %p1376
      $region54: #{bottleneck_resnet.9} parent=47 // pred_check_branch
        %1379 = sbr.rel (%p1377) target = $region56
      $region55: #{bottleneck_resnet.9} parent=47 // pred_region
        %1380 = vst [vmem:[%s398] sm:$0xf] %v1372
        %1381 = vst [vmem:[%s398 + $0x4] sm:$0xf] %v1373
      $region56: #{bottleneck_resnet.9} parent=47 // pred_fallthru
        _
      %p1382 = scmp.lt.s32.totalorder %s22, 1
      %s1383 = scalar_select %p1382, %s22, 1
      %s1384 = smul.addr %s1383, 2
      %s1385 = smul.addr %s1384, 4
      %s1386 = scalar_lea.vmem %s7, %s1385
      // Predicated region
      $region57: #{bottleneck_resnet.9} parent=47 // pred_check
        %p1387 = pneg %p230
      $region58: #{bottleneck_resnet.9} parent=47 // pred_check_branch
        %1389 = sbr.rel (%p1387) target = $region60
      $region59: #{bottleneck_resnet.9} parent=47 // pred_region
        _
      $region60: #{bottleneck_resnet.9} parent=47 // pred_fallthru
        _
    $region48: #{bottleneck_resnet.9} parent=5 // pred_fallthru
      _
    %p1390 = scmp.le.s32.totalorder 2, %s13
    // Predicated region
    $region61: #{bottleneck_resnet.9} parent=5 // pred_check
      %p1391 = pneg %p1390
    $region62: #{bottleneck_resnet.9} parent=5 // pred_check_branch
      %1393 = sbr.rel (%p1391) target = $region64
    $region63: #{bottleneck_resnet.9} parent=5 // pred_region
      %s1394 = ssub.s32 %s13, 2
      // Predicated region
      $region65: #{bottleneck_resnet.9} parent=63 // pred_check
        %p1395 = pneg %p236
      $region66: #{bottleneck_resnet.9} parent=63 // pred_check_branch
        %1397 = sbr.rel (%p1395) target = $region68
      $region67: #{bottleneck_resnet.9} parent=63 // pred_region
        %p1398 = scmp.lt.s32.totalorder %s24, 1
        %s1399 = scalar_select %p1398, %s24, 1
        %s1400 = smul.addr %s1399, 2
        %s1401 = smul.addr %s1400, 4
        %s1402 = scalar_lea.vmem %s7, %s1401
      $region68: #{bottleneck_resnet.9} parent=63 // pred_fallthru
        _
    $region64: #{bottleneck_resnet.9} parent=5 // pred_fallthru
      _
  $region6: #{bottleneck_resnet.9} parent=0 // loop_footer
    %s17 = sadd.s32 1, %s13
  $region7: #{bottleneck_resnet.9} parent=0 // loop_footer_branch
    %12 = sbr.rel target = $region3
  $region8: #{bottleneck_resnet.9} parent=0 // loop_exit
    _

</llo_original>
